<compile_context>
chip_gen: v7x
topology: tpu7x:2x2x1
jax: 0.10.0
libtpu: 0.0.40
codegen_flags: <defaults>
</compile_context>

<pallas_src>
import math

import jax
import jax.numpy as jnp
import numpy as np
from jax.experimental import pallas as pl
from jax.experimental.pallas import tpu as pltpu


# order of the (already fused / pre-cast) parameters handed to the kernel
PARAM_ORDER = [
    "w_kv", "b_kv",
    "w_sp", "b_sp",
    "w_q", "b_q", "w_o", "b_o",
    "hmask", "hmask_t",
    "g1", "be1", "w1", "b1", "w2", "b2", "g2", "be2",
    "w_out", "b_out",
]


def stf_kernel(temp_ref, sp_ref,
               w_kv, b_kv, w_sp, b_sp,
               w_q, b_q, w_o, b_o,
               hmask, hmask_t,
               g1, be1, w1, b1, w2, b2, g2, be2,
               w_out, b_out,
               out_ref):
    f32 = jnp.float32
    bf16 = jnp.bfloat16

    T, TN, C_t = temp_ref.shape
    C_s = sp_ref.shape[1]
    nh = hmask.shape[1]
    hd = C_s // nh
    scale = 1.0 / math.sqrt(hd)

    # ---- spatial path: spatial_proj -> depthwise 1x1 -> pointwise 1x1, fused
    #      into one affine map at trace time (w_sp / b_sp already fused).
    sp = jnp.dot(sp_ref[...], w_sp[...], preferred_element_type=f32) + b_sp[...]   # (TN, C_s)

    # query projection of the spatial features
    q = jnp.dot(sp.astype(bf16), w_q[...], preferred_element_type=f32) + b_q[...]  # (TN, C_s)

    # ---- temporal path: temporal_proj + K/V projection fused into one weight,
    #      ALL T frames stacked into a single (T*TN, C_t) x (C_t, 2*C_s) matmul.
    tmp = temp_ref[...].reshape(T * TN, C_t)                           # leading-dim collapse
    kv = jnp.dot(tmp, w_kv[...], preferred_element_type=f32)           # (T*TN, 2*C_s)
    kv = kv.reshape(T, TN, 2 * C_s) + b_kv[...]                        # per-frame bias (incl. PE)
    k = kv[:, :, :C_s]                                                 # (T, TN, C_s)
    v = kv[:, :, C_s:]                                                 # (T, TN, C_s)

    # ---- multi-head cross attention: 1 query token per pixel over T key tokens.
    # per-head dot products via a head-assignment matmul, stacked over frames.
    qk = (q[None, :, :] * k).reshape(T * TN, C_s)                      # (T*TN, C_s)
    s = (jnp.dot(qk, hmask[...], preferred_element_type=f32)
         * scale).reshape(T, TN, nh)                                   # (T, TN, nh)

    # softmax over the (small, static) T frame axis — f32
    m = s[0]
    for t in range(1, T):
        m = jnp.maximum(m, s[t])
    e = jnp.exp(s - m[None])
    denom = e[0]
    for t in range(1, T):
        denom = denom + e[t]
    inv = pl.reciprocal(denom, approx=True)                            # EUP slot
    p = e * inv[None]                                                  # (T, TN, nh)

    # broadcast per-head probs back to channels with one stacked matmul
    p_c = jnp.dot(p.reshape(T * TN, nh), hmask_t[...],
                  preferred_element_type=f32).reshape(T, TN, C_s)
    ctx = p_c[0] * v[0]
    for t in range(1, T):
        ctx = ctx + p_c[t] * v[t]                                      # (TN, C_s)

    attn_out = jnp.dot(ctx.astype(bf16), w_o[...],
                       preferred_element_type=f32) + b_o[...]

    # ---- residual + LayerNorm 1 (f32)
    x = attn_out + sp
    mu = jnp.mean(x, axis=-1, keepdims=True)
    var = jnp.mean((x - mu) * (x - mu), axis=-1, keepdims=True)
    x1 = (x - mu) * jax.lax.rsqrt(var + 1e-5) * g1[...] + be1[...]

    # ---- FFN (Linear -> ReLU -> Linear) + residual + LayerNorm 2
    h = jnp.maximum(jnp.dot(x1.astype(bf16), w1[...],
                            preferred_element_type=f32) + b1[...], 0.0)
    f = jnp.dot(h.astype(bf16), w2[...], preferred_element_type=f32) + b2[...]
    y = f + x1
    mu2 = jnp.mean(y, axis=-1, keepdims=True)
    var2 = jnp.mean((y - mu2) * (y - mu2), axis=-1, keepdims=True)
    y2 = (y - mu2) * jax.lax.rsqrt(var2 + 1e-5) * g2[...] + be2[...]

    # ---- out_proj (1x1 conv per pixel) — lane-dense (tile_n, C_s) store
    out_ref[...] = (jnp.dot(y2.astype(bf16), w_out[...],
                            preferred_element_type=f32) + b_out[...]).astype(out_ref.dtype)


def spatio_temporal_fusion(temporal, spatial, params, *, tile_n=256):
    T, C_t, H, W = temporal.shape
    C_s = spatial.shape[1]
    HW = H * W
    assert HW % tile_n == 0 and tile_n % 16 == 0

    f32, bf16 = jnp.float32, jnp.bfloat16
    P = params

    # ---- trace-time weight fusion (pure affine algebra; no semantic change) ----
    # spatial_proj -> depthwise(per-channel scale) -> pointwise  == one affine map
    w_sp_f = (P["w_sp"] * P["dw"]) @ P["w_pw"]
    b_sp_f = (P["b_sp"] * P["dw"]) @ P["w_pw"] + P["b_pw"]
    # temporal_proj folded into K / V projection weights; the positional encoding
    # stays as a per-frame bias:  (b_tp + pe[t]) @ w_k + b_k   etc.
    w_kv = jnp.concatenate([P["w_tp"] @ P["w_k"], P["w_tp"] @ P["w_v"]], axis=1)   # (C_t, 2C_s)
    ft_bias = P["b_tp"] + P["pe"]                                                   # (T, C_s)
    b_kv = jnp.concatenate([ft_bias @ P["w_k"] + P["b_k"],
                            ft_bias @ P["w_v"] + P["b_v"]], axis=1)[:, None, :]     # (T,1,2C_s)

    kparams = {
        "w_kv": w_kv.astype(bf16), "b_kv": b_kv.astype(f32),
        "w_sp": w_sp_f.astype(bf16), "b_sp": b_sp_f.astype(f32),
        "w_q": P["w_q"].astype(bf16), "b_q": P["b_q"].astype(f32),
        "w_o": P["w_o"].astype(bf16), "b_o": P["b_o"].astype(f32),
        "hmask": P["hmask"].astype(f32), "hmask_t": P["hmask_t"].astype(f32),
        "g1": P["g1"].astype(f32), "be1": P["be1"].astype(f32),
        "w1": P["w1"].astype(bf16), "b1": P["b1"].astype(f32),
        "w2": P["w2"].astype(bf16), "b2": P["b2"].astype(f32),
        "g2": P["g2"].astype(f32), "be2": P["be2"].astype(f32),
        "w_out": P["w_out"].astype(bf16), "b_out": P["b_out"].astype(f32),
    }

    # NCHW -> channels-last, lane-dense layouts; bf16 activations for the MXU
    temporal_f = jnp.transpose(temporal, (0, 2, 3, 1)).reshape(T, HW, C_t).astype(bf16)
    spatial_f = jnp.transpose(spatial[0], (1, 2, 0)).reshape(HW, C_s).astype(bf16)

    def full_spec(shape):
        n = len(shape)
        return pl.BlockSpec(tuple(shape), lambda i, _n=n: (0,) * _n)

    in_specs = [
        pl.BlockSpec((T, tile_n, C_t), lambda i: (0, i, 0)),   # temporal, pixel-tiled
        pl.BlockSpec((tile_n, C_s), lambda i: (i, 0)),         # spatial,  pixel-tiled
    ]
    in_specs += [full_spec(kparams[k].shape) for k in PARAM_ORDER]

    out = pl.pallas_call(
        stf_kernel,
        out_shape=jax.ShapeDtypeStruct((HW, C_s), jnp.float32),
        grid=(HW // tile_n,),
        in_specs=in_specs,
        out_specs=pl.BlockSpec((tile_n, C_s), lambda i: (i, 0)),
        compiler_params=pltpu.CompilerParams(dimension_semantics=("parallel",)),
    )(temporal_f, spatial_f, *[kparams[k] for k in PARAM_ORDER])

    # (HW, C_s) -> intended output layout [1, 1, C_s, H, W]
    return jnp.transpose(out.reshape(H, W, C_s), (2, 0, 1))[None, None]


# ---------------------------------------------------------------------------
# deterministic parameter init (synthetic weights; shapes follow the module)
# ---------------------------------------------------------------------------
def init_params(key, T, C_t, C_s, num_heads, max_len=5):
    assert T <= max_len
    keys = jax.random.split(key, 32)          # 25 draws needed; margin included
    ki = iter(keys)

    def w(shape, scale=0.05):
        return (scale * jax.random.normal(next(ki), shape)).astype(jnp.float32)

    params = {}
    # temporal_proj Conv2d(C_t->C_s, 1x1): stored as [in, out]
    params["w_tp"] = w((C_t, C_s))
    params["b_tp"] = w((1, C_s))
    # sinusoidal positional encoding (same formula as PositionalEncoding)
    position = np.arange(max_len)[:, None].astype(np.float32)
    div_term = np.exp(np.arange(0, C_s, 2).astype(np.float32) * (-math.log(10000.0) / C_s))
    pe = np.zeros((max_len, C_s), np.float32)
    pe[:, 0::2] = np.sin(position * div_term)
    pe[:, 1::2] = np.cos(position * div_term)
    params["pe"] = jnp.asarray(pe[:T])
    # spatial_proj Conv2d(C_s->C_s, 1x1)
    params["w_sp"] = w((C_s, C_s))
    params["b_sp"] = w((1, C_s))
    # DepthwiseSeparableConv1x1: depthwise (per-channel scale, no bias) + pointwise
    params["dw"] = w((1, C_s), scale=0.5) + 1.0
    params["w_pw"] = w((C_s, C_s))
    params["b_pw"] = w((1, C_s))
    # MultiheadAttention in/out projections
    params["w_q"] = w((C_s, C_s)); params["b_q"] = w((1, C_s))
    params["w_k"] = w((C_s, C_s)); params["b_k"] = w((1, C_s))
    params["w_v"] = w((C_s, C_s)); params["b_v"] = w((1, C_s))
    params["w_o"] = w((C_s, C_s)); params["b_o"] = w((1, C_s))
    # head assignment matrix (C_s, nh) and its transpose (contiguous heads)
    hd = C_s // num_heads
    hm = np.zeros((C_s, num_heads), np.float32)
    for h in range(num_heads):
        hm[h * hd:(h + 1) * hd, h] = 1.0
    params["hmask"] = jnp.asarray(hm)
    params["hmask_t"] = jnp.asarray(hm.T.copy())
    # LayerNorms
    params["g1"] = w((1, C_s), scale=0.1) + 1.0
    params["be1"] = w((1, C_s))
    params["g2"] = w((1, C_s), scale=0.1) + 1.0
    params["be2"] = w((1, C_s))
    # FFN
    params["w1"] = w((C_s, 4 * C_s)); params["b1"] = w((1, 4 * C_s))
    params["w2"] = w((4 * C_s, C_s)); params["b2"] = w((1, C_s))
    # out_proj Conv2d(C_s->C_s, 1x1)
    params["w_out"] = w((C_s, C_s)); params["b_out"] = w((1, C_s))
    return params


# ---------------------------------------------------------------------------
# pure-JAX f32 reference (unfused weights) for self-check of the Pallas kernel
# ---------------------------------------------------------------------------
def _ln(x, g, b, eps=1e-5):
    mu = jnp.mean(x, axis=-1, keepdims=True)
    var = jnp.mean((x - mu) ** 2, axis=-1, keepdims=True)
    return (x - mu) / jnp.sqrt(var + eps) * g + b


def reference(temporal, spatial, P, num_heads):
    T, C_t, H, W = temporal.shape
    C_s = spatial.shape[1]
    HW = H * W
    temp = jnp.einsum("tchw,cd->thwd", temporal, P["w_tp"]) + P["b_tp"]
    temp = jnp.transpose(temp, (1, 2, 0, 3)).reshape(HW, T, C_s) + P["pe"][None]
    sp = jnp.einsum("chw,cd->hwd", spatial[0], P["w_sp"]).reshape(HW, C_s) + P["b_sp"]
    sp = sp * P["dw"]
    sp = sp @ P["w_pw"] + P["b_pw"]
    q = sp @ P["w_q"] + P["b_q"]
    k = temp @ P["w_k"] + P["b_k"]
    v = temp @ P["w_v"] + P["b_v"]
    hd = C_s // num_heads
    qh = q.reshape(HW, num_heads, hd)
    kh = k.reshape(HW, T, num_heads, hd)
    vh = v.reshape(HW, T, num_heads, hd)
    s = jnp.einsum("nhd,nthd->nht", qh, kh) / math.sqrt(hd)
    p = jax.nn.softmax(s, axis=-1)
    ctx = jnp.einsum("nht,nthd->nhd", p, vh).reshape(HW, C_s)
    attn_out = ctx @ P["w_o"] + P["b_o"]
    x1 = _ln(attn_out + sp, P["g1"], P["be1"])
    f = jnp.maximum(x1 @ P["w1"] + P["b1"], 0.0) @ P["w2"] + P["b2"]
    y2 = _ln(f + x1, P["g2"], P["be2"])
    out = y2 @ P["w_out"] + P["b_out"]                      # (HW, C_s)
    return jnp.transpose(out.reshape(H, W, C_s), (2, 0, 1))[None, None]


if __name__ == "__main__":
    # small-but-dense shapes consistent with the module's conventions
    # (C_t == C_s == 128 keeps every input / output / intermediate 128-lane dense)
    T, C_T, C_S, H, W, NUM_HEADS = 4, 128, 128, 32, 32, 8

    key = jax.random.PRNGKey(0)
    k_t, k_s, k_p = jax.random.split(key, 3)
    temporal = jax.random.normal(k_t, (T, C_T, H, W), jnp.float32)
    spatial = jax.random.normal(k_s, (1, C_S, H, W), jnp.float32)
    params = init_params(k_p, T, C_T, C_S, NUM_HEADS)

    out = spatio_temporal_fusion(temporal, spatial, params, tile_n=256)  # grid = 4 steps
    out = jax.block_until_ready(out)

    ref = reference(temporal, spatial, params, NUM_HEADS)
    # bf16 MXU inputs + approx reciprocal vs. pure-f32 reference -> relaxed tolerance
    np.testing.assert_allclose(np.asarray(out), np.asarray(ref), rtol=3e-2, atol=3e-2)

    print("KERNEL_OK")
</pallas_src>

<mosaic_0001>
module attributes {stable_mosaic.version = 11 : i64} {
  func.func @stf_kernel(%arg0: i32, %arg1: memref<4x256x128xbf16, #tpu.memory_space<vmem>>, %arg2: memref<256x128xbf16, #tpu.memory_space<vmem>>, %arg3: memref<128x256xbf16, #tpu.memory_space<vmem>>, %arg4: memref<4x1x256xf32, #tpu.memory_space<vmem>>, %arg5: memref<128x128xbf16, #tpu.memory_space<vmem>>, %arg6: memref<1x128xf32, #tpu.memory_space<vmem>>, %arg7: memref<128x128xbf16, #tpu.memory_space<vmem>>, %arg8: memref<1x128xf32, #tpu.memory_space<vmem>>, %arg9: memref<128x128xbf16, #tpu.memory_space<vmem>>, %arg10: memref<1x128xf32, #tpu.memory_space<vmem>>, %arg11: memref<128x8xf32, #tpu.memory_space<vmem>>, %arg12: memref<8x128xf32, #tpu.memory_space<vmem>>, %arg13: memref<1x128xf32, #tpu.memory_space<vmem>>, %arg14: memref<1x128xf32, #tpu.memory_space<vmem>>, %arg15: memref<128x512xbf16, #tpu.memory_space<vmem>>, %arg16: memref<1x512xf32, #tpu.memory_space<vmem>>, %arg17: memref<512x128xbf16, #tpu.memory_space<vmem>>, %arg18: memref<1x128xf32, #tpu.memory_space<vmem>>, %arg19: memref<1x128xf32, #tpu.memory_space<vmem>>, %arg20: memref<1x128xf32, #tpu.memory_space<vmem>>, %arg21: memref<128x128xbf16, #tpu.memory_space<vmem>>, %arg22: memref<1x128xf32, #tpu.memory_space<vmem>>, %arg23: memref<256x128xf32, #tpu.memory_space<vmem>>) attributes {dimension_semantics = [#tpu.dimension_semantics<parallel>], iteration_bounds = array<i64: 4>, scalar_prefetch = 0 : i64, scratch_operands = 0 : i64, tpu.core_type = #tpu.core_type<tc>, window_params = [{transform_indices = @transform_0, window_bounds = array<i64: 4, 256, 128>}, {transform_indices = @transform_1, window_bounds = array<i64: 256, 128>}, {pipeline_mode = #tpu.pipeline_mode<synchronous>, transform_indices = @transform_2, window_bounds = array<i64: 128, 256>}, {pipeline_mode = #tpu.pipeline_mode<synchronous>, transform_indices = @transform_3, window_bounds = array<i64: 4, 1, 256>}, {pipeline_mode = #tpu.pipeline_mode<synchronous>, transform_indices = @transform_4, window_bounds = array<i64: 128, 128>}, {pipeline_mode = #tpu.pipeline_mode<synchronous>, transform_indices = @transform_5, window_bounds = array<i64: 1, 128>}, {pipeline_mode = #tpu.pipeline_mode<synchronous>, transform_indices = @transform_6, window_bounds = array<i64: 128, 128>}, {pipeline_mode = #tpu.pipeline_mode<synchronous>, transform_indices = @transform_7, window_bounds = array<i64: 1, 128>}, {pipeline_mode = #tpu.pipeline_mode<synchronous>, transform_indices = @transform_8, window_bounds = array<i64: 128, 128>}, {pipeline_mode = #tpu.pipeline_mode<synchronous>, transform_indices = @transform_9, window_bounds = array<i64: 1, 128>}, {pipeline_mode = #tpu.pipeline_mode<synchronous>, transform_indices = @transform_10, window_bounds = array<i64: 128, 8>}, {pipeline_mode = #tpu.pipeline_mode<synchronous>, transform_indices = @transform_11, window_bounds = array<i64: 8, 128>}, {pipeline_mode = #tpu.pipeline_mode<synchronous>, transform_indices = @transform_12, window_bounds = array<i64: 1, 128>}, {pipeline_mode = #tpu.pipeline_mode<synchronous>, transform_indices = @transform_13, window_bounds = array<i64: 1, 128>}, {pipeline_mode = #tpu.pipeline_mode<synchronous>, transform_indices = @transform_14, window_bounds = array<i64: 128, 512>}, {pipeline_mode = #tpu.pipeline_mode<synchronous>, transform_indices = @transform_15, window_bounds = array<i64: 1, 512>}, {pipeline_mode = #tpu.pipeline_mode<synchronous>, transform_indices = @transform_16, window_bounds = array<i64: 512, 128>}, {pipeline_mode = #tpu.pipeline_mode<synchronous>, transform_indices = @transform_17, window_bounds = array<i64: 1, 128>}, {pipeline_mode = #tpu.pipeline_mode<synchronous>, transform_indices = @transform_18, window_bounds = array<i64: 1, 128>}, {pipeline_mode = #tpu.pipeline_mode<synchronous>, transform_indices = @transform_19, window_bounds = array<i64: 1, 128>}, {pipeline_mode = #tpu.pipeline_mode<synchronous>, transform_indices = @transform_20, window_bounds = array<i64: 128, 128>}, {pipeline_mode = #tpu.pipeline_mode<synchronous>, transform_indices = @transform_21, window_bounds = array<i64: 1, 128>}, {transform_indices = @transform_22, window_bounds = array<i64: 256, 128>}]} {
    %c0 = arith.constant 0 : index
    %c0_0 = arith.constant 0 : index
    %0 = vector.load %arg2[%c0, %c0_0] : memref<256x128xbf16, #tpu.memory_space<vmem>>, vector<256x128xbf16>
    %c0_1 = arith.constant 0 : index
    %c0_2 = arith.constant 0 : index
    %1 = vector.load %arg5[%c0_1, %c0_2] : memref<128x128xbf16, #tpu.memory_space<vmem>>, vector<128x128xbf16>
    %cst = arith.constant dense<0.000000e+00> : vector<256x128xf32>
    %2 = tpu.matmul %0, %1, %cst {dimension_numbers = #tpu.dot_dimension_numbers<[1], [0], [0], [1], [0, 0, 1, 1], [], []>} : vector<256x128xbf16>, vector<128x128xbf16>, vector<256x128xf32> -> vector<256x128xf32>
    %c0_3 = arith.constant 0 : index
    %c0_4 = arith.constant 0 : index
    %3 = vector.load %arg6[%c0_3, %c0_4] : memref<1x128xf32, #tpu.memory_space<vmem>>, vector<1x128xf32>
    %4 = vector.broadcast %3 : vector<1x128xf32> to vector<256x128xf32>
    %5 = arith.addf %2, %4 : vector<256x128xf32>
    %6 = arith.truncf %5 : vector<256x128xf32> to vector<256x128xbf16>
    %c0_5 = arith.constant 0 : index
    %c0_6 = arith.constant 0 : index
    %7 = vector.load %arg7[%c0_5, %c0_6] : memref<128x128xbf16, #tpu.memory_space<vmem>>, vector<128x128xbf16>
    %cst_7 = arith.constant dense<0.000000e+00> : vector<256x128xf32>
    %8 = tpu.matmul %6, %7, %cst_7 {dimension_numbers = #tpu.dot_dimension_numbers<[1], [0], [0], [1], [0, 0, 1, 1], [], []>} : vector<256x128xbf16>, vector<128x128xbf16>, vector<256x128xf32> -> vector<256x128xf32>
    %c0_8 = arith.constant 0 : index
    %c0_9 = arith.constant 0 : index
    %9 = vector.load %arg8[%c0_8, %c0_9] : memref<1x128xf32, #tpu.memory_space<vmem>>, vector<1x128xf32>
    %10 = vector.broadcast %9 : vector<1x128xf32> to vector<256x128xf32>
    %11 = arith.addf %8, %10 : vector<256x128xf32>
    %c0_10 = arith.constant 0 : index
    %c0_11 = arith.constant 0 : index
    %c0_12 = arith.constant 0 : index
    %12 = vector.load %arg1[%c0_10, %c0_11, %c0_12] : memref<4x256x128xbf16, #tpu.memory_space<vmem>>, vector<4x256x128xbf16>
    %13 = vector.shape_cast %12 : vector<4x256x128xbf16> to vector<1024x128xbf16>
    %c0_13 = arith.constant 0 : index
    %c0_14 = arith.constant 0 : index
    %14 = vector.load %arg3[%c0_13, %c0_14] : memref<128x256xbf16, #tpu.memory_space<vmem>>, vector<128x256xbf16>
    %cst_15 = arith.constant dense<0.000000e+00> : vector<1024x256xf32>
    %15 = tpu.matmul %13, %14, %cst_15 {dimension_numbers = #tpu.dot_dimension_numbers<[1], [0], [0], [1], [0, 0, 1, 1], [], []>} : vector<1024x128xbf16>, vector<128x256xbf16>, vector<1024x256xf32> -> vector<1024x256xf32>
    %16 = vector.shape_cast %15 : vector<1024x256xf32> to vector<4x256x256xf32>
    %c0_16 = arith.constant 0 : index
    %c0_17 = arith.constant 0 : index
    %c0_18 = arith.constant 0 : index
    %17 = vector.load %arg4[%c0_16, %c0_17, %c0_18] : memref<4x1x256xf32, #tpu.memory_space<vmem>>, vector<4x1x256xf32>
    %18 = vector.broadcast %17 : vector<4x1x256xf32> to vector<4x256x256xf32>
    %19 = arith.addf %16, %18 : vector<4x256x256xf32>
    %20 = vector.extract_strided_slice %19 {offsets = [0, 0, 0], sizes = [4, 256, 128], strides = [1, 1, 1]} : vector<4x256x256xf32> to vector<4x256x128xf32>
    %21 = vector.extract_strided_slice %19 {offsets = [0, 0, 128], sizes = [4, 256, 128], strides = [1, 1, 1]} : vector<4x256x256xf32> to vector<4x256x128xf32>
    %22 = vector.shape_cast %11 : vector<256x128xf32> to vector<1x256x128xf32>
    %23 = vector.broadcast %22 : vector<1x256x128xf32> to vector<4x256x128xf32>
    %24 = arith.mulf %23, %20 : vector<4x256x128xf32>
    %25 = vector.shape_cast %24 : vector<4x256x128xf32> to vector<1024x128xf32>
    %c0_19 = arith.constant 0 : index
    %c0_20 = arith.constant 0 : index
    %26 = vector.load %arg11[%c0_19, %c0_20] : memref<128x8xf32, #tpu.memory_space<vmem>>, vector<128x8xf32>
    %cst_21 = arith.constant dense<0.000000e+00> : vector<1024x8xf32>
    %27 = tpu.matmul %25, %26, %cst_21 {dimension_numbers = #tpu.dot_dimension_numbers<[1], [0], [0], [1], [0, 0, 1, 1], [], []>} : vector<1024x128xf32>, vector<128x8xf32>, vector<1024x8xf32> -> vector<1024x8xf32>
    %cst_22 = arith.constant 2.500000e-01 : f32
    %28 = vector.broadcast %cst_22 : f32 to vector<1024x8xf32>
    %29 = arith.mulf %27, %28 : vector<1024x8xf32>
    %30 = vector.shape_cast %29 : vector<1024x8xf32> to vector<4x256x8xf32>
    %31 = vector.extract_strided_slice %30 {offsets = [0, 0, 0], sizes = [1, 256, 8], strides = [1, 1, 1]} : vector<4x256x8xf32> to vector<1x256x8xf32>
    %32 = vector.shape_cast %31 : vector<1x256x8xf32> to vector<256x8xf32>
    %33 = vector.extract_strided_slice %30 {offsets = [1, 0, 0], sizes = [1, 256, 8], strides = [1, 1, 1]} : vector<4x256x8xf32> to vector<1x256x8xf32>
    %34 = vector.shape_cast %33 : vector<1x256x8xf32> to vector<256x8xf32>
    %35 = arith.maximumf %32, %34 : vector<256x8xf32>
    %36 = vector.extract_strided_slice %30 {offsets = [2, 0, 0], sizes = [1, 256, 8], strides = [1, 1, 1]} : vector<4x256x8xf32> to vector<1x256x8xf32>
    %37 = vector.shape_cast %36 : vector<1x256x8xf32> to vector<256x8xf32>
    %38 = arith.maximumf %35, %37 : vector<256x8xf32>
    %39 = vector.extract_strided_slice %30 {offsets = [3, 0, 0], sizes = [1, 256, 8], strides = [1, 1, 1]} : vector<4x256x8xf32> to vector<1x256x8xf32>
    %40 = vector.shape_cast %39 : vector<1x256x8xf32> to vector<256x8xf32>
    %41 = arith.maximumf %38, %40 : vector<256x8xf32>
    %42 = vector.shape_cast %41 : vector<256x8xf32> to vector<1x256x8xf32>
    %43 = vector.broadcast %42 : vector<1x256x8xf32> to vector<4x256x8xf32>
    %44 = arith.subf %30, %43 : vector<4x256x8xf32>
    %45 = math.exp %44 : vector<4x256x8xf32>
    %46 = vector.extract_strided_slice %45 {offsets = [0, 0, 0], sizes = [1, 256, 8], strides = [1, 1, 1]} : vector<4x256x8xf32> to vector<1x256x8xf32>
    %47 = vector.shape_cast %46 : vector<1x256x8xf32> to vector<256x8xf32>
    %48 = vector.extract_strided_slice %45 {offsets = [1, 0, 0], sizes = [1, 256, 8], strides = [1, 1, 1]} : vector<4x256x8xf32> to vector<1x256x8xf32>
    %49 = vector.shape_cast %48 : vector<1x256x8xf32> to vector<256x8xf32>
    %50 = arith.addf %47, %49 : vector<256x8xf32>
    %51 = vector.extract_strided_slice %45 {offsets = [2, 0, 0], sizes = [1, 256, 8], strides = [1, 1, 1]} : vector<4x256x8xf32> to vector<1x256x8xf32>
    %52 = vector.shape_cast %51 : vector<1x256x8xf32> to vector<256x8xf32>
    %53 = arith.addf %50, %52 : vector<256x8xf32>
    %54 = vector.extract_strided_slice %45 {offsets = [3, 0, 0], sizes = [1, 256, 8], strides = [1, 1, 1]} : vector<4x256x8xf32> to vector<1x256x8xf32>
    %55 = vector.shape_cast %54 : vector<1x256x8xf32> to vector<256x8xf32>
    %56 = arith.addf %53, %55 : vector<256x8xf32>
    %57 = tpu.reciprocal %56 {approx = true} : vector<256x8xf32> -> vector<256x8xf32>
    %58 = vector.shape_cast %57 : vector<256x8xf32> to vector<1x256x8xf32>
    %59 = vector.broadcast %58 : vector<1x256x8xf32> to vector<4x256x8xf32>
    %60 = arith.mulf %45, %59 : vector<4x256x8xf32>
    %61 = vector.shape_cast %60 : vector<4x256x8xf32> to vector<1024x8xf32>
    %c0_23 = arith.constant 0 : index
    %c0_24 = arith.constant 0 : index
    %62 = vector.load %arg12[%c0_23, %c0_24] : memref<8x128xf32, #tpu.memory_space<vmem>>, vector<8x128xf32>
    %cst_25 = arith.constant dense<0.000000e+00> : vector<1024x128xf32>
    %63 = tpu.matmul %61, %62, %cst_25 {dimension_numbers = #tpu.dot_dimension_numbers<[1], [0], [0], [1], [0, 0, 1, 1], [], []>} : vector<1024x8xf32>, vector<8x128xf32>, vector<1024x128xf32> -> vector<1024x128xf32>
    %64 = vector.shape_cast %63 : vector<1024x128xf32> to vector<4x256x128xf32>
    %65 = vector.extract_strided_slice %64 {offsets = [0, 0, 0], sizes = [1, 256, 128], strides = [1, 1, 1]} : vector<4x256x128xf32> to vector<1x256x128xf32>
    %66 = vector.shape_cast %65 : vector<1x256x128xf32> to vector<256x128xf32>
    %67 = vector.extract_strided_slice %21 {offsets = [0, 0, 0], sizes = [1, 256, 128], strides = [1, 1, 1]} : vector<4x256x128xf32> to vector<1x256x128xf32>
    %68 = vector.shape_cast %67 : vector<1x256x128xf32> to vector<256x128xf32>
    %69 = arith.mulf %66, %68 : vector<256x128xf32>
    %70 = vector.extract_strided_slice %64 {offsets = [1, 0, 0], sizes = [1, 256, 128], strides = [1, 1, 1]} : vector<4x256x128xf32> to vector<1x256x128xf32>
    %71 = vector.shape_cast %70 : vector<1x256x128xf32> to vector<256x128xf32>
    %72 = vector.extract_strided_slice %21 {offsets = [1, 0, 0], sizes = [1, 256, 128], strides = [1, 1, 1]} : vector<4x256x128xf32> to vector<1x256x128xf32>
    %73 = vector.shape_cast %72 : vector<1x256x128xf32> to vector<256x128xf32>
    %74 = arith.mulf %71, %73 : vector<256x128xf32>
    %75 = arith.addf %69, %74 : vector<256x128xf32>
    %76 = vector.extract_strided_slice %64 {offsets = [2, 0, 0], sizes = [1, 256, 128], strides = [1, 1, 1]} : vector<4x256x128xf32> to vector<1x256x128xf32>
    %77 = vector.shape_cast %76 : vector<1x256x128xf32> to vector<256x128xf32>
    %78 = vector.extract_strided_slice %21 {offsets = [2, 0, 0], sizes = [1, 256, 128], strides = [1, 1, 1]} : vector<4x256x128xf32> to vector<1x256x128xf32>
    %79 = vector.shape_cast %78 : vector<1x256x128xf32> to vector<256x128xf32>
    %80 = arith.mulf %77, %79 : vector<256x128xf32>
    %81 = arith.addf %75, %80 : vector<256x128xf32>
    %82 = vector.extract_strided_slice %64 {offsets = [3, 0, 0], sizes = [1, 256, 128], strides = [1, 1, 1]} : vector<4x256x128xf32> to vector<1x256x128xf32>
    %83 = vector.shape_cast %82 : vector<1x256x128xf32> to vector<256x128xf32>
    %84 = vector.extract_strided_slice %21 {offsets = [3, 0, 0], sizes = [1, 256, 128], strides = [1, 1, 1]} : vector<4x256x128xf32> to vector<1x256x128xf32>
    %85 = vector.shape_cast %84 : vector<1x256x128xf32> to vector<256x128xf32>
    %86 = arith.mulf %83, %85 : vector<256x128xf32>
    %87 = arith.addf %81, %86 : vector<256x128xf32>
    %88 = arith.truncf %87 : vector<256x128xf32> to vector<256x128xbf16>
    %c0_26 = arith.constant 0 : index
    %c0_27 = arith.constant 0 : index
    %89 = vector.load %arg9[%c0_26, %c0_27] : memref<128x128xbf16, #tpu.memory_space<vmem>>, vector<128x128xbf16>
    %cst_28 = arith.constant dense<0.000000e+00> : vector<256x128xf32>
    %90 = tpu.matmul %88, %89, %cst_28 {dimension_numbers = #tpu.dot_dimension_numbers<[1], [0], [0], [1], [0, 0, 1, 1], [], []>} : vector<256x128xbf16>, vector<128x128xbf16>, vector<256x128xf32> -> vector<256x128xf32>
    %c0_29 = arith.constant 0 : index
    %c0_30 = arith.constant 0 : index
    %91 = vector.load %arg10[%c0_29, %c0_30] : memref<1x128xf32, #tpu.memory_space<vmem>>, vector<1x128xf32>
    %92 = vector.broadcast %91 : vector<1x128xf32> to vector<256x128xf32>
    %93 = arith.addf %90, %92 : vector<256x128xf32>
    %94 = arith.addf %93, %5 : vector<256x128xf32>
    %cst_31 = arith.constant dense<0.000000e+00> : vector<256xf32>
    %95 = vector.multi_reduction <add>, %94, %cst_31 [1] : vector<256x128xf32> to vector<256xf32>
    %96 = vector.shape_cast %95 : vector<256xf32> to vector<256x1xf32>
    %cst_32 = arith.constant 1.280000e+02 : f32
    %97 = vector.broadcast %cst_32 : f32 to vector<256x1xf32>
    %98 = arith.divf %96, %97 : vector<256x1xf32>
    %99 = vector.broadcast %98 : vector<256x1xf32> to vector<256x128xf32>
    %100 = arith.subf %94, %99 : vector<256x128xf32>
    %101 = vector.broadcast %98 : vector<256x1xf32> to vector<256x128xf32>
    %102 = arith.subf %94, %101 : vector<256x128xf32>
    %103 = arith.mulf %100, %102 : vector<256x128xf32>
    %cst_33 = arith.constant dense<0.000000e+00> : vector<256xf32>
    %104 = vector.multi_reduction <add>, %103, %cst_33 [1] : vector<256x128xf32> to vector<256xf32>
    %105 = vector.shape_cast %104 : vector<256xf32> to vector<256x1xf32>
    %cst_34 = arith.constant 1.280000e+02 : f32
    %106 = vector.broadcast %cst_34 : f32 to vector<256x1xf32>
    %107 = arith.divf %105, %106 : vector<256x1xf32>
    %108 = vector.broadcast %98 : vector<256x1xf32> to vector<256x128xf32>
    %109 = arith.subf %94, %108 : vector<256x128xf32>
    %cst_35 = arith.constant 9.99999974E-6 : f32
    %110 = vector.broadcast %cst_35 : f32 to vector<256x1xf32>
    %111 = arith.addf %107, %110 : vector<256x1xf32>
    %112 = math.rsqrt %111 : vector<256x1xf32>
    %113 = vector.broadcast %112 : vector<256x1xf32> to vector<256x128xf32>
    %114 = arith.mulf %109, %113 : vector<256x128xf32>
    %c0_36 = arith.constant 0 : index
    %c0_37 = arith.constant 0 : index
    %115 = vector.load %arg13[%c0_36, %c0_37] : memref<1x128xf32, #tpu.memory_space<vmem>>, vector<1x128xf32>
    %116 = vector.broadcast %115 : vector<1x128xf32> to vector<256x128xf32>
    %117 = arith.mulf %114, %116 : vector<256x128xf32>
    %c0_38 = arith.constant 0 : index
    %c0_39 = arith.constant 0 : index
    %118 = vector.load %arg14[%c0_38, %c0_39] : memref<1x128xf32, #tpu.memory_space<vmem>>, vector<1x128xf32>
    %119 = vector.broadcast %118 : vector<1x128xf32> to vector<256x128xf32>
    %120 = arith.addf %117, %119 : vector<256x128xf32>
    %121 = arith.truncf %120 : vector<256x128xf32> to vector<256x128xbf16>
    %c0_40 = arith.constant 0 : index
    %c0_41 = arith.constant 0 : index
    %122 = vector.load %arg15[%c0_40, %c0_41] : memref<128x512xbf16, #tpu.memory_space<vmem>>, vector<128x512xbf16>
    %cst_42 = arith.constant dense<0.000000e+00> : vector<256x512xf32>
    %123 = tpu.matmul %121, %122, %cst_42 {dimension_numbers = #tpu.dot_dimension_numbers<[1], [0], [0], [1], [0, 0, 1, 1], [], []>} : vector<256x128xbf16>, vector<128x512xbf16>, vector<256x512xf32> -> vector<256x512xf32>
    %c0_43 = arith.constant 0 : index
    %c0_44 = arith.constant 0 : index
    %124 = vector.load %arg16[%c0_43, %c0_44] : memref<1x512xf32, #tpu.memory_space<vmem>>, vector<1x512xf32>
    %125 = vector.broadcast %124 : vector<1x512xf32> to vector<256x512xf32>
    %126 = arith.addf %123, %125 : vector<256x512xf32>
    %cst_45 = arith.constant 0.000000e+00 : f32
    %127 = vector.broadcast %cst_45 : f32 to vector<256x512xf32>
    %128 = arith.maximumf %126, %127 : vector<256x512xf32>
    %129 = arith.truncf %128 : vector<256x512xf32> to vector<256x512xbf16>
    %c0_46 = arith.constant 0 : index
    %c0_47 = arith.constant 0 : index
    %130 = vector.load %arg17[%c0_46, %c0_47] : memref<512x128xbf16, #tpu.memory_space<vmem>>, vector<512x128xbf16>
    %cst_48 = arith.constant dense<0.000000e+00> : vector<256x128xf32>
    %131 = tpu.matmul %129, %130, %cst_48 {dimension_numbers = #tpu.dot_dimension_numbers<[1], [0], [0], [1], [0, 0, 1, 1], [], []>} : vector<256x512xbf16>, vector<512x128xbf16>, vector<256x128xf32> -> vector<256x128xf32>
    %c0_49 = arith.constant 0 : index
    %c0_50 = arith.constant 0 : index
    %132 = vector.load %arg18[%c0_49, %c0_50] : memref<1x128xf32, #tpu.memory_space<vmem>>, vector<1x128xf32>
    %133 = vector.broadcast %132 : vector<1x128xf32> to vector<256x128xf32>
    %134 = arith.addf %131, %133 : vector<256x128xf32>
    %135 = arith.addf %134, %120 : vector<256x128xf32>
    %cst_51 = arith.constant dense<0.000000e+00> : vector<256xf32>
    %136 = vector.multi_reduction <add>, %135, %cst_51 [1] : vector<256x128xf32> to vector<256xf32>
    %137 = vector.shape_cast %136 : vector<256xf32> to vector<256x1xf32>
    %cst_52 = arith.constant 1.280000e+02 : f32
    %138 = vector.broadcast %cst_52 : f32 to vector<256x1xf32>
    %139 = arith.divf %137, %138 : vector<256x1xf32>
    %140 = vector.broadcast %139 : vector<256x1xf32> to vector<256x128xf32>
    %141 = arith.subf %135, %140 : vector<256x128xf32>
    %142 = vector.broadcast %139 : vector<256x1xf32> to vector<256x128xf32>
    %143 = arith.subf %135, %142 : vector<256x128xf32>
    %144 = arith.mulf %141, %143 : vector<256x128xf32>
    %cst_53 = arith.constant dense<0.000000e+00> : vector<256xf32>
    %145 = vector.multi_reduction <add>, %144, %cst_53 [1] : vector<256x128xf32> to vector<256xf32>
    %146 = vector.shape_cast %145 : vector<256xf32> to vector<256x1xf32>
    %cst_54 = arith.constant 1.280000e+02 : f32
    %147 = vector.broadcast %cst_54 : f32 to vector<256x1xf32>
    %148 = arith.divf %146, %147 : vector<256x1xf32>
    %149 = vector.broadcast %139 : vector<256x1xf32> to vector<256x128xf32>
    %150 = arith.subf %135, %149 : vector<256x128xf32>
    %cst_55 = arith.constant 9.99999974E-6 : f32
    %151 = vector.broadcast %cst_55 : f32 to vector<256x1xf32>
    %152 = arith.addf %148, %151 : vector<256x1xf32>
    %153 = math.rsqrt %152 : vector<256x1xf32>
    %154 = vector.broadcast %153 : vector<256x1xf32> to vector<256x128xf32>
    %155 = arith.mulf %150, %154 : vector<256x128xf32>
    %c0_56 = arith.constant 0 : index
    %c0_57 = arith.constant 0 : index
    %156 = vector.load %arg19[%c0_56, %c0_57] : memref<1x128xf32, #tpu.memory_space<vmem>>, vector<1x128xf32>
    %157 = vector.broadcast %156 : vector<1x128xf32> to vector<256x128xf32>
    %158 = arith.mulf %155, %157 : vector<256x128xf32>
    %c0_58 = arith.constant 0 : index
    %c0_59 = arith.constant 0 : index
    %159 = vector.load %arg20[%c0_58, %c0_59] : memref<1x128xf32, #tpu.memory_space<vmem>>, vector<1x128xf32>
    %160 = vector.broadcast %159 : vector<1x128xf32> to vector<256x128xf32>
    %161 = arith.addf %158, %160 : vector<256x128xf32>
    %162 = arith.truncf %161 : vector<256x128xf32> to vector<256x128xbf16>
    %c0_60 = arith.constant 0 : index
    %c0_61 = arith.constant 0 : index
    %163 = vector.load %arg21[%c0_60, %c0_61] : memref<128x128xbf16, #tpu.memory_space<vmem>>, vector<128x128xbf16>
    %cst_62 = arith.constant dense<0.000000e+00> : vector<256x128xf32>
    %164 = tpu.matmul %162, %163, %cst_62 {dimension_numbers = #tpu.dot_dimension_numbers<[1], [0], [0], [1], [0, 0, 1, 1], [], []>} : vector<256x128xbf16>, vector<128x128xbf16>, vector<256x128xf32> -> vector<256x128xf32>
    %c0_63 = arith.constant 0 : index
    %c0_64 = arith.constant 0 : index
    %165 = vector.load %arg22[%c0_63, %c0_64] : memref<1x128xf32, #tpu.memory_space<vmem>>, vector<1x128xf32>
    %166 = vector.broadcast %165 : vector<1x128xf32> to vector<256x128xf32>
    %167 = arith.addf %164, %166 : vector<256x128xf32>
    %c0_65 = arith.constant 0 : index
    %c0_66 = arith.constant 0 : index
    %168 = vector.load %arg23[%c0_65, %c0_66] : memref<256x128xf32, #tpu.memory_space<vmem>>, vector<256x128xf32>
    tpu.vector_store %arg23[%c0_65, %c0_66], %167 {strides = array<i32>} : memref<256x128xf32, #tpu.memory_space<vmem>>, vector<256x128xf32>,
    return
  }
  func.func @transform_0(%arg0: i32) -> (i32, i32, i32) {
    %c0_i32 = arith.constant 0 : i32
    %c0_i32_0 = arith.constant 0 : i32
    %c0_i32_1 = arith.constant 0 : i32
    return %c0_i32, %arg0, %c0_i32_0 : i32, i32, i32
  }
  func.func @transform_1(%arg0: i32) -> (i32, i32) {
    %c0_i32 = arith.constant 0 : i32
    %c0_i32_0 = arith.constant 0 : i32
    return %arg0, %c0_i32 : i32, i32
  }
  func.func @transform_2(%arg0: i32) -> (i32, i32) {
    %c0_i32 = arith.constant 0 : i32
    %c0_i32_0 = arith.constant 0 : i32
    %c0_i32_1 = arith.constant 0 : i32
    return %c0_i32, %c0_i32_0 : i32, i32
  }
  func.func @transform_3(%arg0: i32) -> (i32, i32, i32) {
    %c0_i32 = arith.constant 0 : i32
    %c0_i32_0 = arith.constant 0 : i32
    %c0_i32_1 = arith.constant 0 : i32
    %c0_i32_2 = arith.constant 0 : i32
    return %c0_i32, %c0_i32_0, %c0_i32_1 : i32, i32, i32
  }
  func.func @transform_4(%arg0: i32) -> (i32, i32) {
    %c0_i32 = arith.constant 0 : i32
    %c0_i32_0 = arith.constant 0 : i32
    %c0_i32_1 = arith.constant 0 : i32
    return %c0_i32, %c0_i32_0 : i32, i32
  }
  func.func @transform_5(%arg0: i32) -> (i32, i32) {
    %c0_i32 = arith.constant 0 : i32
    %c0_i32_0 = arith.constant 0 : i32
    %c0_i32_1 = arith.constant 0 : i32
    return %c0_i32, %c0_i32_0 : i32, i32
  }
  func.func @transform_6(%arg0: i32) -> (i32, i32) {
    %c0_i32 = arith.constant 0 : i32
    %c0_i32_0 = arith.constant 0 : i32
    %c0_i32_1 = arith.constant 0 : i32
    return %c0_i32, %c0_i32_0 : i32, i32
  }
  func.func @transform_7(%arg0: i32) -> (i32, i32) {
    %c0_i32 = arith.constant 0 : i32
    %c0_i32_0 = arith.constant 0 : i32
    %c0_i32_1 = arith.constant 0 : i32
    return %c0_i32, %c0_i32_0 : i32, i32
  }
  func.func @transform_8(%arg0: i32) -> (i32, i32) {
    %c0_i32 = arith.constant 0 : i32
    %c0_i32_0 = arith.constant 0 : i32
    %c0_i32_1 = arith.constant 0 : i32
    return %c0_i32, %c0_i32_0 : i32, i32
  }
  func.func @transform_9(%arg0: i32) -> (i32, i32) {
    %c0_i32 = arith.constant 0 : i32
    %c0_i32_0 = arith.constant 0 : i32
    %c0_i32_1 = arith.constant 0 : i32
    return %c0_i32, %c0_i32_0 : i32, i32
  }
  func.func @transform_10(%arg0: i32) -> (i32, i32) {
    %c0_i32 = arith.constant 0 : i32
    %c0_i32_0 = arith.constant 0 : i32
    %c0_i32_1 = arith.constant 0 : i32
    return %c0_i32, %c0_i32_0 : i32, i32
  }
  func.func @transform_11(%arg0: i32) -> (i32, i32) {
    %c0_i32 = arith.constant 0 : i32
    %c0_i32_0 = arith.constant 0 : i32
    %c0_i32_1 = arith.constant 0 : i32
    return %c0_i32, %c0_i32_0 : i32, i32
  }
  func.func @transform_12(%arg0: i32) -> (i32, i32) {
    %c0_i32 = arith.constant 0 : i32
    %c0_i32_0 = arith.constant 0 : i32
    %c0_i32_1 = arith.constant 0 : i32
    return %c0_i32, %c0_i32_0 : i32, i32
  }
  func.func @transform_13(%arg0: i32) -> (i32, i32) {
    %c0_i32 = arith.constant 0 : i32
    %c0_i32_0 = arith.constant 0 : i32
    %c0_i32_1 = arith.constant 0 : i32
    return %c0_i32, %c0_i32_0 : i32, i32
  }
  func.func @transform_14(%arg0: i32) -> (i32, i32) {
    %c0_i32 = arith.constant 0 : i32
    %c0_i32_0 = arith.constant 0 : i32
    %c0_i32_1 = arith.constant 0 : i32
    return %c0_i32, %c0_i32_0 : i32, i32
  }
  func.func @transform_15(%arg0: i32) -> (i32, i32) {
    %c0_i32 = arith.constant 0 : i32
    %c0_i32_0 = arith.constant 0 : i32
    %c0_i32_1 = arith.constant 0 : i32
    return %c0_i32, %c0_i32_0 : i32, i32
  }
  func.func @transform_16(%arg0: i32) -> (i32, i32) {
    %c0_i32 = arith.constant 0 : i32
    %c0_i32_0 = arith.constant 0 : i32
    %c0_i32_1 = arith.constant 0 : i32
    return %c0_i32, %c0_i32_0 : i32, i32
  }
  func.func @transform_17(%arg0: i32) -> (i32, i32) {
    %c0_i32 = arith.constant 0 : i32
    %c0_i32_0 = arith.constant 0 : i32
    %c0_i32_1 = arith.constant 0 : i32
    return %c0_i32, %c0_i32_0 : i32, i32
  }
  func.func @transform_18(%arg0: i32) -> (i32, i32) {
    %c0_i32 = arith.constant 0 : i32
    %c0_i32_0 = arith.constant 0 : i32
    %c0_i32_1 = arith.constant 0 : i32
    return %c0_i32, %c0_i32_0 : i32, i32
  }
  func.func @transform_19(%arg0: i32) -> (i32, i32) {
    %c0_i32 = arith.constant 0 : i32
    %c0_i32_0 = arith.constant 0 : i32
    %c0_i32_1 = arith.constant 0 : i32
    return %c0_i32, %c0_i32_0 : i32, i32
  }
  func.func @transform_20(%arg0: i32) -> (i32, i32) {
    %c0_i32 = arith.constant 0 : i32
    %c0_i32_0 = arith.constant 0 : i32
    %c0_i32_1 = arith.constant 0 : i32
    return %c0_i32, %c0_i32_0 : i32, i32
  }
  func.func @transform_21(%arg0: i32) -> (i32, i32) {
    %c0_i32 = arith.constant 0 : i32
    %c0_i32_0 = arith.constant 0 : i32
    %c0_i32_1 = arith.constant 0 : i32
    return %c0_i32, %c0_i32_0 : i32, i32
  }
  func.func @transform_22(%arg0: i32) -> (i32, i32) {
    %c0_i32 = arith.constant 0 : i32
    %c0_i32_0 = arith.constant 0 : i32
    return %arg0, %c0_i32 : i32, i32
  }
}

</mosaic_0001>

<llo_original>
// kernel: tpu_custom_call.1
$region0: #{tpu_custom_call.1}
  #allocation0 [shape = 'u32[]', space=smem, size = 0x4, offset = 0x4, fixed_abs, tag = 'smem constant byte address 0x4 - core index']
  #allocation1 [shape = 'u32[144,128]{1,0:T(1,128)}', space=vmem, size = 0x12000, scoped, tag = 'internal scratch']
  #allocation27 [shape = 's32[]', space=sflag, size = 0x4, offset = 0, fixed_abs, tag = 'sflag constant byte address 0x0 - dummy sync flag']
  %s0 = inlined_call_operand.hbm [shape: bf16[4,1024,128], index: 0, kind: input, shape index: {}]
  %s1 = inlined_call_operand.hbm [shape: bf16[1024,128], index: 1, kind: input, shape index: {}]
  %s2 = inlined_call_operand.vmem [shape: bf16[128,256], index: 2, kind: input, shape index: {}]
  %s3 = inlined_call_operand.hbm [shape: f32[4,1,256], index: 3, kind: input, shape index: {}]
  %s4 = inlined_call_operand.hbm [shape: bf16[128,128], index: 4, kind: input, shape index: {}]
  %s5 = inlined_call_operand.hbm [shape: f32[1,128], index: 5, kind: input, shape index: {}]
  %s6 = inlined_call_operand.hbm [shape: bf16[128,128], index: 6, kind: input, shape index: {}]
  %s7 = inlined_call_operand.hbm [shape: f32[1,128], index: 7, kind: input, shape index: {}]
  %s8 = inlined_call_operand.hbm [shape: bf16[128,128], index: 8, kind: input, shape index: {}]
  %s9 = inlined_call_operand.hbm [shape: f32[1,128], index: 9, kind: input, shape index: {}]
  %s10 = inlined_call_operand.vmem [shape: f32[128,8], index: 10, kind: input, shape index: {}]
  %s11 = inlined_call_operand.hbm [shape: f32[8,128], index: 11, kind: input, shape index: {}]
  %s12 = inlined_call_operand.hbm [shape: f32[1,128], index: 12, kind: input, shape index: {}]
  %s13 = inlined_call_operand.hbm [shape: f32[1,128], index: 13, kind: input, shape index: {}]
  %s14 = inlined_call_operand.hbm [shape: bf16[128,512], index: 14, kind: input, shape index: {}]
  %s15 = inlined_call_operand.hbm [shape: f32[1,512], index: 15, kind: input, shape index: {}]
  %s16 = inlined_call_operand.hbm [shape: bf16[512,128], index: 16, kind: input, shape index: {}]
  %s17 = inlined_call_operand.vmem [shape: f32[1,128], index: 17, kind: input, shape index: {}]
  %s18 = inlined_call_operand.vmem [shape: f32[1,128], index: 18, kind: input, shape index: {}]
  %s19 = inlined_call_operand.vmem [shape: f32[1,128], index: 19, kind: input, shape index: {}]
  %s20 = inlined_call_operand.vmem [shape: bf16[128,128], index: 20, kind: input, shape index: {}]
  %s21 = inlined_call_operand.vmem [shape: f32[1,128], index: 21, kind: input, shape index: {}]
  %s22 = inlined_call_operand.hbm [shape: f32[1024,128], index: 22, kind: output, shape index: {}]
  %s23 = sld [smem:[#allocation0]]
  $region181: #{tpu_custom_call.1} parent=0
    _
  %s25 = ssub.s32 1, %s23
  %s26 = scalar_select 0, %s25, %s23
  $region1: #{tpu_custom_call.1} parent=0
    #allocation2 [shape = 'u8[524288]{0}', space=vmem, size = 0x80000, scoped, tag = 'input window, operand 0']
    #allocation3 [shape = 's32[2]{0}', space=sflag, size = 0x8, scoped, tag = 'scoped memory for tpu_custom_call.1']
    #allocation4 [shape = 's32[2]{0}', space=sflag, size = 0x8, scoped, tag = 'scoped memory for tpu_custom_call.1']
    #allocation5 [shape = 'u8[131072]{0}', space=vmem, size = 0x20000, scoped, tag = 'input window, operand 1']
    #allocation6 [shape = 's32[2]{0}', space=sflag, size = 0x8, scoped, tag = 'scoped memory for tpu_custom_call.1']
    #allocation7 [shape = 'u8[4096]{0}', space=vmem, size = 0x1000, scoped, tag = 'input window, operand 3, single buffered']
    #allocation8 [shape = 'u8[32768]{0}', space=vmem, size = 0x8000, scoped, tag = 'input window, operand 4, single buffered']
    #allocation9 [shape = 's32[1]{0}', space=sflag, size = 0x4, scoped, tag = 'scoped memory for tpu_custom_call.1']
    #allocation10 [shape = 'u8[512]{0}', space=vmem, size = 0x400, scoped, tag = 'input window, operand 5, single buffered']
    #allocation11 [shape = 'u8[32768]{0}', space=vmem, size = 0x8000, scoped, tag = 'input window, operand 6, single buffered']
    #allocation12 [shape = 's32[1]{0}', space=sflag, size = 0x4, scoped, tag = 'scoped memory for tpu_custom_call.1']
    #allocation13 [shape = 'u8[512]{0}', space=vmem, size = 0x400, scoped, tag = 'input window, operand 7, single buffered']
    #allocation14 [shape = 'u8[32768]{0}', space=vmem, size = 0x8000, scoped, tag = 'input window, operand 8, single buffered']
    #allocation15 [shape = 's32[1]{0}', space=sflag, size = 0x4, scoped, tag = 'scoped memory for tpu_custom_call.1']
    #allocation16 [shape = 'u8[512]{0}', space=vmem, size = 0x400, scoped, tag = 'input window, operand 9, single buffered']
    #allocation17 [shape = 'u8[4096]{0}', space=vmem, size = 0x1000, scoped, tag = 'input window, operand 11, single buffered']
    #allocation18 [shape = 's32[1]{0}', space=sflag, size = 0x4, scoped, tag = 'scoped memory for tpu_custom_call.1']
    #allocation19 [shape = 'u8[512]{0}', space=vmem, size = 0x400, scoped, tag = 'input window, operand 12, single buffered']
    #allocation20 [shape = 'u8[512]{0}', space=vmem, size = 0x400, scoped, tag = 'input window, operand 13, single buffered']
    #allocation21 [shape = 's32[1]{0}', space=sflag, size = 0x4, scoped, tag = 'scoped memory for tpu_custom_call.1']
    #allocation22 [shape = 'u8[131072]{0}', space=vmem, size = 0x20000, scoped, tag = 'input window, operand 14, single buffered']
    #allocation23 [shape = 'u8[2048]{0}', space=vmem, size = 0x800, scoped, tag = 'input window, operand 15, single buffered']
    #allocation24 [shape = 's32[1]{0}', space=sflag, size = 0x4, scoped, tag = 'scoped memory for tpu_custom_call.1']
    #allocation25 [shape = 'u8[131072]{0}', space=vmem, size = 0x20000, scoped, tag = 'input window, operand 16, single buffered']
    #allocation26 [shape = 'u8[262144]{0}', space=vmem, size = 0x40000, scoped, tag = 'output window, operand 0']
    %27 = vsyncpa [#allocation3], 0
    %s28 = scalar_lea.sflag [#allocation3], 1
    %29 = vsyncpa %s28, 0
    %30 = vsyncpa [#allocation6], 0
    %s31 = scalar_lea.sflag [#allocation6], 1
    %32 = vsyncpa %s31, 0
    %33 = vsyncpa [#allocation9], 0
    %34 = vsyncpa [#allocation12], 0
    %35 = vsyncpa [#allocation15], 0
    %36 = vsyncpa [#allocation18], 0
    %37 = vsyncpa [#allocation21], 0
    %38 = vsyncpa [#allocation24], 0
    %39 = vsyncpa [#allocation4], 0
    %s40 = scalar_lea.sflag [#allocation4], 1
    %41 = vsyncpa %s40, 0
    loop: start=0, step=1, limit=6
    $region2: #{tpu_custom_call.1} parent=1 // loop_pre_header
      _
    $region3: #{tpu_custom_call.1} parent=1 // loop_header
      %s43 = sphi 0, %s47
      %p44 = scmp.ge.s32.totalorder %s43, 6
      %s53 = sphi 0, %s55
      %s56 = sphi 0, %s53
      %s57 = sphi 0, %s56
      %s73 = sphi 0, %s57
      %s79 = sphi 0, %s81
      %s82 = sphi 0, %s79
      %s83 = sphi 0, %s82
      %s99 = sphi 0, %s83
      %s103 = sphi 0, %s103
      %s105 = sphi 0, %s103
      %s106 = sphi 0, %s105
      %s120 = sphi 0, %s106
      %s124 = sphi 0, %s124
      %s126 = sphi 0, %s124
      %s127 = sphi 0, %s126
      %s141 = sphi 0, %s127
      %s145 = sphi 0, %s145
      %s147 = sphi 0, %s145
      %s148 = sphi 0, %s147
      %s162 = sphi 0, %s148
      %s166 = sphi 0, %s166
      %s168 = sphi 0, %s166
      %s169 = sphi 0, %s168
      %s183 = sphi 0, %s169
      %s187 = sphi 0, %s187
      %s189 = sphi 0, %s187
      %s190 = sphi 0, %s189
      %s204 = sphi 0, %s190
      %s208 = sphi 0, %s208
      %s210 = sphi 0, %s208
      %s211 = sphi 0, %s210
      %s225 = sphi 0, %s211
      %s229 = sphi 0, %s229
      %s231 = sphi 0, %s229
      %s232 = sphi 0, %s231
      %s246 = sphi 0, %s232
      %s250 = sphi 0, %s250
      %s252 = sphi 0, %s250
      %s253 = sphi 0, %s252
      %s267 = sphi 0, %s253
      %s271 = sphi 0, %s271
      %s273 = sphi 0, %s271
      %s274 = sphi 0, %s273
      %s288 = sphi 0, %s274
      %s292 = sphi 0, %s292
      %s294 = sphi 0, %s292
      %s295 = sphi 0, %s294
      %s309 = sphi 0, %s295
      %s313 = sphi 0, %s313
      %s315 = sphi 0, %s313
      %s316 = sphi 0, %s315
      %s330 = sphi 0, %s316
      %s334 = sphi 0, %s334
      %s336 = sphi 0, %s334
      %s337 = sphi 0, %s336
      %s351 = sphi 0, %s337
      %s355 = sphi 0, %s355
      %s357 = sphi 0, %s355
      %s358 = sphi 0, %s357
      %s372 = sphi 0, %s358
      %s376 = sphi 0, %s376
      %s378 = sphi 0, %s376
      %s379 = sphi 0, %s378
      %s393 = sphi 0, %s379
      %s397 = sphi 0, %s397
      %s399 = sphi 0, %s397
      %s400 = sphi 0, %s399
      %s414 = sphi 0, %s400
      %s418 = sphi 0, %s418
      %s420 = sphi 0, %s418
      %s421 = sphi 0, %s420
      %s435 = sphi 0, %s421
      %s439 = sphi 0, %s439
      %s441 = sphi 0, %s439
      %s442 = sphi 0, %s441
      %s456 = sphi 0, %s442
      %s460 = sphi 0, %s460
      %s462 = sphi 0, %s460
      %s463 = sphi 0, %s462
      %s477 = sphi 0, %s463
      %s481 = sphi 0, %s481
      %s483 = sphi 0, %s481
      %s484 = sphi 0, %s483
      %s498 = sphi 0, %s484
      %s502 = sphi 0, %s502
      %s504 = sphi 0, %s502
      %s505 = sphi 0, %s504
      %s519 = sphi 0, %s505
      %s525 = sphi 0, %s527
      %s528 = sphi 0, %s525
      %s529 = sphi 0, %s528
      %s545 = sphi 0, %s529
    $region4: #{tpu_custom_call.1} parent=1 // loop_header_branch
      %46 = sbr.rel (%p44) target = $region8
    $region5: #{tpu_custom_call.1} parent=1 // loop_body
      %s48 = ssub.s32 %s43, 1
      %s49 = ssub.s32 %s43, 2
      %s50 = sadd.s32 %s43, 1
      %s51 = ssub.s32 %s43, %s50
      %p52 = scmp.eq.s32.totalorder %s51, 0
      %s54 = sadd.s32 %s53, 1
      %s55 = scalar_select %p52, %s53, %s54
      %p58 = pneg %p52
      %p59 = scmp.eq.s32.totalorder %s43, 3
      %p60 = por %p58, %p59
      %p61 = scmp.ne.s32.totalorder %s53, %s56
      %p62 = scmp.eq.s32.totalorder %s43, 0
      %p63 = por %p61, %p62
      %p64 = scmp.ne.s32.totalorder %s53, %s56
      %p65 = scmp.eq.s32.totalorder %s48, 3
      %p66 = por %p64, %p65
      %p67 = scmp.ne.s32.totalorder %s56, %s57
      %p68 = scmp.eq.s32.totalorder %s48, 0
      %p69 = por %p67, %p68
      %p70 = scmp.ne.s32.totalorder %s56, %s57
      %p71 = scmp.eq.s32.totalorder %s49, 3
      %p72 = por %p70, %p71
      %p74 = scmp.ne.s32.totalorder %s57, %s73
      %p75 = scmp.eq.s32.totalorder %s49, 0
      %p76 = por %p74, %p75
      %s77 = ssub.s32 %s43, %s50
      %p78 = scmp.eq.s32.totalorder %s77, 0
      %s80 = sadd.s32 %s79, 1
      %s81 = scalar_select %p78, %s79, %s80
      %p84 = pneg %p78
      %p85 = scmp.eq.s32.totalorder %s43, 3
      %p86 = por %p84, %p85
      %p87 = scmp.ne.s32.totalorder %s79, %s82
      %p88 = scmp.eq.s32.totalorder %s43, 0
      %p89 = por %p87, %p88
      %p90 = scmp.ne.s32.totalorder %s79, %s82
      %p91 = scmp.eq.s32.totalorder %s48, 3
      %p92 = por %p90, %p91
      %p93 = scmp.ne.s32.totalorder %s82, %s83
      %p94 = scmp.eq.s32.totalorder %s48, 0
      %p95 = por %p93, %p94
      %p96 = scmp.ne.s32.totalorder %s82, %s83
      %p97 = scmp.eq.s32.totalorder %s49, 3
      %p98 = por %p96, %p97
      %p100 = scmp.ne.s32.totalorder %s83, %s99
      %p101 = scmp.eq.s32.totalorder %s49, 0
      %p102 = por %p100, %p101
      %s104 = sadd.s32 %s103, 1
      %p107 = scmp.eq.s32.totalorder %s43, 3
      %p108 = scmp.ne.s32.totalorder %s103, %s105
      %p109 = scmp.eq.s32.totalorder %s43, 0
      %p110 = por %p108, %p109
      %p111 = scmp.ne.s32.totalorder %s103, %s105
      %p112 = scmp.eq.s32.totalorder %s48, 3
      %p113 = por %p111, %p112
      %p114 = scmp.ne.s32.totalorder %s105, %s106
      %p115 = scmp.eq.s32.totalorder %s48, 0
      %p116 = por %p114, %p115
      %p117 = scmp.ne.s32.totalorder %s105, %s106
      %p118 = scmp.eq.s32.totalorder %s49, 3
      %p119 = por %p117, %p118
      %p121 = scmp.ne.s32.totalorder %s106, %s120
      %p122 = scmp.eq.s32.totalorder %s49, 0
      %p123 = por %p121, %p122
      %s125 = sadd.s32 %s124, 1
      %p128 = scmp.eq.s32.totalorder %s43, 3
      %p129 = scmp.ne.s32.totalorder %s124, %s126
      %p130 = scmp.eq.s32.totalorder %s43, 0
      %p131 = por %p129, %p130
      %p132 = scmp.ne.s32.totalorder %s124, %s126
      %p133 = scmp.eq.s32.totalorder %s48, 3
      %p134 = por %p132, %p133
      %p135 = scmp.ne.s32.totalorder %s126, %s127
      %p136 = scmp.eq.s32.totalorder %s48, 0
      %p137 = por %p135, %p136
      %p138 = scmp.ne.s32.totalorder %s126, %s127
      %p139 = scmp.eq.s32.totalorder %s49, 3
      %p140 = por %p138, %p139
      %p142 = scmp.ne.s32.totalorder %s127, %s141
      %p143 = scmp.eq.s32.totalorder %s49, 0
      %p144 = por %p142, %p143
      %s146 = sadd.s32 %s145, 1
      %p149 = scmp.eq.s32.totalorder %s43, 3
      %p150 = scmp.ne.s32.totalorder %s145, %s147
      %p151 = scmp.eq.s32.totalorder %s43, 0
      %p152 = por %p150, %p151
      %p153 = scmp.ne.s32.totalorder %s145, %s147
      %p154 = scmp.eq.s32.totalorder %s48, 3
      %p155 = por %p153, %p154
      %p156 = scmp.ne.s32.totalorder %s147, %s148
      %p157 = scmp.eq.s32.totalorder %s48, 0
      %p158 = por %p156, %p157
      %p159 = scmp.ne.s32.totalorder %s147, %s148
      %p160 = scmp.eq.s32.totalorder %s49, 3
      %p161 = por %p159, %p160
      %p163 = scmp.ne.s32.totalorder %s148, %s162
      %p164 = scmp.eq.s32.totalorder %s49, 0
      %p165 = por %p163, %p164
      %s167 = sadd.s32 %s166, 1
      %p170 = scmp.eq.s32.totalorder %s43, 3
      %p171 = scmp.ne.s32.totalorder %s166, %s168
      %p172 = scmp.eq.s32.totalorder %s43, 0
      %p173 = por %p171, %p172
      %p174 = scmp.ne.s32.totalorder %s166, %s168
      %p175 = scmp.eq.s32.totalorder %s48, 3
      %p176 = por %p174, %p175
      %p177 = scmp.ne.s32.totalorder %s168, %s169
      %p178 = scmp.eq.s32.totalorder %s48, 0
      %p179 = por %p177, %p178
      %p180 = scmp.ne.s32.totalorder %s168, %s169
      %p181 = scmp.eq.s32.totalorder %s49, 3
      %p182 = por %p180, %p181
      %p184 = scmp.ne.s32.totalorder %s169, %s183
      %p185 = scmp.eq.s32.totalorder %s49, 0
      %p186 = por %p184, %p185
      %s188 = sadd.s32 %s187, 1
      %p191 = scmp.eq.s32.totalorder %s43, 3
      %p192 = scmp.ne.s32.totalorder %s187, %s189
      %p193 = scmp.eq.s32.totalorder %s43, 0
      %p194 = por %p192, %p193
      %p195 = scmp.ne.s32.totalorder %s187, %s189
      %p196 = scmp.eq.s32.totalorder %s48, 3
      %p197 = por %p195, %p196
      %p198 = scmp.ne.s32.totalorder %s189, %s190
      %p199 = scmp.eq.s32.totalorder %s48, 0
      %p200 = por %p198, %p199
      %p201 = scmp.ne.s32.totalorder %s189, %s190
      %p202 = scmp.eq.s32.totalorder %s49, 3
      %p203 = por %p201, %p202
      %p205 = scmp.ne.s32.totalorder %s190, %s204
      %p206 = scmp.eq.s32.totalorder %s49, 0
      %p207 = por %p205, %p206
      %s209 = sadd.s32 %s208, 1
      %p212 = scmp.eq.s32.totalorder %s43, 3
      %p213 = scmp.ne.s32.totalorder %s208, %s210
      %p214 = scmp.eq.s32.totalorder %s43, 0
      %p215 = por %p213, %p214
      %p216 = scmp.ne.s32.totalorder %s208, %s210
      %p217 = scmp.eq.s32.totalorder %s48, 3
      %p218 = por %p216, %p217
      %p219 = scmp.ne.s32.totalorder %s210, %s211
      %p220 = scmp.eq.s32.totalorder %s48, 0
      %p221 = por %p219, %p220
      %p222 = scmp.ne.s32.totalorder %s210, %s211
      %p223 = scmp.eq.s32.totalorder %s49, 3
      %p224 = por %p222, %p223
      %p226 = scmp.ne.s32.totalorder %s211, %s225
      %p227 = scmp.eq.s32.totalorder %s49, 0
      %p228 = por %p226, %p227
      %s230 = sadd.s32 %s229, 1
      %p233 = scmp.eq.s32.totalorder %s43, 3
      %p234 = scmp.ne.s32.totalorder %s229, %s231
      %p235 = scmp.eq.s32.totalorder %s43, 0
      %p236 = por %p234, %p235
      %p237 = scmp.ne.s32.totalorder %s229, %s231
      %p238 = scmp.eq.s32.totalorder %s48, 3
      %p239 = por %p237, %p238
      %p240 = scmp.ne.s32.totalorder %s231, %s232
      %p241 = scmp.eq.s32.totalorder %s48, 0
      %p242 = por %p240, %p241
      %p243 = scmp.ne.s32.totalorder %s231, %s232
      %p244 = scmp.eq.s32.totalorder %s49, 3
      %p245 = por %p243, %p244
      %p247 = scmp.ne.s32.totalorder %s232, %s246
      %p248 = scmp.eq.s32.totalorder %s49, 0
      %p249 = por %p247, %p248
      %s251 = sadd.s32 %s250, 1
      %p254 = scmp.eq.s32.totalorder %s43, 3
      %p255 = scmp.ne.s32.totalorder %s250, %s252
      %p256 = scmp.eq.s32.totalorder %s43, 0
      %p257 = por %p255, %p256
      %p258 = scmp.ne.s32.totalorder %s250, %s252
      %p259 = scmp.eq.s32.totalorder %s48, 3
      %p260 = por %p258, %p259
      %p261 = scmp.ne.s32.totalorder %s252, %s253
      %p262 = scmp.eq.s32.totalorder %s48, 0
      %p263 = por %p261, %p262
      %p264 = scmp.ne.s32.totalorder %s252, %s253
      %p265 = scmp.eq.s32.totalorder %s49, 3
      %p266 = por %p264, %p265
      %p268 = scmp.ne.s32.totalorder %s253, %s267
      %p269 = scmp.eq.s32.totalorder %s49, 0
      %p270 = por %p268, %p269
      %s272 = sadd.s32 %s271, 1
      %p275 = scmp.eq.s32.totalorder %s43, 3
      %p276 = scmp.ne.s32.totalorder %s271, %s273
      %p277 = scmp.eq.s32.totalorder %s43, 0
      %p278 = por %p276, %p277
      %p279 = scmp.ne.s32.totalorder %s271, %s273
      %p280 = scmp.eq.s32.totalorder %s48, 3
      %p281 = por %p279, %p280
      %p282 = scmp.ne.s32.totalorder %s273, %s274
      %p283 = scmp.eq.s32.totalorder %s48, 0
      %p284 = por %p282, %p283
      %p285 = scmp.ne.s32.totalorder %s273, %s274
      %p286 = scmp.eq.s32.totalorder %s49, 3
      %p287 = por %p285, %p286
      %p289 = scmp.ne.s32.totalorder %s274, %s288
      %p290 = scmp.eq.s32.totalorder %s49, 0
      %p291 = por %p289, %p290
      %s293 = sadd.s32 %s292, 1
      %p296 = scmp.eq.s32.totalorder %s43, 3
      %p297 = scmp.ne.s32.totalorder %s292, %s294
      %p298 = scmp.eq.s32.totalorder %s43, 0
      %p299 = por %p297, %p298
      %p300 = scmp.ne.s32.totalorder %s292, %s294
      %p301 = scmp.eq.s32.totalorder %s48, 3
      %p302 = por %p300, %p301
      %p303 = scmp.ne.s32.totalorder %s294, %s295
      %p304 = scmp.eq.s32.totalorder %s48, 0
      %p305 = por %p303, %p304
      %p306 = scmp.ne.s32.totalorder %s294, %s295
      %p307 = scmp.eq.s32.totalorder %s49, 3
      %p308 = por %p306, %p307
      %p310 = scmp.ne.s32.totalorder %s295, %s309
      %p311 = scmp.eq.s32.totalorder %s49, 0
      %p312 = por %p310, %p311
      %s314 = sadd.s32 %s313, 1
      %p317 = scmp.eq.s32.totalorder %s43, 3
      %p318 = scmp.ne.s32.totalorder %s313, %s315
      %p319 = scmp.eq.s32.totalorder %s43, 0
      %p320 = por %p318, %p319
      %p321 = scmp.ne.s32.totalorder %s313, %s315
      %p322 = scmp.eq.s32.totalorder %s48, 3
      %p323 = por %p321, %p322
      %p324 = scmp.ne.s32.totalorder %s315, %s316
      %p325 = scmp.eq.s32.totalorder %s48, 0
      %p326 = por %p324, %p325
      %p327 = scmp.ne.s32.totalorder %s315, %s316
      %p328 = scmp.eq.s32.totalorder %s49, 3
      %p329 = por %p327, %p328
      %p331 = scmp.ne.s32.totalorder %s316, %s330
      %p332 = scmp.eq.s32.totalorder %s49, 0
      %p333 = por %p331, %p332
      %s335 = sadd.s32 %s334, 1
      %p338 = scmp.eq.s32.totalorder %s43, 3
      %p339 = scmp.ne.s32.totalorder %s334, %s336
      %p340 = scmp.eq.s32.totalorder %s43, 0
      %p341 = por %p339, %p340
      %p342 = scmp.ne.s32.totalorder %s334, %s336
      %p343 = scmp.eq.s32.totalorder %s48, 3
      %p344 = por %p342, %p343
      %p345 = scmp.ne.s32.totalorder %s336, %s337
      %p346 = scmp.eq.s32.totalorder %s48, 0
      %p347 = por %p345, %p346
      %p348 = scmp.ne.s32.totalorder %s336, %s337
      %p349 = scmp.eq.s32.totalorder %s49, 3
      %p350 = por %p348, %p349
      %p352 = scmp.ne.s32.totalorder %s337, %s351
      %p353 = scmp.eq.s32.totalorder %s49, 0
      %p354 = por %p352, %p353
      %s356 = sadd.s32 %s355, 1
      %p359 = scmp.eq.s32.totalorder %s43, 3
      %p360 = scmp.ne.s32.totalorder %s355, %s357
      %p361 = scmp.eq.s32.totalorder %s43, 0
      %p362 = por %p360, %p361
      %p363 = scmp.ne.s32.totalorder %s355, %s357
      %p364 = scmp.eq.s32.totalorder %s48, 3
      %p365 = por %p363, %p364
      %p366 = scmp.ne.s32.totalorder %s357, %s358
      %p367 = scmp.eq.s32.totalorder %s48, 0
      %p368 = por %p366, %p367
      %p369 = scmp.ne.s32.totalorder %s357, %s358
      %p370 = scmp.eq.s32.totalorder %s49, 3
      %p371 = por %p369, %p370
      %p373 = scmp.ne.s32.totalorder %s358, %s372
      %p374 = scmp.eq.s32.totalorder %s49, 0
      %p375 = por %p373, %p374
      %s377 = sadd.s32 %s376, 1
      %p380 = scmp.eq.s32.totalorder %s43, 3
      %p381 = scmp.ne.s32.totalorder %s376, %s378
      %p382 = scmp.eq.s32.totalorder %s43, 0
      %p383 = por %p381, %p382
      %p384 = scmp.ne.s32.totalorder %s376, %s378
      %p385 = scmp.eq.s32.totalorder %s48, 3
      %p386 = por %p384, %p385
      %p387 = scmp.ne.s32.totalorder %s378, %s379
      %p388 = scmp.eq.s32.totalorder %s48, 0
      %p389 = por %p387, %p388
      %p390 = scmp.ne.s32.totalorder %s378, %s379
      %p391 = scmp.eq.s32.totalorder %s49, 3
      %p392 = por %p390, %p391
      %p394 = scmp.ne.s32.totalorder %s379, %s393
      %p395 = scmp.eq.s32.totalorder %s49, 0
      %p396 = por %p394, %p395
      %s398 = sadd.s32 %s397, 1
      %p401 = scmp.eq.s32.totalorder %s43, 3
      %p402 = scmp.ne.s32.totalorder %s397, %s399
      %p403 = scmp.eq.s32.totalorder %s43, 0
      %p404 = por %p402, %p403
      %p405 = scmp.ne.s32.totalorder %s397, %s399
      %p406 = scmp.eq.s32.totalorder %s48, 3
      %p407 = por %p405, %p406
      %p408 = scmp.ne.s32.totalorder %s399, %s400
      %p409 = scmp.eq.s32.totalorder %s48, 0
      %p410 = por %p408, %p409
      %p411 = scmp.ne.s32.totalorder %s399, %s400
      %p412 = scmp.eq.s32.totalorder %s49, 3
      %p413 = por %p411, %p412
      %p415 = scmp.ne.s32.totalorder %s400, %s414
      %p416 = scmp.eq.s32.totalorder %s49, 0
      %p417 = por %p415, %p416
      %s419 = sadd.s32 %s418, 1
      %p422 = scmp.eq.s32.totalorder %s43, 3
      %p423 = scmp.ne.s32.totalorder %s418, %s420
      %p424 = scmp.eq.s32.totalorder %s43, 0
      %p425 = por %p423, %p424
      %p426 = scmp.ne.s32.totalorder %s418, %s420
      %p427 = scmp.eq.s32.totalorder %s48, 3
      %p428 = por %p426, %p427
      %p429 = scmp.ne.s32.totalorder %s420, %s421
      %p430 = scmp.eq.s32.totalorder %s48, 0
      %p431 = por %p429, %p430
      %p432 = scmp.ne.s32.totalorder %s420, %s421
      %p433 = scmp.eq.s32.totalorder %s49, 3
      %p434 = por %p432, %p433
      %p436 = scmp.ne.s32.totalorder %s421, %s435
      %p437 = scmp.eq.s32.totalorder %s49, 0
      %p438 = por %p436, %p437
      %s440 = sadd.s32 %s439, 1
      %p443 = scmp.eq.s32.totalorder %s43, 3
      %p444 = scmp.ne.s32.totalorder %s439, %s441
      %p445 = scmp.eq.s32.totalorder %s43, 0
      %p446 = por %p444, %p445
      %p447 = scmp.ne.s32.totalorder %s439, %s441
      %p448 = scmp.eq.s32.totalorder %s48, 3
      %p449 = por %p447, %p448
      %p450 = scmp.ne.s32.totalorder %s441, %s442
      %p451 = scmp.eq.s32.totalorder %s48, 0
      %p452 = por %p450, %p451
      %p453 = scmp.ne.s32.totalorder %s441, %s442
      %p454 = scmp.eq.s32.totalorder %s49, 3
      %p455 = por %p453, %p454
      %p457 = scmp.ne.s32.totalorder %s442, %s456
      %p458 = scmp.eq.s32.totalorder %s49, 0
      %p459 = por %p457, %p458
      %s461 = sadd.s32 %s460, 1
      %p464 = scmp.eq.s32.totalorder %s43, 3
      %p465 = scmp.ne.s32.totalorder %s460, %s462
      %p466 = scmp.eq.s32.totalorder %s43, 0
      %p467 = por %p465, %p466
      %p468 = scmp.ne.s32.totalorder %s460, %s462
      %p469 = scmp.eq.s32.totalorder %s48, 3
      %p470 = por %p468, %p469
      %p471 = scmp.ne.s32.totalorder %s462, %s463
      %p472 = scmp.eq.s32.totalorder %s48, 0
      %p473 = por %p471, %p472
      %p474 = scmp.ne.s32.totalorder %s462, %s463
      %p475 = scmp.eq.s32.totalorder %s49, 3
      %p476 = por %p474, %p475
      %p478 = scmp.ne.s32.totalorder %s463, %s477
      %p479 = scmp.eq.s32.totalorder %s49, 0
      %p480 = por %p478, %p479
      %s482 = sadd.s32 %s481, 1
      %p485 = scmp.eq.s32.totalorder %s43, 3
      %p486 = scmp.ne.s32.totalorder %s481, %s483
      %p487 = scmp.eq.s32.totalorder %s43, 0
      %p488 = por %p486, %p487
      %p489 = scmp.ne.s32.totalorder %s481, %s483
      %p490 = scmp.eq.s32.totalorder %s48, 3
      %p491 = por %p489, %p490
      %p492 = scmp.ne.s32.totalorder %s483, %s484
      %p493 = scmp.eq.s32.totalorder %s48, 0
      %p494 = por %p492, %p493
      %p495 = scmp.ne.s32.totalorder %s483, %s484
      %p496 = scmp.eq.s32.totalorder %s49, 3
      %p497 = por %p495, %p496
      %p499 = scmp.ne.s32.totalorder %s484, %s498
      %p500 = scmp.eq.s32.totalorder %s49, 0
      %p501 = por %p499, %p500
      %s503 = sadd.s32 %s502, 1
      %p506 = scmp.eq.s32.totalorder %s43, 3
      %p507 = scmp.ne.s32.totalorder %s502, %s504
      %p508 = scmp.eq.s32.totalorder %s43, 0
      %p509 = por %p507, %p508
      %p510 = scmp.ne.s32.totalorder %s502, %s504
      %p511 = scmp.eq.s32.totalorder %s48, 3
      %p512 = por %p510, %p511
      %p513 = scmp.ne.s32.totalorder %s504, %s505
      %p514 = scmp.eq.s32.totalorder %s48, 0
      %p515 = por %p513, %p514
      %p516 = scmp.ne.s32.totalorder %s504, %s505
      %p517 = scmp.eq.s32.totalorder %s49, 3
      %p518 = por %p516, %p517
      %p520 = scmp.ne.s32.totalorder %s505, %s519
      %p521 = scmp.eq.s32.totalorder %s49, 0
      %p522 = por %p520, %p521
      %s523 = ssub.s32 %s43, %s50
      %p524 = scmp.eq.s32.totalorder %s523, 0
      %s526 = sadd.s32 %s525, 1
      %s527 = scalar_select %p524, %s525, %s526
      %p530 = pneg %p524
      %p531 = scmp.eq.s32.totalorder %s43, 3
      %p532 = por %p530, %p531
      %p533 = scmp.ne.s32.totalorder %s525, %s528
      %p534 = scmp.eq.s32.totalorder %s43, 0
      %p535 = por %p533, %p534
      %p536 = scmp.ne.s32.totalorder %s525, %s528
      %p537 = scmp.eq.s32.totalorder %s48, 3
      %p538 = por %p536, %p537
      %p539 = scmp.ne.s32.totalorder %s528, %s529
      %p540 = scmp.eq.s32.totalorder %s48, 0
      %p541 = por %p539, %p540
      %p542 = scmp.ne.s32.totalorder %s528, %s529
      %p543 = scmp.eq.s32.totalorder %s49, 3
      %p544 = por %p542, %p543
      %p546 = scmp.ne.s32.totalorder %s529, %s545
      %p547 = scmp.eq.s32.totalorder %s49, 0
      %p548 = por %p546, %p547
      %p549 = scmp.le.s32.totalorder 1, %s43
      %p550 = scmp.lt.s32.totalorder %s43, 5
      %p551 = pnand %p549, %p550
      %p552 = pneg %p551
      // Predicated region
      $region9: #{tpu_custom_call.1} parent=5 // pred_check
        _
      $region10: #{tpu_custom_call.1} parent=5 // pred_check_branch
        %554 = sbr.rel (%p551) target = $region12
      $region11: #{tpu_custom_call.1} parent=5 // pred_region
        %s555 = ssub.s32 %s43, 1
        // Predicated region
        $region13: #{tpu_custom_call.1} parent=11 // pred_check
          %p556 = pneg %p116
        $region14: #{tpu_custom_call.1} parent=11 // pred_check_branch
          %558 = sbr.rel (%p556) target = $region16
        $region15: #{tpu_custom_call.1} parent=11 // pred_region
          _
        $region16: #{tpu_custom_call.1} parent=11 // pred_fallthru
          _
        // Predicated region
        $region17: #{tpu_custom_call.1} parent=11 // pred_check
          %p559 = pneg %p137
        $region18: #{tpu_custom_call.1} parent=11 // pred_check_branch
          %561 = sbr.rel (%p559) target = $region20
        $region19: #{tpu_custom_call.1} parent=11 // pred_region
          %s563 = ssub.s32 128, 128
          %564 = vsyncadd [#allocation6], %s563
          %s565 = sshll.u32 [#allocation7], 4
          %s566 = int_to_ptr.vmem [resolvable:$true] %s565
          %571 = dma.hbm_to_vmem [thread:$0]  %s3, 128, %s566, [#allocation6], 32, 32, 2
        $region20: #{tpu_custom_call.1} parent=11 // pred_fallthru
          _
        // Predicated region
        $region21: #{tpu_custom_call.1} parent=11 // pred_check
          %p572 = pneg %p158
        $region22: #{tpu_custom_call.1} parent=11 // pred_check_branch
          %574 = sbr.rel (%p572) target = $region24
        $region23: #{tpu_custom_call.1} parent=11 // pred_region
          %s576 = ssub.s32 1024, 1024
          %577 = vsyncadd [#allocation9], %s576
          %s578 = sshll.u32 [#allocation8], 4
          %s579 = int_to_ptr.vmem [resolvable:$true] %s578
          %584 = dma.hbm_to_vmem [thread:$0]  %s4, 1024, %s579, [#allocation9], 64, 64, 4
        $region24: #{tpu_custom_call.1} parent=11 // pred_fallthru
          _
        // Predicated region
        $region25: #{tpu_custom_call.1} parent=11 // pred_check
          %p585 = pneg %p179
        $region26: #{tpu_custom_call.1} parent=11 // pred_check_branch
          %587 = sbr.rel (%p585) target = $region28
        $region27: #{tpu_custom_call.1} parent=11 // pred_region
          %s589 = ssub.s32 16, 16
          %590 = vsyncadd [#allocation9], %s589
          %s592 = sshll.u32 [#allocation10], 4
          %s593 = int_to_ptr.vmem [resolvable:$true] %s592
          %595 = dma.hbm_to_vmem [thread:$0]  %s5, 16, %s593, [#allocation9]
        $region28: #{tpu_custom_call.1} parent=11 // pred_fallthru
          _
        // Predicated region
        $region29: #{tpu_custom_call.1} parent=11 // pred_check
          %p596 = pneg %p200
        $region30: #{tpu_custom_call.1} parent=11 // pred_check_branch
          %598 = sbr.rel (%p596) target = $region32
        $region31: #{tpu_custom_call.1} parent=11 // pred_region
          %s600 = ssub.s32 1024, 1024
          %601 = vsyncadd [#allocation12], %s600
          %s602 = sshll.u32 [#allocation11], 4
          %s603 = int_to_ptr.vmem [resolvable:$true] %s602
          %608 = dma.hbm_to_vmem [thread:$0]  %s6, 1024, %s603, [#allocation12], 64, 64, 4
        $region32: #{tpu_custom_call.1} parent=11 // pred_fallthru
          _
        // Predicated region
        $region33: #{tpu_custom_call.1} parent=11 // pred_check
          %p609 = pneg %p221
        $region34: #{tpu_custom_call.1} parent=11 // pred_check_branch
          %611 = sbr.rel (%p609) target = $region36
        $region35: #{tpu_custom_call.1} parent=11 // pred_region
          %s613 = ssub.s32 16, 16
          %614 = vsyncadd [#allocation12], %s613
          %s616 = sshll.u32 [#allocation13], 4
          %s617 = int_to_ptr.vmem [resolvable:$true] %s616
          %619 = dma.hbm_to_vmem [thread:$0]  %s7, 16, %s617, [#allocation12]
        $region36: #{tpu_custom_call.1} parent=11 // pred_fallthru
          _
        // Predicated region
        $region37: #{tpu_custom_call.1} parent=11 // pred_check
          %p620 = pneg %p242
        $region38: #{tpu_custom_call.1} parent=11 // pred_check_branch
          %622 = sbr.rel (%p620) target = $region40
        $region39: #{tpu_custom_call.1} parent=11 // pred_region
          %s624 = ssub.s32 1024, 1024
          %625 = vsyncadd [#allocation15], %s624
          %s626 = sshll.u32 [#allocation14], 4
          %s627 = int_to_ptr.vmem [resolvable:$true] %s626
          %632 = dma.hbm_to_vmem [thread:$0]  %s8, 1024, %s627, [#allocation15], 64, 64, 4
        $region40: #{tpu_custom_call.1} parent=11 // pred_fallthru
          _
        // Predicated region
        $region41: #{tpu_custom_call.1} parent=11 // pred_check
          %p633 = pneg %p263
        $region42: #{tpu_custom_call.1} parent=11 // pred_check_branch
          %635 = sbr.rel (%p633) target = $region44
        $region43: #{tpu_custom_call.1} parent=11 // pred_region
          %s637 = ssub.s32 16, 16
          %638 = vsyncadd [#allocation15], %s637
          %s640 = sshll.u32 [#allocation16], 4
          %s641 = int_to_ptr.vmem [resolvable:$true] %s640
          %643 = dma.hbm_to_vmem [thread:$0]  %s9, 16, %s641, [#allocation15]
        $region44: #{tpu_custom_call.1} parent=11 // pred_fallthru
          _
        // Predicated region
        $region45: #{tpu_custom_call.1} parent=11 // pred_check
          %p644 = pneg %p284
        $region46: #{tpu_custom_call.1} parent=11 // pred_check_branch
          %646 = sbr.rel (%p644) target = $region48
        $region47: #{tpu_custom_call.1} parent=11 // pred_region
          _
        $region48: #{tpu_custom_call.1} parent=11 // pred_fallthru
          _
        // Predicated region
        $region49: #{tpu_custom_call.1} parent=11 // pred_check
          %p647 = pneg %p305
        $region50: #{tpu_custom_call.1} parent=11 // pred_check_branch
          %649 = sbr.rel (%p647) target = $region52
        $region51: #{tpu_custom_call.1} parent=11 // pred_region
          %s651 = ssub.s32 128, 128
          %652 = vsyncadd [#allocation18], %s651
          %s654 = sshll.u32 [#allocation17], 4
          %s655 = int_to_ptr.vmem [resolvable:$true] %s654
          %657 = dma.hbm_to_vmem [thread:$0]  %s11, 128, %s655, [#allocation18]
        $region52: #{tpu_custom_call.1} parent=11 // pred_fallthru
          _
        // Predicated region
        $region53: #{tpu_custom_call.1} parent=11 // pred_check
          %p658 = pneg %p326
        $region54: #{tpu_custom_call.1} parent=11 // pred_check_branch
          %660 = sbr.rel (%p658) target = $region56
        $region55: #{tpu_custom_call.1} parent=11 // pred_region
          %s662 = ssub.s32 16, 16
          %663 = vsyncadd [#allocation18], %s662
          %s665 = sshll.u32 [#allocation19], 4
          %s666 = int_to_ptr.vmem [resolvable:$true] %s665
          %668 = dma.hbm_to_vmem [thread:$0]  %s12, 16, %s666, [#allocation18]
        $region56: #{tpu_custom_call.1} parent=11 // pred_fallthru
          _
        // Predicated region
        $region57: #{tpu_custom_call.1} parent=11 // pred_check
          %p669 = pneg %p347
        $region58: #{tpu_custom_call.1} parent=11 // pred_check_branch
          %671 = sbr.rel (%p669) target = $region60
        $region59: #{tpu_custom_call.1} parent=11 // pred_region
          %s673 = ssub.s32 16, 16
          %674 = vsyncadd [#allocation21], %s673
          %s676 = sshll.u32 [#allocation20], 4
          %s677 = int_to_ptr.vmem [resolvable:$true] %s676
          %679 = dma.hbm_to_vmem [thread:$0]  %s13, 16, %s677, [#allocation21]
        $region60: #{tpu_custom_call.1} parent=11 // pred_fallthru
          _
        // Predicated region
        $region61: #{tpu_custom_call.1} parent=11 // pred_check
          %p680 = pneg %p368
        $region62: #{tpu_custom_call.1} parent=11 // pred_check_branch
          %682 = sbr.rel (%p680) target = $region64
        $region63: #{tpu_custom_call.1} parent=11 // pred_region
          %s684 = ssub.s32 4096, 4096
          %685 = vsyncadd [#allocation21], %s684
          %s686 = sshll.u32 [#allocation22], 4
          %s687 = int_to_ptr.vmem [resolvable:$true] %s686
          %692 = dma.hbm_to_vmem [thread:$0]  %s14, 4096, %s687, [#allocation21], 256, 256, 16
        $region64: #{tpu_custom_call.1} parent=11 // pred_fallthru
          _
        // Predicated region
        $region65: #{tpu_custom_call.1} parent=11 // pred_check
          %p693 = pneg %p389
        $region66: #{tpu_custom_call.1} parent=11 // pred_check_branch
          %695 = sbr.rel (%p693) target = $region68
        $region67: #{tpu_custom_call.1} parent=11 // pred_region
          %s697 = ssub.s32 64, 64
          %698 = vsyncadd [#allocation24], %s697
          %s700 = sshll.u32 [#allocation23], 4
          %s701 = int_to_ptr.vmem [resolvable:$true] %s700
          %703 = dma.hbm_to_vmem [thread:$0]  %s15, 64, %s701, [#allocation24]
        $region68: #{tpu_custom_call.1} parent=11 // pred_fallthru
          _
        // Predicated region
        $region69: #{tpu_custom_call.1} parent=11 // pred_check
          %p704 = pneg %p410
        $region70: #{tpu_custom_call.1} parent=11 // pred_check_branch
          %706 = sbr.rel (%p704) target = $region72
        $region71: #{tpu_custom_call.1} parent=11 // pred_region
          %s708 = ssub.s32 4096, 4096
          %709 = vsyncadd [#allocation24], %s708
          %s710 = sshll.u32 [#allocation25], 4
          %s711 = int_to_ptr.vmem [resolvable:$true] %s710
          %716 = dma.hbm_to_vmem [thread:$0]  %s16, 4096, %s711, [#allocation24], 64, 64, 4
        $region72: #{tpu_custom_call.1} parent=11 // pred_fallthru
          _
        // Predicated region
        $region73: #{tpu_custom_call.1} parent=11 // pred_check
          %p717 = pneg %p431
        $region74: #{tpu_custom_call.1} parent=11 // pred_check_branch
          %719 = sbr.rel (%p717) target = $region76
        $region75: #{tpu_custom_call.1} parent=11 // pred_region
          _
        $region76: #{tpu_custom_call.1} parent=11 // pred_fallthru
          _
        // Predicated region
        $region77: #{tpu_custom_call.1} parent=11 // pred_check
          %p720 = pneg %p452
        $region78: #{tpu_custom_call.1} parent=11 // pred_check_branch
          %722 = sbr.rel (%p720) target = $region80
        $region79: #{tpu_custom_call.1} parent=11 // pred_region
          _
        $region80: #{tpu_custom_call.1} parent=11 // pred_fallthru
          _
        // Predicated region
        $region81: #{tpu_custom_call.1} parent=11 // pred_check
          %p723 = pneg %p473
        $region82: #{tpu_custom_call.1} parent=11 // pred_check_branch
          %725 = sbr.rel (%p723) target = $region84
        $region83: #{tpu_custom_call.1} parent=11 // pred_region
          _
        $region84: #{tpu_custom_call.1} parent=11 // pred_fallthru
          _
        // Predicated region
        $region85: #{tpu_custom_call.1} parent=11 // pred_check
          %p726 = pneg %p494
        $region86: #{tpu_custom_call.1} parent=11 // pred_check_branch
          %728 = sbr.rel (%p726) target = $region88
        $region87: #{tpu_custom_call.1} parent=11 // pred_region
          _
        $region88: #{tpu_custom_call.1} parent=11 // pred_fallthru
          _
        // Predicated region
        $region89: #{tpu_custom_call.1} parent=11 // pred_check
          %p729 = pneg %p515
        $region90: #{tpu_custom_call.1} parent=11 // pred_check_branch
          %731 = sbr.rel (%p729) target = $region92
        $region91: #{tpu_custom_call.1} parent=11 // pred_region
          _
        $region92: #{tpu_custom_call.1} parent=11 // pred_fallthru
          _
      $region12: #{tpu_custom_call.1} parent=5 // pred_fallthru
        _
      %p732 = scmp.lt.s32.totalorder %s43, 4
      // Predicated region
      $region93: #{tpu_custom_call.1} parent=5 // pred_check
        %p733 = pneg %p732
      $region94: #{tpu_custom_call.1} parent=5 // pred_check_branch
        %735 = sbr.rel (%p733) target = $region96
      $region95: #{tpu_custom_call.1} parent=5 // pred_region
        // Predicated region
        $region97: #{tpu_custom_call.1} parent=95 // pred_check
          %p736 = pneg %p63
        $region98: #{tpu_custom_call.1} parent=95 // pred_check_branch
          %738 = sbr.rel (%p736) target = $region100
        $region99: #{tpu_custom_call.1} parent=95 // pred_region
          #allocation28 [shape = 'u32[6]{0}', space=smem, size = 0x18, scoped, tag = 'DMA stride descriptor']
          %s739 = sand.u32 %s53, 1
          %s740 = scalar_lea.sflag [#allocation3], %s739
          %s741 = sand.u32 %s53, 1
          %s742 = smul.addr %s741, 512
          %s743 = scalar_lea.vmem [#allocation2], %s742
          %s744 = smul.u32 32, %s43
          %s746 = ssub.s32 8192, 8192
          %747 = vsyncadd %s740, %s746
          %s748 = smul.addr %s744, 64
          %s749 = scalar_lea.hbm %s0, %s748
          %s751 = sshll.u32 1, 14
          %s752 = sxor.u32 4294967295, %s751
          %s754 = sld [smem:[#allocation0]]
          %s755 = sadd.s32 2, %s754
          %s757 = sshll.u32 7, 26
          %s758 = sxor.u32 4294967295, %s757
          %s759 = sand.u32 0, %s758
          %s760 = sshll.u32 %s755, 26
          %s761 = sor.u32 %s759, %s760
          %s762 = sshll.u32 %s743, 4
          %s763 = int_to_ptr.vmem [resolvable:$true] %s762
          %769 = sst [smem:[#allocation28]] 8192
          %s770 = scalar_lea.smem [#allocation28], 1
          %771 = sst [smem:[%s770]] 2048
          %s772 = scalar_lea.smem [#allocation28], 2
          %773 = sst [smem:[%s772]] 32
          %s774 = scalar_lea.smem [#allocation28], 3
          %775 = sst [smem:[%s774]] 64
          %s776 = scalar_lea.smem [#allocation28], 4
          %777 = sst [smem:[%s776]] 64
          %s778 = scalar_lea.smem [#allocation28], 5
          %779 = sst [smem:[%s778]] 4
          %781 = dma.general %s749, 8192, %s763, %s740, [#allocation27], [#allocation28], %s761, 0
        $region100: #{tpu_custom_call.1} parent=95 // pred_fallthru
          _
        // Predicated region
        $region101: #{tpu_custom_call.1} parent=95 // pred_check
          %p782 = pneg %p89
        $region102: #{tpu_custom_call.1} parent=95 // pred_check_branch
          %784 = sbr.rel (%p782) target = $region104
        $region103: #{tpu_custom_call.1} parent=95 // pred_region
          %s785 = sand.u32 %s43, 1
          %s786 = scalar_lea.sflag [#allocation6], %s785
          %s787 = sand.u32 %s79, 1
          %s788 = smul.addr %s787, 128
          %s789 = scalar_lea.vmem [#allocation5], %s788
          %s790 = smul.u32 32, %s43
          %s792 = ssub.s32 2048, 2048
          %793 = vsyncadd %s786, %s792
          %s794 = smul.addr %s790, 64
          %s795 = scalar_lea.hbm %s1, %s794
          %s796 = sshll.u32 %s789, 4
          %s797 = int_to_ptr.vmem [resolvable:$true] %s796
          %802 = dma.hbm_to_vmem [thread:$0]  %s795, 2048, %s797, %s786, 64, 64, 4
        $region104: #{tpu_custom_call.1} parent=95 // pred_fallthru
          _
      $region96: #{tpu_custom_call.1} parent=5 // pred_fallthru
        _
      %p803 = scmp.le.s32.totalorder 1, %s43
      %p804 = scmp.lt.s32.totalorder %s43, 5
      %p805 = pnand %p803, %p804
      %p806 = pneg %p805
      // Predicated region
      $region105: #{tpu_custom_call.1} parent=5 // pred_check
        _
      $region106: #{tpu_custom_call.1} parent=5 // pred_check_branch
        %808 = sbr.rel (%p805) target = $region108
      $region107: #{tpu_custom_call.1} parent=5 // pred_region
        %s809 = ssub.s32 %s43, 1
        %s810 = sand.u32 %s56, 1
        %s811 = scalar_lea.sflag [#allocation3], %s810
        %s812 = sand.u32 %s56, 1
        %s813 = smul.addr %s812, 512
        %s814 = scalar_lea.vmem [#allocation2], %s813
        // Predicated region
        $region109: #{tpu_custom_call.1} parent=107 // pred_check
          %p815 = pneg %p69
        $region110: #{tpu_custom_call.1} parent=107 // pred_check_branch
          %817 = sbr.rel (%p815) target = $region112
        $region111: #{tpu_custom_call.1} parent=107 // pred_region
          %818 = dma.done %s811, 8192
        $region112: #{tpu_custom_call.1} parent=107 // pred_fallthru
          _
        %s819 = sand.u32 %s48, 1
        %s820 = scalar_lea.sflag [#allocation6], %s819
        %s821 = sand.u32 %s82, 1
        %s822 = smul.addr %s821, 128
        %s823 = scalar_lea.vmem [#allocation5], %s822
        // Predicated region
        $region113: #{tpu_custom_call.1} parent=107 // pred_check
          %p824 = pneg %p95
        $region114: #{tpu_custom_call.1} parent=107 // pred_check_branch
          %826 = sbr.rel (%p824) target = $region116
        $region115: #{tpu_custom_call.1} parent=107 // pred_region
          %827 = dma.done %s820, 2048
        $region116: #{tpu_custom_call.1} parent=107 // pred_fallthru
          _
        // Predicated region
        $region117: #{tpu_custom_call.1} parent=107 // pred_check
          %p828 = pneg %p137
        $region118: #{tpu_custom_call.1} parent=107 // pred_check_branch
          %830 = sbr.rel (%p828) target = $region120
        $region119: #{tpu_custom_call.1} parent=107 // pred_region
          %831 = dma.done [#allocation6], 128
        $region120: #{tpu_custom_call.1} parent=107 // pred_fallthru
          _
        // Predicated region
        $region121: #{tpu_custom_call.1} parent=107 // pred_check
          %p832 = pneg %p158
        $region122: #{tpu_custom_call.1} parent=107 // pred_check_branch
          %834 = sbr.rel (%p832) target = $region124
        $region123: #{tpu_custom_call.1} parent=107 // pred_region
          %835 = dma.done [#allocation9], 1024
        $region124: #{tpu_custom_call.1} parent=107 // pred_fallthru
          _
        // Predicated region
        $region125: #{tpu_custom_call.1} parent=107 // pred_check
          %p836 = pneg %p179
        $region126: #{tpu_custom_call.1} parent=107 // pred_check_branch
          %838 = sbr.rel (%p836) target = $region128
        $region127: #{tpu_custom_call.1} parent=107 // pred_region
          %839 = dma.done [#allocation9], 16
        $region128: #{tpu_custom_call.1} parent=107 // pred_fallthru
          _
        // Predicated region
        $region129: #{tpu_custom_call.1} parent=107 // pred_check
          %p840 = pneg %p200
        $region130: #{tpu_custom_call.1} parent=107 // pred_check_branch
          %842 = sbr.rel (%p840) target = $region132
        $region131: #{tpu_custom_call.1} parent=107 // pred_region
          %843 = dma.done [#allocation12], 1024
        $region132: #{tpu_custom_call.1} parent=107 // pred_fallthru
          _
        // Predicated region
        $region133: #{tpu_custom_call.1} parent=107 // pred_check
          %p844 = pneg %p221
        $region134: #{tpu_custom_call.1} parent=107 // pred_check_branch
          %846 = sbr.rel (%p844) target = $region136
        $region135: #{tpu_custom_call.1} parent=107 // pred_region
          %847 = dma.done [#allocation12], 16
        $region136: #{tpu_custom_call.1} parent=107 // pred_fallthru
          _
        // Predicated region
        $region137: #{tpu_custom_call.1} parent=107 // pred_check
          %p848 = pneg %p242
        $region138: #{tpu_custom_call.1} parent=107 // pred_check_branch
          %850 = sbr.rel (%p848) target = $region140
        $region139: #{tpu_custom_call.1} parent=107 // pred_region
          %851 = dma.done [#allocation15], 1024
        $region140: #{tpu_custom_call.1} parent=107 // pred_fallthru
          _
        // Predicated region
        $region141: #{tpu_custom_call.1} parent=107 // pred_check
          %p852 = pneg %p263
        $region142: #{tpu_custom_call.1} parent=107 // pred_check_branch
          %854 = sbr.rel (%p852) target = $region144
        $region143: #{tpu_custom_call.1} parent=107 // pred_region
          %855 = dma.done [#allocation15], 16
        $region144: #{tpu_custom_call.1} parent=107 // pred_fallthru
          _
        // Predicated region
        $region145: #{tpu_custom_call.1} parent=107 // pred_check
          %p856 = pneg %p305
        $region146: #{tpu_custom_call.1} parent=107 // pred_check_branch
          %858 = sbr.rel (%p856) target = $region148
        $region147: #{tpu_custom_call.1} parent=107 // pred_region
          %859 = dma.done [#allocation18], 128
        $region148: #{tpu_custom_call.1} parent=107 // pred_fallthru
          _
        // Predicated region
        $region149: #{tpu_custom_call.1} parent=107 // pred_check
          %p860 = pneg %p326
        $region150: #{tpu_custom_call.1} parent=107 // pred_check_branch
          %862 = sbr.rel (%p860) target = $region152
        $region151: #{tpu_custom_call.1} parent=107 // pred_region
          %863 = dma.done [#allocation18], 16
        $region152: #{tpu_custom_call.1} parent=107 // pred_fallthru
          _
        // Predicated region
        $region153: #{tpu_custom_call.1} parent=107 // pred_check
          %p864 = pneg %p347
        $region154: #{tpu_custom_call.1} parent=107 // pred_check_branch
          %866 = sbr.rel (%p864) target = $region156
        $region155: #{tpu_custom_call.1} parent=107 // pred_region
          %867 = dma.done [#allocation21], 16
        $region156: #{tpu_custom_call.1} parent=107 // pred_fallthru
          _
        // Predicated region
        $region157: #{tpu_custom_call.1} parent=107 // pred_check
          %p868 = pneg %p368
        $region158: #{tpu_custom_call.1} parent=107 // pred_check_branch
          %870 = sbr.rel (%p868) target = $region160
        $region159: #{tpu_custom_call.1} parent=107 // pred_region
          %871 = dma.done [#allocation21], 4096
        $region160: #{tpu_custom_call.1} parent=107 // pred_fallthru
          _
        // Predicated region
        $region161: #{tpu_custom_call.1} parent=107 // pred_check
          %p872 = pneg %p389
        $region162: #{tpu_custom_call.1} parent=107 // pred_check_branch
          %874 = sbr.rel (%p872) target = $region164
        $region163: #{tpu_custom_call.1} parent=107 // pred_region
          %875 = dma.done [#allocation24], 64
        $region164: #{tpu_custom_call.1} parent=107 // pred_fallthru
          _
        // Predicated region
        $region165: #{tpu_custom_call.1} parent=107 // pred_check
          %p876 = pneg %p410
        $region166: #{tpu_custom_call.1} parent=107 // pred_check_branch
          %878 = sbr.rel (%p876) target = $region168
        $region167: #{tpu_custom_call.1} parent=107 // pred_region
          %879 = dma.done [#allocation24], 4096
        $region168: #{tpu_custom_call.1} parent=107 // pred_fallthru
          _
        %s880 = sand.u32 %s56, 1
        %s881 = scalar_lea.sflag [#allocation3], %s880
        %s882 = sand.u32 %s56, 1
        %s883 = smul.addr %s882, 512
        %s884 = scalar_lea.vmem [#allocation2], %s883
        %p885 = pneg %p69
        %p886 = pneg %p66
        %s887 = sand.u32 %s48, 1
        %s888 = scalar_lea.sflag [#allocation6], %s887
        %s889 = sand.u32 %s82, 1
        %s890 = smul.addr %s889, 128
        %s891 = scalar_lea.vmem [#allocation5], %s890
        %p892 = pneg %p95
        %p893 = pneg %p92
        %p894 = pneg %p116
        %p895 = pneg %p113
        %p896 = pneg %p137
        %p897 = pneg %p134
        %p898 = pneg %p158
        %p899 = pneg %p155
        %p900 = pneg %p179
        %p901 = pneg %p176
        %p902 = pneg %p200
        %p903 = pneg %p197
        %p904 = pneg %p221
        %p905 = pneg %p218
        %p906 = pneg %p242
        %p907 = pneg %p239
        %p908 = pneg %p263
        %p909 = pneg %p260
        %p910 = pneg %p284
        %p911 = pneg %p281
        %p912 = pneg %p305
        %p913 = pneg %p302
        %p914 = pneg %p326
        %p915 = pneg %p323
        %p916 = pneg %p347
        %p917 = pneg %p344
        %p918 = pneg %p368
        %p919 = pneg %p365
        %p920 = pneg %p389
        %p921 = pneg %p386
        %p922 = pneg %p410
        %p923 = pneg %p407
        %p924 = pneg %p431
        %p925 = pneg %p428
        %p926 = pneg %p452
        %p927 = pneg %p449
        %p928 = pneg %p473
        %p929 = pneg %p470
        %p930 = pneg %p494
        %p931 = pneg %p491
        %p932 = pneg %p515
        %p933 = pneg %p512
        %p934 = pneg %p541
        %p935 = pneg %p538
        %s936 = sand.u32 %s528, 1
        %s937 = scalar_lea.sflag [#allocation4], %s936
        %s938 = sand.u32 %s528, 1
        %s939 = smul.addr %s938, 256
        %s940 = scalar_lea.vmem [#allocation26], %s939
        %s941 = smul.u32 32, %s48
        %s942 = smul.u32 32, %s48
        %s943 = smul.u32 32, %s48
        %v945 = vld [vmem:[%s823] sm:$0xf]
        %v946 = vld [vmem:[%s823 + $0x4] sm:$0xf]
        %v947 = vld [vmem:[%s823 + $0x8] sm:$0xf]
        %v948 = vld [vmem:[%s823 + $0xc] sm:$0xf]
        %v949 = vld [vmem:[%s823 + $0x10] sm:$0xf]
        %v950 = vld [vmem:[%s823 + $0x14] sm:$0xf]
        %v951 = vld [vmem:[%s823 + $0x18] sm:$0xf]
        %v952 = vld [vmem:[%s823 + $0x1c] sm:$0xf]
        %v953 = vld [vmem:[%s823 + $0x20] sm:$0xf]
        %v954 = vld [vmem:[%s823 + $0x24] sm:$0xf]
        %v955 = vld [vmem:[%s823 + $0x28] sm:$0xf]
        %v956 = vld [vmem:[%s823 + $0x2c] sm:$0xf]
        %v957 = vld [vmem:[%s823 + $0x30] sm:$0xf]
        %v958 = vld [vmem:[%s823 + $0x34] sm:$0xf]
        %v959 = vld [vmem:[%s823 + $0x38] sm:$0xf]
        %v960 = vld [vmem:[%s823 + $0x3c] sm:$0xf]
        %v961 = vld [vmem:[%s823 + $0x40] sm:$0xf]
        %v962 = vld [vmem:[%s823 + $0x44] sm:$0xf]
        %v963 = vld [vmem:[%s823 + $0x48] sm:$0xf]
        %v964 = vld [vmem:[%s823 + $0x4c] sm:$0xf]
        %v965 = vld [vmem:[%s823 + $0x50] sm:$0xf]
        %v966 = vld [vmem:[%s823 + $0x54] sm:$0xf]
        %v967 = vld [vmem:[%s823 + $0x58] sm:$0xf]
        %v968 = vld [vmem:[%s823 + $0x5c] sm:$0xf]
        %v969 = vld [vmem:[%s823 + $0x60] sm:$0xf]
        %v970 = vld [vmem:[%s823 + $0x64] sm:$0xf]
        %v971 = vld [vmem:[%s823 + $0x68] sm:$0xf]
        %v972 = vld [vmem:[%s823 + $0x6c] sm:$0xf]
        %v973 = vld [vmem:[%s823 + $0x70] sm:$0xf]
        %v974 = vld [vmem:[%s823 + $0x74] sm:$0xf]
        %v975 = vld [vmem:[%s823 + $0x78] sm:$0xf]
        %v976 = vld [vmem:[%s823 + $0x7c] sm:$0xf]
        %v977 = vld [vmem:[#allocation8] sm:$0xf]
        %v978 = vld [vmem:[#allocation8 + $0x4] sm:$0xf]
        %v979 = vld [vmem:[#allocation8 + $0x8] sm:$0xf]
        %v980 = vld [vmem:[#allocation8 + $0xc] sm:$0xf]
        %v981 = vld [vmem:[#allocation8 + $0x10] sm:$0xf]
        %v982 = vld [vmem:[#allocation8 + $0x14] sm:$0xf]
        %v983 = vld [vmem:[#allocation8 + $0x18] sm:$0xf]
        %v984 = vld [vmem:[#allocation8 + $0x1c] sm:$0xf]
        %v985 = vld [vmem:[#allocation8 + $0x20] sm:$0xf]
        %v986 = vld [vmem:[#allocation8 + $0x24] sm:$0xf]
        %v987 = vld [vmem:[#allocation8 + $0x28] sm:$0xf]
        %v988 = vld [vmem:[#allocation8 + $0x2c] sm:$0xf]
        %v989 = vld [vmem:[#allocation8 + $0x30] sm:$0xf]
        %v990 = vld [vmem:[#allocation8 + $0x34] sm:$0xf]
        %v991 = vld [vmem:[#allocation8 + $0x38] sm:$0xf]
        %v992 = vld [vmem:[#allocation8 + $0x3c] sm:$0xf]
        %v993 = vld [vmem:[#allocation10] sm:$0x1]
        %v995 = vlaneseq
        %v996 = vshrl.u32 %v995, 7
        %v997 = vsub.s32 0, %v996
        %v998 = vrot.slane %v993, %v997
        %v1032 = vunpack.c.l.b16 %v945
        %v1033 = vunpack.c.l.b16 %v946
        %v1034 = vunpack.c.l.b16 %v947
        %v1035 = vunpack.c.l.b16 %v948
        %v1036 = vunpack.c.l.b16 %v949
        %v1037 = vunpack.c.l.b16 %v950
        %v1038 = vunpack.c.l.b16 %v951
        %v1039 = vunpack.c.l.b16 %v952
        %v1040 = vunpack.c.l.b16 %v953
        %v1041 = vunpack.c.l.b16 %v954
        %v1042 = vunpack.c.l.b16 %v955
        %v1043 = vunpack.c.l.b16 %v956
        %v1044 = vunpack.c.l.b16 %v957
        %v1045 = vunpack.c.l.b16 %v958
        %v1046 = vunpack.c.l.b16 %v959
        %v1047 = vunpack.c.l.b16 %v960
        %v1048 = vunpack.c.l.b16 %v961
        %v1049 = vunpack.c.l.b16 %v962
        %v1050 = vunpack.c.l.b16 %v963
        %v1051 = vunpack.c.l.b16 %v964
        %v1052 = vunpack.c.l.b16 %v965
        %v1053 = vunpack.c.l.b16 %v966
        %v1054 = vunpack.c.l.b16 %v967
        %v1055 = vunpack.c.l.b16 %v968
        %v1056 = vunpack.c.l.b16 %v969
        %v1057 = vunpack.c.l.b16 %v970
        %v1058 = vunpack.c.l.b16 %v971
        %v1059 = vunpack.c.l.b16 %v972
        %v1060 = vunpack.c.l.b16 %v973
        %v1061 = vunpack.c.l.b16 %v974
        %v1062 = vunpack.c.l.b16 %v975
        %v1063 = vunpack.c.l.b16 %v976
        %v1064 = vpack.c.b16 %v1033, %v1032
        %v1065 = vpack.c.b16 %v1035, %v1034
        %v1066 = vpack.c.b16 %v1037, %v1036
        %v1067 = vpack.c.b16 %v1039, %v1038
        %v1068 = vpack.c.b16 %v1041, %v1040
        %v1069 = vpack.c.b16 %v1043, %v1042
        %v1070 = vpack.c.b16 %v1045, %v1044
        %v1071 = vpack.c.b16 %v1047, %v1046
        %v1072 = vpack.c.b16 %v1049, %v1048
        %v1073 = vpack.c.b16 %v1051, %v1050
        %v1074 = vpack.c.b16 %v1053, %v1052
        %v1075 = vpack.c.b16 %v1055, %v1054
        %v1076 = vpack.c.b16 %v1057, %v1056
        %v1077 = vpack.c.b16 %v1059, %v1058
        %v1078 = vpack.c.b16 %v1061, %v1060
        %v1079 = vpack.c.b16 %v1063, %v1062
        %v1112 = vunpack.c.l.b16 %v977
        %v1113 = vunpack.c.l.b16 %v978
        %v1114 = vunpack.c.l.b16 %v979
        %v1115 = vunpack.c.l.b16 %v980
        %v1116 = vunpack.c.l.b16 %v981
        %v1117 = vunpack.c.l.b16 %v982
        %v1118 = vunpack.c.l.b16 %v983
        %v1119 = vunpack.c.l.b16 %v984
        %v1120 = vunpack.c.l.b16 %v985
        %v1121 = vunpack.c.l.b16 %v986
        %v1122 = vunpack.c.l.b16 %v987
        %v1123 = vunpack.c.l.b16 %v988
        %v1124 = vunpack.c.l.b16 %v989
        %v1125 = vunpack.c.l.b16 %v990
        %v1126 = vunpack.c.l.b16 %v991
        %v1127 = vunpack.c.l.b16 %v992
        %v1128 = vpack.c.b16 %v1113, %v1112
        %v1129 = vpack.c.b16 %v1115, %v1114
        %v1130 = vpack.c.b16 %v1117, %v1116
        %v1131 = vpack.c.b16 %v1119, %v1118
        %v1132 = vpack.c.b16 %v1121, %v1120
        %v1133 = vpack.c.b16 %v1123, %v1122
        %v1134 = vpack.c.b16 %v1125, %v1124
        %v1135 = vpack.c.b16 %v1127, %v1126
        %1144 = vmatprep.subr.bf16.mxu0 0
        %1145 = vmatpush1.bf16.msra.mxu0 %v1128
        %1146 = vmatprep.subr.bf16.mxu0 0
        %1147 = vmatpush1.bf16.msra.mxu0 %v1129
        %1148 = vmatprep.subr.bf16.mxu0 0
        %1149 = vmatpush1.bf16.msra.mxu0 %v1130
        %1150 = vmatprep.subr.bf16.mxu0 0
        %1151 = vmatpush1.bf16.msra.mxu0 %v1131
        %1152 = vmatprep.subr.bf16.mxu0 0
        %1153 = vmatpush1.bf16.msra.mxu0 %v1132
        %1154 = vmatprep.subr.bf16.mxu0 0
        %1155 = vmatpush1.bf16.msra.mxu0 %v1133
        %1156 = vmatprep.subr.bf16.mxu0 0
        %1157 = vmatpush1.bf16.msra.mxu0 %v1134
        %1158 = vmatprep.subr.bf16.mxu0 0
        %1159 = vmatpush1.bf16.msra.mxu0 %v1135
        %1160 = vmatprep.subr.bf16.mxu0 0
        %1161 = vmatpush1.bf16.msra.mxu0 0
        %1162 = vmatprep.subr.bf16.mxu0 0
        %1163 = vmatpush1.bf16.msra.mxu0 0
        %1164 = vmatprep.subr.bf16.mxu0 0
        %1165 = vmatpush1.bf16.msra.mxu0 0
        %1166 = vmatprep.subr.bf16.mxu0 0
        %1167 = vmatpush1.bf16.msra.mxu0 0
        %1168 = vmatprep.subr.bf16.mxu0 0
        %1169 = vmatpush1.bf16.msra.mxu0 0
        %1170 = vmatprep.subr.bf16.mxu0 0
        %1171 = vmatpush1.bf16.msra.mxu0 0
        %1172 = vmatprep.subr.bf16.mxu0 0
        %1173 = vmatpush1.bf16.msra.mxu0 0
        %1174 = vmatprep.subr.bf16.mxu0 0
        %1175 = vmatpush1.bf16.msra.mxu0 0
        %1176 = vmatprep.mubr.bf16.mxu0 0
        %1177 = vmatmul.mubr.bf16.gmra.mrb[0].mxu0 %v1064
        %v1178 = vpop.f32.mrb[0].mxu0
        %v1179 = vadd.f32 %v998, %v1178
        %v1180 = vpop.f32.mrb[0].mxu0
        %v1181 = vpop.f32.mrb[0].mxu0
        %v1182 = vadd.f32 %v998, %v1181
        %v1183 = vpop.f32.mrb[0].mxu0
        %1184 = vmatprep.mubr.bf16.mxu0 0
        %1185 = vmatmul.mubr.bf16.gmra.mrb[0].mxu0 %v1065
        %v1186 = vpop.f32.mrb[0].mxu0
        %v1187 = vadd.f32 %v998, %v1186
        %v1188 = vpop.f32.mrb[0].mxu0
        %v1189 = vpop.f32.mrb[0].mxu0
        %v1190 = vadd.f32 %v998, %v1189
        %v1191 = vpop.f32.mrb[0].mxu0
        %1192 = vmatprep.mubr.bf16.mxu0 0
        %1193 = vmatmul.mubr.bf16.gmra.mrb[0].mxu0 %v1066
        %v1194 = vpop.f32.mrb[0].mxu0
        %v1195 = vadd.f32 %v998, %v1194
        %v1196 = vpop.f32.mrb[0].mxu0
        %v1197 = vpop.f32.mrb[0].mxu0
        %v1198 = vadd.f32 %v998, %v1197
        %v1199 = vpop.f32.mrb[0].mxu0
        %1200 = vmatprep.mubr.bf16.mxu0 0
        %1201 = vmatmul.mubr.bf16.gmra.mrb[0].mxu0 %v1067
        %v1202 = vpop.f32.mrb[0].mxu0
        %v1203 = vadd.f32 %v998, %v1202
        %v1204 = vpop.f32.mrb[0].mxu0
        %v1205 = vpop.f32.mrb[0].mxu0
        %v1206 = vadd.f32 %v998, %v1205
        %v1207 = vpop.f32.mrb[0].mxu0
        %1208 = vmatprep.mubr.bf16.mxu0 0
        %1209 = vmatmul.mubr.bf16.gmra.mrb[0].mxu0 %v1068
        %v1210 = vpop.f32.mrb[0].mxu0
        %v1211 = vadd.f32 %v998, %v1210
        %v1212 = vpop.f32.mrb[0].mxu0
        %v1213 = vpop.f32.mrb[0].mxu0
        %v1214 = vadd.f32 %v998, %v1213
        %v1215 = vpop.f32.mrb[0].mxu0
        %1216 = vmatprep.mubr.bf16.mxu0 0
        %1217 = vmatmul.mubr.bf16.gmra.mrb[0].mxu0 %v1069
        %v1218 = vpop.f32.mrb[0].mxu0
        %v1219 = vadd.f32 %v998, %v1218
        %v1220 = vpop.f32.mrb[0].mxu0
        %v1221 = vpop.f32.mrb[0].mxu0
        %v1222 = vadd.f32 %v998, %v1221
        %v1223 = vpop.f32.mrb[0].mxu0
        %1224 = vmatprep.mubr.bf16.mxu0 0
        %1225 = vmatmul.mubr.bf16.gmra.mrb[0].mxu0 %v1070
        %v1226 = vpop.f32.mrb[0].mxu0
        %v1227 = vadd.f32 %v998, %v1226
        %v1228 = vpop.f32.mrb[0].mxu0
        %v1229 = vpop.f32.mrb[0].mxu0
        %v1230 = vadd.f32 %v998, %v1229
        %v1231 = vpop.f32.mrb[0].mxu0
        %1232 = vmatprep.mubr.bf16.mxu0 0
        %1233 = vmatmul.mubr.bf16.gmra.mrb[0].mxu0 %v1071
        %v1234 = vpop.f32.mrb[0].mxu0
        %v1235 = vadd.f32 %v998, %v1234
        %v1236 = vpop.f32.mrb[0].mxu0
        %v1237 = vpop.f32.mrb[0].mxu0
        %v1238 = vadd.f32 %v998, %v1237
        %v1239 = vpop.f32.mrb[0].mxu0
        %1240 = vmatprep.mubr.bf16.mxu0 0
        %1241 = vmatmul.mubr.bf16.gmra.mrb[0].mxu0 %v1072
        %v1242 = vpop.f32.mrb[0].mxu0
        %v1243 = vadd.f32 %v998, %v1242
        %v1244 = vpop.f32.mrb[0].mxu0
        %v1245 = vpop.f32.mrb[0].mxu0
        %v1246 = vadd.f32 %v998, %v1245
        %v1247 = vpop.f32.mrb[0].mxu0
        %1248 = vmatprep.mubr.bf16.mxu0 0
        %1249 = vmatmul.mubr.bf16.gmra.mrb[0].mxu0 %v1073
        %v1250 = vpop.f32.mrb[0].mxu0
        %v1251 = vadd.f32 %v998, %v1250
        %v1252 = vpop.f32.mrb[0].mxu0
        %v1253 = vpop.f32.mrb[0].mxu0
        %v1254 = vadd.f32 %v998, %v1253
        %v1255 = vpop.f32.mrb[0].mxu0
        %1256 = vmatprep.mubr.bf16.mxu0 0
        %1257 = vmatmul.mubr.bf16.gmra.mrb[0].mxu0 %v1074
        %v1258 = vpop.f32.mrb[0].mxu0
        %v1259 = vadd.f32 %v998, %v1258
        %v1260 = vpop.f32.mrb[0].mxu0
        %v1261 = vpop.f32.mrb[0].mxu0
        %v1262 = vadd.f32 %v998, %v1261
        %v1263 = vpop.f32.mrb[0].mxu0
        %1264 = vmatprep.mubr.bf16.mxu0 0
        %1265 = vmatmul.mubr.bf16.gmra.mrb[0].mxu0 %v1075
        %v1266 = vpop.f32.mrb[0].mxu0
        %v1267 = vadd.f32 %v998, %v1266
        %v1268 = vpop.f32.mrb[0].mxu0
        %v1269 = vpop.f32.mrb[0].mxu0
        %v1270 = vadd.f32 %v998, %v1269
        %v1271 = vpop.f32.mrb[0].mxu0
        %1272 = vmatprep.mubr.bf16.mxu0 0
        %1273 = vmatmul.mubr.bf16.gmra.mrb[0].mxu0 %v1076
        %v1274 = vpop.f32.mrb[0].mxu0
        %v1275 = vadd.f32 %v998, %v1274
        %v1276 = vpop.f32.mrb[0].mxu0
        %v1277 = vpop.f32.mrb[0].mxu0
        %v1278 = vadd.f32 %v998, %v1277
        %v1279 = vpop.f32.mrb[0].mxu0
        %1280 = vmatprep.mubr.bf16.mxu0 0
        %1281 = vmatmul.mubr.bf16.gmra.mrb[0].mxu0 %v1077
        %v1282 = vpop.f32.mrb[0].mxu0
        %v1283 = vadd.f32 %v998, %v1282
        %v1284 = vpop.f32.mrb[0].mxu0
        %v1285 = vpop.f32.mrb[0].mxu0
        %v1286 = vadd.f32 %v998, %v1285
        %v1287 = vpop.f32.mrb[0].mxu0
        %1288 = vmatprep.mubr.bf16.mxu0 0
        %1289 = vmatmul.mubr.bf16.gmra.mrb[0].mxu0 %v1078
        %v1290 = vpop.f32.mrb[0].mxu0
        %v1291 = vadd.f32 %v998, %v1290
        %v1292 = vpop.f32.mrb[0].mxu0
        %v1293 = vpop.f32.mrb[0].mxu0
        %v1294 = vadd.f32 %v998, %v1293
        %v1295 = vpop.f32.mrb[0].mxu0
        %1296 = vmatprep.mubr.bf16.mxu0 0
        %1297 = vmatmul.mubr.bf16.gmra.mrb[0].mxu0 %v1079
        %v1298 = vpop.f32.mrb[0].mxu0
        %v1299 = vadd.f32 %v998, %v1298
        %v1300 = vpop.f32.mrb[0].mxu0
        %v1301 = vpop.f32.mrb[0].mxu0
        %v1302 = vadd.f32 %v998, %v1301
        %v1303 = vpop.f32.mrb[0].mxu0
        %1304 = vdwg.mxu0
        %v1305 = vpack.c.bf16 %v1182, %v1179
        %v1306 = vpack.c.bf16 %v1190, %v1187
        %v1307 = vpack.c.bf16 %v1198, %v1195
        %v1308 = vpack.c.bf16 %v1206, %v1203
        %v1309 = vpack.c.bf16 %v1214, %v1211
        %v1310 = vpack.c.bf16 %v1222, %v1219
        %v1311 = vpack.c.bf16 %v1230, %v1227
        %v1312 = vpack.c.bf16 %v1238, %v1235
        %v1313 = vpack.c.bf16 %v1246, %v1243
        %v1314 = vpack.c.bf16 %v1254, %v1251
        %v1315 = vpack.c.bf16 %v1262, %v1259
        %v1316 = vpack.c.bf16 %v1270, %v1267
        %v1317 = vpack.c.bf16 %v1278, %v1275
        %v1318 = vpack.c.bf16 %v1286, %v1283
        %v1319 = vpack.c.bf16 %v1294, %v1291
        %v1320 = vpack.c.bf16 %v1302, %v1299
        %v1321 = vld [vmem:[#allocation11] sm:$0xf]
        %v1322 = vld [vmem:[#allocation11 + $0x4] sm:$0xf]
        %v1323 = vld [vmem:[#allocation11 + $0x8] sm:$0xf]
        %v1324 = vld [vmem:[#allocation11 + $0xc] sm:$0xf]
        %v1325 = vld [vmem:[#allocation11 + $0x10] sm:$0xf]
        %v1326 = vld [vmem:[#allocation11 + $0x14] sm:$0xf]
        %v1327 = vld [vmem:[#allocation11 + $0x18] sm:$0xf]
        %v1328 = vld [vmem:[#allocation11 + $0x1c] sm:$0xf]
        %v1329 = vld [vmem:[#allocation11 + $0x20] sm:$0xf]
        %v1330 = vld [vmem:[#allocation11 + $0x24] sm:$0xf]
        %v1331 = vld [vmem:[#allocation11 + $0x28] sm:$0xf]
        %v1332 = vld [vmem:[#allocation11 + $0x2c] sm:$0xf]
        %v1333 = vld [vmem:[#allocation11 + $0x30] sm:$0xf]
        %v1334 = vld [vmem:[#allocation11 + $0x34] sm:$0xf]
        %v1335 = vld [vmem:[#allocation11 + $0x38] sm:$0xf]
        %v1336 = vld [vmem:[#allocation11 + $0x3c] sm:$0xf]
        %v1337 = vld [vmem:[#allocation13] sm:$0x1]
        %v1339 = vlaneseq
        %v1340 = vshrl.u32 %v1339, 7
        %v1341 = vsub.s32 0, %v1340
        %v1342 = vrot.slane %v1337, %v1341
        %v1360 = vunpack.c.l.b16 %v1321
        %v1361 = vunpack.c.l.b16 %v1322
        %v1362 = vunpack.c.l.b16 %v1323
        %v1363 = vunpack.c.l.b16 %v1324
        %v1364 = vunpack.c.l.b16 %v1325
        %v1365 = vunpack.c.l.b16 %v1326
        %v1366 = vunpack.c.l.b16 %v1327
        %v1367 = vunpack.c.l.b16 %v1328
        %v1368 = vunpack.c.l.b16 %v1329
        %v1369 = vunpack.c.l.b16 %v1330
        %v1370 = vunpack.c.l.b16 %v1331
        %v1371 = vunpack.c.l.b16 %v1332
        %v1372 = vunpack.c.l.b16 %v1333
        %v1373 = vunpack.c.l.b16 %v1334
        %v1374 = vunpack.c.l.b16 %v1335
        %v1375 = vunpack.c.l.b16 %v1336
        %v1376 = vpack.c.b16 %v1361, %v1360
        %v1377 = vpack.c.b16 %v1363, %v1362
        %v1378 = vpack.c.b16 %v1365, %v1364
        %v1379 = vpack.c.b16 %v1367, %v1366
        %v1380 = vpack.c.b16 %v1369, %v1368
        %v1381 = vpack.c.b16 %v1371, %v1370
        %v1382 = vpack.c.b16 %v1373, %v1372
        %v1383 = vpack.c.b16 %v1375, %v1374
        %1392 = vmatprep.subr.bf16.mxu0 0
        %1393 = vmatpush1.bf16.msra.mxu0 %v1376
        %1394 = vmatprep.subr.bf16.mxu0 0
        %1395 = vmatpush1.bf16.msra.mxu0 %v1377
        %1396 = vmatprep.subr.bf16.mxu0 0
        %1397 = vmatpush1.bf16.msra.mxu0 %v1378
        %1398 = vmatprep.subr.bf16.mxu0 0
        %1399 = vmatpush1.bf16.msra.mxu0 %v1379
        %1400 = vmatprep.subr.bf16.mxu0 0
        %1401 = vmatpush1.bf16.msra.mxu0 %v1380
        %1402 = vmatprep.subr.bf16.mxu0 0
        %1403 = vmatpush1.bf16.msra.mxu0 %v1381
        %1404 = vmatprep.subr.bf16.mxu0 0
        %1405 = vmatpush1.bf16.msra.mxu0 %v1382
        %1406 = vmatprep.subr.bf16.mxu0 0
        %1407 = vmatpush1.bf16.msra.mxu0 %v1383
        %1408 = vmatprep.subr.bf16.mxu0 0
        %1409 = vmatpush1.bf16.msra.mxu0 0
        %1410 = vmatprep.subr.bf16.mxu0 0
        %1411 = vmatpush1.bf16.msra.mxu0 0
        %1412 = vmatprep.subr.bf16.mxu0 0
        %1413 = vmatpush1.bf16.msra.mxu0 0
        %1414 = vmatprep.subr.bf16.mxu0 0
        %1415 = vmatpush1.bf16.msra.mxu0 0
        %1416 = vmatprep.subr.bf16.mxu0 0
        %1417 = vmatpush1.bf16.msra.mxu0 0
        %1418 = vmatprep.subr.bf16.mxu0 0
        %1419 = vmatpush1.bf16.msra.mxu0 0
        %1420 = vmatprep.subr.bf16.mxu0 0
        %1421 = vmatpush1.bf16.msra.mxu0 0
        %1422 = vmatprep.subr.bf16.mxu0 0
        %1423 = vmatpush1.bf16.msra.mxu0 0
        %1424 = vmatprep.mubr.bf16.mxu0 0
        %1425 = vmatmul.mubr.bf16.gmra.mrb[0].mxu0 %v1305
        %v1426 = vpop.f32.mrb[0].mxu0
        %v1427 = vadd.f32 %v1342, %v1426
        %v1428 = vpop.f32.mrb[0].mxu0
        %v1429 = vpop.f32.mrb[0].mxu0
        %v1430 = vadd.f32 %v1342, %v1429
        %v1431 = vpop.f32.mrb[0].mxu0
        %1432 = vmatprep.mubr.bf16.mxu0 0
        %1433 = vmatmul.mubr.bf16.gmra.mrb[0].mxu0 %v1306
        %v1434 = vpop.f32.mrb[0].mxu0
        %v1435 = vadd.f32 %v1342, %v1434
        %v1436 = vpop.f32.mrb[0].mxu0
        %v1437 = vpop.f32.mrb[0].mxu0
        %v1438 = vadd.f32 %v1342, %v1437
        %v1439 = vpop.f32.mrb[0].mxu0
        %1440 = vmatprep.mubr.bf16.mxu0 0
        %1441 = vmatmul.mubr.bf16.gmra.mrb[0].mxu0 %v1307
        %v1442 = vpop.f32.mrb[0].mxu0
        %v1443 = vadd.f32 %v1342, %v1442
        %v1444 = vpop.f32.mrb[0].mxu0
        %v1445 = vpop.f32.mrb[0].mxu0
        %v1446 = vadd.f32 %v1342, %v1445
        %v1447 = vpop.f32.mrb[0].mxu0
        %1448 = vmatprep.mubr.bf16.mxu0 0
        %1449 = vmatmul.mubr.bf16.gmra.mrb[0].mxu0 %v1308
        %v1450 = vpop.f32.mrb[0].mxu0
        %v1451 = vadd.f32 %v1342, %v1450
        %v1452 = vpop.f32.mrb[0].mxu0
        %v1453 = vpop.f32.mrb[0].mxu0
        %v1454 = vadd.f32 %v1342, %v1453
        %v1455 = vpop.f32.mrb[0].mxu0
        %1456 = vmatprep.mubr.bf16.mxu0 0
        %1457 = vmatmul.mubr.bf16.gmra.mrb[0].mxu0 %v1309
        %v1458 = vpop.f32.mrb[0].mxu0
        %v1459 = vadd.f32 %v1342, %v1458
        %v1460 = vpop.f32.mrb[0].mxu0
        %v1461 = vpop.f32.mrb[0].mxu0
        %v1462 = vadd.f32 %v1342, %v1461
        %v1463 = vpop.f32.mrb[0].mxu0
        %1464 = vmatprep.mubr.bf16.mxu0 0
        %1465 = vmatmul.mubr.bf16.gmra.mrb[0].mxu0 %v1310
        %v1466 = vpop.f32.mrb[0].mxu0
        %v1467 = vadd.f32 %v1342, %v1466
        %v1468 = vpop.f32.mrb[0].mxu0
        %v1469 = vpop.f32.mrb[0].mxu0
        %v1470 = vadd.f32 %v1342, %v1469
        %v1471 = vpop.f32.mrb[0].mxu0
        %1472 = vmatprep.mubr.bf16.mxu0 0
        %1473 = vmatmul.mubr.bf16.gmra.mrb[0].mxu0 %v1311
        %v1474 = vpop.f32.mrb[0].mxu0
        %v1475 = vadd.f32 %v1342, %v1474
        %v1476 = vpop.f32.mrb[0].mxu0
        %v1477 = vpop.f32.mrb[0].mxu0
        %v1478 = vadd.f32 %v1342, %v1477
        %v1479 = vpop.f32.mrb[0].mxu0
        %1480 = vmatprep.mubr.bf16.mxu0 0
        %1481 = vmatmul.mubr.bf16.gmra.mrb[0].mxu0 %v1312
        %v1482 = vpop.f32.mrb[0].mxu0
        %v1483 = vadd.f32 %v1342, %v1482
        %v1484 = vpop.f32.mrb[0].mxu0
        %v1485 = vpop.f32.mrb[0].mxu0
        %v1486 = vadd.f32 %v1342, %v1485
        %v1487 = vpop.f32.mrb[0].mxu0
        %1488 = vmatprep.mubr.bf16.mxu0 0
        %1489 = vmatmul.mubr.bf16.gmra.mrb[0].mxu0 %v1313
        %v1490 = vpop.f32.mrb[0].mxu0
        %v1491 = vadd.f32 %v1342, %v1490
        %v1492 = vpop.f32.mrb[0].mxu0
        %v1493 = vpop.f32.mrb[0].mxu0
        %v1494 = vadd.f32 %v1342, %v1493
        %v1495 = vpop.f32.mrb[0].mxu0
        %1496 = vmatprep.mubr.bf16.mxu0 0
        %1497 = vmatmul.mubr.bf16.gmra.mrb[0].mxu0 %v1314
        %v1498 = vpop.f32.mrb[0].mxu0
        %v1499 = vadd.f32 %v1342, %v1498
        %v1500 = vpop.f32.mrb[0].mxu0
        %v1501 = vpop.f32.mrb[0].mxu0
        %v1502 = vadd.f32 %v1342, %v1501
        %v1503 = vpop.f32.mrb[0].mxu0
        %1504 = vmatprep.mubr.bf16.mxu0 0
        %1505 = vmatmul.mubr.bf16.gmra.mrb[0].mxu0 %v1315
        %v1506 = vpop.f32.mrb[0].mxu0
        %v1507 = vadd.f32 %v1342, %v1506
        %v1508 = vpop.f32.mrb[0].mxu0
        %v1509 = vpop.f32.mrb[0].mxu0
        %v1510 = vadd.f32 %v1342, %v1509
        %v1511 = vpop.f32.mrb[0].mxu0
        %1512 = vmatprep.mubr.bf16.mxu0 0
        %1513 = vmatmul.mubr.bf16.gmra.mrb[0].mxu0 %v1316
        %v1514 = vpop.f32.mrb[0].mxu0
        %v1515 = vadd.f32 %v1342, %v1514
        %v1516 = vpop.f32.mrb[0].mxu0
        %v1517 = vpop.f32.mrb[0].mxu0
        %v1518 = vadd.f32 %v1342, %v1517
        %v1519 = vpop.f32.mrb[0].mxu0
        %1520 = vmatprep.mubr.bf16.mxu0 0
        %1521 = vmatmul.mubr.bf16.gmra.mrb[0].mxu0 %v1317
        %v1522 = vpop.f32.mrb[0].mxu0
        %v1523 = vadd.f32 %v1342, %v1522
        %v1524 = vpop.f32.mrb[0].mxu0
        %v1525 = vpop.f32.mrb[0].mxu0
        %v1526 = vadd.f32 %v1342, %v1525
        %v1527 = vpop.f32.mrb[0].mxu0
        %1528 = vmatprep.mubr.bf16.mxu0 0
        %1529 = vmatmul.mubr.bf16.gmra.mrb[0].mxu0 %v1318
        %v1530 = vpop.f32.mrb[0].mxu0
        %v1531 = vadd.f32 %v1342, %v1530
        %v1532 = vpop.f32.mrb[0].mxu0
        %v1533 = vpop.f32.mrb[0].mxu0
        %v1534 = vadd.f32 %v1342, %v1533
        %v1535 = vpop.f32.mrb[0].mxu0
        %1536 = vmatprep.mubr.bf16.mxu0 0
        %1537 = vmatmul.mubr.bf16.gmra.mrb[0].mxu0 %v1319
        %v1538 = vpop.f32.mrb[0].mxu0
        %v1539 = vadd.f32 %v1342, %v1538
        %v1540 = vpop.f32.mrb[0].mxu0
        %v1541 = vpop.f32.mrb[0].mxu0
        %v1542 = vadd.f32 %v1342, %v1541
        %v1543 = vpop.f32.mrb[0].mxu0
        %1544 = vmatprep.mubr.bf16.mxu0 0
        %1545 = vmatmul.mubr.bf16.gmra.mrb[0].mxu0 %v1320
        %v1546 = vpop.f32.mrb[0].mxu0
        %v1547 = vadd.f32 %v1342, %v1546
        %v1548 = vpop.f32.mrb[0].mxu0
        %v1549 = vpop.f32.mrb[0].mxu0
        %v1550 = vadd.f32 %v1342, %v1549
        %v1551 = vpop.f32.mrb[0].mxu0
        %1552 = vdwg.mxu0
        %v1553 = vld [vmem:[%s814] sm:$0xf]
        %v1554 = vld [vmem:[%s814 + $0x4] sm:$0xf]
        %v1555 = vld [vmem:[%s814 + $0x8] sm:$0xf]
        %v1556 = vld [vmem:[%s814 + $0xc] sm:$0xf]
        %v1557 = vld [vmem:[%s814 + $0x10] sm:$0xf]
        %v1558 = vld [vmem:[%s814 + $0x14] sm:$0xf]
        %v1559 = vld [vmem:[%s814 + $0x18] sm:$0xf]
        %v1560 = vld [vmem:[%s814 + $0x1c] sm:$0xf]
        %v1561 = vld [vmem:[%s814 + $0x20] sm:$0xf]
        %v1562 = vld [vmem:[%s814 + $0x24] sm:$0xf]
        %v1563 = vld [vmem:[%s814 + $0x28] sm:$0xf]
        %v1564 = vld [vmem:[%s814 + $0x2c] sm:$0xf]
        %v1565 = vld [vmem:[%s814 + $0x30] sm:$0xf]
        %v1566 = vld [vmem:[%s814 + $0x34] sm:$0xf]
        %v1567 = vld [vmem:[%s814 + $0x38] sm:$0xf]
        %v1568 = vld [vmem:[%s814 + $0x3c] sm:$0xf]
        %v1569 = vld [vmem:[%s814 + $0x40] sm:$0xf]
        %v1570 = vld [vmem:[%s814 + $0x44] sm:$0xf]
        %v1571 = vld [vmem:[%s814 + $0x48] sm:$0xf]
        %v1572 = vld [vmem:[%s814 + $0x4c] sm:$0xf]
        %v1573 = vld [vmem:[%s814 + $0x50] sm:$0xf]
        %v1574 = vld [vmem:[%s814 + $0x54] sm:$0xf]
        %v1575 = vld [vmem:[%s814 + $0x58] sm:$0xf]
        %v1576 = vld [vmem:[%s814 + $0x5c] sm:$0xf]
        %v1577 = vld [vmem:[%s814 + $0x60] sm:$0xf]
        %v1578 = vld [vmem:[%s814 + $0x64] sm:$0xf]
        %v1579 = vld [vmem:[%s814 + $0x68] sm:$0xf]
        %v1580 = vld [vmem:[%s814 + $0x6c] sm:$0xf]
        %v1581 = vld [vmem:[%s814 + $0x70] sm:$0xf]
        %v1582 = vld [vmem:[%s814 + $0x74] sm:$0xf]
        %v1583 = vld [vmem:[%s814 + $0x78] sm:$0xf]
        %v1584 = vld [vmem:[%s814 + $0x7c] sm:$0xf]
        %v1585 = vld [vmem:[%s814 + $0x80] sm:$0xf]
        %v1586 = vld [vmem:[%s814 + $0x84] sm:$0xf]
        %v1587 = vld [vmem:[%s814 + $0x88] sm:$0xf]
        %v1588 = vld [vmem:[%s814 + $0x8c] sm:$0xf]
        %v1589 = vld [vmem:[%s814 + $0x90] sm:$0xf]
        %v1590 = vld [vmem:[%s814 + $0x94] sm:$0xf]
        %v1591 = vld [vmem:[%s814 + $0x98] sm:$0xf]
        %v1592 = vld [vmem:[%s814 + $0x9c] sm:$0xf]
        %v1593 = vld [vmem:[%s814 + $0xa0] sm:$0xf]
        %v1594 = vld [vmem:[%s814 + $0xa4] sm:$0xf]
        %v1595 = vld [vmem:[%s814 + $0xa8] sm:$0xf]
        %v1596 = vld [vmem:[%s814 + $0xac] sm:$0xf]
        %v1597 = vld [vmem:[%s814 + $0xb0] sm:$0xf]
        %v1598 = vld [vmem:[%s814 + $0xb4] sm:$0xf]
        %v1599 = vld [vmem:[%s814 + $0xb8] sm:$0xf]
        %v1600 = vld [vmem:[%s814 + $0xbc] sm:$0xf]
        %v1601 = vld [vmem:[%s814 + $0xc0] sm:$0xf]
        %v1602 = vld [vmem:[%s814 + $0xc4] sm:$0xf]
        %v1603 = vld [vmem:[%s814 + $0xc8] sm:$0xf]
        %v1604 = vld [vmem:[%s814 + $0xcc] sm:$0xf]
        %v1605 = vld [vmem:[%s814 + $0xd0] sm:$0xf]
        %v1606 = vld [vmem:[%s814 + $0xd4] sm:$0xf]
        %v1607 = vld [vmem:[%s814 + $0xd8] sm:$0xf]
        %v1608 = vld [vmem:[%s814 + $0xdc] sm:$0xf]
        %v1609 = vld [vmem:[%s814 + $0xe0] sm:$0xf]
        %v1610 = vld [vmem:[%s814 + $0xe4] sm:$0xf]
        %v1611 = vld [vmem:[%s814 + $0xe8] sm:$0xf]
        %v1612 = vld [vmem:[%s814 + $0xec] sm:$0xf]
        %v1613 = vld [vmem:[%s814 + $0xf0] sm:$0xf]
        %v1614 = vld [vmem:[%s814 + $0xf4] sm:$0xf]
        %v1615 = vld [vmem:[%s814 + $0xf8] sm:$0xf]
        %v1616 = vld [vmem:[%s814 + $0xfc] sm:$0xf]
        %v1617 = vld [vmem:[%s814 + $0x100] sm:$0xf]
        %v1618 = vld [vmem:[%s814 + $0x104] sm:$0xf]
        %v1619 = vld [vmem:[%s814 + $0x108] sm:$0xf]
        %v1620 = vld [vmem:[%s814 + $0x10c] sm:$0xf]
        %v1621 = vld [vmem:[%s814 + $0x110] sm:$0xf]
        %v1622 = vld [vmem:[%s814 + $0x114] sm:$0xf]
        %v1623 = vld [vmem:[%s814 + $0x118] sm:$0xf]
        %v1624 = vld [vmem:[%s814 + $0x11c] sm:$0xf]
        %v1625 = vld [vmem:[%s814 + $0x120] sm:$0xf]
        %v1626 = vld [vmem:[%s814 + $0x124] sm:$0xf]
        %v1627 = vld [vmem:[%s814 + $0x128] sm:$0xf]
        %v1628 = vld [vmem:[%s814 + $0x12c] sm:$0xf]
        %v1629 = vld [vmem:[%s814 + $0x130] sm:$0xf]
        %v1630 = vld [vmem:[%s814 + $0x134] sm:$0xf]
        %v1631 = vld [vmem:[%s814 + $0x138] sm:$0xf]
        %v1632 = vld [vmem:[%s814 + $0x13c] sm:$0xf]
        %v1633 = vld [vmem:[%s814 + $0x140] sm:$0xf]
        %v1634 = vld [vmem:[%s814 + $0x144] sm:$0xf]
        %v1635 = vld [vmem:[%s814 + $0x148] sm:$0xf]
        %v1636 = vld [vmem:[%s814 + $0x14c] sm:$0xf]
        %v1637 = vld [vmem:[%s814 + $0x150] sm:$0xf]
        %v1638 = vld [vmem:[%s814 + $0x154] sm:$0xf]
        %v1639 = vld [vmem:[%s814 + $0x158] sm:$0xf]
        %v1640 = vld [vmem:[%s814 + $0x15c] sm:$0xf]
        %v1641 = vld [vmem:[%s814 + $0x160] sm:$0xf]
        %v1642 = vld [vmem:[%s814 + $0x164] sm:$0xf]
        %v1643 = vld [vmem:[%s814 + $0x168] sm:$0xf]
        %v1644 = vld [vmem:[%s814 + $0x16c] sm:$0xf]
        %v1645 = vld [vmem:[%s814 + $0x170] sm:$0xf]
        %v1646 = vld [vmem:[%s814 + $0x174] sm:$0xf]
        %v1647 = vld [vmem:[%s814 + $0x178] sm:$0xf]
        %v1648 = vld [vmem:[%s814 + $0x17c] sm:$0xf]
        %v1649 = vld [vmem:[%s814 + $0x180] sm:$0xf]
        %v1650 = vld [vmem:[%s814 + $0x184] sm:$0xf]
        %v1651 = vld [vmem:[%s814 + $0x188] sm:$0xf]
        %v1652 = vld [vmem:[%s814 + $0x18c] sm:$0xf]
        %v1653 = vld [vmem:[%s814 + $0x190] sm:$0xf]
        %v1654 = vld [vmem:[%s814 + $0x194] sm:$0xf]
        %v1655 = vld [vmem:[%s814 + $0x198] sm:$0xf]
        %v1656 = vld [vmem:[%s814 + $0x19c] sm:$0xf]
        %v1657 = vld [vmem:[%s814 + $0x1a0] sm:$0xf]
        %v1658 = vld [vmem:[%s814 + $0x1a4] sm:$0xf]
        %v1659 = vld [vmem:[%s814 + $0x1a8] sm:$0xf]
        %v1660 = vld [vmem:[%s814 + $0x1ac] sm:$0xf]
        %v1661 = vld [vmem:[%s814 + $0x1b0] sm:$0xf]
        %v1662 = vld [vmem:[%s814 + $0x1b4] sm:$0xf]
        %v1663 = vld [vmem:[%s814 + $0x1b8] sm:$0xf]
        %v1664 = vld [vmem:[%s814 + $0x1bc] sm:$0xf]
        %v1665 = vld [vmem:[%s814 + $0x1c0] sm:$0xf]
        %v1666 = vld [vmem:[%s814 + $0x1c4] sm:$0xf]
        %v1667 = vld [vmem:[%s814 + $0x1c8] sm:$0xf]
        %v1668 = vld [vmem:[%s814 + $0x1cc] sm:$0xf]
        %v1669 = vld [vmem:[%s814 + $0x1d0] sm:$0xf]
        %v1670 = vld [vmem:[%s814 + $0x1d4] sm:$0xf]
        %v1671 = vld [vmem:[%s814 + $0x1d8] sm:$0xf]
        %v1672 = vld [vmem:[%s814 + $0x1dc] sm:$0xf]
        %v1673 = vld [vmem:[%s814 + $0x1e0] sm:$0xf]
        %v1674 = vld [vmem:[%s814 + $0x1e4] sm:$0xf]
        %v1675 = vld [vmem:[%s814 + $0x1e8] sm:$0xf]
        %v1676 = vld [vmem:[%s814 + $0x1ec] sm:$0xf]
        %v1677 = vld [vmem:[%s814 + $0x1f0] sm:$0xf]
        %v1678 = vld [vmem:[%s814 + $0x1f4] sm:$0xf]
        %v1679 = vld [vmem:[%s814 + $0x1f8] sm:$0xf]
        %v1680 = vld [vmem:[%s814 + $0x1fc] sm:$0xf]
        %v1681 = vld [vmem:[%s2] sm:$0xff]
        %v1682 = vld [vmem:[%s2 + $0x8] sm:$0xff]
        %v1683 = vld [vmem:[%s2 + $0x10] sm:$0xff]
        %v1684 = vld [vmem:[%s2 + $0x18] sm:$0xff]
        %v1685 = vld [vmem:[%s2 + $0x20] sm:$0xff]
        %v1686 = vld [vmem:[%s2 + $0x28] sm:$0xff]
        %v1687 = vld [vmem:[%s2 + $0x30] sm:$0xff]
        %v1688 = vld [vmem:[%s2 + $0x38] sm:$0xff]
        %v1689 = vld [vmem:[%s2 + $0x40] sm:$0xff]
        %v1690 = vld [vmem:[%s2 + $0x48] sm:$0xff]
        %v1691 = vld [vmem:[%s2 + $0x50] sm:$0xff]
        %v1692 = vld [vmem:[%s2 + $0x58] sm:$0xff]
        %v1693 = vld [vmem:[%s2 + $0x60] sm:$0xff]
        %v1694 = vld [vmem:[%s2 + $0x68] sm:$0xff]
        %v1695 = vld [vmem:[%s2 + $0x70] sm:$0xff]
        %v1696 = vld [vmem:[%s2 + $0x78] sm:$0xff]
        %v1825 = vunpack.c.l.b16 %v1553
        %v1826 = vunpack.c.l.b16 %v1554
        %v1827 = vunpack.c.l.b16 %v1555
        %v1828 = vunpack.c.l.b16 %v1556
        %v1829 = vunpack.c.l.b16 %v1557
        %v1830 = vunpack.c.l.b16 %v1558
        %v1831 = vunpack.c.l.b16 %v1559
        %v1832 = vunpack.c.l.b16 %v1560
        %v1833 = vunpack.c.l.b16 %v1561
        %v1834 = vunpack.c.l.b16 %v1562
        %v1835 = vunpack.c.l.b16 %v1563
        %v1836 = vunpack.c.l.b16 %v1564
        %v1837 = vunpack.c.l.b16 %v1565
        %v1838 = vunpack.c.l.b16 %v1566
        %v1839 = vunpack.c.l.b16 %v1567
        %v1840 = vunpack.c.l.b16 %v1568
        %v1841 = vunpack.c.l.b16 %v1569
        %v1842 = vunpack.c.l.b16 %v1570
        %v1843 = vunpack.c.l.b16 %v1571
        %v1844 = vunpack.c.l.b16 %v1572
        %v1845 = vunpack.c.l.b16 %v1573
        %v1846 = vunpack.c.l.b16 %v1574
        %v1847 = vunpack.c.l.b16 %v1575
        %v1848 = vunpack.c.l.b16 %v1576
        %v1849 = vunpack.c.l.b16 %v1577
        %v1850 = vunpack.c.l.b16 %v1578
        %v1851 = vunpack.c.l.b16 %v1579
        %v1852 = vunpack.c.l.b16 %v1580
        %v1853 = vunpack.c.l.b16 %v1581
        %v1854 = vunpack.c.l.b16 %v1582
        %v1855 = vunpack.c.l.b16 %v1583
        %v1856 = vunpack.c.l.b16 %v1584
        %v1857 = vunpack.c.l.b16 %v1585
        %v1858 = vunpack.c.l.b16 %v1586
        %v1859 = vunpack.c.l.b16 %v1587
        %v1860 = vunpack.c.l.b16 %v1588
        %v1861 = vunpack.c.l.b16 %v1589
        %v1862 = vunpack.c.l.b16 %v1590
        %v1863 = vunpack.c.l.b16 %v1591
        %v1864 = vunpack.c.l.b16 %v1592
        %v1865 = vunpack.c.l.b16 %v1593
        %v1866 = vunpack.c.l.b16 %v1594
        %v1867 = vunpack.c.l.b16 %v1595
        %v1868 = vunpack.c.l.b16 %v1596
        %v1869 = vunpack.c.l.b16 %v1597
        %v1870 = vunpack.c.l.b16 %v1598
        %v1871 = vunpack.c.l.b16 %v1599
        %v1872 = vunpack.c.l.b16 %v1600
        %v1873 = vunpack.c.l.b16 %v1601
        %v1874 = vunpack.c.l.b16 %v1602
        %v1875 = vunpack.c.l.b16 %v1603
        %v1876 = vunpack.c.l.b16 %v1604
        %v1877 = vunpack.c.l.b16 %v1605
        %v1878 = vunpack.c.l.b16 %v1606
        %v1879 = vunpack.c.l.b16 %v1607
        %v1880 = vunpack.c.l.b16 %v1608
        %v1881 = vunpack.c.l.b16 %v1609
        %v1882 = vunpack.c.l.b16 %v1610
        %v1883 = vunpack.c.l.b16 %v1611
        %v1884 = vunpack.c.l.b16 %v1612
        %v1885 = vunpack.c.l.b16 %v1613
        %v1886 = vunpack.c.l.b16 %v1614
        %v1887 = vunpack.c.l.b16 %v1615
        %v1888 = vunpack.c.l.b16 %v1616
        %v1889 = vunpack.c.l.b16 %v1617
        %v1890 = vunpack.c.l.b16 %v1618
        %v1891 = vunpack.c.l.b16 %v1619
        %v1892 = vunpack.c.l.b16 %v1620
        %v1893 = vunpack.c.l.b16 %v1621
        %v1894 = vunpack.c.l.b16 %v1622
        %v1895 = vunpack.c.l.b16 %v1623
        %v1896 = vunpack.c.l.b16 %v1624
        %v1897 = vunpack.c.l.b16 %v1625
        %v1898 = vunpack.c.l.b16 %v1626
        %v1899 = vunpack.c.l.b16 %v1627
        %v1900 = vunpack.c.l.b16 %v1628
        %v1901 = vunpack.c.l.b16 %v1629
        %v1902 = vunpack.c.l.b16 %v1630
        %v1903 = vunpack.c.l.b16 %v1631
        %v1904 = vunpack.c.l.b16 %v1632
        %v1905 = vunpack.c.l.b16 %v1633
        %v1906 = vunpack.c.l.b16 %v1634
        %v1907 = vunpack.c.l.b16 %v1635
        %v1908 = vunpack.c.l.b16 %v1636
        %v1909 = vunpack.c.l.b16 %v1637
        %v1910 = vunpack.c.l.b16 %v1638
        %v1911 = vunpack.c.l.b16 %v1639
        %v1912 = vunpack.c.l.b16 %v1640
        %v1913 = vunpack.c.l.b16 %v1641
        %v1914 = vunpack.c.l.b16 %v1642
        %v1915 = vunpack.c.l.b16 %v1643
        %v1916 = vunpack.c.l.b16 %v1644
        %v1917 = vunpack.c.l.b16 %v1645
        %v1918 = vunpack.c.l.b16 %v1646
        %v1919 = vunpack.c.l.b16 %v1647
        %v1920 = vunpack.c.l.b16 %v1648
        %v1921 = vunpack.c.l.b16 %v1649
        %v1922 = vunpack.c.l.b16 %v1650
        %v1923 = vunpack.c.l.b16 %v1651
        %v1924 = vunpack.c.l.b16 %v1652
        %v1925 = vunpack.c.l.b16 %v1653
        %v1926 = vunpack.c.l.b16 %v1654
        %v1927 = vunpack.c.l.b16 %v1655
        %v1928 = vunpack.c.l.b16 %v1656
        %v1929 = vunpack.c.l.b16 %v1657
        %v1930 = vunpack.c.l.b16 %v1658
        %v1931 = vunpack.c.l.b16 %v1659
        %v1932 = vunpack.c.l.b16 %v1660
        %v1933 = vunpack.c.l.b16 %v1661
        %v1934 = vunpack.c.l.b16 %v1662
        %v1935 = vunpack.c.l.b16 %v1663
        %v1936 = vunpack.c.l.b16 %v1664
        %v1937 = vunpack.c.l.b16 %v1665
        %v1938 = vunpack.c.l.b16 %v1666
        %v1939 = vunpack.c.l.b16 %v1667
        %v1940 = vunpack.c.l.b16 %v1668
        %v1941 = vunpack.c.l.b16 %v1669
        %v1942 = vunpack.c.l.b16 %v1670
        %v1943 = vunpack.c.l.b16 %v1671
        %v1944 = vunpack.c.l.b16 %v1672
        %v1945 = vunpack.c.l.b16 %v1673
        %v1946 = vunpack.c.l.b16 %v1674
        %v1947 = vunpack.c.l.b16 %v1675
        %v1948 = vunpack.c.l.b16 %v1676
        %v1949 = vunpack.c.l.b16 %v1677
        %v1950 = vunpack.c.l.b16 %v1678
        %v1951 = vunpack.c.l.b16 %v1679
        %v1952 = vunpack.c.l.b16 %v1680
        %v1953 = vpack.c.b16 %v1826, %v1825
        %v1954 = vpack.c.b16 %v1828, %v1827
        %v1955 = vpack.c.b16 %v1830, %v1829
        %v1956 = vpack.c.b16 %v1832, %v1831
        %v1957 = vpack.c.b16 %v1834, %v1833
        %v1958 = vpack.c.b16 %v1836, %v1835
        %v1959 = vpack.c.b16 %v1838, %v1837
        %v1960 = vpack.c.b16 %v1840, %v1839
        %v1961 = vpack.c.b16 %v1842, %v1841
        %v1962 = vpack.c.b16 %v1844, %v1843
        %v1963 = vpack.c.b16 %v1846, %v1845
        %v1964 = vpack.c.b16 %v1848, %v1847
        %v1965 = vpack.c.b16 %v1850, %v1849
        %v1966 = vpack.c.b16 %v1852, %v1851
        %v1967 = vpack.c.b16 %v1854, %v1853
        %v1968 = vpack.c.b16 %v1856, %v1855
        %v1969 = vpack.c.b16 %v1858, %v1857
        %v1970 = vpack.c.b16 %v1860, %v1859
        %v1971 = vpack.c.b16 %v1862, %v1861
        %v1972 = vpack.c.b16 %v1864, %v1863
        %v1973 = vpack.c.b16 %v1866, %v1865
        %v1974 = vpack.c.b16 %v1868, %v1867
        %v1975 = vpack.c.b16 %v1870, %v1869
        %v1976 = vpack.c.b16 %v1872, %v1871
        %v1977 = vpack.c.b16 %v1874, %v1873
        %v1978 = vpack.c.b16 %v1876, %v1875
        %v1979 = vpack.c.b16 %v1878, %v1877
        %v1980 = vpack.c.b16 %v1880, %v1879
        %v1981 = vpack.c.b16 %v1882, %v1881
        %v1982 = vpack.c.b16 %v1884, %v1883
        %v1983 = vpack.c.b16 %v1886, %v1885
        %v1984 = vpack.c.b16 %v1888, %v1887
        %v1985 = vpack.c.b16 %v1890, %v1889
        %v1986 = vpack.c.b16 %v1892, %v1891
        %v1987 = vpack.c.b16 %v1894, %v1893
        %v1988 = vpack.c.b16 %v1896, %v1895
        %v1989 = vpack.c.b16 %v1898, %v1897
        %v1990 = vpack.c.b16 %v1900, %v1899
        %v1991 = vpack.c.b16 %v1902, %v1901
        %v1992 = vpack.c.b16 %v1904, %v1903
        %v1993 = vpack.c.b16 %v1906, %v1905
        %v1994 = vpack.c.b16 %v1908, %v1907
        %v1995 = vpack.c.b16 %v1910, %v1909
        %v1996 = vpack.c.b16 %v1912, %v1911
        %v1997 = vpack.c.b16 %v1914, %v1913
        %v1998 = vpack.c.b16 %v1916, %v1915
        %v1999 = vpack.c.b16 %v1918, %v1917
        %v2000 = vpack.c.b16 %v1920, %v1919
        %v2001 = vpack.c.b16 %v1922, %v1921
        %v2002 = vpack.c.b16 %v1924, %v1923
        %v2003 = vpack.c.b16 %v1926, %v1925
        %v2004 = vpack.c.b16 %v1928, %v1927
        %v2005 = vpack.c.b16 %v1930, %v1929
        %v2006 = vpack.c.b16 %v1932, %v1931
        %v2007 = vpack.c.b16 %v1934, %v1933
        %v2008 = vpack.c.b16 %v1936, %v1935
        %v2009 = vpack.c.b16 %v1938, %v1937
        %v2010 = vpack.c.b16 %v1940, %v1939
        %v2011 = vpack.c.b16 %v1942, %v1941
        %v2012 = vpack.c.b16 %v1944, %v1943
        %v2013 = vpack.c.b16 %v1946, %v1945
        %v2014 = vpack.c.b16 %v1948, %v1947
        %v2015 = vpack.c.b16 %v1950, %v1949
        %v2016 = vpack.c.b16 %v1952, %v1951
        %v2097 = vunpack.c.l.b16 %v1681
        %v2098 = vunpack.c.h.b16 %v1681
        %v2099 = vunpack.c.l.b16 %v1682
        %v2100 = vunpack.c.h.b16 %v1682
        %v2101 = vunpack.c.l.b16 %v1683
        %v2102 = vunpack.c.h.b16 %v1683
        %v2103 = vunpack.c.l.b16 %v1684
        %v2104 = vunpack.c.h.b16 %v1684
        %v2105 = vunpack.c.l.b16 %v1685
        %v2106 = vunpack.c.h.b16 %v1685
        %v2107 = vunpack.c.l.b16 %v1686
        %v2108 = vunpack.c.h.b16 %v1686
        %v2109 = vunpack.c.l.b16 %v1687
        %v2110 = vunpack.c.h.b16 %v1687
        %v2111 = vunpack.c.l.b16 %v1688
        %v2112 = vunpack.c.h.b16 %v1688
        %v2113 = vunpack.c.l.b16 %v1689
        %v2114 = vunpack.c.h.b16 %v1689
        %v2115 = vunpack.c.l.b16 %v1690
        %v2116 = vunpack.c.h.b16 %v1690
        %v2117 = vunpack.c.l.b16 %v1691
        %v2118 = vunpack.c.h.b16 %v1691
        %v2119 = vunpack.c.l.b16 %v1692
        %v2120 = vunpack.c.h.b16 %v1692
        %v2121 = vunpack.c.l.b16 %v1693
        %v2122 = vunpack.c.h.b16 %v1693
        %v2123 = vunpack.c.l.b16 %v1694
        %v2124 = vunpack.c.h.b16 %v1694
        %v2125 = vunpack.c.l.b16 %v1695
        %v2126 = vunpack.c.h.b16 %v1695
        %v2127 = vunpack.c.l.b16 %v1696
        %v2128 = vunpack.c.h.b16 %v1696
        %v2129 = vpack.c.b16 %v2099, %v2097
        %v2130 = vpack.c.b16 %v2100, %v2098
        %v2131 = vpack.c.b16 %v2103, %v2101
        %v2132 = vpack.c.b16 %v2104, %v2102
        %v2133 = vpack.c.b16 %v2107, %v2105
        %v2134 = vpack.c.b16 %v2108, %v2106
        %v2135 = vpack.c.b16 %v2111, %v2109
        %v2136 = vpack.c.b16 %v2112, %v2110
        %v2137 = vpack.c.b16 %v2115, %v2113
        %v2138 = vpack.c.b16 %v2116, %v2114
        %v2139 = vpack.c.b16 %v2119, %v2117
        %v2140 = vpack.c.b16 %v2120, %v2118
        %v2141 = vpack.c.b16 %v2123, %v2121
        %v2142 = vpack.c.b16 %v2124, %v2122
        %v2143 = vpack.c.b16 %v2127, %v2125
        %v2144 = vpack.c.b16 %v2128, %v2126
        %2161 = vmatprep.subr.bf16.mxu0 %v2130
        %2162 = vmatpush1.bf16.msra.mxu0 %v2129
        %2163 = vmatprep.subr.bf16.mxu0 %v2132
        %2164 = vmatpush1.bf16.msra.mxu0 %v2131
        %2165 = vmatprep.subr.bf16.mxu0 %v2134
        %2166 = vmatpush1.bf16.msra.mxu0 %v2133
        %2167 = vmatprep.subr.bf16.mxu0 %v2136
        %2168 = vmatpush1.bf16.msra.mxu0 %v2135
        %2169 = vmatprep.subr.bf16.mxu0 %v2138
        %2170 = vmatpush1.bf16.msra.mxu0 %v2137
        %2171 = vmatprep.subr.bf16.mxu0 %v2140
        %2172 = vmatpush1.bf16.msra.mxu0 %v2139
        %2173 = vmatprep.subr.bf16.mxu0 %v2142
        %2174 = vmatpush1.bf16.msra.mxu0 %v2141
        %2175 = vmatprep.subr.bf16.mxu0 %v2144
        %2176 = vmatpush1.bf16.msra.mxu0 %v2143
        %2177 = vmatprep.subr.bf16.mxu0 0
        %2178 = vmatpush1.bf16.msra.mxu0 0
        %2179 = vmatprep.subr.bf16.mxu0 0
        %2180 = vmatpush1.bf16.msra.mxu0 0
        %2181 = vmatprep.subr.bf16.mxu0 0
        %2182 = vmatpush1.bf16.msra.mxu0 0
        %2183 = vmatprep.subr.bf16.mxu0 0
        %2184 = vmatpush1.bf16.msra.mxu0 0
        %2185 = vmatprep.subr.bf16.mxu0 0
        %2186 = vmatpush1.bf16.msra.mxu0 0
        %2187 = vmatprep.subr.bf16.mxu0 0
        %2188 = vmatpush1.bf16.msra.mxu0 0
        %2189 = vmatprep.subr.bf16.mxu0 0
        %2190 = vmatpush1.bf16.msra.mxu0 0
        %2191 = vmatprep.subr.bf16.mxu0 0
        %2192 = vmatpush1.bf16.msra.mxu0 0
        %2193 = vmatprep.mubr.bf16.mxu0 0
        %2194 = vmatmul.mubr.bf16.gmra.mrb[0].mxu0 %v1953
        %v2195 = vpop.f32.mrb[0].mxu0
        %v2196 = vadd.f32 0.0, %v2195
        %v2197 = vpop.f32.mrb[0].mxu0
        %v2198 = vadd.f32 0.0, %v2197
        %v2199 = vpop.f32.mrb[0].mxu0
        %v2200 = vadd.f32 0.0, %v2199
        %v2201 = vpop.f32.mrb[0].mxu0
        %v2202 = vadd.f32 0.0, %v2201
        %2203 = vmatprep.mubr.bf16.mxu0 0
        %2204 = vmatmul.mubr.bf16.gmra.mrb[0].mxu0 %v1954
        %v2205 = vpop.f32.mrb[0].mxu0
        %v2206 = vadd.f32 0.0, %v2205
        %v2207 = vpop.f32.mrb[0].mxu0
        %v2208 = vadd.f32 0.0, %v2207
        %v2209 = vpop.f32.mrb[0].mxu0
        %v2210 = vadd.f32 0.0, %v2209
        %v2211 = vpop.f32.mrb[0].mxu0
        %v2212 = vadd.f32 0.0, %v2211
        %2213 = vmatprep.mubr.bf16.mxu0 0
        %2214 = vmatmul.mubr.bf16.gmra.mrb[0].mxu0 %v1955
        %v2215 = vpop.f32.mrb[0].mxu0
        %v2216 = vadd.f32 0.0, %v2215
        %v2217 = vpop.f32.mrb[0].mxu0
        %v2218 = vadd.f32 0.0, %v2217
        %v2219 = vpop.f32.mrb[0].mxu0
        %v2220 = vadd.f32 0.0, %v2219
        %v2221 = vpop.f32.mrb[0].mxu0
        %v2222 = vadd.f32 0.0, %v2221
        %2223 = vmatprep.mubr.bf16.mxu0 0
        %2224 = vmatmul.mubr.bf16.gmra.mrb[0].mxu0 %v1956
        %v2225 = vpop.f32.mrb[0].mxu0
        %v2226 = vadd.f32 0.0, %v2225
        %v2227 = vpop.f32.mrb[0].mxu0
        %v2228 = vadd.f32 0.0, %v2227
        %v2229 = vpop.f32.mrb[0].mxu0
        %v2230 = vadd.f32 0.0, %v2229
        %v2231 = vpop.f32.mrb[0].mxu0
        %v2232 = vadd.f32 0.0, %v2231
        %2233 = vmatprep.mubr.bf16.mxu0 0
        %2234 = vmatmul.mubr.bf16.gmra.mrb[0].mxu0 %v1957
        %v2235 = vpop.f32.mrb[0].mxu0
        %v2236 = vadd.f32 0.0, %v2235
        %v2237 = vpop.f32.mrb[0].mxu0
        %v2238 = vadd.f32 0.0, %v2237
        %v2239 = vpop.f32.mrb[0].mxu0
        %v2240 = vadd.f32 0.0, %v2239
        %v2241 = vpop.f32.mrb[0].mxu0
        %v2242 = vadd.f32 0.0, %v2241
        %2243 = vmatprep.mubr.bf16.mxu0 0
        %2244 = vmatmul.mubr.bf16.gmra.mrb[0].mxu0 %v1958
        %v2245 = vpop.f32.mrb[0].mxu0
        %v2246 = vadd.f32 0.0, %v2245
        %v2247 = vpop.f32.mrb[0].mxu0
        %v2248 = vadd.f32 0.0, %v2247
        %v2249 = vpop.f32.mrb[0].mxu0
        %v2250 = vadd.f32 0.0, %v2249
        %v2251 = vpop.f32.mrb[0].mxu0
        %v2252 = vadd.f32 0.0, %v2251
        %2253 = vmatprep.mubr.bf16.mxu0 0
        %2254 = vmatmul.mubr.bf16.gmra.mrb[0].mxu0 %v1959
        %v2255 = vpop.f32.mrb[0].mxu0
        %v2256 = vadd.f32 0.0, %v2255
        %v2257 = vpop.f32.mrb[0].mxu0
        %v2258 = vadd.f32 0.0, %v2257
        %v2259 = vpop.f32.mrb[0].mxu0
        %v2260 = vadd.f32 0.0, %v2259
        %v2261 = vpop.f32.mrb[0].mxu0
        %v2262 = vadd.f32 0.0, %v2261
        %2263 = vmatprep.mubr.bf16.mxu0 0
        %2264 = vmatmul.mubr.bf16.gmra.mrb[0].mxu0 %v1960
        %v2265 = vpop.f32.mrb[0].mxu0
        %v2266 = vadd.f32 0.0, %v2265
        %v2267 = vpop.f32.mrb[0].mxu0
        %v2268 = vadd.f32 0.0, %v2267
        %v2269 = vpop.f32.mrb[0].mxu0
        %v2270 = vadd.f32 0.0, %v2269
        %v2271 = vpop.f32.mrb[0].mxu0
        %v2272 = vadd.f32 0.0, %v2271
        %2273 = vmatprep.mubr.bf16.mxu0 0
        %2274 = vmatmul.mubr.bf16.gmra.mrb[0].mxu0 %v1961
        %v2275 = vpop.f32.mrb[0].mxu0
        %v2276 = vadd.f32 0.0, %v2275
        %v2277 = vpop.f32.mrb[0].mxu0
        %v2278 = vadd.f32 0.0, %v2277
        %v2279 = vpop.f32.mrb[0].mxu0
        %v2280 = vadd.f32 0.0, %v2279
        %v2281 = vpop.f32.mrb[0].mxu0
        %v2282 = vadd.f32 0.0, %v2281
        %2283 = vmatprep.mubr.bf16.mxu0 0
        %2284 = vmatmul.mubr.bf16.gmra.mrb[0].mxu0 %v1962
        %v2285 = vpop.f32.mrb[0].mxu0
        %v2286 = vadd.f32 0.0, %v2285
        %v2287 = vpop.f32.mrb[0].mxu0
        %v2288 = vadd.f32 0.0, %v2287
        %v2289 = vpop.f32.mrb[0].mxu0
        %v2290 = vadd.f32 0.0, %v2289
        %v2291 = vpop.f32.mrb[0].mxu0
        %v2292 = vadd.f32 0.0, %v2291
        %2293 = vmatprep.mubr.bf16.mxu0 0
        %2294 = vmatmul.mubr.bf16.gmra.mrb[0].mxu0 %v1963
        %v2295 = vpop.f32.mrb[0].mxu0
        %v2296 = vadd.f32 0.0, %v2295
        %v2297 = vpop.f32.mrb[0].mxu0
        %v2298 = vadd.f32 0.0, %v2297
        %v2299 = vpop.f32.mrb[0].mxu0
        %v2300 = vadd.f32 0.0, %v2299
        %v2301 = vpop.f32.mrb[0].mxu0
        %v2302 = vadd.f32 0.0, %v2301
        %2303 = vmatprep.mubr.bf16.mxu0 0
        %2304 = vmatmul.mubr.bf16.gmra.mrb[0].mxu0 %v1964
        %v2305 = vpop.f32.mrb[0].mxu0
        %v2306 = vadd.f32 0.0, %v2305
        %v2307 = vpop.f32.mrb[0].mxu0
        %v2308 = vadd.f32 0.0, %v2307
        %v2309 = vpop.f32.mrb[0].mxu0
        %v2310 = vadd.f32 0.0, %v2309
        %v2311 = vpop.f32.mrb[0].mxu0
        %v2312 = vadd.f32 0.0, %v2311
        %2313 = vmatprep.mubr.bf16.mxu0 0
        %2314 = vmatmul.mubr.bf16.gmra.mrb[0].mxu0 %v1965
        %v2315 = vpop.f32.mrb[0].mxu0
        %v2316 = vadd.f32 0.0, %v2315
        %v2317 = vpop.f32.mrb[0].mxu0
        %v2318 = vadd.f32 0.0, %v2317
        %v2319 = vpop.f32.mrb[0].mxu0
        %v2320 = vadd.f32 0.0, %v2319
        %v2321 = vpop.f32.mrb[0].mxu0
        %v2322 = vadd.f32 0.0, %v2321
        %2323 = vmatprep.mubr.bf16.mxu0 0
        %2324 = vmatmul.mubr.bf16.gmra.mrb[0].mxu0 %v1966
        %v2325 = vpop.f32.mrb[0].mxu0
        %v2326 = vadd.f32 0.0, %v2325
        %v2327 = vpop.f32.mrb[0].mxu0
        %v2328 = vadd.f32 0.0, %v2327
        %v2329 = vpop.f32.mrb[0].mxu0
        %v2330 = vadd.f32 0.0, %v2329
        %v2331 = vpop.f32.mrb[0].mxu0
        %v2332 = vadd.f32 0.0, %v2331
        %2333 = vmatprep.mubr.bf16.mxu0 0
        %2334 = vmatmul.mubr.bf16.gmra.mrb[0].mxu0 %v1967
        %v2335 = vpop.f32.mrb[0].mxu0
        %v2336 = vadd.f32 0.0, %v2335
        %v2337 = vpop.f32.mrb[0].mxu0
        %v2338 = vadd.f32 0.0, %v2337
        %v2339 = vpop.f32.mrb[0].mxu0
        %v2340 = vadd.f32 0.0, %v2339
        %v2341 = vpop.f32.mrb[0].mxu0
        %v2342 = vadd.f32 0.0, %v2341
        %2343 = vmatprep.mubr.bf16.mxu0 0
        %2344 = vmatmul.mubr.bf16.gmra.mrb[0].mxu0 %v1968
        %v2345 = vpop.f32.mrb[0].mxu0
        %v2346 = vadd.f32 0.0, %v2345
        %v2347 = vpop.f32.mrb[0].mxu0
        %v2348 = vadd.f32 0.0, %v2347
        %v2349 = vpop.f32.mrb[0].mxu0
        %v2350 = vadd.f32 0.0, %v2349
        %v2351 = vpop.f32.mrb[0].mxu0
        %v2352 = vadd.f32 0.0, %v2351
        %2353 = vmatprep.mubr.bf16.mxu0 0
        %2354 = vmatmul.mubr.bf16.gmra.mrb[0].mxu0 %v1969
        %v2355 = vpop.f32.mrb[0].mxu0
        %v2356 = vadd.f32 0.0, %v2355
        %v2357 = vpop.f32.mrb[0].mxu0
        %v2358 = vadd.f32 0.0, %v2357
        %v2359 = vpop.f32.mrb[0].mxu0
        %v2360 = vadd.f32 0.0, %v2359
        %v2361 = vpop.f32.mrb[0].mxu0
        %v2362 = vadd.f32 0.0, %v2361
        %2363 = vmatprep.mubr.bf16.mxu0 0
        %2364 = vmatmul.mubr.bf16.gmra.mrb[0].mxu0 %v1970
        %v2365 = vpop.f32.mrb[0].mxu0
        %v2366 = vadd.f32 0.0, %v2365
        %v2367 = vpop.f32.mrb[0].mxu0
        %v2368 = vadd.f32 0.0, %v2367
        %v2369 = vpop.f32.mrb[0].mxu0
        %v2370 = vadd.f32 0.0, %v2369
        %v2371 = vpop.f32.mrb[0].mxu0
        %v2372 = vadd.f32 0.0, %v2371
        %2373 = vmatprep.mubr.bf16.mxu0 0
        %2374 = vmatmul.mubr.bf16.gmra.mrb[0].mxu0 %v1971
        %v2375 = vpop.f32.mrb[0].mxu0
        %v2376 = vadd.f32 0.0, %v2375
        %v2377 = vpop.f32.mrb[0].mxu0
        %v2378 = vadd.f32 0.0, %v2377
        %v2379 = vpop.f32.mrb[0].mxu0
        %v2380 = vadd.f32 0.0, %v2379
        %v2381 = vpop.f32.mrb[0].mxu0
        %v2382 = vadd.f32 0.0, %v2381
        %2383 = vmatprep.mubr.bf16.mxu0 0
        %2384 = vmatmul.mubr.bf16.gmra.mrb[0].mxu0 %v1972
        %v2385 = vpop.f32.mrb[0].mxu0
        %v2386 = vadd.f32 0.0, %v2385
        %v2387 = vpop.f32.mrb[0].mxu0
        %v2388 = vadd.f32 0.0, %v2387
        %v2389 = vpop.f32.mrb[0].mxu0
        %v2390 = vadd.f32 0.0, %v2389
        %v2391 = vpop.f32.mrb[0].mxu0
        %v2392 = vadd.f32 0.0, %v2391
        %2393 = vmatprep.mubr.bf16.mxu0 0
        %2394 = vmatmul.mubr.bf16.gmra.mrb[0].mxu0 %v1973
        %v2395 = vpop.f32.mrb[0].mxu0
        %v2396 = vadd.f32 0.0, %v2395
        %v2397 = vpop.f32.mrb[0].mxu0
        %v2398 = vadd.f32 0.0, %v2397
        %v2399 = vpop.f32.mrb[0].mxu0
        %v2400 = vadd.f32 0.0, %v2399
        %v2401 = vpop.f32.mrb[0].mxu0
        %v2402 = vadd.f32 0.0, %v2401
        %2403 = vmatprep.mubr.bf16.mxu0 0
        %2404 = vmatmul.mubr.bf16.gmra.mrb[0].mxu0 %v1974
        %v2405 = vpop.f32.mrb[0].mxu0
        %v2406 = vadd.f32 0.0, %v2405
        %v2407 = vpop.f32.mrb[0].mxu0
        %v2408 = vadd.f32 0.0, %v2407
        %v2409 = vpop.f32.mrb[0].mxu0
        %v2410 = vadd.f32 0.0, %v2409
        %v2411 = vpop.f32.mrb[0].mxu0
        %v2412 = vadd.f32 0.0, %v2411
        %2413 = vmatprep.mubr.bf16.mxu0 0
        %2414 = vmatmul.mubr.bf16.gmra.mrb[0].mxu0 %v1975
        %v2415 = vpop.f32.mrb[0].mxu0
        %v2416 = vadd.f32 0.0, %v2415
        %v2417 = vpop.f32.mrb[0].mxu0
        %v2418 = vadd.f32 0.0, %v2417
        %v2419 = vpop.f32.mrb[0].mxu0
        %v2420 = vadd.f32 0.0, %v2419
        %v2421 = vpop.f32.mrb[0].mxu0
        %v2422 = vadd.f32 0.0, %v2421
        %2423 = vmatprep.mubr.bf16.mxu0 0
        %2424 = vmatmul.mubr.bf16.gmra.mrb[0].mxu0 %v1976
        %v2425 = vpop.f32.mrb[0].mxu0
        %v2426 = vadd.f32 0.0, %v2425
        %v2427 = vpop.f32.mrb[0].mxu0
        %v2428 = vadd.f32 0.0, %v2427
        %v2429 = vpop.f32.mrb[0].mxu0
        %v2430 = vadd.f32 0.0, %v2429
        %v2431 = vpop.f32.mrb[0].mxu0
        %v2432 = vadd.f32 0.0, %v2431
        %2433 = vmatprep.mubr.bf16.mxu0 0
        %2434 = vmatmul.mubr.bf16.gmra.mrb[0].mxu0 %v1977
        %v2435 = vpop.f32.mrb[0].mxu0
        %v2436 = vadd.f32 0.0, %v2435
        %v2437 = vpop.f32.mrb[0].mxu0
        %v2438 = vadd.f32 0.0, %v2437
        %v2439 = vpop.f32.mrb[0].mxu0
        %v2440 = vadd.f32 0.0, %v2439
        %v2441 = vpop.f32.mrb[0].mxu0
        %v2442 = vadd.f32 0.0, %v2441
        %2443 = vmatprep.mubr.bf16.mxu0 0
        %2444 = vmatmul.mubr.bf16.gmra.mrb[0].mxu0 %v1978
        %v2445 = vpop.f32.mrb[0].mxu0
        %v2446 = vadd.f32 0.0, %v2445
        %v2447 = vpop.f32.mrb[0].mxu0
        %v2448 = vadd.f32 0.0, %v2447
        %v2449 = vpop.f32.mrb[0].mxu0
        %v2450 = vadd.f32 0.0, %v2449
        %v2451 = vpop.f32.mrb[0].mxu0
        %v2452 = vadd.f32 0.0, %v2451
        %2453 = vmatprep.mubr.bf16.mxu0 0
        %2454 = vmatmul.mubr.bf16.gmra.mrb[0].mxu0 %v1979
        %v2455 = vpop.f32.mrb[0].mxu0
        %v2456 = vadd.f32 0.0, %v2455
        %v2457 = vpop.f32.mrb[0].mxu0
        %v2458 = vadd.f32 0.0, %v2457
        %v2459 = vpop.f32.mrb[0].mxu0
        %v2460 = vadd.f32 0.0, %v2459
        %v2461 = vpop.f32.mrb[0].mxu0
        %v2462 = vadd.f32 0.0, %v2461
        %2463 = vmatprep.mubr.bf16.mxu0 0
        %2464 = vmatmul.mubr.bf16.gmra.mrb[0].mxu0 %v1980
        %v2465 = vpop.f32.mrb[0].mxu0
        %v2466 = vadd.f32 0.0, %v2465
        %v2467 = vpop.f32.mrb[0].mxu0
        %v2468 = vadd.f32 0.0, %v2467
        %v2469 = vpop.f32.mrb[0].mxu0
        %v2470 = vadd.f32 0.0, %v2469
        %v2471 = vpop.f32.mrb[0].mxu0
        %v2472 = vadd.f32 0.0, %v2471
        %2473 = vmatprep.mubr.bf16.mxu0 0
        %2474 = vmatmul.mubr.bf16.gmra.mrb[0].mxu0 %v1981
        %v2475 = vpop.f32.mrb[0].mxu0
        %v2476 = vadd.f32 0.0, %v2475
        %v2477 = vpop.f32.mrb[0].mxu0
        %v2478 = vadd.f32 0.0, %v2477
        %v2479 = vpop.f32.mrb[0].mxu0
        %v2480 = vadd.f32 0.0, %v2479
        %v2481 = vpop.f32.mrb[0].mxu0
        %v2482 = vadd.f32 0.0, %v2481
        %2483 = vmatprep.mubr.bf16.mxu0 0
        %2484 = vmatmul.mubr.bf16.gmra.mrb[0].mxu0 %v1982
        %v2485 = vpop.f32.mrb[0].mxu0
        %v2486 = vadd.f32 0.0, %v2485
        %v2487 = vpop.f32.mrb[0].mxu0
        %v2488 = vadd.f32 0.0, %v2487
        %v2489 = vpop.f32.mrb[0].mxu0
        %v2490 = vadd.f32 0.0, %v2489
        %v2491 = vpop.f32.mrb[0].mxu0
        %v2492 = vadd.f32 0.0, %v2491
        %2493 = vmatprep.mubr.bf16.mxu0 0
        %2494 = vmatmul.mubr.bf16.gmra.mrb[0].mxu0 %v1983
        %v2495 = vpop.f32.mrb[0].mxu0
        %v2496 = vadd.f32 0.0, %v2495
        %v2497 = vpop.f32.mrb[0].mxu0
        %v2498 = vadd.f32 0.0, %v2497
        %v2499 = vpop.f32.mrb[0].mxu0
        %v2500 = vadd.f32 0.0, %v2499
        %v2501 = vpop.f32.mrb[0].mxu0
        %v2502 = vadd.f32 0.0, %v2501
        %2503 = vmatprep.mubr.bf16.mxu0 0
        %2504 = vmatmul.mubr.bf16.gmra.mrb[0].mxu0 %v1984
        %v2505 = vpop.f32.mrb[0].mxu0
        %v2506 = vadd.f32 0.0, %v2505
        %v2507 = vpop.f32.mrb[0].mxu0
        %v2508 = vadd.f32 0.0, %v2507
        %v2509 = vpop.f32.mrb[0].mxu0
        %v2510 = vadd.f32 0.0, %v2509
        %v2511 = vpop.f32.mrb[0].mxu0
        %v2512 = vadd.f32 0.0, %v2511
        %2513 = vmatprep.mubr.bf16.mxu0 0
        %2514 = vmatmul.mubr.bf16.gmra.mrb[0].mxu0 %v1985
        %v2515 = vpop.f32.mrb[0].mxu0
        %v2516 = vadd.f32 0.0, %v2515
        %v2517 = vpop.f32.mrb[0].mxu0
        %v2518 = vadd.f32 0.0, %v2517
        %v2519 = vpop.f32.mrb[0].mxu0
        %v2520 = vadd.f32 0.0, %v2519
        %v2521 = vpop.f32.mrb[0].mxu0
        %v2522 = vadd.f32 0.0, %v2521
        %2523 = vmatprep.mubr.bf16.mxu0 0
        %2524 = vmatmul.mubr.bf16.gmra.mrb[0].mxu0 %v1986
        %v2525 = vpop.f32.mrb[0].mxu0
        %v2526 = vadd.f32 0.0, %v2525
        %v2527 = vpop.f32.mrb[0].mxu0
        %v2528 = vadd.f32 0.0, %v2527
        %v2529 = vpop.f32.mrb[0].mxu0
        %v2530 = vadd.f32 0.0, %v2529
        %v2531 = vpop.f32.mrb[0].mxu0
        %v2532 = vadd.f32 0.0, %v2531
        %2533 = vmatprep.mubr.bf16.mxu0 0
        %2534 = vmatmul.mubr.bf16.gmra.mrb[0].mxu0 %v1987
        %v2535 = vpop.f32.mrb[0].mxu0
        %v2536 = vadd.f32 0.0, %v2535
        %v2537 = vpop.f32.mrb[0].mxu0
        %v2538 = vadd.f32 0.0, %v2537
        %v2539 = vpop.f32.mrb[0].mxu0
        %v2540 = vadd.f32 0.0, %v2539
        %v2541 = vpop.f32.mrb[0].mxu0
        %v2542 = vadd.f32 0.0, %v2541
        %2543 = vmatprep.mubr.bf16.mxu0 0
        %2544 = vmatmul.mubr.bf16.gmra.mrb[0].mxu0 %v1988
        %v2545 = vpop.f32.mrb[0].mxu0
        %v2546 = vadd.f32 0.0, %v2545
        %v2547 = vpop.f32.mrb[0].mxu0
        %v2548 = vadd.f32 0.0, %v2547
        %v2549 = vpop.f32.mrb[0].mxu0
        %v2550 = vadd.f32 0.0, %v2549
        %v2551 = vpop.f32.mrb[0].mxu0
        %v2552 = vadd.f32 0.0, %v2551
        %2553 = vmatprep.mubr.bf16.mxu0 0
        %2554 = vmatmul.mubr.bf16.gmra.mrb[0].mxu0 %v1989
        %v2555 = vpop.f32.mrb[0].mxu0
        %v2556 = vadd.f32 0.0, %v2555
        %v2557 = vpop.f32.mrb[0].mxu0
        %v2558 = vadd.f32 0.0, %v2557
        %v2559 = vpop.f32.mrb[0].mxu0
        %v2560 = vadd.f32 0.0, %v2559
        %v2561 = vpop.f32.mrb[0].mxu0
        %v2562 = vadd.f32 0.0, %v2561
        %2563 = vmatprep.mubr.bf16.mxu0 0
        %2564 = vmatmul.mubr.bf16.gmra.mrb[0].mxu0 %v1990
        %v2565 = vpop.f32.mrb[0].mxu0
        %v2566 = vadd.f32 0.0, %v2565
        %v2567 = vpop.f32.mrb[0].mxu0
        %v2568 = vadd.f32 0.0, %v2567
        %v2569 = vpop.f32.mrb[0].mxu0
        %v2570 = vadd.f32 0.0, %v2569
        %v2571 = vpop.f32.mrb[0].mxu0
        %v2572 = vadd.f32 0.0, %v2571
        %2573 = vmatprep.mubr.bf16.mxu0 0
        %2574 = vmatmul.mubr.bf16.gmra.mrb[0].mxu0 %v1991
        %v2575 = vpop.f32.mrb[0].mxu0
        %v2576 = vadd.f32 0.0, %v2575
        %v2577 = vpop.f32.mrb[0].mxu0
        %v2578 = vadd.f32 0.0, %v2577
        %v2579 = vpop.f32.mrb[0].mxu0
        %v2580 = vadd.f32 0.0, %v2579
        %v2581 = vpop.f32.mrb[0].mxu0
        %v2582 = vadd.f32 0.0, %v2581
        %2583 = vmatprep.mubr.bf16.mxu0 0
        %2584 = vmatmul.mubr.bf16.gmra.mrb[0].mxu0 %v1992
        %v2585 = vpop.f32.mrb[0].mxu0
        %v2586 = vadd.f32 0.0, %v2585
        %v2587 = vpop.f32.mrb[0].mxu0
        %v2588 = vadd.f32 0.0, %v2587
        %v2589 = vpop.f32.mrb[0].mxu0
        %v2590 = vadd.f32 0.0, %v2589
        %v2591 = vpop.f32.mrb[0].mxu0
        %v2592 = vadd.f32 0.0, %v2591
        %2593 = vmatprep.mubr.bf16.mxu0 0
        %2594 = vmatmul.mubr.bf16.gmra.mrb[0].mxu0 %v1993
        %v2595 = vpop.f32.mrb[0].mxu0
        %v2596 = vadd.f32 0.0, %v2595
        %v2597 = vpop.f32.mrb[0].mxu0
        %v2598 = vadd.f32 0.0, %v2597
        %v2599 = vpop.f32.mrb[0].mxu0
        %v2600 = vadd.f32 0.0, %v2599
        %v2601 = vpop.f32.mrb[0].mxu0
        %v2602 = vadd.f32 0.0, %v2601
        %2603 = vmatprep.mubr.bf16.mxu0 0
        %2604 = vmatmul.mubr.bf16.gmra.mrb[0].mxu0 %v1994
        %v2605 = vpop.f32.mrb[0].mxu0
        %v2606 = vadd.f32 0.0, %v2605
        %v2607 = vpop.f32.mrb[0].mxu0
        %v2608 = vadd.f32 0.0, %v2607
        %v2609 = vpop.f32.mrb[0].mxu0
        %v2610 = vadd.f32 0.0, %v2609
        %v2611 = vpop.f32.mrb[0].mxu0
        %v2612 = vadd.f32 0.0, %v2611
        %2613 = vmatprep.mubr.bf16.mxu0 0
        %2614 = vmatmul.mubr.bf16.gmra.mrb[0].mxu0 %v1995
        %v2615 = vpop.f32.mrb[0].mxu0
        %v2616 = vadd.f32 0.0, %v2615
        %v2617 = vpop.f32.mrb[0].mxu0
        %v2618 = vadd.f32 0.0, %v2617
        %v2619 = vpop.f32.mrb[0].mxu0
        %v2620 = vadd.f32 0.0, %v2619
        %v2621 = vpop.f32.mrb[0].mxu0
        %v2622 = vadd.f32 0.0, %v2621
        %2623 = vmatprep.mubr.bf16.mxu0 0
        %2624 = vmatmul.mubr.bf16.gmra.mrb[0].mxu0 %v1996
        %v2625 = vpop.f32.mrb[0].mxu0
        %v2626 = vadd.f32 0.0, %v2625
        %v2627 = vpop.f32.mrb[0].mxu0
        %v2628 = vadd.f32 0.0, %v2627
        %v2629 = vpop.f32.mrb[0].mxu0
        %v2630 = vadd.f32 0.0, %v2629
        %v2631 = vpop.f32.mrb[0].mxu0
        %v2632 = vadd.f32 0.0, %v2631
        %2633 = vmatprep.mubr.bf16.mxu0 0
        %2634 = vmatmul.mubr.bf16.gmra.mrb[0].mxu0 %v1997
        %v2635 = vpop.f32.mrb[0].mxu0
        %v2636 = vadd.f32 0.0, %v2635
        %v2637 = vpop.f32.mrb[0].mxu0
        %v2638 = vadd.f32 0.0, %v2637
        %v2639 = vpop.f32.mrb[0].mxu0
        %v2640 = vadd.f32 0.0, %v2639
        %v2641 = vpop.f32.mrb[0].mxu0
        %v2642 = vadd.f32 0.0, %v2641
        %2643 = vmatprep.mubr.bf16.mxu0 0
        %2644 = vmatmul.mubr.bf16.gmra.mrb[0].mxu0 %v1998
        %v2645 = vpop.f32.mrb[0].mxu0
        %v2646 = vadd.f32 0.0, %v2645
        %v2647 = vpop.f32.mrb[0].mxu0
        %v2648 = vadd.f32 0.0, %v2647
        %v2649 = vpop.f32.mrb[0].mxu0
        %v2650 = vadd.f32 0.0, %v2649
        %v2651 = vpop.f32.mrb[0].mxu0
        %v2652 = vadd.f32 0.0, %v2651
        %2653 = vmatprep.mubr.bf16.mxu0 0
        %2654 = vmatmul.mubr.bf16.gmra.mrb[0].mxu0 %v1999
        %v2655 = vpop.f32.mrb[0].mxu0
        %v2656 = vadd.f32 0.0, %v2655
        %v2657 = vpop.f32.mrb[0].mxu0
        %v2658 = vadd.f32 0.0, %v2657
        %v2659 = vpop.f32.mrb[0].mxu0
        %v2660 = vadd.f32 0.0, %v2659
        %v2661 = vpop.f32.mrb[0].mxu0
        %v2662 = vadd.f32 0.0, %v2661
        %2663 = vmatprep.mubr.bf16.mxu0 0
        %2664 = vmatmul.mubr.bf16.gmra.mrb[0].mxu0 %v2000
        %v2665 = vpop.f32.mrb[0].mxu0
        %v2666 = vadd.f32 0.0, %v2665
        %v2667 = vpop.f32.mrb[0].mxu0
        %v2668 = vadd.f32 0.0, %v2667
        %v2669 = vpop.f32.mrb[0].mxu0
        %v2670 = vadd.f32 0.0, %v2669
        %v2671 = vpop.f32.mrb[0].mxu0
        %v2672 = vadd.f32 0.0, %v2671
        %2673 = vmatprep.mubr.bf16.mxu0 0
        %2674 = vmatmul.mubr.bf16.gmra.mrb[0].mxu0 %v2001
        %v2675 = vpop.f32.mrb[0].mxu0
        %v2676 = vadd.f32 0.0, %v2675
        %v2677 = vpop.f32.mrb[0].mxu0
        %v2678 = vadd.f32 0.0, %v2677
        %v2679 = vpop.f32.mrb[0].mxu0
        %v2680 = vadd.f32 0.0, %v2679
        %v2681 = vpop.f32.mrb[0].mxu0
        %v2682 = vadd.f32 0.0, %v2681
        %2683 = vmatprep.mubr.bf16.mxu0 0
        %2684 = vmatmul.mubr.bf16.gmra.mrb[0].mxu0 %v2002
        %v2685 = vpop.f32.mrb[0].mxu0
        %v2686 = vadd.f32 0.0, %v2685
        %v2687 = vpop.f32.mrb[0].mxu0
        %v2688 = vadd.f32 0.0, %v2687
        %v2689 = vpop.f32.mrb[0].mxu0
        %v2690 = vadd.f32 0.0, %v2689
        %v2691 = vpop.f32.mrb[0].mxu0
        %v2692 = vadd.f32 0.0, %v2691
        %2693 = vmatprep.mubr.bf16.mxu0 0
        %2694 = vmatmul.mubr.bf16.gmra.mrb[0].mxu0 %v2003
        %v2695 = vpop.f32.mrb[0].mxu0
        %v2696 = vadd.f32 0.0, %v2695
        %v2697 = vpop.f32.mrb[0].mxu0
        %v2698 = vadd.f32 0.0, %v2697
        %v2699 = vpop.f32.mrb[0].mxu0
        %v2700 = vadd.f32 0.0, %v2699
        %v2701 = vpop.f32.mrb[0].mxu0
        %v2702 = vadd.f32 0.0, %v2701
        %2703 = vmatprep.mubr.bf16.mxu0 0
        %2704 = vmatmul.mubr.bf16.gmra.mrb[0].mxu0 %v2004
        %v2705 = vpop.f32.mrb[0].mxu0
        %v2706 = vadd.f32 0.0, %v2705
        %v2707 = vpop.f32.mrb[0].mxu0
        %v2708 = vadd.f32 0.0, %v2707
        %v2709 = vpop.f32.mrb[0].mxu0
        %v2710 = vadd.f32 0.0, %v2709
        %v2711 = vpop.f32.mrb[0].mxu0
        %v2712 = vadd.f32 0.0, %v2711
        %2713 = vmatprep.mubr.bf16.mxu0 0
        %2714 = vmatmul.mubr.bf16.gmra.mrb[0].mxu0 %v2005
        %v2715 = vpop.f32.mrb[0].mxu0
        %v2716 = vadd.f32 0.0, %v2715
        %v2717 = vpop.f32.mrb[0].mxu0
        %v2718 = vadd.f32 0.0, %v2717
        %v2719 = vpop.f32.mrb[0].mxu0
        %v2720 = vadd.f32 0.0, %v2719
        %v2721 = vpop.f32.mrb[0].mxu0
        %v2722 = vadd.f32 0.0, %v2721
        %2723 = vmatprep.mubr.bf16.mxu0 0
        %2724 = vmatmul.mubr.bf16.gmra.mrb[0].mxu0 %v2006
        %v2725 = vpop.f32.mrb[0].mxu0
        %v2726 = vadd.f32 0.0, %v2725
        %v2727 = vpop.f32.mrb[0].mxu0
        %v2728 = vadd.f32 0.0, %v2727
        %v2729 = vpop.f32.mrb[0].mxu0
        %v2730 = vadd.f32 0.0, %v2729
        %v2731 = vpop.f32.mrb[0].mxu0
        %v2732 = vadd.f32 0.0, %v2731
        %2733 = vmatprep.mubr.bf16.mxu0 0
        %2734 = vmatmul.mubr.bf16.gmra.mrb[0].mxu0 %v2007
        %v2735 = vpop.f32.mrb[0].mxu0
        %v2736 = vadd.f32 0.0, %v2735
        %v2737 = vpop.f32.mrb[0].mxu0
        %v2738 = vadd.f32 0.0, %v2737
        %v2739 = vpop.f32.mrb[0].mxu0
        %v2740 = vadd.f32 0.0, %v2739
        %v2741 = vpop.f32.mrb[0].mxu0
        %v2742 = vadd.f32 0.0, %v2741
        %2743 = vmatprep.mubr.bf16.mxu0 0
        %2744 = vmatmul.mubr.bf16.gmra.mrb[0].mxu0 %v2008
        %v2745 = vpop.f32.mrb[0].mxu0
        %v2746 = vadd.f32 0.0, %v2745
        %v2747 = vpop.f32.mrb[0].mxu0
        %v2748 = vadd.f32 0.0, %v2747
        %v2749 = vpop.f32.mrb[0].mxu0
        %v2750 = vadd.f32 0.0, %v2749
        %v2751 = vpop.f32.mrb[0].mxu0
        %v2752 = vadd.f32 0.0, %v2751
        %2753 = vmatprep.mubr.bf16.mxu0 0
        %2754 = vmatmul.mubr.bf16.gmra.mrb[0].mxu0 %v2009
        %v2755 = vpop.f32.mrb[0].mxu0
        %v2756 = vadd.f32 0.0, %v2755
        %v2757 = vpop.f32.mrb[0].mxu0
        %v2758 = vadd.f32 0.0, %v2757
        %v2759 = vpop.f32.mrb[0].mxu0
        %v2760 = vadd.f32 0.0, %v2759
        %v2761 = vpop.f32.mrb[0].mxu0
        %v2762 = vadd.f32 0.0, %v2761
        %2763 = vmatprep.mubr.bf16.mxu0 0
        %2764 = vmatmul.mubr.bf16.gmra.mrb[0].mxu0 %v2010
        %v2765 = vpop.f32.mrb[0].mxu0
        %v2766 = vadd.f32 0.0, %v2765
        %v2767 = vpop.f32.mrb[0].mxu0
        %v2768 = vadd.f32 0.0, %v2767
        %v2769 = vpop.f32.mrb[0].mxu0
        %v2770 = vadd.f32 0.0, %v2769
        %v2771 = vpop.f32.mrb[0].mxu0
        %v2772 = vadd.f32 0.0, %v2771
        %2773 = vmatprep.mubr.bf16.mxu0 0
        %2774 = vmatmul.mubr.bf16.gmra.mrb[0].mxu0 %v2011
        %v2775 = vpop.f32.mrb[0].mxu0
        %v2776 = vadd.f32 0.0, %v2775
        %v2777 = vpop.f32.mrb[0].mxu0
        %v2778 = vadd.f32 0.0, %v2777
        %v2779 = vpop.f32.mrb[0].mxu0
        %v2780 = vadd.f32 0.0, %v2779
        %v2781 = vpop.f32.mrb[0].mxu0
        %v2782 = vadd.f32 0.0, %v2781
        %2783 = vmatprep.mubr.bf16.mxu0 0
        %2784 = vmatmul.mubr.bf16.gmra.mrb[0].mxu0 %v2012
        %v2785 = vpop.f32.mrb[0].mxu0
        %v2786 = vadd.f32 0.0, %v2785
        %v2787 = vpop.f32.mrb[0].mxu0
        %v2788 = vadd.f32 0.0, %v2787
        %v2789 = vpop.f32.mrb[0].mxu0
        %v2790 = vadd.f32 0.0, %v2789
        %v2791 = vpop.f32.mrb[0].mxu0
        %v2792 = vadd.f32 0.0, %v2791
        %2793 = vmatprep.mubr.bf16.mxu0 0
        %2794 = vmatmul.mubr.bf16.gmra.mrb[0].mxu0 %v2013
        %v2795 = vpop.f32.mrb[0].mxu0
        %v2796 = vadd.f32 0.0, %v2795
        %v2797 = vpop.f32.mrb[0].mxu0
        %v2798 = vadd.f32 0.0, %v2797
        %v2799 = vpop.f32.mrb[0].mxu0
        %v2800 = vadd.f32 0.0, %v2799
        %v2801 = vpop.f32.mrb[0].mxu0
        %v2802 = vadd.f32 0.0, %v2801
        %2803 = vmatprep.mubr.bf16.mxu0 0
        %2804 = vmatmul.mubr.bf16.gmra.mrb[0].mxu0 %v2014
        %v2805 = vpop.f32.mrb[0].mxu0
        %v2806 = vadd.f32 0.0, %v2805
        %v2807 = vpop.f32.mrb[0].mxu0
        %v2808 = vadd.f32 0.0, %v2807
        %v2809 = vpop.f32.mrb[0].mxu0
        %v2810 = vadd.f32 0.0, %v2809
        %v2811 = vpop.f32.mrb[0].mxu0
        %v2812 = vadd.f32 0.0, %v2811
        %2813 = vmatprep.mubr.bf16.mxu0 0
        %2814 = vmatmul.mubr.bf16.gmra.mrb[0].mxu0 %v2015
        %v2815 = vpop.f32.mrb[0].mxu0
        %v2816 = vadd.f32 0.0, %v2815
        %v2817 = vpop.f32.mrb[0].mxu0
        %v2818 = vadd.f32 0.0, %v2817
        %v2819 = vpop.f32.mrb[0].mxu0
        %v2820 = vadd.f32 0.0, %v2819
        %v2821 = vpop.f32.mrb[0].mxu0
        %v2822 = vadd.f32 0.0, %v2821
        %2823 = vmatprep.mubr.bf16.mxu0 0
        %2824 = vmatmul.mubr.bf16.gmra.mrb[0].mxu0 %v2016
        %v2825 = vpop.f32.mrb[0].mxu0
        %v2826 = vadd.f32 0.0, %v2825
        %v2827 = vpop.f32.mrb[0].mxu0
        %v2828 = vadd.f32 0.0, %v2827
        %v2829 = vpop.f32.mrb[0].mxu0
        %v2830 = vadd.f32 0.0, %v2829
        %v2831 = vpop.f32.mrb[0].mxu0
        %v2832 = vadd.f32 0.0, %v2831
        %2833 = vdwg.mxu0
        %v2834 = vld [vmem:[#allocation7] sm:$0x3]
        %v2835 = vld [vmem:[#allocation7 + $0x2] sm:$0x3]
        %v2836 = vld [vmem:[#allocation7 + $0x4] sm:$0x3]
        %v2837 = vld [vmem:[#allocation7 + $0x6] sm:$0x3]
        %v2842 = vlaneseq
        %v2843 = vshrl.u32 %v2842, 7
        %v2844 = vsub.s32 0, %v2843
        %v2845 = vrot.slane %v2834, %v2844
        %v2846 = vlaneseq
        %v2847 = vshrl.u32 %v2846, 7
        %v2848 = vsub.s32 1, %v2847
        %v2849 = vrot.slane %v2834, %v2848
        %v2850 = vlaneseq
        %v2851 = vshrl.u32 %v2850, 7
        %v2852 = vsub.s32 0, %v2851
        %v2853 = vrot.slane %v2835, %v2852
        %v2854 = vlaneseq
        %v2855 = vshrl.u32 %v2854, 7
        %v2856 = vsub.s32 1, %v2855
        %v2857 = vrot.slane %v2835, %v2856
        %v2858 = vlaneseq
        %v2859 = vshrl.u32 %v2858, 7
        %v2860 = vsub.s32 0, %v2859
        %v2861 = vrot.slane %v2836, %v2860
        %v2862 = vlaneseq
        %v2863 = vshrl.u32 %v2862, 7
        %v2864 = vsub.s32 1, %v2863
        %v2865 = vrot.slane %v2836, %v2864
        %v2866 = vlaneseq
        %v2867 = vshrl.u32 %v2866, 7
        %v2868 = vsub.s32 0, %v2867
        %v2869 = vrot.slane %v2837, %v2868
        %v2870 = vlaneseq
        %v2871 = vshrl.u32 %v2870, 7
        %v2872 = vsub.s32 1, %v2871
        %v2873 = vrot.slane %v2837, %v2872
        %v2882 = vadd.f32 %v2196, %v2845
        %v2883 = vadd.f32 %v2198, %v2849
        %v2884 = vadd.f32 %v2200, %v2845
        %v2885 = vadd.f32 %v2202, %v2849
        %v2886 = vadd.f32 %v2206, %v2845
        %v2887 = vadd.f32 %v2208, %v2849
        %v2888 = vadd.f32 %v2210, %v2845
        %v2889 = vadd.f32 %v2212, %v2849
        %v2890 = vadd.f32 %v2216, %v2845
        %v2891 = vadd.f32 %v2218, %v2849
        %v2892 = vadd.f32 %v2220, %v2845
        %v2893 = vadd.f32 %v2222, %v2849
        %v2894 = vadd.f32 %v2226, %v2845
        %v2895 = vadd.f32 %v2228, %v2849
        %v2896 = vadd.f32 %v2230, %v2845
        %v2897 = vadd.f32 %v2232, %v2849
        %v2898 = vadd.f32 %v2236, %v2845
        %v2899 = vadd.f32 %v2238, %v2849
        %v2900 = vadd.f32 %v2240, %v2845
        %v2901 = vadd.f32 %v2242, %v2849
        %v2902 = vadd.f32 %v2246, %v2845
        %v2903 = vadd.f32 %v2248, %v2849
        %v2904 = vadd.f32 %v2250, %v2845
        %v2905 = vadd.f32 %v2252, %v2849
        %v2906 = vadd.f32 %v2256, %v2845
        %v2907 = vadd.f32 %v2258, %v2849
        %v2908 = vadd.f32 %v2260, %v2845
        %v2909 = vadd.f32 %v2262, %v2849
        %v2910 = vadd.f32 %v2266, %v2845
        %v2911 = vadd.f32 %v2268, %v2849
        %v2912 = vadd.f32 %v2270, %v2845
        %v2913 = vadd.f32 %v2272, %v2849
        %v2914 = vadd.f32 %v2276, %v2845
        %v2915 = vadd.f32 %v2278, %v2849
        %v2916 = vadd.f32 %v2280, %v2845
        %v2917 = vadd.f32 %v2282, %v2849
        %v2918 = vadd.f32 %v2286, %v2845
        %v2919 = vadd.f32 %v2288, %v2849
        %v2920 = vadd.f32 %v2290, %v2845
        %v2921 = vadd.f32 %v2292, %v2849
        %v2922 = vadd.f32 %v2296, %v2845
        %v2923 = vadd.f32 %v2298, %v2849
        %v2924 = vadd.f32 %v2300, %v2845
        %v2925 = vadd.f32 %v2302, %v2849
        %v2926 = vadd.f32 %v2306, %v2845
        %v2927 = vadd.f32 %v2308, %v2849
        %v2928 = vadd.f32 %v2310, %v2845
        %v2929 = vadd.f32 %v2312, %v2849
        %v2930 = vadd.f32 %v2316, %v2845
        %v2931 = vadd.f32 %v2318, %v2849
        %v2932 = vadd.f32 %v2320, %v2845
        %v2933 = vadd.f32 %v2322, %v2849
        %v2934 = vadd.f32 %v2326, %v2845
        %v2935 = vadd.f32 %v2328, %v2849
        %v2936 = vadd.f32 %v2330, %v2845
        %v2937 = vadd.f32 %v2332, %v2849
        %v2938 = vadd.f32 %v2336, %v2845
        %v2939 = vadd.f32 %v2338, %v2849
        %v2940 = vadd.f32 %v2340, %v2845
        %v2941 = vadd.f32 %v2342, %v2849
        %v2942 = vadd.f32 %v2346, %v2845
        %v2943 = vadd.f32 %v2348, %v2849
        %v2944 = vadd.f32 %v2350, %v2845
        %v2945 = vadd.f32 %v2352, %v2849
        %v2946 = vadd.f32 %v2356, %v2853
        %v2947 = vadd.f32 %v2358, %v2857
        %v2948 = vadd.f32 %v2360, %v2853
        %v2949 = vadd.f32 %v2362, %v2857
        %v2950 = vadd.f32 %v2366, %v2853
        %v2951 = vadd.f32 %v2368, %v2857
        %v2952 = vadd.f32 %v2370, %v2853
        %v2953 = vadd.f32 %v2372, %v2857
        %v2954 = vadd.f32 %v2376, %v2853
        %v2955 = vadd.f32 %v2378, %v2857
        %v2956 = vadd.f32 %v2380, %v2853
        %v2957 = vadd.f32 %v2382, %v2857
        %v2958 = vadd.f32 %v2386, %v2853
        %v2959 = vadd.f32 %v2388, %v2857
        %v2960 = vadd.f32 %v2390, %v2853
        %v2961 = vadd.f32 %v2392, %v2857
        %v2962 = vadd.f32 %v2396, %v2853
        %v2963 = vadd.f32 %v2398, %v2857
        %v2964 = vadd.f32 %v2400, %v2853
        %v2965 = vadd.f32 %v2402, %v2857
        %v2966 = vadd.f32 %v2406, %v2853
        %v2967 = vadd.f32 %v2408, %v2857
        %v2968 = vadd.f32 %v2410, %v2853
        %v2969 = vadd.f32 %v2412, %v2857
        %v2970 = vadd.f32 %v2416, %v2853
        %v2971 = vadd.f32 %v2418, %v2857
        %v2972 = vadd.f32 %v2420, %v2853
        %v2973 = vadd.f32 %v2422, %v2857
        %v2974 = vadd.f32 %v2426, %v2853
        %v2975 = vadd.f32 %v2428, %v2857
        %v2976 = vadd.f32 %v2430, %v2853
        %v2977 = vadd.f32 %v2432, %v2857
        %v2978 = vadd.f32 %v2436, %v2853
        %v2979 = vadd.f32 %v2438, %v2857
        %v2980 = vadd.f32 %v2440, %v2853
        %v2981 = vadd.f32 %v2442, %v2857
        %v2982 = vadd.f32 %v2446, %v2853
        %v2983 = vadd.f32 %v2448, %v2857
        %v2984 = vadd.f32 %v2450, %v2853
        %v2985 = vadd.f32 %v2452, %v2857
        %v2986 = vadd.f32 %v2456, %v2853
        %v2987 = vadd.f32 %v2458, %v2857
        %v2988 = vadd.f32 %v2460, %v2853
        %v2989 = vadd.f32 %v2462, %v2857
        %v2990 = vadd.f32 %v2466, %v2853
        %v2991 = vadd.f32 %v2468, %v2857
        %v2992 = vadd.f32 %v2470, %v2853
        %v2993 = vadd.f32 %v2472, %v2857
        %v2994 = vadd.f32 %v2476, %v2853
        %v2995 = vadd.f32 %v2478, %v2857
        %v2996 = vadd.f32 %v2480, %v2853
        %v2997 = vadd.f32 %v2482, %v2857
        %v2998 = vadd.f32 %v2486, %v2853
        %v2999 = vadd.f32 %v2488, %v2857
        %v3000 = vadd.f32 %v2490, %v2853
        %v3001 = vadd.f32 %v2492, %v2857
        %v3002 = vadd.f32 %v2496, %v2853
        %v3003 = vadd.f32 %v2498, %v2857
        %v3004 = vadd.f32 %v2500, %v2853
        %v3005 = vadd.f32 %v2502, %v2857
        %v3006 = vadd.f32 %v2506, %v2853
        %v3007 = vadd.f32 %v2508, %v2857
        %v3008 = vadd.f32 %v2510, %v2853
        %v3009 = vadd.f32 %v2512, %v2857
        %v3010 = vadd.f32 %v2516, %v2861
        %v3011 = vadd.f32 %v2518, %v2865
        %v3012 = vadd.f32 %v2520, %v2861
        %v3013 = vadd.f32 %v2522, %v2865
        %v3014 = vadd.f32 %v2526, %v2861
        %v3015 = vadd.f32 %v2528, %v2865
        %v3016 = vadd.f32 %v2530, %v2861
        %v3017 = vadd.f32 %v2532, %v2865
        %v3018 = vadd.f32 %v2536, %v2861
        %v3019 = vadd.f32 %v2538, %v2865
        %v3020 = vadd.f32 %v2540, %v2861
        %v3021 = vadd.f32 %v2542, %v2865
        %v3022 = vadd.f32 %v2546, %v2861
        %v3023 = vadd.f32 %v2548, %v2865
        %v3024 = vadd.f32 %v2550, %v2861
        %v3025 = vadd.f32 %v2552, %v2865
        %v3026 = vadd.f32 %v2556, %v2861
        %v3027 = vadd.f32 %v2558, %v2865
        %v3028 = vadd.f32 %v2560, %v2861
        %v3029 = vadd.f32 %v2562, %v2865
        %v3030 = vadd.f32 %v2566, %v2861
        %v3031 = vadd.f32 %v2568, %v2865
        %v3032 = vadd.f32 %v2570, %v2861
        %v3033 = vadd.f32 %v2572, %v2865
        %v3034 = vadd.f32 %v2576, %v2861
        %v3035 = vadd.f32 %v2578, %v2865
        %v3036 = vadd.f32 %v2580, %v2861
        %v3037 = vadd.f32 %v2582, %v2865
        %v3038 = vadd.f32 %v2586, %v2861
        %v3039 = vadd.f32 %v2588, %v2865
        %v3040 = vadd.f32 %v2590, %v2861
        %v3041 = vadd.f32 %v2592, %v2865
        %v3042 = vadd.f32 %v2596, %v2861
        %v3043 = vadd.f32 %v2598, %v2865
        %v3044 = vadd.f32 %v2600, %v2861
        %v3045 = vadd.f32 %v2602, %v2865
        %v3046 = vadd.f32 %v2606, %v2861
        %v3047 = vadd.f32 %v2608, %v2865
        %v3048 = vadd.f32 %v2610, %v2861
        %v3049 = vadd.f32 %v2612, %v2865
        %v3050 = vadd.f32 %v2616, %v2861
        %v3051 = vadd.f32 %v2618, %v2865
        %v3052 = vadd.f32 %v2620, %v2861
        %v3053 = vadd.f32 %v2622, %v2865
        %v3054 = vadd.f32 %v2626, %v2861
        %v3055 = vadd.f32 %v2628, %v2865
        %v3056 = vadd.f32 %v2630, %v2861
        %v3057 = vadd.f32 %v2632, %v2865
        %v3058 = vadd.f32 %v2636, %v2861
        %v3059 = vadd.f32 %v2638, %v2865
        %v3060 = vadd.f32 %v2640, %v2861
        %v3061 = vadd.f32 %v2642, %v2865
        %v3062 = vadd.f32 %v2646, %v2861
        %v3063 = vadd.f32 %v2648, %v2865
        %v3064 = vadd.f32 %v2650, %v2861
        %v3065 = vadd.f32 %v2652, %v2865
        %v3066 = vadd.f32 %v2656, %v2861
        %v3067 = vadd.f32 %v2658, %v2865
        %v3068 = vadd.f32 %v2660, %v2861
        %v3069 = vadd.f32 %v2662, %v2865
        %v3070 = vadd.f32 %v2666, %v2861
        %v3071 = vadd.f32 %v2668, %v2865
        %v3072 = vadd.f32 %v2670, %v2861
        %v3073 = vadd.f32 %v2672, %v2865
        %v3074 = vadd.f32 %v2676, %v2869
        %v3075 = vadd.f32 %v2678, %v2873
        %v3076 = vadd.f32 %v2680, %v2869
        %v3077 = vadd.f32 %v2682, %v2873
        %v3078 = vadd.f32 %v2686, %v2869
        %v3079 = vadd.f32 %v2688, %v2873
        %v3080 = vadd.f32 %v2690, %v2869
        %v3081 = vadd.f32 %v2692, %v2873
        %v3082 = vadd.f32 %v2696, %v2869
        %v3083 = vadd.f32 %v2698, %v2873
        %v3084 = vadd.f32 %v2700, %v2869
        %v3085 = vadd.f32 %v2702, %v2873
        %v3086 = vadd.f32 %v2706, %v2869
        %v3087 = vadd.f32 %v2708, %v2873
        %v3088 = vadd.f32 %v2710, %v2869
        %v3089 = vadd.f32 %v2712, %v2873
        %v3090 = vadd.f32 %v2716, %v2869
        %v3091 = vadd.f32 %v2718, %v2873
        %v3092 = vadd.f32 %v2720, %v2869
        %v3093 = vadd.f32 %v2722, %v2873
        %v3094 = vadd.f32 %v2726, %v2869
        %v3095 = vadd.f32 %v2728, %v2873
        %v3096 = vadd.f32 %v2730, %v2869
        %v3097 = vadd.f32 %v2732, %v2873
        %v3098 = vadd.f32 %v2736, %v2869
        %v3099 = vadd.f32 %v2738, %v2873
        %v3100 = vadd.f32 %v2740, %v2869
        %v3101 = vadd.f32 %v2742, %v2873
        %v3102 = vadd.f32 %v2746, %v2869
        %v3103 = vadd.f32 %v2748, %v2873
        %v3104 = vadd.f32 %v2750, %v2869
        %v3105 = vadd.f32 %v2752, %v2873
        %v3106 = vadd.f32 %v2756, %v2869
        %v3107 = vadd.f32 %v2758, %v2873
        %v3108 = vadd.f32 %v2760, %v2869
        %v3109 = vadd.f32 %v2762, %v2873
        %v3110 = vadd.f32 %v2766, %v2869
        %v3111 = vadd.f32 %v2768, %v2873
        %v3112 = vadd.f32 %v2770, %v2869
        %v3113 = vadd.f32 %v2772, %v2873
        %v3114 = vadd.f32 %v2776, %v2869
        %v3115 = vadd.f32 %v2778, %v2873
        %v3116 = vadd.f32 %v2780, %v2869
        %v3117 = vadd.f32 %v2782, %v2873
        %v3118 = vadd.f32 %v2786, %v2869
        %v3119 = vadd.f32 %v2788, %v2873
        %v3120 = vadd.f32 %v2790, %v2869
        %v3121 = vadd.f32 %v2792, %v2873
        %v3122 = vadd.f32 %v2796, %v2869
        %v3123 = vadd.f32 %v2798, %v2873
        %v3124 = vadd.f32 %v2800, %v2869
        %v3125 = vadd.f32 %v2802, %v2873
        %v3126 = vadd.f32 %v2806, %v2869
        %v3127 = vadd.f32 %v2808, %v2873
        %v3128 = vadd.f32 %v2810, %v2869
        %v3129 = vadd.f32 %v2812, %v2873
        %v3130 = vadd.f32 %v2816, %v2869
        %v3131 = vadd.f32 %v2818, %v2873
        %v3132 = vadd.f32 %v2820, %v2869
        %v3133 = vadd.f32 %v2822, %v2873
        %v3134 = vadd.f32 %v2826, %v2869
        %v3135 = vadd.f32 %v2828, %v2873
        %v3136 = vadd.f32 %v2830, %v2869
        %v3137 = vadd.f32 %v2832, %v2873
        %v3138 = vmul.f32 %v1427, %v2882
        %v3139 = vmul.f32 %v1430, %v2884
        %v3140 = vmul.f32 %v1435, %v2886
        %v3141 = vmul.f32 %v1438, %v2888
        %v3142 = vmul.f32 %v1443, %v2890
        %v3143 = vmul.f32 %v1446, %v2892
        %v3144 = vmul.f32 %v1451, %v2894
        %v3145 = vmul.f32 %v1454, %v2896
        %v3146 = vmul.f32 %v1459, %v2898
        %v3147 = vmul.f32 %v1462, %v2900
        %v3148 = vmul.f32 %v1467, %v2902
        %v3149 = vmul.f32 %v1470, %v2904
        %v3150 = vmul.f32 %v1475, %v2906
        %v3151 = vmul.f32 %v1478, %v2908
        %v3152 = vmul.f32 %v1483, %v2910
        %v3153 = vmul.f32 %v1486, %v2912
        %v3154 = vmul.f32 %v1491, %v2914
        %v3155 = vmul.f32 %v1494, %v2916
        %v3156 = vmul.f32 %v1499, %v2918
        %v3157 = vmul.f32 %v1502, %v2920
        %v3158 = vmul.f32 %v1507, %v2922
        %v3159 = vmul.f32 %v1510, %v2924
        %v3160 = vmul.f32 %v1515, %v2926
        %v3161 = vmul.f32 %v1518, %v2928
        %v3162 = vmul.f32 %v1523, %v2930
        %v3163 = vmul.f32 %v1526, %v2932
        %v3164 = vmul.f32 %v1531, %v2934
        %v3165 = vmul.f32 %v1534, %v2936
        %v3166 = vmul.f32 %v1539, %v2938
        %v3167 = vmul.f32 %v1542, %v2940
        %v3168 = vmul.f32 %v1547, %v2942
        %v3169 = vmul.f32 %v1550, %v2944
        %v3170 = vmul.f32 %v1427, %v2946
        %v3171 = vmul.f32 %v1430, %v2948
        %v3172 = vmul.f32 %v1435, %v2950
        %v3173 = vmul.f32 %v1438, %v2952
        %v3174 = vmul.f32 %v1443, %v2954
        %v3175 = vmul.f32 %v1446, %v2956
        %v3176 = vmul.f32 %v1451, %v2958
        %v3177 = vmul.f32 %v1454, %v2960
        %v3178 = vmul.f32 %v1459, %v2962
        %v3179 = vmul.f32 %v1462, %v2964
        %v3180 = vmul.f32 %v1467, %v2966
        %v3181 = vmul.f32 %v1470, %v2968
        %v3182 = vmul.f32 %v1475, %v2970
        %v3183 = vmul.f32 %v1478, %v2972
        %v3184 = vmul.f32 %v1483, %v2974
        %v3185 = vmul.f32 %v1486, %v2976
        %v3186 = vmul.f32 %v1491, %v2978
        %v3187 = vmul.f32 %v1494, %v2980
        %v3188 = vmul.f32 %v1499, %v2982
        %v3189 = vmul.f32 %v1502, %v2984
        %v3190 = vmul.f32 %v1507, %v2986
        %v3191 = vmul.f32 %v1510, %v2988
        %v3192 = vmul.f32 %v1515, %v2990
        %v3193 = vmul.f32 %v1518, %v2992
        %v3194 = vmul.f32 %v1523, %v2994
        %v3195 = vmul.f32 %v1526, %v2996
        %v3196 = vmul.f32 %v1531, %v2998
        %v3197 = vmul.f32 %v1534, %v3000
        %v3198 = vmul.f32 %v1539, %v3002
        %v3199 = vmul.f32 %v1542, %v3004
        %v3200 = vmul.f32 %v1547, %v3006
        %v3201 = vmul.f32 %v1550, %v3008
        %v3202 = vmul.f32 %v1427, %v3010
        %v3203 = vmul.f32 %v1430, %v3012
        %v3204 = vmul.f32 %v1435, %v3014
        %v3205 = vmul.f32 %v1438, %v3016
        %v3206 = vmul.f32 %v1443, %v3018
        %v3207 = vmul.f32 %v1446, %v3020
        %v3208 = vmul.f32 %v1451, %v3022
        %v3209 = vmul.f32 %v1454, %v3024
        %v3210 = vmul.f32 %v1459, %v3026
        %v3211 = vmul.f32 %v1462, %v3028
        %v3212 = vmul.f32 %v1467, %v3030
        %v3213 = vmul.f32 %v1470, %v3032
        %v3214 = vmul.f32 %v1475, %v3034
        %v3215 = vmul.f32 %v1478, %v3036
        %v3216 = vmul.f32 %v1483, %v3038
        %v3217 = vmul.f32 %v1486, %v3040
        %v3218 = vmul.f32 %v1491, %v3042
        %v3219 = vmul.f32 %v1494, %v3044
        %v3220 = vmul.f32 %v1499, %v3046
        %v3221 = vmul.f32 %v1502, %v3048
        %v3222 = vmul.f32 %v1507, %v3050
        %v3223 = vmul.f32 %v1510, %v3052
        %v3224 = vmul.f32 %v1515, %v3054
        %v3225 = vmul.f32 %v1518, %v3056
        %v3226 = vmul.f32 %v1523, %v3058
        %v3227 = vmul.f32 %v1526, %v3060
        %v3228 = vmul.f32 %v1531, %v3062
        %v3229 = vmul.f32 %v1534, %v3064
        %v3230 = vmul.f32 %v1539, %v3066
        %v3231 = vmul.f32 %v1542, %v3068
        %v3232 = vmul.f32 %v1547, %v3070
        %v3233 = vmul.f32 %v1550, %v3072
        %v3234 = vmul.f32 %v1427, %v3074
        %v3235 = vmul.f32 %v1430, %v3076
        %v3236 = vmul.f32 %v1435, %v3078
        %v3237 = vmul.f32 %v1438, %v3080
        %v3238 = vmul.f32 %v1443, %v3082
        %v3239 = vmul.f32 %v1446, %v3084
        %v3240 = vmul.f32 %v1451, %v3086
        %v3241 = vmul.f32 %v1454, %v3088
        %v3242 = vmul.f32 %v1459, %v3090
        %v3243 = vmul.f32 %v1462, %v3092
        %v3244 = vmul.f32 %v1467, %v3094
        %v3245 = vmul.f32 %v1470, %v3096
        %v3246 = vmul.f32 %v1475, %v3098
        %v3247 = vmul.f32 %v1478, %v3100
        %v3248 = vmul.f32 %v1483, %v3102
        %v3249 = vmul.f32 %v1486, %v3104
        %v3250 = vmul.f32 %v1491, %v3106
        %v3251 = vmul.f32 %v1494, %v3108
        %v3252 = vmul.f32 %v1499, %v3110
        %v3253 = vmul.f32 %v1502, %v3112
        %v3254 = vmul.f32 %v1507, %v3114
        %v3255 = vmul.f32 %v1510, %v3116
        %v3256 = vmul.f32 %v1515, %v3118
        %v3257 = vmul.f32 %v1518, %v3120
        %v3258 = vmul.f32 %v1523, %v3122
        %v3259 = vmul.f32 %v1526, %v3124
        %v3260 = vmul.f32 %v1531, %v3126
        %v3261 = vmul.f32 %v1534, %v3128
        %v3262 = vmul.f32 %v1539, %v3130
        %v3263 = vmul.f32 %v1542, %v3132
        %v3264 = vmul.f32 %v1547, %v3134
        %v3265 = vmul.f32 %v1550, %v3136
        %v3266 = vld [vmem:[%s10] sm:$0xff]
        %v3267 = vld [vmem:[%s10 + $0x8] sm:$0xff]
        %v3268 = vld [vmem:[%s10 + $0x10] sm:$0xff]
        %v3269 = vld [vmem:[%s10 + $0x18] sm:$0xff]
        %v3270 = vld [vmem:[%s10 + $0x20] sm:$0xff]
        %v3271 = vld [vmem:[%s10 + $0x28] sm:$0xff]
        %v3272 = vld [vmem:[%s10 + $0x30] sm:$0xff]
        %v3273 = vld [vmem:[%s10 + $0x38] sm:$0xff]
        %v3274 = vld [vmem:[%s10 + $0x40] sm:$0xff]
        %v3275 = vld [vmem:[%s10 + $0x48] sm:$0xff]
        %v3276 = vld [vmem:[%s10 + $0x50] sm:$0xff]
        %v3277 = vld [vmem:[%s10 + $0x58] sm:$0xff]
        %v3278 = vld [vmem:[%s10 + $0x60] sm:$0xff]
        %v3279 = vld [vmem:[%s10 + $0x68] sm:$0xff]
        %v3280 = vld [vmem:[%s10 + $0x70] sm:$0xff]
        %v3281 = vld [vmem:[%s10 + $0x78] sm:$0xff]
        %3282 = vmatprep.subr.mxu0 0.0
        %3283 = vmatpush1.msra.mxu0 %v3266
        %3284 = vmatprep.subr.mxu0 0.0
        %3285 = vmatpush1.msra.mxu0 %v3267
        %3286 = vmatprep.subr.mxu0 0.0
        %3287 = vmatpush1.msra.mxu0 %v3268
        %3288 = vmatprep.subr.mxu0 0.0
        %3289 = vmatpush1.msra.mxu0 %v3269
        %3290 = vmatprep.subr.mxu0 0.0
        %3291 = vmatpush1.msra.mxu0 %v3270
        %3292 = vmatprep.subr.mxu0 0.0
        %3293 = vmatpush1.msra.mxu0 %v3271
        %3294 = vmatprep.subr.mxu0 0.0
        %3295 = vmatpush1.msra.mxu0 %v3272
        %3296 = vmatprep.subr.mxu0 0.0
        %3297 = vmatpush1.msra.mxu0 %v3273
        %3298 = vmatprep.subr.mxu0 0.0
        %3299 = vmatpush1.msra.mxu0 %v3274
        %3300 = vmatprep.subr.mxu0 0.0
        %3301 = vmatpush1.msra.mxu0 %v3275
        %3302 = vmatprep.subr.mxu0 0.0
        %3303 = vmatpush1.msra.mxu0 %v3276
        %3304 = vmatprep.subr.mxu0 0.0
        %3305 = vmatpush1.msra.mxu0 %v3277
        %3306 = vmatprep.subr.mxu0 0.0
        %3307 = vmatpush1.msra.mxu0 %v3278
        %3308 = vmatprep.subr.mxu0 0.0
        %3309 = vmatpush1.msra.mxu0 %v3279
        %3310 = vmatprep.subr.mxu0 0.0
        %3311 = vmatpush1.msra.mxu0 %v3280
        %3312 = vmatprep.subr.mxu0 0.0
        %3313 = vmatpush1.msra.mxu0 %v3281
        %3314 = vmatprep.subr.mxu0 0.0
        %3315 = vmatpush1.msra.mxu0 0.0
        %3316 = vmatprep.subr.mxu0 0.0
        %3317 = vmatpush1.msra.mxu0 0.0
        %3318 = vmatprep.subr.mxu0 0.0
        %3319 = vmatpush1.msra.mxu0 0.0
        %3320 = vmatprep.subr.mxu0 0.0
        %3321 = vmatpush1.msra.mxu0 0.0
        %3322 = vmatprep.subr.mxu0 0.0
        %3323 = vmatpush1.msra.mxu0 0.0
        %3324 = vmatprep.subr.mxu0 0.0
        %3325 = vmatpush1.msra.mxu0 0.0
        %3326 = vmatprep.subr.mxu0 0.0
        %3327 = vmatpush1.msra.mxu0 0.0
        %3328 = vmatprep.subr.mxu0 0.0
        %3329 = vmatpush1.msra.mxu0 0.0
        %3330 = vmatprep.subr.mxu0 0.0
        %3331 = vmatpush1.msra.mxu0 0.0
        %3332 = vmatprep.subr.mxu0 0.0
        %3333 = vmatpush1.msra.mxu0 0.0
        %3334 = vmatprep.subr.mxu0 0.0
        %3335 = vmatpush1.msra.mxu0 0.0
        %3336 = vmatprep.subr.mxu0 0.0
        %3337 = vmatpush1.msra.mxu0 0.0
        %3338 = vmatprep.subr.mxu0 0.0
        %3339 = vmatpush1.msra.mxu0 0.0
        %3340 = vmatprep.subr.mxu0 0.0
        %3341 = vmatpush1.msra.mxu0 0.0
        %3342 = vmatprep.subr.mxu0 0.0
        %3343 = vmatpush1.msra.mxu0 0.0
        %3344 = vmatprep.subr.mxu0 0.0
        %3345 = vmatpush1.msra.mxu0 0.0
        %3346 = vmatprep.mubr.f32.mxu0 0.0
        %3347 = vmatmul.mubr.f32.gmra.mrb[0].mxu0 %v3138
        %v3348 = vpop.f32.mrb[0].mxu0
        %v3349 = vadd.f32 0.0, %v3348
        %v3350 = vpop.f32.mrb[0].mxu0
        %3351 = vmatprep.mubr.f32.mxu0 0.0
        %3352 = vmatmul.mubr.f32.gmra.mrb[0].mxu0 %v3139
        %v3353 = vpop.f32.mrb[0].mxu0
        %v3354 = vadd.f32 0.0, %v3353
        %v3355 = vpop.f32.mrb[0].mxu0
        %3356 = vmatprep.mubr.f32.mxu0 0.0
        %3357 = vmatmul.mubr.f32.gmra.mrb[0].mxu0 %v3140
        %v3358 = vpop.f32.mrb[0].mxu0
        %v3359 = vadd.f32 0.0, %v3358
        %v3360 = vpop.f32.mrb[0].mxu0
        %3361 = vmatprep.mubr.f32.mxu0 0.0
        %3362 = vmatmul.mubr.f32.gmra.mrb[0].mxu0 %v3141
        %v3363 = vpop.f32.mrb[0].mxu0
        %v3364 = vadd.f32 0.0, %v3363
        %v3365 = vpop.f32.mrb[0].mxu0
        %3366 = vmatprep.mubr.f32.mxu0 0.0
        %3367 = vmatmul.mubr.f32.gmra.mrb[0].mxu0 %v3142
        %v3368 = vpop.f32.mrb[0].mxu0
        %v3369 = vadd.f32 0.0, %v3368
        %v3370 = vpop.f32.mrb[0].mxu0
        %3371 = vmatprep.mubr.f32.mxu0 0.0
        %3372 = vmatmul.mubr.f32.gmra.mrb[0].mxu0 %v3143
        %v3373 = vpop.f32.mrb[0].mxu0
        %v3374 = vadd.f32 0.0, %v3373
        %v3375 = vpop.f32.mrb[0].mxu0
        %3376 = vmatprep.mubr.f32.mxu0 0.0
        %3377 = vmatmul.mubr.f32.gmra.mrb[0].mxu0 %v3144
        %v3378 = vpop.f32.mrb[0].mxu0
        %v3379 = vadd.f32 0.0, %v3378
        %v3380 = vpop.f32.mrb[0].mxu0
        %3381 = vmatprep.mubr.f32.mxu0 0.0
        %3382 = vmatmul.mubr.f32.gmra.mrb[0].mxu0 %v3145
        %v3383 = vpop.f32.mrb[0].mxu0
        %v3384 = vadd.f32 0.0, %v3383
        %v3385 = vpop.f32.mrb[0].mxu0
        %3386 = vmatprep.mubr.f32.mxu0 0.0
        %3387 = vmatmul.mubr.f32.gmra.mrb[0].mxu0 %v3146
        %v3388 = vpop.f32.mrb[0].mxu0
        %v3389 = vadd.f32 0.0, %v3388
        %v3390 = vpop.f32.mrb[0].mxu0
        %3391 = vmatprep.mubr.f32.mxu0 0.0
        %3392 = vmatmul.mubr.f32.gmra.mrb[0].mxu0 %v3147
        %v3393 = vpop.f32.mrb[0].mxu0
        %v3394 = vadd.f32 0.0, %v3393
        %v3395 = vpop.f32.mrb[0].mxu0
        %3396 = vmatprep.mubr.f32.mxu0 0.0
        %3397 = vmatmul.mubr.f32.gmra.mrb[0].mxu0 %v3148
        %v3398 = vpop.f32.mrb[0].mxu0
        %v3399 = vadd.f32 0.0, %v3398
        %v3400 = vpop.f32.mrb[0].mxu0
        %3401 = vmatprep.mubr.f32.mxu0 0.0
        %3402 = vmatmul.mubr.f32.gmra.mrb[0].mxu0 %v3149
        %v3403 = vpop.f32.mrb[0].mxu0
        %v3404 = vadd.f32 0.0, %v3403
        %v3405 = vpop.f32.mrb[0].mxu0
        %3406 = vmatprep.mubr.f32.mxu0 0.0
        %3407 = vmatmul.mubr.f32.gmra.mrb[0].mxu0 %v3150
        %v3408 = vpop.f32.mrb[0].mxu0
        %v3409 = vadd.f32 0.0, %v3408
        %v3410 = vpop.f32.mrb[0].mxu0
        %3411 = vmatprep.mubr.f32.mxu0 0.0
        %3412 = vmatmul.mubr.f32.gmra.mrb[0].mxu0 %v3151
        %v3413 = vpop.f32.mrb[0].mxu0
        %v3414 = vadd.f32 0.0, %v3413
        %v3415 = vpop.f32.mrb[0].mxu0
        %3416 = vmatprep.mubr.f32.mxu0 0.0
        %3417 = vmatmul.mubr.f32.gmra.mrb[0].mxu0 %v3152
        %v3418 = vpop.f32.mrb[0].mxu0
        %v3419 = vadd.f32 0.0, %v3418
        %v3420 = vpop.f32.mrb[0].mxu0
        %3421 = vmatprep.mubr.f32.mxu0 0.0
        %3422 = vmatmul.mubr.f32.gmra.mrb[0].mxu0 %v3153
        %v3423 = vpop.f32.mrb[0].mxu0
        %v3424 = vadd.f32 0.0, %v3423
        %v3425 = vpop.f32.mrb[0].mxu0
        %3426 = vmatprep.mubr.f32.mxu0 0.0
        %3427 = vmatmul.mubr.f32.gmra.mrb[0].mxu0 %v3154
        %v3428 = vpop.f32.mrb[0].mxu0
        %v3429 = vadd.f32 0.0, %v3428
        %v3430 = vpop.f32.mrb[0].mxu0
        %3431 = vmatprep.mubr.f32.mxu0 0.0
        %3432 = vmatmul.mubr.f32.gmra.mrb[0].mxu0 %v3155
        %v3433 = vpop.f32.mrb[0].mxu0
        %v3434 = vadd.f32 0.0, %v3433
        %v3435 = vpop.f32.mrb[0].mxu0
        %3436 = vmatprep.mubr.f32.mxu0 0.0
        %3437 = vmatmul.mubr.f32.gmra.mrb[0].mxu0 %v3156
        %v3438 = vpop.f32.mrb[0].mxu0
        %v3439 = vadd.f32 0.0, %v3438
        %v3440 = vpop.f32.mrb[0].mxu0
        %3441 = vmatprep.mubr.f32.mxu0 0.0
        %3442 = vmatmul.mubr.f32.gmra.mrb[0].mxu0 %v3157
        %v3443 = vpop.f32.mrb[0].mxu0
        %v3444 = vadd.f32 0.0, %v3443
        %v3445 = vpop.f32.mrb[0].mxu0
        %3446 = vmatprep.mubr.f32.mxu0 0.0
        %3447 = vmatmul.mubr.f32.gmra.mrb[0].mxu0 %v3158
        %v3448 = vpop.f32.mrb[0].mxu0
        %v3449 = vadd.f32 0.0, %v3448
        %v3450 = vpop.f32.mrb[0].mxu0
        %3451 = vmatprep.mubr.f32.mxu0 0.0
        %3452 = vmatmul.mubr.f32.gmra.mrb[0].mxu0 %v3159
        %v3453 = vpop.f32.mrb[0].mxu0
        %v3454 = vadd.f32 0.0, %v3453
        %v3455 = vpop.f32.mrb[0].mxu0
        %3456 = vmatprep.mubr.f32.mxu0 0.0
        %3457 = vmatmul.mubr.f32.gmra.mrb[0].mxu0 %v3160
        %v3458 = vpop.f32.mrb[0].mxu0
        %v3459 = vadd.f32 0.0, %v3458
        %v3460 = vpop.f32.mrb[0].mxu0
        %3461 = vmatprep.mubr.f32.mxu0 0.0
        %3462 = vmatmul.mubr.f32.gmra.mrb[0].mxu0 %v3161
        %v3463 = vpop.f32.mrb[0].mxu0
        %v3464 = vadd.f32 0.0, %v3463
        %v3465 = vpop.f32.mrb[0].mxu0
        %3466 = vmatprep.mubr.f32.mxu0 0.0
        %3467 = vmatmul.mubr.f32.gmra.mrb[0].mxu0 %v3162
        %v3468 = vpop.f32.mrb[0].mxu0
        %v3469 = vadd.f32 0.0, %v3468
        %v3470 = vpop.f32.mrb[0].mxu0
        %3471 = vmatprep.mubr.f32.mxu0 0.0
        %3472 = vmatmul.mubr.f32.gmra.mrb[0].mxu0 %v3163
        %v3473 = vpop.f32.mrb[0].mxu0
        %v3474 = vadd.f32 0.0, %v3473
        %v3475 = vpop.f32.mrb[0].mxu0
        %3476 = vmatprep.mubr.f32.mxu0 0.0
        %3477 = vmatmul.mubr.f32.gmra.mrb[0].mxu0 %v3164
        %v3478 = vpop.f32.mrb[0].mxu0
        %v3479 = vadd.f32 0.0, %v3478
        %v3480 = vpop.f32.mrb[0].mxu0
        %3481 = vmatprep.mubr.f32.mxu0 0.0
        %3482 = vmatmul.mubr.f32.gmra.mrb[0].mxu0 %v3165
        %v3483 = vpop.f32.mrb[0].mxu0
        %v3484 = vadd.f32 0.0, %v3483
        %v3485 = vpop.f32.mrb[0].mxu0
        %3486 = vmatprep.mubr.f32.mxu0 0.0
        %3487 = vmatmul.mubr.f32.gmra.mrb[0].mxu0 %v3166
        %v3488 = vpop.f32.mrb[0].mxu0
        %v3489 = vadd.f32 0.0, %v3488
        %v3490 = vpop.f32.mrb[0].mxu0
        %3491 = vmatprep.mubr.f32.mxu0 0.0
        %3492 = vmatmul.mubr.f32.gmra.mrb[0].mxu0 %v3167
        %v3493 = vpop.f32.mrb[0].mxu0
        %v3494 = vadd.f32 0.0, %v3493
        %v3495 = vpop.f32.mrb[0].mxu0
        %3496 = vmatprep.mubr.f32.mxu0 0.0
        %3497 = vmatmul.mubr.f32.gmra.mrb[0].mxu0 %v3168
        %v3498 = vpop.f32.mrb[0].mxu0
        %v3499 = vadd.f32 0.0, %v3498
        %v3500 = vpop.f32.mrb[0].mxu0
        %3501 = vmatprep.mubr.f32.mxu0 0.0
        %3502 = vmatmul.mubr.f32.gmra.mrb[0].mxu0 %v3169
        %v3503 = vpop.f32.mrb[0].mxu0
        %v3504 = vadd.f32 0.0, %v3503
        %v3505 = vpop.f32.mrb[0].mxu0
        %3506 = vmatprep.mubr.f32.mxu0 0.0
        %3507 = vmatmul.mubr.f32.gmra.mrb[0].mxu0 %v3170
        %v3508 = vpop.f32.mrb[0].mxu0
        %v3509 = vadd.f32 0.0, %v3508
        %v3510 = vpop.f32.mrb[0].mxu0
        %3511 = vmatprep.mubr.f32.mxu0 0.0
        %3512 = vmatmul.mubr.f32.gmra.mrb[0].mxu0 %v3171
        %v3513 = vpop.f32.mrb[0].mxu0
        %v3514 = vadd.f32 0.0, %v3513
        %v3515 = vpop.f32.mrb[0].mxu0
        %3516 = vmatprep.mubr.f32.mxu0 0.0
        %3517 = vmatmul.mubr.f32.gmra.mrb[0].mxu0 %v3172
        %v3518 = vpop.f32.mrb[0].mxu0
        %v3519 = vadd.f32 0.0, %v3518
        %v3520 = vpop.f32.mrb[0].mxu0
        %3521 = vmatprep.mubr.f32.mxu0 0.0
        %3522 = vmatmul.mubr.f32.gmra.mrb[0].mxu0 %v3173
        %v3523 = vpop.f32.mrb[0].mxu0
        %v3524 = vadd.f32 0.0, %v3523
        %v3525 = vpop.f32.mrb[0].mxu0
        %3526 = vmatprep.mubr.f32.mxu0 0.0
        %3527 = vmatmul.mubr.f32.gmra.mrb[0].mxu0 %v3174
        %v3528 = vpop.f32.mrb[0].mxu0
        %v3529 = vadd.f32 0.0, %v3528
        %v3530 = vpop.f32.mrb[0].mxu0
        %3531 = vmatprep.mubr.f32.mxu0 0.0
        %3532 = vmatmul.mubr.f32.gmra.mrb[0].mxu0 %v3175
        %v3533 = vpop.f32.mrb[0].mxu0
        %v3534 = vadd.f32 0.0, %v3533
        %v3535 = vpop.f32.mrb[0].mxu0
        %3536 = vmatprep.mubr.f32.mxu0 0.0
        %3537 = vmatmul.mubr.f32.gmra.mrb[0].mxu0 %v3176
        %v3538 = vpop.f32.mrb[0].mxu0
        %v3539 = vadd.f32 0.0, %v3538
        %v3540 = vpop.f32.mrb[0].mxu0
        %3541 = vmatprep.mubr.f32.mxu0 0.0
        %3542 = vmatmul.mubr.f32.gmra.mrb[0].mxu0 %v3177
        %v3543 = vpop.f32.mrb[0].mxu0
        %v3544 = vadd.f32 0.0, %v3543
        %v3545 = vpop.f32.mrb[0].mxu0
        %3546 = vmatprep.mubr.f32.mxu0 0.0
        %3547 = vmatmul.mubr.f32.gmra.mrb[0].mxu0 %v3178
        %v3548 = vpop.f32.mrb[0].mxu0
        %v3549 = vadd.f32 0.0, %v3548
        %v3550 = vpop.f32.mrb[0].mxu0
        %3551 = vmatprep.mubr.f32.mxu0 0.0
        %3552 = vmatmul.mubr.f32.gmra.mrb[0].mxu0 %v3179
        %v3553 = vpop.f32.mrb[0].mxu0
        %v3554 = vadd.f32 0.0, %v3553
        %v3555 = vpop.f32.mrb[0].mxu0
        %3556 = vmatprep.mubr.f32.mxu0 0.0
        %3557 = vmatmul.mubr.f32.gmra.mrb[0].mxu0 %v3180
        %v3558 = vpop.f32.mrb[0].mxu0
        %v3559 = vadd.f32 0.0, %v3558
        %v3560 = vpop.f32.mrb[0].mxu0
        %3561 = vmatprep.mubr.f32.mxu0 0.0
        %3562 = vmatmul.mubr.f32.gmra.mrb[0].mxu0 %v3181
        %v3563 = vpop.f32.mrb[0].mxu0
        %v3564 = vadd.f32 0.0, %v3563
        %v3565 = vpop.f32.mrb[0].mxu0
        %3566 = vmatprep.mubr.f32.mxu0 0.0
        %3567 = vmatmul.mubr.f32.gmra.mrb[0].mxu0 %v3182
        %v3568 = vpop.f32.mrb[0].mxu0
        %v3569 = vadd.f32 0.0, %v3568
        %v3570 = vpop.f32.mrb[0].mxu0
        %3571 = vmatprep.mubr.f32.mxu0 0.0
        %3572 = vmatmul.mubr.f32.gmra.mrb[0].mxu0 %v3183
        %v3573 = vpop.f32.mrb[0].mxu0
        %v3574 = vadd.f32 0.0, %v3573
        %v3575 = vpop.f32.mrb[0].mxu0
        %3576 = vmatprep.mubr.f32.mxu0 0.0
        %3577 = vmatmul.mubr.f32.gmra.mrb[0].mxu0 %v3184
        %v3578 = vpop.f32.mrb[0].mxu0
        %v3579 = vadd.f32 0.0, %v3578
        %v3580 = vpop.f32.mrb[0].mxu0
        %3581 = vmatprep.mubr.f32.mxu0 0.0
        %3582 = vmatmul.mubr.f32.gmra.mrb[0].mxu0 %v3185
        %v3583 = vpop.f32.mrb[0].mxu0
        %v3584 = vadd.f32 0.0, %v3583
        %v3585 = vpop.f32.mrb[0].mxu0
        %3586 = vmatprep.mubr.f32.mxu0 0.0
        %3587 = vmatmul.mubr.f32.gmra.mrb[0].mxu0 %v3186
        %v3588 = vpop.f32.mrb[0].mxu0
        %v3589 = vadd.f32 0.0, %v3588
        %v3590 = vpop.f32.mrb[0].mxu0
        %3591 = vmatprep.mubr.f32.mxu0 0.0
        %3592 = vmatmul.mubr.f32.gmra.mrb[0].mxu0 %v3187
        %v3593 = vpop.f32.mrb[0].mxu0
        %v3594 = vadd.f32 0.0, %v3593
        %v3595 = vpop.f32.mrb[0].mxu0
        %3596 = vmatprep.mubr.f32.mxu0 0.0
        %3597 = vmatmul.mubr.f32.gmra.mrb[0].mxu0 %v3188
        %v3598 = vpop.f32.mrb[0].mxu0
        %v3599 = vadd.f32 0.0, %v3598
        %v3600 = vpop.f32.mrb[0].mxu0
        %3601 = vmatprep.mubr.f32.mxu0 0.0
        %3602 = vmatmul.mubr.f32.gmra.mrb[0].mxu0 %v3189
        %v3603 = vpop.f32.mrb[0].mxu0
        %v3604 = vadd.f32 0.0, %v3603
        %v3605 = vpop.f32.mrb[0].mxu0
        %3606 = vmatprep.mubr.f32.mxu0 0.0
        %3607 = vmatmul.mubr.f32.gmra.mrb[0].mxu0 %v3190
        %v3608 = vpop.f32.mrb[0].mxu0
        %v3609 = vadd.f32 0.0, %v3608
        %v3610 = vpop.f32.mrb[0].mxu0
        %3611 = vmatprep.mubr.f32.mxu0 0.0
        %3612 = vmatmul.mubr.f32.gmra.mrb[0].mxu0 %v3191
        %v3613 = vpop.f32.mrb[0].mxu0
        %v3614 = vadd.f32 0.0, %v3613
        %v3615 = vpop.f32.mrb[0].mxu0
        %3616 = vmatprep.mubr.f32.mxu0 0.0
        %3617 = vmatmul.mubr.f32.gmra.mrb[0].mxu0 %v3192
        %v3618 = vpop.f32.mrb[0].mxu0
        %v3619 = vadd.f32 0.0, %v3618
        %v3620 = vpop.f32.mrb[0].mxu0
        %3621 = vmatprep.mubr.f32.mxu0 0.0
        %3622 = vmatmul.mubr.f32.gmra.mrb[0].mxu0 %v3193
        %v3623 = vpop.f32.mrb[0].mxu0
        %v3624 = vadd.f32 0.0, %v3623
        %v3625 = vpop.f32.mrb[0].mxu0
        %3626 = vmatprep.mubr.f32.mxu0 0.0
        %3627 = vmatmul.mubr.f32.gmra.mrb[0].mxu0 %v3194
        %v3628 = vpop.f32.mrb[0].mxu0
        %v3629 = vadd.f32 0.0, %v3628
        %v3630 = vpop.f32.mrb[0].mxu0
        %3631 = vmatprep.mubr.f32.mxu0 0.0
        %3632 = vmatmul.mubr.f32.gmra.mrb[0].mxu0 %v3195
        %v3633 = vpop.f32.mrb[0].mxu0
        %v3634 = vadd.f32 0.0, %v3633
        %v3635 = vpop.f32.mrb[0].mxu0
        %3636 = vmatprep.mubr.f32.mxu0 0.0
        %3637 = vmatmul.mubr.f32.gmra.mrb[0].mxu0 %v3196
        %v3638 = vpop.f32.mrb[0].mxu0
        %v3639 = vadd.f32 0.0, %v3638
        %v3640 = vpop.f32.mrb[0].mxu0
        %3641 = vmatprep.mubr.f32.mxu0 0.0
        %3642 = vmatmul.mubr.f32.gmra.mrb[0].mxu0 %v3197
        %v3643 = vpop.f32.mrb[0].mxu0
        %v3644 = vadd.f32 0.0, %v3643
        %v3645 = vpop.f32.mrb[0].mxu0
        %3646 = vmatprep.mubr.f32.mxu0 0.0
        %3647 = vmatmul.mubr.f32.gmra.mrb[0].mxu0 %v3198
        %v3648 = vpop.f32.mrb[0].mxu0
        %v3649 = vadd.f32 0.0, %v3648
        %v3650 = vpop.f32.mrb[0].mxu0
        %3651 = vmatprep.mubr.f32.mxu0 0.0
        %3652 = vmatmul.mubr.f32.gmra.mrb[0].mxu0 %v3199
        %v3653 = vpop.f32.mrb[0].mxu0
        %v3654 = vadd.f32 0.0, %v3653
        %v3655 = vpop.f32.mrb[0].mxu0
        %3656 = vmatprep.mubr.f32.mxu0 0.0
        %3657 = vmatmul.mubr.f32.gmra.mrb[0].mxu0 %v3200
        %v3658 = vpop.f32.mrb[0].mxu0
        %v3659 = vadd.f32 0.0, %v3658
        %v3660 = vpop.f32.mrb[0].mxu0
        %3661 = vmatprep.mubr.f32.mxu0 0.0
        %3662 = vmatmul.mubr.f32.gmra.mrb[0].mxu0 %v3201
        %v3663 = vpop.f32.mrb[0].mxu0
        %v3664 = vadd.f32 0.0, %v3663
        %v3665 = vpop.f32.mrb[0].mxu0
        %3666 = vmatprep.mubr.f32.mxu0 0.0
        %3667 = vmatmul.mubr.f32.gmra.mrb[0].mxu0 %v3202
        %v3668 = vpop.f32.mrb[0].mxu0
        %v3669 = vadd.f32 0.0, %v3668
        %v3670 = vpop.f32.mrb[0].mxu0
        %3671 = vmatprep.mubr.f32.mxu0 0.0
        %3672 = vmatmul.mubr.f32.gmra.mrb[0].mxu0 %v3203
        %v3673 = vpop.f32.mrb[0].mxu0
        %v3674 = vadd.f32 0.0, %v3673
        %v3675 = vpop.f32.mrb[0].mxu0
        %3676 = vmatprep.mubr.f32.mxu0 0.0
        %3677 = vmatmul.mubr.f32.gmra.mrb[0].mxu0 %v3204
        %v3678 = vpop.f32.mrb[0].mxu0
        %v3679 = vadd.f32 0.0, %v3678
        %v3680 = vpop.f32.mrb[0].mxu0
        %3681 = vmatprep.mubr.f32.mxu0 0.0
        %3682 = vmatmul.mubr.f32.gmra.mrb[0].mxu0 %v3205
        %v3683 = vpop.f32.mrb[0].mxu0
        %v3684 = vadd.f32 0.0, %v3683
        %v3685 = vpop.f32.mrb[0].mxu0
        %3686 = vmatprep.mubr.f32.mxu0 0.0
        %3687 = vmatmul.mubr.f32.gmra.mrb[0].mxu0 %v3206
        %v3688 = vpop.f32.mrb[0].mxu0
        %v3689 = vadd.f32 0.0, %v3688
        %v3690 = vpop.f32.mrb[0].mxu0
        %3691 = vmatprep.mubr.f32.mxu0 0.0
        %3692 = vmatmul.mubr.f32.gmra.mrb[0].mxu0 %v3207
        %v3693 = vpop.f32.mrb[0].mxu0
        %v3694 = vadd.f32 0.0, %v3693
        %v3695 = vpop.f32.mrb[0].mxu0
        %3696 = vmatprep.mubr.f32.mxu0 0.0
        %3697 = vmatmul.mubr.f32.gmra.mrb[0].mxu0 %v3208
        %v3698 = vpop.f32.mrb[0].mxu0
        %v3699 = vadd.f32 0.0, %v3698
        %v3700 = vpop.f32.mrb[0].mxu0
        %3701 = vmatprep.mubr.f32.mxu0 0.0
        %3702 = vmatmul.mubr.f32.gmra.mrb[0].mxu0 %v3209
        %v3703 = vpop.f32.mrb[0].mxu0
        %v3704 = vadd.f32 0.0, %v3703
        %v3705 = vpop.f32.mrb[0].mxu0
        %3706 = vmatprep.mubr.f32.mxu0 0.0
        %3707 = vmatmul.mubr.f32.gmra.mrb[0].mxu0 %v3210
        %v3708 = vpop.f32.mrb[0].mxu0
        %v3709 = vadd.f32 0.0, %v3708
        %v3710 = vpop.f32.mrb[0].mxu0
        %3711 = vmatprep.mubr.f32.mxu0 0.0
        %3712 = vmatmul.mubr.f32.gmra.mrb[0].mxu0 %v3211
        %v3713 = vpop.f32.mrb[0].mxu0
        %v3714 = vadd.f32 0.0, %v3713
        %v3715 = vpop.f32.mrb[0].mxu0
        %3716 = vmatprep.mubr.f32.mxu0 0.0
        %3717 = vmatmul.mubr.f32.gmra.mrb[0].mxu0 %v3212
        %v3718 = vpop.f32.mrb[0].mxu0
        %v3719 = vadd.f32 0.0, %v3718
        %v3720 = vpop.f32.mrb[0].mxu0
        %3721 = vmatprep.mubr.f32.mxu0 0.0
        %3722 = vmatmul.mubr.f32.gmra.mrb[0].mxu0 %v3213
        %v3723 = vpop.f32.mrb[0].mxu0
        %v3724 = vadd.f32 0.0, %v3723
        %v3725 = vpop.f32.mrb[0].mxu0
        %3726 = vmatprep.mubr.f32.mxu0 0.0
        %3727 = vmatmul.mubr.f32.gmra.mrb[0].mxu0 %v3214
        %v3728 = vpop.f32.mrb[0].mxu0
        %v3729 = vadd.f32 0.0, %v3728
        %v3730 = vpop.f32.mrb[0].mxu0
        %3731 = vmatprep.mubr.f32.mxu0 0.0
        %3732 = vmatmul.mubr.f32.gmra.mrb[0].mxu0 %v3215
        %v3733 = vpop.f32.mrb[0].mxu0
        %v3734 = vadd.f32 0.0, %v3733
        %v3735 = vpop.f32.mrb[0].mxu0
        %3736 = vmatprep.mubr.f32.mxu0 0.0
        %3737 = vmatmul.mubr.f32.gmra.mrb[0].mxu0 %v3216
        %v3738 = vpop.f32.mrb[0].mxu0
        %v3739 = vadd.f32 0.0, %v3738
        %v3740 = vpop.f32.mrb[0].mxu0
        %3741 = vmatprep.mubr.f32.mxu0 0.0
        %3742 = vmatmul.mubr.f32.gmra.mrb[0].mxu0 %v3217
        %v3743 = vpop.f32.mrb[0].mxu0
        %v3744 = vadd.f32 0.0, %v3743
        %v3745 = vpop.f32.mrb[0].mxu0
        %3746 = vmatprep.mubr.f32.mxu0 0.0
        %3747 = vmatmul.mubr.f32.gmra.mrb[0].mxu0 %v3218
        %v3748 = vpop.f32.mrb[0].mxu0
        %v3749 = vadd.f32 0.0, %v3748
        %v3750 = vpop.f32.mrb[0].mxu0
        %3751 = vmatprep.mubr.f32.mxu0 0.0
        %3752 = vmatmul.mubr.f32.gmra.mrb[0].mxu0 %v3219
        %v3753 = vpop.f32.mrb[0].mxu0
        %v3754 = vadd.f32 0.0, %v3753
        %v3755 = vpop.f32.mrb[0].mxu0
        %3756 = vmatprep.mubr.f32.mxu0 0.0
        %3757 = vmatmul.mubr.f32.gmra.mrb[0].mxu0 %v3220
        %v3758 = vpop.f32.mrb[0].mxu0
        %v3759 = vadd.f32 0.0, %v3758
        %v3760 = vpop.f32.mrb[0].mxu0
        %3761 = vmatprep.mubr.f32.mxu0 0.0
        %3762 = vmatmul.mubr.f32.gmra.mrb[0].mxu0 %v3221
        %v3763 = vpop.f32.mrb[0].mxu0
        %v3764 = vadd.f32 0.0, %v3763
        %v3765 = vpop.f32.mrb[0].mxu0
        %3766 = vmatprep.mubr.f32.mxu0 0.0
        %3767 = vmatmul.mubr.f32.gmra.mrb[0].mxu0 %v3222
        %v3768 = vpop.f32.mrb[0].mxu0
        %v3769 = vadd.f32 0.0, %v3768
        %v3770 = vpop.f32.mrb[0].mxu0
        %3771 = vmatprep.mubr.f32.mxu0 0.0
        %3772 = vmatmul.mubr.f32.gmra.mrb[0].mxu0 %v3223
        %v3773 = vpop.f32.mrb[0].mxu0
        %v3774 = vadd.f32 0.0, %v3773
        %v3775 = vpop.f32.mrb[0].mxu0
        %3776 = vmatprep.mubr.f32.mxu0 0.0
        %3777 = vmatmul.mubr.f32.gmra.mrb[0].mxu0 %v3224
        %v3778 = vpop.f32.mrb[0].mxu0
        %v3779 = vadd.f32 0.0, %v3778
        %v3780 = vpop.f32.mrb[0].mxu0
        %3781 = vmatprep.mubr.f32.mxu0 0.0
        %3782 = vmatmul.mubr.f32.gmra.mrb[0].mxu0 %v3225
        %v3783 = vpop.f32.mrb[0].mxu0
        %v3784 = vadd.f32 0.0, %v3783
        %v3785 = vpop.f32.mrb[0].mxu0
        %3786 = vmatprep.mubr.f32.mxu0 0.0
        %3787 = vmatmul.mubr.f32.gmra.mrb[0].mxu0 %v3226
        %v3788 = vpop.f32.mrb[0].mxu0
        %v3789 = vadd.f32 0.0, %v3788
        %v3790 = vpop.f32.mrb[0].mxu0
        %3791 = vmatprep.mubr.f32.mxu0 0.0
        %3792 = vmatmul.mubr.f32.gmra.mrb[0].mxu0 %v3227
        %v3793 = vpop.f32.mrb[0].mxu0
        %v3794 = vadd.f32 0.0, %v3793
        %v3795 = vpop.f32.mrb[0].mxu0
        %3796 = vmatprep.mubr.f32.mxu0 0.0
        %3797 = vmatmul.mubr.f32.gmra.mrb[0].mxu0 %v3228
        %v3798 = vpop.f32.mrb[0].mxu0
        %v3799 = vadd.f32 0.0, %v3798
        %v3800 = vpop.f32.mrb[0].mxu0
        %3801 = vmatprep.mubr.f32.mxu0 0.0
        %3802 = vmatmul.mubr.f32.gmra.mrb[0].mxu0 %v3229
        %v3803 = vpop.f32.mrb[0].mxu0
        %v3804 = vadd.f32 0.0, %v3803
        %v3805 = vpop.f32.mrb[0].mxu0
        %3806 = vmatprep.mubr.f32.mxu0 0.0
        %3807 = vmatmul.mubr.f32.gmra.mrb[0].mxu0 %v3230
        %v3808 = vpop.f32.mrb[0].mxu0
        %v3809 = vadd.f32 0.0, %v3808
        %v3810 = vpop.f32.mrb[0].mxu0
        %3811 = vmatprep.mubr.f32.mxu0 0.0
        %3812 = vmatmul.mubr.f32.gmra.mrb[0].mxu0 %v3231
        %v3813 = vpop.f32.mrb[0].mxu0
        %v3814 = vadd.f32 0.0, %v3813
        %v3815 = vpop.f32.mrb[0].mxu0
        %3816 = vmatprep.mubr.f32.mxu0 0.0
        %3817 = vmatmul.mubr.f32.gmra.mrb[0].mxu0 %v3232
        %v3818 = vpop.f32.mrb[0].mxu0
        %v3819 = vadd.f32 0.0, %v3818
        %v3820 = vpop.f32.mrb[0].mxu0
        %3821 = vmatprep.mubr.f32.mxu0 0.0
        %3822 = vmatmul.mubr.f32.gmra.mrb[0].mxu0 %v3233
        %v3823 = vpop.f32.mrb[0].mxu0
        %v3824 = vadd.f32 0.0, %v3823
        %v3825 = vpop.f32.mrb[0].mxu0
        %3826 = vmatprep.mubr.f32.mxu0 0.0
        %3827 = vmatmul.mubr.f32.gmra.mrb[0].mxu0 %v3234
        %v3828 = vpop.f32.mrb[0].mxu0
        %v3829 = vadd.f32 0.0, %v3828
        %v3830 = vpop.f32.mrb[0].mxu0
        %3831 = vmatprep.mubr.f32.mxu0 0.0
        %3832 = vmatmul.mubr.f32.gmra.mrb[0].mxu0 %v3235
        %v3833 = vpop.f32.mrb[0].mxu0
        %v3834 = vadd.f32 0.0, %v3833
        %v3835 = vpop.f32.mrb[0].mxu0
        %3836 = vmatprep.mubr.f32.mxu0 0.0
        %3837 = vmatmul.mubr.f32.gmra.mrb[0].mxu0 %v3236
        %v3838 = vpop.f32.mrb[0].mxu0
        %v3839 = vadd.f32 0.0, %v3838
        %v3840 = vpop.f32.mrb[0].mxu0
        %3841 = vmatprep.mubr.f32.mxu0 0.0
        %3842 = vmatmul.mubr.f32.gmra.mrb[0].mxu0 %v3237
        %v3843 = vpop.f32.mrb[0].mxu0
        %v3844 = vadd.f32 0.0, %v3843
        %v3845 = vpop.f32.mrb[0].mxu0
        %3846 = vmatprep.mubr.f32.mxu0 0.0
        %3847 = vmatmul.mubr.f32.gmra.mrb[0].mxu0 %v3238
        %v3848 = vpop.f32.mrb[0].mxu0
        %v3849 = vadd.f32 0.0, %v3848
        %v3850 = vpop.f32.mrb[0].mxu0
        %3851 = vmatprep.mubr.f32.mxu0 0.0
        %3852 = vmatmul.mubr.f32.gmra.mrb[0].mxu0 %v3239
        %v3853 = vpop.f32.mrb[0].mxu0
        %v3854 = vadd.f32 0.0, %v3853
        %v3855 = vpop.f32.mrb[0].mxu0
        %3856 = vmatprep.mubr.f32.mxu0 0.0
        %3857 = vmatmul.mubr.f32.gmra.mrb[0].mxu0 %v3240
        %v3858 = vpop.f32.mrb[0].mxu0
        %v3859 = vadd.f32 0.0, %v3858
        %v3860 = vpop.f32.mrb[0].mxu0
        %3861 = vmatprep.mubr.f32.mxu0 0.0
        %3862 = vmatmul.mubr.f32.gmra.mrb[0].mxu0 %v3241
        %v3863 = vpop.f32.mrb[0].mxu0
        %v3864 = vadd.f32 0.0, %v3863
        %v3865 = vpop.f32.mrb[0].mxu0
        %3866 = vmatprep.mubr.f32.mxu0 0.0
        %3867 = vmatmul.mubr.f32.gmra.mrb[0].mxu0 %v3242
        %v3868 = vpop.f32.mrb[0].mxu0
        %v3869 = vadd.f32 0.0, %v3868
        %v3870 = vpop.f32.mrb[0].mxu0
        %3871 = vmatprep.mubr.f32.mxu0 0.0
        %3872 = vmatmul.mubr.f32.gmra.mrb[0].mxu0 %v3243
        %v3873 = vpop.f32.mrb[0].mxu0
        %v3874 = vadd.f32 0.0, %v3873
        %v3875 = vpop.f32.mrb[0].mxu0
        %3876 = vmatprep.mubr.f32.mxu0 0.0
        %3877 = vmatmul.mubr.f32.gmra.mrb[0].mxu0 %v3244
        %v3878 = vpop.f32.mrb[0].mxu0
        %v3879 = vadd.f32 0.0, %v3878
        %v3880 = vpop.f32.mrb[0].mxu0
        %3881 = vmatprep.mubr.f32.mxu0 0.0
        %3882 = vmatmul.mubr.f32.gmra.mrb[0].mxu0 %v3245
        %v3883 = vpop.f32.mrb[0].mxu0
        %v3884 = vadd.f32 0.0, %v3883
        %v3885 = vpop.f32.mrb[0].mxu0
        %3886 = vmatprep.mubr.f32.mxu0 0.0
        %3887 = vmatmul.mubr.f32.gmra.mrb[0].mxu0 %v3246
        %v3888 = vpop.f32.mrb[0].mxu0
        %v3889 = vadd.f32 0.0, %v3888
        %v3890 = vpop.f32.mrb[0].mxu0
        %3891 = vmatprep.mubr.f32.mxu0 0.0
        %3892 = vmatmul.mubr.f32.gmra.mrb[0].mxu0 %v3247
        %v3893 = vpop.f32.mrb[0].mxu0
        %v3894 = vadd.f32 0.0, %v3893
        %v3895 = vpop.f32.mrb[0].mxu0
        %3896 = vmatprep.mubr.f32.mxu0 0.0
        %3897 = vmatmul.mubr.f32.gmra.mrb[0].mxu0 %v3248
        %v3898 = vpop.f32.mrb[0].mxu0
        %v3899 = vadd.f32 0.0, %v3898
        %v3900 = vpop.f32.mrb[0].mxu0
        %3901 = vmatprep.mubr.f32.mxu0 0.0
        %3902 = vmatmul.mubr.f32.gmra.mrb[0].mxu0 %v3249
        %v3903 = vpop.f32.mrb[0].mxu0
        %v3904 = vadd.f32 0.0, %v3903
        %v3905 = vpop.f32.mrb[0].mxu0
        %3906 = vmatprep.mubr.f32.mxu0 0.0
        %3907 = vmatmul.mubr.f32.gmra.mrb[0].mxu0 %v3250
        %v3908 = vpop.f32.mrb[0].mxu0
        %v3909 = vadd.f32 0.0, %v3908
        %v3910 = vpop.f32.mrb[0].mxu0
        %3911 = vmatprep.mubr.f32.mxu0 0.0
        %3912 = vmatmul.mubr.f32.gmra.mrb[0].mxu0 %v3251
        %v3913 = vpop.f32.mrb[0].mxu0
        %v3914 = vadd.f32 0.0, %v3913
        %v3915 = vpop.f32.mrb[0].mxu0
        %3916 = vmatprep.mubr.f32.mxu0 0.0
        %3917 = vmatmul.mubr.f32.gmra.mrb[0].mxu0 %v3252
        %v3918 = vpop.f32.mrb[0].mxu0
        %v3919 = vadd.f32 0.0, %v3918
        %v3920 = vpop.f32.mrb[0].mxu0
        %3921 = vmatprep.mubr.f32.mxu0 0.0
        %3922 = vmatmul.mubr.f32.gmra.mrb[0].mxu0 %v3253
        %v3923 = vpop.f32.mrb[0].mxu0
        %v3924 = vadd.f32 0.0, %v3923
        %v3925 = vpop.f32.mrb[0].mxu0
        %3926 = vmatprep.mubr.f32.mxu0 0.0
        %3927 = vmatmul.mubr.f32.gmra.mrb[0].mxu0 %v3254
        %v3928 = vpop.f32.mrb[0].mxu0
        %v3929 = vadd.f32 0.0, %v3928
        %v3930 = vpop.f32.mrb[0].mxu0
        %3931 = vmatprep.mubr.f32.mxu0 0.0
        %3932 = vmatmul.mubr.f32.gmra.mrb[0].mxu0 %v3255
        %v3933 = vpop.f32.mrb[0].mxu0
        %v3934 = vadd.f32 0.0, %v3933
        %v3935 = vpop.f32.mrb[0].mxu0
        %3936 = vmatprep.mubr.f32.mxu0 0.0
        %3937 = vmatmul.mubr.f32.gmra.mrb[0].mxu0 %v3256
        %v3938 = vpop.f32.mrb[0].mxu0
        %v3939 = vadd.f32 0.0, %v3938
        %v3940 = vpop.f32.mrb[0].mxu0
        %3941 = vmatprep.mubr.f32.mxu0 0.0
        %3942 = vmatmul.mubr.f32.gmra.mrb[0].mxu0 %v3257
        %v3943 = vpop.f32.mrb[0].mxu0
        %v3944 = vadd.f32 0.0, %v3943
        %v3945 = vpop.f32.mrb[0].mxu0
        %3946 = vmatprep.mubr.f32.mxu0 0.0
        %3947 = vmatmul.mubr.f32.gmra.mrb[0].mxu0 %v3258
        %v3948 = vpop.f32.mrb[0].mxu0
        %v3949 = vadd.f32 0.0, %v3948
        %v3950 = vpop.f32.mrb[0].mxu0
        %3951 = vmatprep.mubr.f32.mxu0 0.0
        %3952 = vmatmul.mubr.f32.gmra.mrb[0].mxu0 %v3259
        %v3953 = vpop.f32.mrb[0].mxu0
        %v3954 = vadd.f32 0.0, %v3953
        %v3955 = vpop.f32.mrb[0].mxu0
        %3956 = vmatprep.mubr.f32.mxu0 0.0
        %3957 = vmatmul.mubr.f32.gmra.mrb[0].mxu0 %v3260
        %v3958 = vpop.f32.mrb[0].mxu0
        %v3959 = vadd.f32 0.0, %v3958
        %v3960 = vpop.f32.mrb[0].mxu0
        %3961 = vmatprep.mubr.f32.mxu0 0.0
        %3962 = vmatmul.mubr.f32.gmra.mrb[0].mxu0 %v3261
        %v3963 = vpop.f32.mrb[0].mxu0
        %v3964 = vadd.f32 0.0, %v3963
        %v3965 = vpop.f32.mrb[0].mxu0
        %3966 = vmatprep.mubr.f32.mxu0 0.0
        %3967 = vmatmul.mubr.f32.gmra.mrb[0].mxu0 %v3262
        %v3968 = vpop.f32.mrb[0].mxu0
        %v3969 = vadd.f32 0.0, %v3968
        %v3970 = vpop.f32.mrb[0].mxu0
        %3971 = vmatprep.mubr.f32.mxu0 0.0
        %3972 = vmatmul.mubr.f32.gmra.mrb[0].mxu0 %v3263
        %v3973 = vpop.f32.mrb[0].mxu0
        %v3974 = vadd.f32 0.0, %v3973
        %v3975 = vpop.f32.mrb[0].mxu0
        %3976 = vmatprep.mubr.f32.mxu0 0.0
        %3977 = vmatmul.mubr.f32.gmra.mrb[0].mxu0 %v3264
        %v3978 = vpop.f32.mrb[0].mxu0
        %v3979 = vadd.f32 0.0, %v3978
        %v3980 = vpop.f32.mrb[0].mxu0
        %3981 = vmatprep.mubr.f32.mxu0 0.0
        %3982 = vmatmul.mubr.f32.gmra.mrb[0].mxu0 %v3265
        %v3983 = vpop.f32.mrb[0].mxu0
        %v3984 = vadd.f32 0.0, %v3983
        %v3985 = vpop.f32.mrb[0].mxu0
        %3986 = vdwg.mxu0
        %v3987 = vmul.f32 %v3349, 0.25
        %v3988 = vmul.f32 %v3354, 0.25
        %v3989 = vmul.f32 %v3359, 0.25
        %v3990 = vmul.f32 %v3364, 0.25
        %v3991 = vmul.f32 %v3369, 0.25
        %v3992 = vmul.f32 %v3374, 0.25
        %v3993 = vmul.f32 %v3379, 0.25
        %v3994 = vmul.f32 %v3384, 0.25
        %v3995 = vmul.f32 %v3389, 0.25
        %v3996 = vmul.f32 %v3394, 0.25
        %v3997 = vmul.f32 %v3399, 0.25
        %v3998 = vmul.f32 %v3404, 0.25
        %v3999 = vmul.f32 %v3409, 0.25
        %v4000 = vmul.f32 %v3414, 0.25
        %v4001 = vmul.f32 %v3419, 0.25
        %v4002 = vmul.f32 %v3424, 0.25
        %v4003 = vmul.f32 %v3429, 0.25
        %v4004 = vmul.f32 %v3434, 0.25
        %v4005 = vmul.f32 %v3439, 0.25
        %v4006 = vmul.f32 %v3444, 0.25
        %v4007 = vmul.f32 %v3449, 0.25
        %v4008 = vmul.f32 %v3454, 0.25
        %v4009 = vmul.f32 %v3459, 0.25
        %v4010 = vmul.f32 %v3464, 0.25
        %v4011 = vmul.f32 %v3469, 0.25
        %v4012 = vmul.f32 %v3474, 0.25
        %v4013 = vmul.f32 %v3479, 0.25
        %v4014 = vmul.f32 %v3484, 0.25
        %v4015 = vmul.f32 %v3489, 0.25
        %v4016 = vmul.f32 %v3494, 0.25
        %v4017 = vmul.f32 %v3499, 0.25
        %v4018 = vmul.f32 %v3504, 0.25
        %v4019 = vmul.f32 %v3509, 0.25
        %v4020 = vmul.f32 %v3514, 0.25
        %v4021 = vmul.f32 %v3519, 0.25
        %v4022 = vmul.f32 %v3524, 0.25
        %v4023 = vmul.f32 %v3529, 0.25
        %v4024 = vmul.f32 %v3534, 0.25
        %v4025 = vmul.f32 %v3539, 0.25
        %v4026 = vmul.f32 %v3544, 0.25
        %v4027 = vmul.f32 %v3549, 0.25
        %v4028 = vmul.f32 %v3554, 0.25
        %v4029 = vmul.f32 %v3559, 0.25
        %v4030 = vmul.f32 %v3564, 0.25
        %v4031 = vmul.f32 %v3569, 0.25
        %v4032 = vmul.f32 %v3574, 0.25
        %v4033 = vmul.f32 %v3579, 0.25
        %v4034 = vmul.f32 %v3584, 0.25
        %v4035 = vmul.f32 %v3589, 0.25
        %v4036 = vmul.f32 %v3594, 0.25
        %v4037 = vmul.f32 %v3599, 0.25
        %v4038 = vmul.f32 %v3604, 0.25
        %v4039 = vmul.f32 %v3609, 0.25
        %v4040 = vmul.f32 %v3614, 0.25
        %v4041 = vmul.f32 %v3619, 0.25
        %v4042 = vmul.f32 %v3624, 0.25
        %v4043 = vmul.f32 %v3629, 0.25
        %v4044 = vmul.f32 %v3634, 0.25
        %v4045 = vmul.f32 %v3639, 0.25
        %v4046 = vmul.f32 %v3644, 0.25
        %v4047 = vmul.f32 %v3649, 0.25
        %v4048 = vmul.f32 %v3654, 0.25
        %v4049 = vmul.f32 %v3659, 0.25
        %v4050 = vmul.f32 %v3664, 0.25
        %v4051 = vmul.f32 %v3669, 0.25
        %v4052 = vmul.f32 %v3674, 0.25
        %v4053 = vmul.f32 %v3679, 0.25
        %v4054 = vmul.f32 %v3684, 0.25
        %v4055 = vmul.f32 %v3689, 0.25
        %v4056 = vmul.f32 %v3694, 0.25
        %v4057 = vmul.f32 %v3699, 0.25
        %v4058 = vmul.f32 %v3704, 0.25
        %v4059 = vmul.f32 %v3709, 0.25
        %v4060 = vmul.f32 %v3714, 0.25
        %v4061 = vmul.f32 %v3719, 0.25
        %v4062 = vmul.f32 %v3724, 0.25
        %v4063 = vmul.f32 %v3729, 0.25
        %v4064 = vmul.f32 %v3734, 0.25
        %v4065 = vmul.f32 %v3739, 0.25
        %v4066 = vmul.f32 %v3744, 0.25
        %v4067 = vmul.f32 %v3749, 0.25
        %v4068 = vmul.f32 %v3754, 0.25
        %v4069 = vmul.f32 %v3759, 0.25
        %v4070 = vmul.f32 %v3764, 0.25
        %v4071 = vmul.f32 %v3769, 0.25
        %v4072 = vmul.f32 %v3774, 0.25
        %v4073 = vmul.f32 %v3779, 0.25
        %v4074 = vmul.f32 %v3784, 0.25
        %v4075 = vmul.f32 %v3789, 0.25
        %v4076 = vmul.f32 %v3794, 0.25
        %v4077 = vmul.f32 %v3799, 0.25
        %v4078 = vmul.f32 %v3804, 0.25
        %v4079 = vmul.f32 %v3809, 0.25
        %v4080 = vmul.f32 %v3814, 0.25
        %v4081 = vmul.f32 %v3819, 0.25
        %v4082 = vmul.f32 %v3824, 0.25
        %v4083 = vmul.f32 %v3829, 0.25
        %v4084 = vmul.f32 %v3834, 0.25
        %v4085 = vmul.f32 %v3839, 0.25
        %v4086 = vmul.f32 %v3844, 0.25
        %v4087 = vmul.f32 %v3849, 0.25
        %v4088 = vmul.f32 %v3854, 0.25
        %v4089 = vmul.f32 %v3859, 0.25
        %v4090 = vmul.f32 %v3864, 0.25
        %v4091 = vmul.f32 %v3869, 0.25
        %v4092 = vmul.f32 %v3874, 0.25
        %v4093 = vmul.f32 %v3879, 0.25
        %v4094 = vmul.f32 %v3884, 0.25
        %v4095 = vmul.f32 %v3889, 0.25
        %v4096 = vmul.f32 %v3894, 0.25
        %v4097 = vmul.f32 %v3899, 0.25
        %v4098 = vmul.f32 %v3904, 0.25
        %v4099 = vmul.f32 %v3909, 0.25
        %v4100 = vmul.f32 %v3914, 0.25
        %v4101 = vmul.f32 %v3919, 0.25
        %v4102 = vmul.f32 %v3924, 0.25
        %v4103 = vmul.f32 %v3929, 0.25
        %v4104 = vmul.f32 %v3934, 0.25
        %v4105 = vmul.f32 %v3939, 0.25
        %v4106 = vmul.f32 %v3944, 0.25
        %v4107 = vmul.f32 %v3949, 0.25
        %v4108 = vmul.f32 %v3954, 0.25
        %v4109 = vmul.f32 %v3959, 0.25
        %v4110 = vmul.f32 %v3964, 0.25
        %v4111 = vmul.f32 %v3969, 0.25
        %v4112 = vmul.f32 %v3974, 0.25
        %v4113 = vmul.f32 %v3979, 0.25
        %v4114 = vmul.f32 %v3984, 0.25
        %v4115 = vmax.f32 %v3987, %v4019
        %v4116 = vmax.f32 %v3988, %v4020
        %v4117 = vmax.f32 %v3989, %v4021
        %v4118 = vmax.f32 %v3990, %v4022
        %v4119 = vmax.f32 %v3991, %v4023
        %v4120 = vmax.f32 %v3992, %v4024
        %v4121 = vmax.f32 %v3993, %v4025
        %v4122 = vmax.f32 %v3994, %v4026
        %v4123 = vmax.f32 %v3995, %v4027
        %v4124 = vmax.f32 %v3996, %v4028
        %v4125 = vmax.f32 %v3997, %v4029
        %v4126 = vmax.f32 %v3998, %v4030
        %v4127 = vmax.f32 %v3999, %v4031
        %v4128 = vmax.f32 %v4000, %v4032
        %v4129 = vmax.f32 %v4001, %v4033
        %v4130 = vmax.f32 %v4002, %v4034
        %v4131 = vmax.f32 %v4003, %v4035
        %v4132 = vmax.f32 %v4004, %v4036
        %v4133 = vmax.f32 %v4005, %v4037
        %v4134 = vmax.f32 %v4006, %v4038
        %v4135 = vmax.f32 %v4007, %v4039
        %v4136 = vmax.f32 %v4008, %v4040
        %v4137 = vmax.f32 %v4009, %v4041
        %v4138 = vmax.f32 %v4010, %v4042
        %v4139 = vmax.f32 %v4011, %v4043
        %v4140 = vmax.f32 %v4012, %v4044
        %v4141 = vmax.f32 %v4013, %v4045
        %v4142 = vmax.f32 %v4014, %v4046
        %v4143 = vmax.f32 %v4015, %v4047
        %v4144 = vmax.f32 %v4016, %v4048
        %v4145 = vmax.f32 %v4017, %v4049
        %v4146 = vmax.f32 %v4018, %v4050
        %v4147 = vmax.f32 %v4115, %v4051
        %v4148 = vmax.f32 %v4116, %v4052
        %v4149 = vmax.f32 %v4117, %v4053
        %v4150 = vmax.f32 %v4118, %v4054
        %v4151 = vmax.f32 %v4119, %v4055
        %v4152 = vmax.f32 %v4120, %v4056
        %v4153 = vmax.f32 %v4121, %v4057
        %v4154 = vmax.f32 %v4122, %v4058
        %v4155 = vmax.f32 %v4123, %v4059
        %v4156 = vmax.f32 %v4124, %v4060
        %v4157 = vmax.f32 %v4125, %v4061
        %v4158 = vmax.f32 %v4126, %v4062
        %v4159 = vmax.f32 %v4127, %v4063
        %v4160 = vmax.f32 %v4128, %v4064
        %v4161 = vmax.f32 %v4129, %v4065
        %v4162 = vmax.f32 %v4130, %v4066
        %v4163 = vmax.f32 %v4131, %v4067
        %v4164 = vmax.f32 %v4132, %v4068
        %v4165 = vmax.f32 %v4133, %v4069
        %v4166 = vmax.f32 %v4134, %v4070
        %v4167 = vmax.f32 %v4135, %v4071
        %v4168 = vmax.f32 %v4136, %v4072
        %v4169 = vmax.f32 %v4137, %v4073
        %v4170 = vmax.f32 %v4138, %v4074
        %v4171 = vmax.f32 %v4139, %v4075
        %v4172 = vmax.f32 %v4140, %v4076
        %v4173 = vmax.f32 %v4141, %v4077
        %v4174 = vmax.f32 %v4142, %v4078
        %v4175 = vmax.f32 %v4143, %v4079
        %v4176 = vmax.f32 %v4144, %v4080
        %v4177 = vmax.f32 %v4145, %v4081
        %v4178 = vmax.f32 %v4146, %v4082
        %v4179 = vmax.f32 %v4147, %v4083
        %v4180 = vmax.f32 %v4148, %v4084
        %v4181 = vmax.f32 %v4149, %v4085
        %v4182 = vmax.f32 %v4150, %v4086
        %v4183 = vmax.f32 %v4151, %v4087
        %v4184 = vmax.f32 %v4152, %v4088
        %v4185 = vmax.f32 %v4153, %v4089
        %v4186 = vmax.f32 %v4154, %v4090
        %v4187 = vmax.f32 %v4155, %v4091
        %v4188 = vmax.f32 %v4156, %v4092
        %v4189 = vmax.f32 %v4157, %v4093
        %v4190 = vmax.f32 %v4158, %v4094
        %v4191 = vmax.f32 %v4159, %v4095
        %v4192 = vmax.f32 %v4160, %v4096
        %v4193 = vmax.f32 %v4161, %v4097
        %v4194 = vmax.f32 %v4162, %v4098
        %v4195 = vmax.f32 %v4163, %v4099
        %v4196 = vmax.f32 %v4164, %v4100
        %v4197 = vmax.f32 %v4165, %v4101
        %v4198 = vmax.f32 %v4166, %v4102
        %v4199 = vmax.f32 %v4167, %v4103
        %v4200 = vmax.f32 %v4168, %v4104
        %v4201 = vmax.f32 %v4169, %v4105
        %v4202 = vmax.f32 %v4170, %v4106
        %v4203 = vmax.f32 %v4171, %v4107
        %v4204 = vmax.f32 %v4172, %v4108
        %v4205 = vmax.f32 %v4173, %v4109
        %v4206 = vmax.f32 %v4174, %v4110
        %v4207 = vmax.f32 %v4175, %v4111
        %v4208 = vmax.f32 %v4176, %v4112
        %v4209 = vmax.f32 %v4177, %v4113
        %v4210 = vmax.f32 %v4178, %v4114
        %v4211 = vsub.f32 %v3987, %v4179
        %v4212 = vsub.f32 %v3988, %v4180
        %v4213 = vsub.f32 %v3989, %v4181
        %v4214 = vsub.f32 %v3990, %v4182
        %v4215 = vsub.f32 %v3991, %v4183
        %v4216 = vsub.f32 %v3992, %v4184
        %v4217 = vsub.f32 %v3993, %v4185
        %v4218 = vsub.f32 %v3994, %v4186
        %v4219 = vsub.f32 %v3995, %v4187
        %v4220 = vsub.f32 %v3996, %v4188
        %v4221 = vsub.f32 %v3997, %v4189
        %v4222 = vsub.f32 %v3998, %v4190
        %v4223 = vsub.f32 %v3999, %v4191
        %v4224 = vsub.f32 %v4000, %v4192
        %v4225 = vsub.f32 %v4001, %v4193
        %v4226 = vsub.f32 %v4002, %v4194
        %v4227 = vsub.f32 %v4003, %v4195
        %v4228 = vsub.f32 %v4004, %v4196
        %v4229 = vsub.f32 %v4005, %v4197
        %v4230 = vsub.f32 %v4006, %v4198
        %v4231 = vsub.f32 %v4007, %v4199
        %v4232 = vsub.f32 %v4008, %v4200
        %v4233 = vsub.f32 %v4009, %v4201
        %v4234 = vsub.f32 %v4010, %v4202
        %v4235 = vsub.f32 %v4011, %v4203
        %v4236 = vsub.f32 %v4012, %v4204
        %v4237 = vsub.f32 %v4013, %v4205
        %v4238 = vsub.f32 %v4014, %v4206
        %v4239 = vsub.f32 %v4015, %v4207
        %v4240 = vsub.f32 %v4016, %v4208
        %v4241 = vsub.f32 %v4017, %v4209
        %v4242 = vsub.f32 %v4018, %v4210
        %v4243 = vsub.f32 %v4019, %v4179
        %v4244 = vsub.f32 %v4020, %v4180
        %v4245 = vsub.f32 %v4021, %v4181
        %v4246 = vsub.f32 %v4022, %v4182
        %v4247 = vsub.f32 %v4023, %v4183
        %v4248 = vsub.f32 %v4024, %v4184
        %v4249 = vsub.f32 %v4025, %v4185
        %v4250 = vsub.f32 %v4026, %v4186
        %v4251 = vsub.f32 %v4027, %v4187
        %v4252 = vsub.f32 %v4028, %v4188
        %v4253 = vsub.f32 %v4029, %v4189
        %v4254 = vsub.f32 %v4030, %v4190
        %v4255 = vsub.f32 %v4031, %v4191
        %v4256 = vsub.f32 %v4032, %v4192
        %v4257 = vsub.f32 %v4033, %v4193
        %v4258 = vsub.f32 %v4034, %v4194
        %v4259 = vsub.f32 %v4035, %v4195
        %v4260 = vsub.f32 %v4036, %v4196
        %v4261 = vsub.f32 %v4037, %v4197
        %v4262 = vsub.f32 %v4038, %v4198
        %v4263 = vsub.f32 %v4039, %v4199
        %v4264 = vsub.f32 %v4040, %v4200
        %v4265 = vsub.f32 %v4041, %v4201
        %v4266 = vsub.f32 %v4042, %v4202
        %v4267 = vsub.f32 %v4043, %v4203
        %v4268 = vsub.f32 %v4044, %v4204
        %v4269 = vsub.f32 %v4045, %v4205
        %v4270 = vsub.f32 %v4046, %v4206
        %v4271 = vsub.f32 %v4047, %v4207
        %v4272 = vsub.f32 %v4048, %v4208
        %v4273 = vsub.f32 %v4049, %v4209
        %v4274 = vsub.f32 %v4050, %v4210
        %v4275 = vsub.f32 %v4051, %v4179
        %v4276 = vsub.f32 %v4052, %v4180
        %v4277 = vsub.f32 %v4053, %v4181
        %v4278 = vsub.f32 %v4054, %v4182
        %v4279 = vsub.f32 %v4055, %v4183
        %v4280 = vsub.f32 %v4056, %v4184
        %v4281 = vsub.f32 %v4057, %v4185
        %v4282 = vsub.f32 %v4058, %v4186
        %v4283 = vsub.f32 %v4059, %v4187
        %v4284 = vsub.f32 %v4060, %v4188
        %v4285 = vsub.f32 %v4061, %v4189
        %v4286 = vsub.f32 %v4062, %v4190
        %v4287 = vsub.f32 %v4063, %v4191
        %v4288 = vsub.f32 %v4064, %v4192
        %v4289 = vsub.f32 %v4065, %v4193
        %v4290 = vsub.f32 %v4066, %v4194
        %v4291 = vsub.f32 %v4067, %v4195
        %v4292 = vsub.f32 %v4068, %v4196
        %v4293 = vsub.f32 %v4069, %v4197
        %v4294 = vsub.f32 %v4070, %v4198
        %v4295 = vsub.f32 %v4071, %v4199
        %v4296 = vsub.f32 %v4072, %v4200
        %v4297 = vsub.f32 %v4073, %v4201
        %v4298 = vsub.f32 %v4074, %v4202
        %v4299 = vsub.f32 %v4075, %v4203
        %v4300 = vsub.f32 %v4076, %v4204
        %v4301 = vsub.f32 %v4077, %v4205
        %v4302 = vsub.f32 %v4078, %v4206
        %v4303 = vsub.f32 %v4079, %v4207
        %v4304 = vsub.f32 %v4080, %v4208
        %v4305 = vsub.f32 %v4081, %v4209
        %v4306 = vsub.f32 %v4082, %v4210
        %v4307 = vsub.f32 %v4083, %v4179
        %v4308 = vsub.f32 %v4084, %v4180
        %v4309 = vsub.f32 %v4085, %v4181
        %v4310 = vsub.f32 %v4086, %v4182
        %v4311 = vsub.f32 %v4087, %v4183
        %v4312 = vsub.f32 %v4088, %v4184
        %v4313 = vsub.f32 %v4089, %v4185
        %v4314 = vsub.f32 %v4090, %v4186
        %v4315 = vsub.f32 %v4091, %v4187
        %v4316 = vsub.f32 %v4092, %v4188
        %v4317 = vsub.f32 %v4093, %v4189
        %v4318 = vsub.f32 %v4094, %v4190
        %v4319 = vsub.f32 %v4095, %v4191
        %v4320 = vsub.f32 %v4096, %v4192
        %v4321 = vsub.f32 %v4097, %v4193
        %v4322 = vsub.f32 %v4098, %v4194
        %v4323 = vsub.f32 %v4099, %v4195
        %v4324 = vsub.f32 %v4100, %v4196
        %v4325 = vsub.f32 %v4101, %v4197
        %v4326 = vsub.f32 %v4102, %v4198
        %v4327 = vsub.f32 %v4103, %v4199
        %v4328 = vsub.f32 %v4104, %v4200
        %v4329 = vsub.f32 %v4105, %v4201
        %v4330 = vsub.f32 %v4106, %v4202
        %v4331 = vsub.f32 %v4107, %v4203
        %v4332 = vsub.f32 %v4108, %v4204
        %v4333 = vsub.f32 %v4109, %v4205
        %v4334 = vsub.f32 %v4110, %v4206
        %v4335 = vsub.f32 %v4111, %v4207
        %v4336 = vsub.f32 %v4112, %v4208
        %v4337 = vsub.f32 %v4113, %v4209
        %v4338 = vsub.f32 %v4114, %v4210
        %v4339 = vmul.f32 %v4211, 1.442695
        %v4340 = vpow.pop %v4339
        %v4341 = vmul.f32 %v4212, 1.442695
        %v4342 = vpow.pop %v4341
        %v4343 = vmul.f32 %v4213, 1.442695
        %v4344 = vpow.pop %v4343
        %v4345 = vmul.f32 %v4214, 1.442695
        %v4346 = vpow.pop %v4345
        %v4347 = vmul.f32 %v4215, 1.442695
        %v4348 = vpow.pop %v4347
        %v4349 = vmul.f32 %v4216, 1.442695
        %v4350 = vpow.pop %v4349
        %v4351 = vmul.f32 %v4217, 1.442695
        %v4352 = vpow.pop %v4351
        %v4353 = vmul.f32 %v4218, 1.442695
        %v4354 = vpow.pop %v4353
        %v4355 = vmul.f32 %v4219, 1.442695
        %v4356 = vpow.pop %v4355
        %v4357 = vmul.f32 %v4220, 1.442695
        %v4358 = vpow.pop %v4357
        %v4359 = vmul.f32 %v4221, 1.442695
        %v4360 = vpow.pop %v4359
        %v4361 = vmul.f32 %v4222, 1.442695
        %v4362 = vpow.pop %v4361
        %v4363 = vmul.f32 %v4223, 1.442695
        %v4364 = vpow.pop %v4363
        %v4365 = vmul.f32 %v4224, 1.442695
        %v4366 = vpow.pop %v4365
        %v4367 = vmul.f32 %v4225, 1.442695
        %v4368 = vpow.pop %v4367
        %v4369 = vmul.f32 %v4226, 1.442695
        %v4370 = vpow.pop %v4369
        %v4371 = vmul.f32 %v4227, 1.442695
        %v4372 = vpow.pop %v4371
        %v4373 = vmul.f32 %v4228, 1.442695
        %v4374 = vpow.pop %v4373
        %v4375 = vmul.f32 %v4229, 1.442695
        %v4376 = vpow.pop %v4375
        %v4377 = vmul.f32 %v4230, 1.442695
        %v4378 = vpow.pop %v4377
        %v4379 = vmul.f32 %v4231, 1.442695
        %v4380 = vpow.pop %v4379
        %v4381 = vmul.f32 %v4232, 1.442695
        %v4382 = vpow.pop %v4381
        %v4383 = vmul.f32 %v4233, 1.442695
        %v4384 = vpow.pop %v4383
        %v4385 = vmul.f32 %v4234, 1.442695
        %v4386 = vpow.pop %v4385
        %v4387 = vmul.f32 %v4235, 1.442695
        %v4388 = vpow.pop %v4387
        %v4389 = vmul.f32 %v4236, 1.442695
        %v4390 = vpow.pop %v4389
        %v4391 = vmul.f32 %v4237, 1.442695
        %v4392 = vpow.pop %v4391
        %v4393 = vmul.f32 %v4238, 1.442695
        %v4394 = vpow.pop %v4393
        %v4395 = vmul.f32 %v4239, 1.442695
        %v4396 = vpow.pop %v4395
        %v4397 = vmul.f32 %v4240, 1.442695
        %v4398 = vpow.pop %v4397
        %v4399 = vmul.f32 %v4241, 1.442695
        %v4400 = vpow.pop %v4399
        %v4401 = vmul.f32 %v4242, 1.442695
        %v4402 = vpow.pop %v4401
        %v4403 = vmul.f32 %v4243, 1.442695
        %v4404 = vpow.pop %v4403
        %v4405 = vmul.f32 %v4244, 1.442695
        %v4406 = vpow.pop %v4405
        %v4407 = vmul.f32 %v4245, 1.442695
        %v4408 = vpow.pop %v4407
        %v4409 = vmul.f32 %v4246, 1.442695
        %v4410 = vpow.pop %v4409
        %v4411 = vmul.f32 %v4247, 1.442695
        %v4412 = vpow.pop %v4411
        %v4413 = vmul.f32 %v4248, 1.442695
        %v4414 = vpow.pop %v4413
        %v4415 = vmul.f32 %v4249, 1.442695
        %v4416 = vpow.pop %v4415
        %v4417 = vmul.f32 %v4250, 1.442695
        %v4418 = vpow.pop %v4417
        %v4419 = vmul.f32 %v4251, 1.442695
        %v4420 = vpow.pop %v4419
        %v4421 = vmul.f32 %v4252, 1.442695
        %v4422 = vpow.pop %v4421
        %v4423 = vmul.f32 %v4253, 1.442695
        %v4424 = vpow.pop %v4423
        %v4425 = vmul.f32 %v4254, 1.442695
        %v4426 = vpow.pop %v4425
        %v4427 = vmul.f32 %v4255, 1.442695
        %v4428 = vpow.pop %v4427
        %v4429 = vmul.f32 %v4256, 1.442695
        %v4430 = vpow.pop %v4429
        %v4431 = vmul.f32 %v4257, 1.442695
        %v4432 = vpow.pop %v4431
        %v4433 = vmul.f32 %v4258, 1.442695
        %v4434 = vpow.pop %v4433
        %v4435 = vmul.f32 %v4259, 1.442695
        %v4436 = vpow.pop %v4435
        %v4437 = vmul.f32 %v4260, 1.442695
        %v4438 = vpow.pop %v4437
        %v4439 = vmul.f32 %v4261, 1.442695
        %v4440 = vpow.pop %v4439
        %v4441 = vmul.f32 %v4262, 1.442695
        %v4442 = vpow.pop %v4441
        %v4443 = vmul.f32 %v4263, 1.442695
        %v4444 = vpow.pop %v4443
        %v4445 = vmul.f32 %v4264, 1.442695
        %v4446 = vpow.pop %v4445
        %v4447 = vmul.f32 %v4265, 1.442695
        %v4448 = vpow.pop %v4447
        %v4449 = vmul.f32 %v4266, 1.442695
        %v4450 = vpow.pop %v4449
        %v4451 = vmul.f32 %v4267, 1.442695
        %v4452 = vpow.pop %v4451
        %v4453 = vmul.f32 %v4268, 1.442695
        %v4454 = vpow.pop %v4453
        %v4455 = vmul.f32 %v4269, 1.442695
        %v4456 = vpow.pop %v4455
        %v4457 = vmul.f32 %v4270, 1.442695
        %v4458 = vpow.pop %v4457
        %v4459 = vmul.f32 %v4271, 1.442695
        %v4460 = vpow.pop %v4459
        %v4461 = vmul.f32 %v4272, 1.442695
        %v4462 = vpow.pop %v4461
        %v4463 = vmul.f32 %v4273, 1.442695
        %v4464 = vpow.pop %v4463
        %v4465 = vmul.f32 %v4274, 1.442695
        %v4466 = vpow.pop %v4465
        %v4467 = vmul.f32 %v4275, 1.442695
        %v4468 = vpow.pop %v4467
        %v4469 = vmul.f32 %v4276, 1.442695
        %v4470 = vpow.pop %v4469
        %v4471 = vmul.f32 %v4277, 1.442695
        %v4472 = vpow.pop %v4471
        %v4473 = vmul.f32 %v4278, 1.442695
        %v4474 = vpow.pop %v4473
        %v4475 = vmul.f32 %v4279, 1.442695
        %v4476 = vpow.pop %v4475
        %v4477 = vmul.f32 %v4280, 1.442695
        %v4478 = vpow.pop %v4477
        %v4479 = vmul.f32 %v4281, 1.442695
        %v4480 = vpow.pop %v4479
        %v4481 = vmul.f32 %v4282, 1.442695
        %v4482 = vpow.pop %v4481
        %v4483 = vmul.f32 %v4283, 1.442695
        %v4484 = vpow.pop %v4483
        %v4485 = vmul.f32 %v4284, 1.442695
        %v4486 = vpow.pop %v4485
        %v4487 = vmul.f32 %v4285, 1.442695
        %v4488 = vpow.pop %v4487
        %v4489 = vmul.f32 %v4286, 1.442695
        %v4490 = vpow.pop %v4489
        %v4491 = vmul.f32 %v4287, 1.442695
        %v4492 = vpow.pop %v4491
        %v4493 = vmul.f32 %v4288, 1.442695
        %v4494 = vpow.pop %v4493
        %v4495 = vmul.f32 %v4289, 1.442695
        %v4496 = vpow.pop %v4495
        %v4497 = vmul.f32 %v4290, 1.442695
        %v4498 = vpow.pop %v4497
        %v4499 = vmul.f32 %v4291, 1.442695
        %v4500 = vpow.pop %v4499
        %v4501 = vmul.f32 %v4292, 1.442695
        %v4502 = vpow.pop %v4501
        %v4503 = vmul.f32 %v4293, 1.442695
        %v4504 = vpow.pop %v4503
        %v4505 = vmul.f32 %v4294, 1.442695
        %v4506 = vpow.pop %v4505
        %v4507 = vmul.f32 %v4295, 1.442695
        %v4508 = vpow.pop %v4507
        %v4509 = vmul.f32 %v4296, 1.442695
        %v4510 = vpow.pop %v4509
        %v4511 = vmul.f32 %v4297, 1.442695
        %v4512 = vpow.pop %v4511
        %v4513 = vmul.f32 %v4298, 1.442695
        %v4514 = vpow.pop %v4513
        %v4515 = vmul.f32 %v4299, 1.442695
        %v4516 = vpow.pop %v4515
        %v4517 = vmul.f32 %v4300, 1.442695
        %v4518 = vpow.pop %v4517
        %v4519 = vmul.f32 %v4301, 1.442695
        %v4520 = vpow.pop %v4519
        %v4521 = vmul.f32 %v4302, 1.442695
        %v4522 = vpow.pop %v4521
        %v4523 = vmul.f32 %v4303, 1.442695
        %v4524 = vpow.pop %v4523
        %v4525 = vmul.f32 %v4304, 1.442695
        %v4526 = vpow.pop %v4525
        %v4527 = vmul.f32 %v4305, 1.442695
        %v4528 = vpow.pop %v4527
        %v4529 = vmul.f32 %v4306, 1.442695
        %v4530 = vpow.pop %v4529
        %v4531 = vmul.f32 %v4307, 1.442695
        %v4532 = vpow.pop %v4531
        %v4533 = vmul.f32 %v4308, 1.442695
        %v4534 = vpow.pop %v4533
        %v4535 = vmul.f32 %v4309, 1.442695
        %v4536 = vpow.pop %v4535
        %v4537 = vmul.f32 %v4310, 1.442695
        %v4538 = vpow.pop %v4537
        %v4539 = vmul.f32 %v4311, 1.442695
        %v4540 = vpow.pop %v4539
        %v4541 = vmul.f32 %v4312, 1.442695
        %v4542 = vpow.pop %v4541
        %v4543 = vmul.f32 %v4313, 1.442695
        %v4544 = vpow.pop %v4543
        %v4545 = vmul.f32 %v4314, 1.442695
        %v4546 = vpow.pop %v4545
        %v4547 = vmul.f32 %v4315, 1.442695
        %v4548 = vpow.pop %v4547
        %v4549 = vmul.f32 %v4316, 1.442695
        %v4550 = vpow.pop %v4549
        %v4551 = vmul.f32 %v4317, 1.442695
        %v4552 = vpow.pop %v4551
        %v4553 = vmul.f32 %v4318, 1.442695
        %v4554 = vpow.pop %v4553
        %v4555 = vmul.f32 %v4319, 1.442695
        %v4556 = vpow.pop %v4555
        %v4557 = vmul.f32 %v4320, 1.442695
        %v4558 = vpow.pop %v4557
        %v4559 = vmul.f32 %v4321, 1.442695
        %v4560 = vpow.pop %v4559
        %v4561 = vmul.f32 %v4322, 1.442695
        %v4562 = vpow.pop %v4561
        %v4563 = vmul.f32 %v4323, 1.442695
        %v4564 = vpow.pop %v4563
        %v4565 = vmul.f32 %v4324, 1.442695
        %v4566 = vpow.pop %v4565
        %v4567 = vmul.f32 %v4325, 1.442695
        %v4568 = vpow.pop %v4567
        %v4569 = vmul.f32 %v4326, 1.442695
        %v4570 = vpow.pop %v4569
        %v4571 = vmul.f32 %v4327, 1.442695
        %v4572 = vpow.pop %v4571
        %v4573 = vmul.f32 %v4328, 1.442695
        %v4574 = vpow.pop %v4573
        %v4575 = vmul.f32 %v4329, 1.442695
        %v4576 = vpow.pop %v4575
        %v4577 = vmul.f32 %v4330, 1.442695
        %v4578 = vpow.pop %v4577
        %v4579 = vmul.f32 %v4331, 1.442695
        %v4580 = vpow.pop %v4579
        %v4581 = vmul.f32 %v4332, 1.442695
        %v4582 = vpow.pop %v4581
        %v4583 = vmul.f32 %v4333, 1.442695
        %v4584 = vpow.pop %v4583
        %v4585 = vmul.f32 %v4334, 1.442695
        %v4586 = vpow.pop %v4585
        %v4587 = vmul.f32 %v4335, 1.442695
        %v4588 = vpow.pop %v4587
        %v4589 = vmul.f32 %v4336, 1.442695
        %v4590 = vpow.pop %v4589
        %v4591 = vmul.f32 %v4337, 1.442695
        %v4592 = vpow.pop %v4591
        %v4593 = vmul.f32 %v4338, 1.442695
        %v4594 = vpow.pop %v4593
        %v4595 = vadd.f32 %v4340, %v4404
        %v4596 = vadd.f32 %v4342, %v4406
        %v4597 = vadd.f32 %v4344, %v4408
        %v4598 = vadd.f32 %v4346, %v4410
        %v4599 = vadd.f32 %v4348, %v4412
        %v4600 = vadd.f32 %v4350, %v4414
        %v4601 = vadd.f32 %v4352, %v4416
        %v4602 = vadd.f32 %v4354, %v4418
        %v4603 = vadd.f32 %v4356, %v4420
        %v4604 = vadd.f32 %v4358, %v4422
        %v4605 = vadd.f32 %v4360, %v4424
        %v4606 = vadd.f32 %v4362, %v4426
        %v4607 = vadd.f32 %v4364, %v4428
        %v4608 = vadd.f32 %v4366, %v4430
        %v4609 = vadd.f32 %v4368, %v4432
        %v4610 = vadd.f32 %v4370, %v4434
        %v4611 = vadd.f32 %v4372, %v4436
        %v4612 = vadd.f32 %v4374, %v4438
        %v4613 = vadd.f32 %v4376, %v4440
        %v4614 = vadd.f32 %v4378, %v4442
        %v4615 = vadd.f32 %v4380, %v4444
        %v4616 = vadd.f32 %v4382, %v4446
        %v4617 = vadd.f32 %v4384, %v4448
        %v4618 = vadd.f32 %v4386, %v4450
        %v4619 = vadd.f32 %v4388, %v4452
        %v4620 = vadd.f32 %v4390, %v4454
        %v4621 = vadd.f32 %v4392, %v4456
        %v4622 = vadd.f32 %v4394, %v4458
        %v4623 = vadd.f32 %v4396, %v4460
        %v4624 = vadd.f32 %v4398, %v4462
        %v4625 = vadd.f32 %v4400, %v4464
        %v4626 = vadd.f32 %v4402, %v4466
        %v4627 = vadd.f32 %v4595, %v4468
        %v4628 = vadd.f32 %v4596, %v4470
        %v4629 = vadd.f32 %v4597, %v4472
        %v4630 = vadd.f32 %v4598, %v4474
        %v4631 = vadd.f32 %v4599, %v4476
        %v4632 = vadd.f32 %v4600, %v4478
        %v4633 = vadd.f32 %v4601, %v4480
        %v4634 = vadd.f32 %v4602, %v4482
        %v4635 = vadd.f32 %v4603, %v4484
        %v4636 = vadd.f32 %v4604, %v4486
        %v4637 = vadd.f32 %v4605, %v4488
        %v4638 = vadd.f32 %v4606, %v4490
        %v4639 = vadd.f32 %v4607, %v4492
        %v4640 = vadd.f32 %v4608, %v4494
        %v4641 = vadd.f32 %v4609, %v4496
        %v4642 = vadd.f32 %v4610, %v4498
        %v4643 = vadd.f32 %v4611, %v4500
        %v4644 = vadd.f32 %v4612, %v4502
        %v4645 = vadd.f32 %v4613, %v4504
        %v4646 = vadd.f32 %v4614, %v4506
        %v4647 = vadd.f32 %v4615, %v4508
        %v4648 = vadd.f32 %v4616, %v4510
        %v4649 = vadd.f32 %v4617, %v4512
        %v4650 = vadd.f32 %v4618, %v4514
        %v4651 = vadd.f32 %v4619, %v4516
        %v4652 = vadd.f32 %v4620, %v4518
        %v4653 = vadd.f32 %v4621, %v4520
        %v4654 = vadd.f32 %v4622, %v4522
        %v4655 = vadd.f32 %v4623, %v4524
        %v4656 = vadd.f32 %v4624, %v4526
        %v4657 = vadd.f32 %v4625, %v4528
        %v4658 = vadd.f32 %v4626, %v4530
        %v4659 = vadd.f32 %v4627, %v4532
        %v4660 = vadd.f32 %v4628, %v4534
        %v4661 = vadd.f32 %v4629, %v4536
        %v4662 = vadd.f32 %v4630, %v4538
        %v4663 = vadd.f32 %v4631, %v4540
        %v4664 = vadd.f32 %v4632, %v4542
        %v4665 = vadd.f32 %v4633, %v4544
        %v4666 = vadd.f32 %v4634, %v4546
        %v4667 = vadd.f32 %v4635, %v4548
        %v4668 = vadd.f32 %v4636, %v4550
        %v4669 = vadd.f32 %v4637, %v4552
        %v4670 = vadd.f32 %v4638, %v4554
        %v4671 = vadd.f32 %v4639, %v4556
        %v4672 = vadd.f32 %v4640, %v4558
        %v4673 = vadd.f32 %v4641, %v4560
        %v4674 = vadd.f32 %v4642, %v4562
        %v4675 = vadd.f32 %v4643, %v4564
        %v4676 = vadd.f32 %v4644, %v4566
        %v4677 = vadd.f32 %v4645, %v4568
        %v4678 = vadd.f32 %v4646, %v4570
        %v4679 = vadd.f32 %v4647, %v4572
        %v4680 = vadd.f32 %v4648, %v4574
        %v4681 = vadd.f32 %v4649, %v4576
        %v4682 = vadd.f32 %v4650, %v4578
        %v4683 = vadd.f32 %v4651, %v4580
        %v4684 = vadd.f32 %v4652, %v4582
        %v4685 = vadd.f32 %v4653, %v4584
        %v4686 = vadd.f32 %v4654, %v4586
        %v4687 = vadd.f32 %v4655, %v4588
        %v4688 = vadd.f32 %v4656, %v4590
        %v4689 = vadd.f32 %v4657, %v4592
        %v4690 = vadd.f32 %v4658, %v4594
        %v4691 = vrcp.pop %v4659
        %v4692 = vrcp.pop %v4660
        %v4693 = vrcp.pop %v4661
        %v4694 = vrcp.pop %v4662
        %v4695 = vrcp.pop %v4663
        %v4696 = vrcp.pop %v4664
        %v4697 = vrcp.pop %v4665
        %v4698 = vrcp.pop %v4666
        %v4699 = vrcp.pop %v4667
        %v4700 = vrcp.pop %v4668
        %v4701 = vrcp.pop %v4669
        %v4702 = vrcp.pop %v4670
        %v4703 = vrcp.pop %v4671
        %v4704 = vrcp.pop %v4672
        %v4705 = vrcp.pop %v4673
        %v4706 = vrcp.pop %v4674
        %v4707 = vrcp.pop %v4675
        %v4708 = vrcp.pop %v4676
        %v4709 = vrcp.pop %v4677
        %v4710 = vrcp.pop %v4678
        %v4711 = vrcp.pop %v4679
        %v4712 = vrcp.pop %v4680
        %v4713 = vrcp.pop %v4681
        %v4714 = vrcp.pop %v4682
        %v4715 = vrcp.pop %v4683
        %v4716 = vrcp.pop %v4684
        %v4717 = vrcp.pop %v4685
        %v4718 = vrcp.pop %v4686
        %v4719 = vrcp.pop %v4687
        %v4720 = vrcp.pop %v4688
        %v4721 = vrcp.pop %v4689
        %v4722 = vrcp.pop %v4690
        %v4723 = vmul.f32 %v4340, %v4691
        %v4724 = vmul.f32 %v4342, %v4692
        %v4725 = vmul.f32 %v4344, %v4693
        %v4726 = vmul.f32 %v4346, %v4694
        %v4727 = vmul.f32 %v4348, %v4695
        %v4728 = vmul.f32 %v4350, %v4696
        %v4729 = vmul.f32 %v4352, %v4697
        %v4730 = vmul.f32 %v4354, %v4698
        %v4731 = vmul.f32 %v4356, %v4699
        %v4732 = vmul.f32 %v4358, %v4700
        %v4733 = vmul.f32 %v4360, %v4701
        %v4734 = vmul.f32 %v4362, %v4702
        %v4735 = vmul.f32 %v4364, %v4703
        %v4736 = vmul.f32 %v4366, %v4704
        %v4737 = vmul.f32 %v4368, %v4705
        %v4738 = vmul.f32 %v4370, %v4706
        %v4739 = vmul.f32 %v4372, %v4707
        %v4740 = vmul.f32 %v4374, %v4708
        %v4741 = vmul.f32 %v4376, %v4709
        %v4742 = vmul.f32 %v4378, %v4710
        %v4743 = vmul.f32 %v4380, %v4711
        %v4744 = vmul.f32 %v4382, %v4712
        %v4745 = vmul.f32 %v4384, %v4713
        %v4746 = vmul.f32 %v4386, %v4714
        %v4747 = vmul.f32 %v4388, %v4715
        %v4748 = vmul.f32 %v4390, %v4716
        %v4749 = vmul.f32 %v4392, %v4717
        %v4750 = vmul.f32 %v4394, %v4718
        %v4751 = vmul.f32 %v4396, %v4719
        %v4752 = vmul.f32 %v4398, %v4720
        %v4753 = vmul.f32 %v4400, %v4721
        %v4754 = vmul.f32 %v4402, %v4722
        %v4755 = vmul.f32 %v4404, %v4691
        %v4756 = vmul.f32 %v4406, %v4692
        %v4757 = vmul.f32 %v4408, %v4693
        %v4758 = vmul.f32 %v4410, %v4694
        %v4759 = vmul.f32 %v4412, %v4695
        %v4760 = vmul.f32 %v4414, %v4696
        %v4761 = vmul.f32 %v4416, %v4697
        %v4762 = vmul.f32 %v4418, %v4698
        %v4763 = vmul.f32 %v4420, %v4699
        %v4764 = vmul.f32 %v4422, %v4700
        %v4765 = vmul.f32 %v4424, %v4701
        %v4766 = vmul.f32 %v4426, %v4702
        %v4767 = vmul.f32 %v4428, %v4703
        %v4768 = vmul.f32 %v4430, %v4704
        %v4769 = vmul.f32 %v4432, %v4705
        %v4770 = vmul.f32 %v4434, %v4706
        %v4771 = vmul.f32 %v4436, %v4707
        %v4772 = vmul.f32 %v4438, %v4708
        %v4773 = vmul.f32 %v4440, %v4709
        %v4774 = vmul.f32 %v4442, %v4710
        %v4775 = vmul.f32 %v4444, %v4711
        %v4776 = vmul.f32 %v4446, %v4712
        %v4777 = vmul.f32 %v4448, %v4713
        %v4778 = vmul.f32 %v4450, %v4714
        %v4779 = vmul.f32 %v4452, %v4715
        %v4780 = vmul.f32 %v4454, %v4716
        %v4781 = vmul.f32 %v4456, %v4717
        %v4782 = vmul.f32 %v4458, %v4718
        %v4783 = vmul.f32 %v4460, %v4719
        %v4784 = vmul.f32 %v4462, %v4720
        %v4785 = vmul.f32 %v4464, %v4721
        %v4786 = vmul.f32 %v4466, %v4722
        %v4787 = vmul.f32 %v4468, %v4691
        %v4788 = vmul.f32 %v4470, %v4692
        %v4789 = vmul.f32 %v4472, %v4693
        %v4790 = vmul.f32 %v4474, %v4694
        %v4791 = vmul.f32 %v4476, %v4695
        %v4792 = vmul.f32 %v4478, %v4696
        %v4793 = vmul.f32 %v4480, %v4697
        %v4794 = vmul.f32 %v4482, %v4698
        %v4795 = vmul.f32 %v4484, %v4699
        %v4796 = vmul.f32 %v4486, %v4700
        %v4797 = vmul.f32 %v4488, %v4701
        %v4798 = vmul.f32 %v4490, %v4702
        %v4799 = vmul.f32 %v4492, %v4703
        %v4800 = vmul.f32 %v4494, %v4704
        %v4801 = vmul.f32 %v4496, %v4705
        %v4802 = vmul.f32 %v4498, %v4706
        %v4803 = vmul.f32 %v4500, %v4707
        %v4804 = vmul.f32 %v4502, %v4708
        %v4805 = vmul.f32 %v4504, %v4709
        %v4806 = vmul.f32 %v4506, %v4710
        %v4807 = vmul.f32 %v4508, %v4711
        %v4808 = vmul.f32 %v4510, %v4712
        %v4809 = vmul.f32 %v4512, %v4713
        %v4810 = vmul.f32 %v4514, %v4714
        %v4811 = vmul.f32 %v4516, %v4715
        %v4812 = vmul.f32 %v4518, %v4716
        %v4813 = vmul.f32 %v4520, %v4717
        %v4814 = vmul.f32 %v4522, %v4718
        %v4815 = vmul.f32 %v4524, %v4719
        %v4816 = vmul.f32 %v4526, %v4720
        %v4817 = vmul.f32 %v4528, %v4721
        %v4818 = vmul.f32 %v4530, %v4722
        %v4819 = vmul.f32 %v4532, %v4691
        %v4820 = vmul.f32 %v4534, %v4692
        %v4821 = vmul.f32 %v4536, %v4693
        %v4822 = vmul.f32 %v4538, %v4694
        %v4823 = vmul.f32 %v4540, %v4695
        %v4824 = vmul.f32 %v4542, %v4696
        %v4825 = vmul.f32 %v4544, %v4697
        %v4826 = vmul.f32 %v4546, %v4698
        %v4827 = vmul.f32 %v4548, %v4699
        %v4828 = vmul.f32 %v4550, %v4700
        %v4829 = vmul.f32 %v4552, %v4701
        %v4830 = vmul.f32 %v4554, %v4702
        %v4831 = vmul.f32 %v4556, %v4703
        %v4832 = vmul.f32 %v4558, %v4704
        %v4833 = vmul.f32 %v4560, %v4705
        %v4834 = vmul.f32 %v4562, %v4706
        %v4835 = vmul.f32 %v4564, %v4707
        %v4836 = vmul.f32 %v4566, %v4708
        %v4837 = vmul.f32 %v4568, %v4709
        %v4838 = vmul.f32 %v4570, %v4710
        %v4839 = vmul.f32 %v4572, %v4711
        %v4840 = vmul.f32 %v4574, %v4712
        %v4841 = vmul.f32 %v4576, %v4713
        %v4842 = vmul.f32 %v4578, %v4714
        %v4843 = vmul.f32 %v4580, %v4715
        %v4844 = vmul.f32 %v4582, %v4716
        %v4845 = vmul.f32 %v4584, %v4717
        %v4846 = vmul.f32 %v4586, %v4718
        %v4847 = vmul.f32 %v4588, %v4719
        %v4848 = vmul.f32 %v4590, %v4720
        %v4849 = vmul.f32 %v4592, %v4721
        %v4850 = vmul.f32 %v4594, %v4722
        %v4851 = vld [vmem:[#allocation17] sm:$0xff]
        %vm4852 = vcmask 64512
        %v4854 = vsel %vm4852, %v4723, 0
        %v4857 = vsel %vm4852, %v4724, 0
        %v4860 = vsel %vm4852, %v4725, 0
        %v4863 = vsel %vm4852, %v4726, 0
        %v4866 = vsel %vm4852, %v4727, 0
        %v4869 = vsel %vm4852, %v4728, 0
        %v4872 = vsel %vm4852, %v4729, 0
        %v4875 = vsel %vm4852, %v4730, 0
        %v4878 = vsel %vm4852, %v4731, 0
        %v4881 = vsel %vm4852, %v4732, 0
        %v4884 = vsel %vm4852, %v4733, 0
        %v4887 = vsel %vm4852, %v4734, 0
        %v4890 = vsel %vm4852, %v4735, 0
        %v4893 = vsel %vm4852, %v4736, 0
        %v4896 = vsel %vm4852, %v4737, 0
        %v4899 = vsel %vm4852, %v4738, 0
        %v4902 = vsel %vm4852, %v4739, 0
        %v4905 = vsel %vm4852, %v4740, 0
        %v4908 = vsel %vm4852, %v4741, 0
        %v4911 = vsel %vm4852, %v4742, 0
        %v4914 = vsel %vm4852, %v4743, 0
        %v4917 = vsel %vm4852, %v4744, 0
        %v4920 = vsel %vm4852, %v4745, 0
        %v4923 = vsel %vm4852, %v4746, 0
        %v4926 = vsel %vm4852, %v4747, 0
        %v4929 = vsel %vm4852, %v4748, 0
        %v4932 = vsel %vm4852, %v4749, 0
        %v4935 = vsel %vm4852, %v4750, 0
        %v4938 = vsel %vm4852, %v4751, 0
        %v4941 = vsel %vm4852, %v4752, 0
        %v4944 = vsel %vm4852, %v4753, 0
        %v4947 = vsel %vm4852, %v4754, 0
        %v4950 = vsel %vm4852, %v4755, 0
        %v4953 = vsel %vm4852, %v4756, 0
        %v4956 = vsel %vm4852, %v4757, 0
        %v4959 = vsel %vm4852, %v4758, 0
        %v4962 = vsel %vm4852, %v4759, 0
        %v4965 = vsel %vm4852, %v4760, 0
        %v4968 = vsel %vm4852, %v4761, 0
        %v4971 = vsel %vm4852, %v4762, 0
        %v4974 = vsel %vm4852, %v4763, 0
        %v4977 = vsel %vm4852, %v4764, 0
        %v4980 = vsel %vm4852, %v4765, 0
        %v4983 = vsel %vm4852, %v4766, 0
        %v4986 = vsel %vm4852, %v4767, 0
        %v4989 = vsel %vm4852, %v4768, 0
        %v4992 = vsel %vm4852, %v4769, 0
        %v4995 = vsel %vm4852, %v4770, 0
        %v4998 = vsel %vm4852, %v4771, 0
        %v5001 = vsel %vm4852, %v4772, 0
        %v5004 = vsel %vm4852, %v4773, 0
        %v5007 = vsel %vm4852, %v4774, 0
        %v5010 = vsel %vm4852, %v4775, 0
        %v5013 = vsel %vm4852, %v4776, 0
        %v5016 = vsel %vm4852, %v4777, 0
        %v5019 = vsel %vm4852, %v4778, 0
        %v5022 = vsel %vm4852, %v4779, 0
        %v5025 = vsel %vm4852, %v4780, 0
        %v5028 = vsel %vm4852, %v4781, 0
        %v5031 = vsel %vm4852, %v4782, 0
        %v5034 = vsel %vm4852, %v4783, 0
        %v5037 = vsel %vm4852, %v4784, 0
        %v5040 = vsel %vm4852, %v4785, 0
        %v5043 = vsel %vm4852, %v4786, 0
        %v5046 = vsel %vm4852, %v4787, 0
        %v5049 = vsel %vm4852, %v4788, 0
        %v5052 = vsel %vm4852, %v4789, 0
        %v5055 = vsel %vm4852, %v4790, 0
        %v5058 = vsel %vm4852, %v4791, 0
        %v5061 = vsel %vm4852, %v4792, 0
        %v5064 = vsel %vm4852, %v4793, 0
        %v5067 = vsel %vm4852, %v4794, 0
        %v5070 = vsel %vm4852, %v4795, 0
        %v5073 = vsel %vm4852, %v4796, 0
        %v5076 = vsel %vm4852, %v4797, 0
        %v5079 = vsel %vm4852, %v4798, 0
        %v5082 = vsel %vm4852, %v4799, 0
        %v5085 = vsel %vm4852, %v4800, 0
        %v5088 = vsel %vm4852, %v4801, 0
        %v5091 = vsel %vm4852, %v4802, 0
        %v5094 = vsel %vm4852, %v4803, 0
        %v5097 = vsel %vm4852, %v4804, 0
        %v5100 = vsel %vm4852, %v4805, 0
        %v5103 = vsel %vm4852, %v4806, 0
        %v5106 = vsel %vm4852, %v4807, 0
        %v5109 = vsel %vm4852, %v4808, 0
        %v5112 = vsel %vm4852, %v4809, 0
        %v5115 = vsel %vm4852, %v4810, 0
        %v5118 = vsel %vm4852, %v4811, 0
        %v5121 = vsel %vm4852, %v4812, 0
        %v5124 = vsel %vm4852, %v4813, 0
        %v5127 = vsel %vm4852, %v4814, 0
        %v5130 = vsel %vm4852, %v4815, 0
        %v5133 = vsel %vm4852, %v4816, 0
        %v5136 = vsel %vm4852, %v4817, 0
        %v5139 = vsel %vm4852, %v4818, 0
        %v5142 = vsel %vm4852, %v4819, 0
        %v5145 = vsel %vm4852, %v4820, 0
        %v5148 = vsel %vm4852, %v4821, 0
        %v5151 = vsel %vm4852, %v4822, 0
        %v5154 = vsel %vm4852, %v4823, 0
        %v5157 = vsel %vm4852, %v4824, 0
        %v5160 = vsel %vm4852, %v4825, 0
        %v5163 = vsel %vm4852, %v4826, 0
        %v5166 = vsel %vm4852, %v4827, 0
        %v5169 = vsel %vm4852, %v4828, 0
        %v5172 = vsel %vm4852, %v4829, 0
        %v5175 = vsel %vm4852, %v4830, 0
        %v5178 = vsel %vm4852, %v4831, 0
        %v5181 = vsel %vm4852, %v4832, 0
        %v5184 = vsel %vm4852, %v4833, 0
        %v5187 = vsel %vm4852, %v4834, 0
        %v5190 = vsel %vm4852, %v4835, 0
        %v5193 = vsel %vm4852, %v4836, 0
        %v5196 = vsel %vm4852, %v4837, 0
        %v5199 = vsel %vm4852, %v4838, 0
        %v5202 = vsel %vm4852, %v4839, 0
        %v5205 = vsel %vm4852, %v4840, 0
        %v5208 = vsel %vm4852, %v4841, 0
        %v5211 = vsel %vm4852, %v4842, 0
        %v5214 = vsel %vm4852, %v4843, 0
        %v5217 = vsel %vm4852, %v4844, 0
        %v5220 = vsel %vm4852, %v4845, 0
        %v5223 = vsel %vm4852, %v4846, 0
        %v5226 = vsel %vm4852, %v4847, 0
        %v5229 = vsel %vm4852, %v4848, 0
        %v5232 = vsel %vm4852, %v4849, 0
        %v5235 = vsel %vm4852, %v4850, 0
        %5237 = vmatprep.subr.mxu0 0.0
        %5238 = vmatpush1.msra.mxu0 %v4851
        %5239 = vmatprep.subr.mxu0 0.0
        %5240 = vmatpush1.msra.mxu0 0.0
        %5241 = vmatprep.subr.mxu0 0.0
        %5242 = vmatpush1.msra.mxu0 0.0
        %5243 = vmatprep.subr.mxu0 0.0
        %5244 = vmatpush1.msra.mxu0 0.0
        %5245 = vmatprep.subr.mxu0 0.0
        %5246 = vmatpush1.msra.mxu0 0.0
        %5247 = vmatprep.subr.mxu0 0.0
        %5248 = vmatpush1.msra.mxu0 0.0
        %5249 = vmatprep.subr.mxu0 0.0
        %5250 = vmatpush1.msra.mxu0 0.0
        %5251 = vmatprep.subr.mxu0 0.0
        %5252 = vmatpush1.msra.mxu0 0.0
        %5253 = vmatprep.subr.mxu0 0.0
        %5254 = vmatpush1.msra.mxu0 0.0
        %5255 = vmatprep.subr.mxu0 0.0
        %5256 = vmatpush1.msra.mxu0 0.0
        %5257 = vmatprep.subr.mxu0 0.0
        %5258 = vmatpush1.msra.mxu0 0.0
        %5259 = vmatprep.subr.mxu0 0.0
        %5260 = vmatpush1.msra.mxu0 0.0
        %5261 = vmatprep.subr.mxu0 0.0
        %5262 = vmatpush1.msra.mxu0 0.0
        %5263 = vmatprep.subr.mxu0 0.0
        %5264 = vmatpush1.msra.mxu0 0.0
        %5265 = vmatprep.subr.mxu0 0.0
        %5266 = vmatpush1.msra.mxu0 0.0
        %5267 = vmatprep.subr.mxu0 0.0
        %5268 = vmatpush1.msra.mxu0 0.0
        %5269 = vmatprep.subr.mxu0 0.0
        %5270 = vmatpush1.msra.mxu0 0.0
        %5271 = vmatprep.subr.mxu0 0.0
        %5272 = vmatpush1.msra.mxu0 0.0
        %5273 = vmatprep.subr.mxu0 0.0
        %5274 = vmatpush1.msra.mxu0 0.0
        %5275 = vmatprep.subr.mxu0 0.0
        %5276 = vmatpush1.msra.mxu0 0.0
        %5277 = vmatprep.subr.mxu0 0.0
        %5278 = vmatpush1.msra.mxu0 0.0
        %5279 = vmatprep.subr.mxu0 0.0
        %5280 = vmatpush1.msra.mxu0 0.0
        %5281 = vmatprep.subr.mxu0 0.0
        %5282 = vmatpush1.msra.mxu0 0.0
        %5283 = vmatprep.subr.mxu0 0.0
        %5284 = vmatpush1.msra.mxu0 0.0
        %5285 = vmatprep.subr.mxu0 0.0
        %5286 = vmatpush1.msra.mxu0 0.0
        %5287 = vmatprep.subr.mxu0 0.0
        %5288 = vmatpush1.msra.mxu0 0.0
        %5289 = vmatprep.subr.mxu0 0.0
        %5290 = vmatpush1.msra.mxu0 0.0
        %5291 = vmatprep.subr.mxu0 0.0
        %5292 = vmatpush1.msra.mxu0 0.0
        %5293 = vmatprep.subr.mxu0 0.0
        %5294 = vmatpush1.msra.mxu0 0.0
        %5295 = vmatprep.subr.mxu0 0.0
        %5296 = vmatpush1.msra.mxu0 0.0
        %5297 = vmatprep.subr.mxu0 0.0
        %5298 = vmatpush1.msra.mxu0 0.0
        %5299 = vmatprep.subr.mxu0 0.0
        %5300 = vmatpush1.msra.mxu0 0.0
        %5301 = vmatprep.mubr.f32.mxu0 0.0
        %5302 = vmatmul.mubr.f32.gmra.mrb[0].mxu0 %v4854
        %v5303 = vpop.f32.mrb[0].mxu0
        %v5304 = vadd.f32 0.0, %v5303
        %v5305 = vpop.f32.mrb[0].mxu0
        %5306 = vmatprep.mubr.f32.mxu0 0.0
        %5307 = vmatmul.mubr.f32.gmra.mrb[0].mxu0 %v4857
        %v5308 = vpop.f32.mrb[0].mxu0
        %v5309 = vadd.f32 0.0, %v5308
        %v5310 = vpop.f32.mrb[0].mxu0
        %5311 = vmatprep.mubr.f32.mxu0 0.0
        %5312 = vmatmul.mubr.f32.gmra.mrb[0].mxu0 %v4860
        %v5313 = vpop.f32.mrb[0].mxu0
        %v5314 = vadd.f32 0.0, %v5313
        %v5315 = vpop.f32.mrb[0].mxu0
        %5316 = vmatprep.mubr.f32.mxu0 0.0
        %5317 = vmatmul.mubr.f32.gmra.mrb[0].mxu0 %v4863
        %v5318 = vpop.f32.mrb[0].mxu0
        %v5319 = vadd.f32 0.0, %v5318
        %v5320 = vpop.f32.mrb[0].mxu0
        %5321 = vmatprep.mubr.f32.mxu0 0.0
        %5322 = vmatmul.mubr.f32.gmra.mrb[0].mxu0 %v4866
        %v5323 = vpop.f32.mrb[0].mxu0
        %v5324 = vadd.f32 0.0, %v5323
        %v5325 = vpop.f32.mrb[0].mxu0
        %5326 = vmatprep.mubr.f32.mxu0 0.0
        %5327 = vmatmul.mubr.f32.gmra.mrb[0].mxu0 %v4869
        %v5328 = vpop.f32.mrb[0].mxu0
        %v5329 = vadd.f32 0.0, %v5328
        %v5330 = vpop.f32.mrb[0].mxu0
        %5331 = vmatprep.mubr.f32.mxu0 0.0
        %5332 = vmatmul.mubr.f32.gmra.mrb[0].mxu0 %v4872
        %v5333 = vpop.f32.mrb[0].mxu0
        %v5334 = vadd.f32 0.0, %v5333
        %v5335 = vpop.f32.mrb[0].mxu0
        %5336 = vmatprep.mubr.f32.mxu0 0.0
        %5337 = vmatmul.mubr.f32.gmra.mrb[0].mxu0 %v4875
        %v5338 = vpop.f32.mrb[0].mxu0
        %v5339 = vadd.f32 0.0, %v5338
        %v5340 = vpop.f32.mrb[0].mxu0
        %5341 = vmatprep.mubr.f32.mxu0 0.0
        %5342 = vmatmul.mubr.f32.gmra.mrb[0].mxu0 %v4878
        %v5343 = vpop.f32.mrb[0].mxu0
        %v5344 = vadd.f32 0.0, %v5343
        %v5345 = vpop.f32.mrb[0].mxu0
        %5346 = vmatprep.mubr.f32.mxu0 0.0
        %5347 = vmatmul.mubr.f32.gmra.mrb[0].mxu0 %v4881
        %v5348 = vpop.f32.mrb[0].mxu0
        %v5349 = vadd.f32 0.0, %v5348
        %v5350 = vpop.f32.mrb[0].mxu0
        %5351 = vmatprep.mubr.f32.mxu0 0.0
        %5352 = vmatmul.mubr.f32.gmra.mrb[0].mxu0 %v4884
        %v5353 = vpop.f32.mrb[0].mxu0
        %v5354 = vadd.f32 0.0, %v5353
        %v5355 = vpop.f32.mrb[0].mxu0
        %5356 = vmatprep.mubr.f32.mxu0 0.0
        %5357 = vmatmul.mubr.f32.gmra.mrb[0].mxu0 %v4887
        %v5358 = vpop.f32.mrb[0].mxu0
        %v5359 = vadd.f32 0.0, %v5358
        %v5360 = vpop.f32.mrb[0].mxu0
        %5361 = vmatprep.mubr.f32.mxu0 0.0
        %5362 = vmatmul.mubr.f32.gmra.mrb[0].mxu0 %v4890
        %v5363 = vpop.f32.mrb[0].mxu0
        %v5364 = vadd.f32 0.0, %v5363
        %v5365 = vpop.f32.mrb[0].mxu0
        %5366 = vmatprep.mubr.f32.mxu0 0.0
        %5367 = vmatmul.mubr.f32.gmra.mrb[0].mxu0 %v4893
        %v5368 = vpop.f32.mrb[0].mxu0
        %v5369 = vadd.f32 0.0, %v5368
        %v5370 = vpop.f32.mrb[0].mxu0
        %5371 = vmatprep.mubr.f32.mxu0 0.0
        %5372 = vmatmul.mubr.f32.gmra.mrb[0].mxu0 %v4896
        %v5373 = vpop.f32.mrb[0].mxu0
        %v5374 = vadd.f32 0.0, %v5373
        %v5375 = vpop.f32.mrb[0].mxu0
        %5376 = vmatprep.mubr.f32.mxu0 0.0
        %5377 = vmatmul.mubr.f32.gmra.mrb[0].mxu0 %v4899
        %v5378 = vpop.f32.mrb[0].mxu0
        %v5379 = vadd.f32 0.0, %v5378
        %v5380 = vpop.f32.mrb[0].mxu0
        %5381 = vmatprep.mubr.f32.mxu0 0.0
        %5382 = vmatmul.mubr.f32.gmra.mrb[0].mxu0 %v4902
        %v5383 = vpop.f32.mrb[0].mxu0
        %v5384 = vadd.f32 0.0, %v5383
        %v5385 = vpop.f32.mrb[0].mxu0
        %5386 = vmatprep.mubr.f32.mxu0 0.0
        %5387 = vmatmul.mubr.f32.gmra.mrb[0].mxu0 %v4905
        %v5388 = vpop.f32.mrb[0].mxu0
        %v5389 = vadd.f32 0.0, %v5388
        %v5390 = vpop.f32.mrb[0].mxu0
        %5391 = vmatprep.mubr.f32.mxu0 0.0
        %5392 = vmatmul.mubr.f32.gmra.mrb[0].mxu0 %v4908
        %v5393 = vpop.f32.mrb[0].mxu0
        %v5394 = vadd.f32 0.0, %v5393
        %v5395 = vpop.f32.mrb[0].mxu0
        %5396 = vmatprep.mubr.f32.mxu0 0.0
        %5397 = vmatmul.mubr.f32.gmra.mrb[0].mxu0 %v4911
        %v5398 = vpop.f32.mrb[0].mxu0
        %v5399 = vadd.f32 0.0, %v5398
        %v5400 = vpop.f32.mrb[0].mxu0
        %5401 = vmatprep.mubr.f32.mxu0 0.0
        %5402 = vmatmul.mubr.f32.gmra.mrb[0].mxu0 %v4914
        %v5403 = vpop.f32.mrb[0].mxu0
        %v5404 = vadd.f32 0.0, %v5403
        %v5405 = vpop.f32.mrb[0].mxu0
        %5406 = vmatprep.mubr.f32.mxu0 0.0
        %5407 = vmatmul.mubr.f32.gmra.mrb[0].mxu0 %v4917
        %v5408 = vpop.f32.mrb[0].mxu0
        %v5409 = vadd.f32 0.0, %v5408
        %v5410 = vpop.f32.mrb[0].mxu0
        %5411 = vmatprep.mubr.f32.mxu0 0.0
        %5412 = vmatmul.mubr.f32.gmra.mrb[0].mxu0 %v4920
        %v5413 = vpop.f32.mrb[0].mxu0
        %v5414 = vadd.f32 0.0, %v5413
        %v5415 = vpop.f32.mrb[0].mxu0
        %5416 = vmatprep.mubr.f32.mxu0 0.0
        %5417 = vmatmul.mubr.f32.gmra.mrb[0].mxu0 %v4923
        %v5418 = vpop.f32.mrb[0].mxu0
        %v5419 = vadd.f32 0.0, %v5418
        %v5420 = vpop.f32.mrb[0].mxu0
        %5421 = vmatprep.mubr.f32.mxu0 0.0
        %5422 = vmatmul.mubr.f32.gmra.mrb[0].mxu0 %v4926
        %v5423 = vpop.f32.mrb[0].mxu0
        %v5424 = vadd.f32 0.0, %v5423
        %v5425 = vpop.f32.mrb[0].mxu0
        %5426 = vmatprep.mubr.f32.mxu0 0.0
        %5427 = vmatmul.mubr.f32.gmra.mrb[0].mxu0 %v4929
        %v5428 = vpop.f32.mrb[0].mxu0
        %v5429 = vadd.f32 0.0, %v5428
        %v5430 = vpop.f32.mrb[0].mxu0
        %5431 = vmatprep.mubr.f32.mxu0 0.0
        %5432 = vmatmul.mubr.f32.gmra.mrb[0].mxu0 %v4932
        %v5433 = vpop.f32.mrb[0].mxu0
        %v5434 = vadd.f32 0.0, %v5433
        %v5435 = vpop.f32.mrb[0].mxu0
        %5436 = vmatprep.mubr.f32.mxu0 0.0
        %5437 = vmatmul.mubr.f32.gmra.mrb[0].mxu0 %v4935
        %v5438 = vpop.f32.mrb[0].mxu0
        %v5439 = vadd.f32 0.0, %v5438
        %v5440 = vpop.f32.mrb[0].mxu0
        %5441 = vmatprep.mubr.f32.mxu0 0.0
        %5442 = vmatmul.mubr.f32.gmra.mrb[0].mxu0 %v4938
        %v5443 = vpop.f32.mrb[0].mxu0
        %v5444 = vadd.f32 0.0, %v5443
        %v5445 = vpop.f32.mrb[0].mxu0
        %5446 = vmatprep.mubr.f32.mxu0 0.0
        %5447 = vmatmul.mubr.f32.gmra.mrb[0].mxu0 %v4941
        %v5448 = vpop.f32.mrb[0].mxu0
        %v5449 = vadd.f32 0.0, %v5448
        %v5450 = vpop.f32.mrb[0].mxu0
        %5451 = vmatprep.mubr.f32.mxu0 0.0
        %5452 = vmatmul.mubr.f32.gmra.mrb[0].mxu0 %v4944
        %v5453 = vpop.f32.mrb[0].mxu0
        %v5454 = vadd.f32 0.0, %v5453
        %v5455 = vpop.f32.mrb[0].mxu0
        %5456 = vmatprep.mubr.f32.mxu0 0.0
        %5457 = vmatmul.mubr.f32.gmra.mrb[0].mxu0 %v4947
        %v5458 = vpop.f32.mrb[0].mxu0
        %v5459 = vadd.f32 0.0, %v5458
        %v5460 = vpop.f32.mrb[0].mxu0
        %5461 = vmatprep.mubr.f32.mxu0 0.0
        %5462 = vmatmul.mubr.f32.gmra.mrb[0].mxu0 %v4950
        %v5463 = vpop.f32.mrb[0].mxu0
        %v5464 = vadd.f32 0.0, %v5463
        %v5465 = vpop.f32.mrb[0].mxu0
        %5466 = vmatprep.mubr.f32.mxu0 0.0
        %5467 = vmatmul.mubr.f32.gmra.mrb[0].mxu0 %v4953
        %v5468 = vpop.f32.mrb[0].mxu0
        %v5469 = vadd.f32 0.0, %v5468
        %v5470 = vpop.f32.mrb[0].mxu0
        %5471 = vmatprep.mubr.f32.mxu0 0.0
        %5472 = vmatmul.mubr.f32.gmra.mrb[0].mxu0 %v4956
        %v5473 = vpop.f32.mrb[0].mxu0
        %v5474 = vadd.f32 0.0, %v5473
        %v5475 = vpop.f32.mrb[0].mxu0
        %5476 = vmatprep.mubr.f32.mxu0 0.0
        %5477 = vmatmul.mubr.f32.gmra.mrb[0].mxu0 %v4959
        %v5478 = vpop.f32.mrb[0].mxu0
        %v5479 = vadd.f32 0.0, %v5478
        %v5480 = vpop.f32.mrb[0].mxu0
        %5481 = vmatprep.mubr.f32.mxu0 0.0
        %5482 = vmatmul.mubr.f32.gmra.mrb[0].mxu0 %v4962
        %v5483 = vpop.f32.mrb[0].mxu0
        %v5484 = vadd.f32 0.0, %v5483
        %v5485 = vpop.f32.mrb[0].mxu0
        %5486 = vmatprep.mubr.f32.mxu0 0.0
        %5487 = vmatmul.mubr.f32.gmra.mrb[0].mxu0 %v4965
        %v5488 = vpop.f32.mrb[0].mxu0
        %v5489 = vadd.f32 0.0, %v5488
        %v5490 = vpop.f32.mrb[0].mxu0
        %5491 = vmatprep.mubr.f32.mxu0 0.0
        %5492 = vmatmul.mubr.f32.gmra.mrb[0].mxu0 %v4968
        %v5493 = vpop.f32.mrb[0].mxu0
        %v5494 = vadd.f32 0.0, %v5493
        %v5495 = vpop.f32.mrb[0].mxu0
        %5496 = vmatprep.mubr.f32.mxu0 0.0
        %5497 = vmatmul.mubr.f32.gmra.mrb[0].mxu0 %v4971
        %v5498 = vpop.f32.mrb[0].mxu0
        %v5499 = vadd.f32 0.0, %v5498
        %v5500 = vpop.f32.mrb[0].mxu0
        %5501 = vmatprep.mubr.f32.mxu0 0.0
        %5502 = vmatmul.mubr.f32.gmra.mrb[0].mxu0 %v4974
        %v5503 = vpop.f32.mrb[0].mxu0
        %v5504 = vadd.f32 0.0, %v5503
        %v5505 = vpop.f32.mrb[0].mxu0
        %5506 = vmatprep.mubr.f32.mxu0 0.0
        %5507 = vmatmul.mubr.f32.gmra.mrb[0].mxu0 %v4977
        %v5508 = vpop.f32.mrb[0].mxu0
        %v5509 = vadd.f32 0.0, %v5508
        %v5510 = vpop.f32.mrb[0].mxu0
        %5511 = vmatprep.mubr.f32.mxu0 0.0
        %5512 = vmatmul.mubr.f32.gmra.mrb[0].mxu0 %v4980
        %v5513 = vpop.f32.mrb[0].mxu0
        %v5514 = vadd.f32 0.0, %v5513
        %v5515 = vpop.f32.mrb[0].mxu0
        %5516 = vmatprep.mubr.f32.mxu0 0.0
        %5517 = vmatmul.mubr.f32.gmra.mrb[0].mxu0 %v4983
        %v5518 = vpop.f32.mrb[0].mxu0
        %v5519 = vadd.f32 0.0, %v5518
        %v5520 = vpop.f32.mrb[0].mxu0
        %5521 = vmatprep.mubr.f32.mxu0 0.0
        %5522 = vmatmul.mubr.f32.gmra.mrb[0].mxu0 %v4986
        %v5523 = vpop.f32.mrb[0].mxu0
        %v5524 = vadd.f32 0.0, %v5523
        %v5525 = vpop.f32.mrb[0].mxu0
        %5526 = vmatprep.mubr.f32.mxu0 0.0
        %5527 = vmatmul.mubr.f32.gmra.mrb[0].mxu0 %v4989
        %v5528 = vpop.f32.mrb[0].mxu0
        %v5529 = vadd.f32 0.0, %v5528
        %v5530 = vpop.f32.mrb[0].mxu0
        %5531 = vmatprep.mubr.f32.mxu0 0.0
        %5532 = vmatmul.mubr.f32.gmra.mrb[0].mxu0 %v4992
        %v5533 = vpop.f32.mrb[0].mxu0
        %v5534 = vadd.f32 0.0, %v5533
        %v5535 = vpop.f32.mrb[0].mxu0
        %5536 = vmatprep.mubr.f32.mxu0 0.0
        %5537 = vmatmul.mubr.f32.gmra.mrb[0].mxu0 %v4995
        %v5538 = vpop.f32.mrb[0].mxu0
        %v5539 = vadd.f32 0.0, %v5538
        %v5540 = vpop.f32.mrb[0].mxu0
        %5541 = vmatprep.mubr.f32.mxu0 0.0
        %5542 = vmatmul.mubr.f32.gmra.mrb[0].mxu0 %v4998
        %v5543 = vpop.f32.mrb[0].mxu0
        %v5544 = vadd.f32 0.0, %v5543
        %v5545 = vpop.f32.mrb[0].mxu0
        %5546 = vmatprep.mubr.f32.mxu0 0.0
        %5547 = vmatmul.mubr.f32.gmra.mrb[0].mxu0 %v5001
        %v5548 = vpop.f32.mrb[0].mxu0
        %v5549 = vadd.f32 0.0, %v5548
        %v5550 = vpop.f32.mrb[0].mxu0
        %5551 = vmatprep.mubr.f32.mxu0 0.0
        %5552 = vmatmul.mubr.f32.gmra.mrb[0].mxu0 %v5004
        %v5553 = vpop.f32.mrb[0].mxu0
        %v5554 = vadd.f32 0.0, %v5553
        %v5555 = vpop.f32.mrb[0].mxu0
        %5556 = vmatprep.mubr.f32.mxu0 0.0
        %5557 = vmatmul.mubr.f32.gmra.mrb[0].mxu0 %v5007
        %v5558 = vpop.f32.mrb[0].mxu0
        %v5559 = vadd.f32 0.0, %v5558
        %v5560 = vpop.f32.mrb[0].mxu0
        %5561 = vmatprep.mubr.f32.mxu0 0.0
        %5562 = vmatmul.mubr.f32.gmra.mrb[0].mxu0 %v5010
        %v5563 = vpop.f32.mrb[0].mxu0
        %v5564 = vadd.f32 0.0, %v5563
        %v5565 = vpop.f32.mrb[0].mxu0
        %5566 = vmatprep.mubr.f32.mxu0 0.0
        %5567 = vmatmul.mubr.f32.gmra.mrb[0].mxu0 %v5013
        %v5568 = vpop.f32.mrb[0].mxu0
        %v5569 = vadd.f32 0.0, %v5568
        %v5570 = vpop.f32.mrb[0].mxu0
        %5571 = vmatprep.mubr.f32.mxu0 0.0
        %5572 = vmatmul.mubr.f32.gmra.mrb[0].mxu0 %v5016
        %v5573 = vpop.f32.mrb[0].mxu0
        %v5574 = vadd.f32 0.0, %v5573
        %v5575 = vpop.f32.mrb[0].mxu0
        %5576 = vmatprep.mubr.f32.mxu0 0.0
        %5577 = vmatmul.mubr.f32.gmra.mrb[0].mxu0 %v5019
        %v5578 = vpop.f32.mrb[0].mxu0
        %v5579 = vadd.f32 0.0, %v5578
        %v5580 = vpop.f32.mrb[0].mxu0
        %5581 = vmatprep.mubr.f32.mxu0 0.0
        %5582 = vmatmul.mubr.f32.gmra.mrb[0].mxu0 %v5022
        %v5583 = vpop.f32.mrb[0].mxu0
        %v5584 = vadd.f32 0.0, %v5583
        %v5585 = vpop.f32.mrb[0].mxu0
        %5586 = vmatprep.mubr.f32.mxu0 0.0
        %5587 = vmatmul.mubr.f32.gmra.mrb[0].mxu0 %v5025
        %v5588 = vpop.f32.mrb[0].mxu0
        %v5589 = vadd.f32 0.0, %v5588
        %v5590 = vpop.f32.mrb[0].mxu0
        %5591 = vmatprep.mubr.f32.mxu0 0.0
        %5592 = vmatmul.mubr.f32.gmra.mrb[0].mxu0 %v5028
        %v5593 = vpop.f32.mrb[0].mxu0
        %v5594 = vadd.f32 0.0, %v5593
        %v5595 = vpop.f32.mrb[0].mxu0
        %5596 = vmatprep.mubr.f32.mxu0 0.0
        %5597 = vmatmul.mubr.f32.gmra.mrb[0].mxu0 %v5031
        %v5598 = vpop.f32.mrb[0].mxu0
        %v5599 = vadd.f32 0.0, %v5598
        %v5600 = vpop.f32.mrb[0].mxu0
        %5601 = vmatprep.mubr.f32.mxu0 0.0
        %5602 = vmatmul.mubr.f32.gmra.mrb[0].mxu0 %v5034
        %v5603 = vpop.f32.mrb[0].mxu0
        %v5604 = vadd.f32 0.0, %v5603
        %v5605 = vpop.f32.mrb[0].mxu0
        %5606 = vmatprep.mubr.f32.mxu0 0.0
        %5607 = vmatmul.mubr.f32.gmra.mrb[0].mxu0 %v5037
        %v5608 = vpop.f32.mrb[0].mxu0
        %v5609 = vadd.f32 0.0, %v5608
        %v5610 = vpop.f32.mrb[0].mxu0
        %5611 = vmatprep.mubr.f32.mxu0 0.0
        %5612 = vmatmul.mubr.f32.gmra.mrb[0].mxu0 %v5040
        %v5613 = vpop.f32.mrb[0].mxu0
        %v5614 = vadd.f32 0.0, %v5613
        %v5615 = vpop.f32.mrb[0].mxu0
        %5616 = vmatprep.mubr.f32.mxu0 0.0
        %5617 = vmatmul.mubr.f32.gmra.mrb[0].mxu0 %v5043
        %v5618 = vpop.f32.mrb[0].mxu0
        %v5619 = vadd.f32 0.0, %v5618
        %v5620 = vpop.f32.mrb[0].mxu0
        %5621 = vmatprep.mubr.f32.mxu0 0.0
        %5622 = vmatmul.mubr.f32.gmra.mrb[0].mxu0 %v5046
        %v5623 = vpop.f32.mrb[0].mxu0
        %v5624 = vadd.f32 0.0, %v5623
        %v5625 = vpop.f32.mrb[0].mxu0
        %5626 = vmatprep.mubr.f32.mxu0 0.0
        %5627 = vmatmul.mubr.f32.gmra.mrb[0].mxu0 %v5049
        %v5628 = vpop.f32.mrb[0].mxu0
        %v5629 = vadd.f32 0.0, %v5628
        %v5630 = vpop.f32.mrb[0].mxu0
        %5631 = vmatprep.mubr.f32.mxu0 0.0
        %5632 = vmatmul.mubr.f32.gmra.mrb[0].mxu0 %v5052
        %v5633 = vpop.f32.mrb[0].mxu0
        %v5634 = vadd.f32 0.0, %v5633
        %v5635 = vpop.f32.mrb[0].mxu0
        %5636 = vmatprep.mubr.f32.mxu0 0.0
        %5637 = vmatmul.mubr.f32.gmra.mrb[0].mxu0 %v5055
        %v5638 = vpop.f32.mrb[0].mxu0
        %v5639 = vadd.f32 0.0, %v5638
        %v5640 = vpop.f32.mrb[0].mxu0
        %5641 = vmatprep.mubr.f32.mxu0 0.0
        %5642 = vmatmul.mubr.f32.gmra.mrb[0].mxu0 %v5058
        %v5643 = vpop.f32.mrb[0].mxu0
        %v5644 = vadd.f32 0.0, %v5643
        %v5645 = vpop.f32.mrb[0].mxu0
        %5646 = vmatprep.mubr.f32.mxu0 0.0
        %5647 = vmatmul.mubr.f32.gmra.mrb[0].mxu0 %v5061
        %v5648 = vpop.f32.mrb[0].mxu0
        %v5649 = vadd.f32 0.0, %v5648
        %v5650 = vpop.f32.mrb[0].mxu0
        %5651 = vmatprep.mubr.f32.mxu0 0.0
        %5652 = vmatmul.mubr.f32.gmra.mrb[0].mxu0 %v5064
        %v5653 = vpop.f32.mrb[0].mxu0
        %v5654 = vadd.f32 0.0, %v5653
        %v5655 = vpop.f32.mrb[0].mxu0
        %5656 = vmatprep.mubr.f32.mxu0 0.0
        %5657 = vmatmul.mubr.f32.gmra.mrb[0].mxu0 %v5067
        %v5658 = vpop.f32.mrb[0].mxu0
        %v5659 = vadd.f32 0.0, %v5658
        %v5660 = vpop.f32.mrb[0].mxu0
        %5661 = vmatprep.mubr.f32.mxu0 0.0
        %5662 = vmatmul.mubr.f32.gmra.mrb[0].mxu0 %v5070
        %v5663 = vpop.f32.mrb[0].mxu0
        %v5664 = vadd.f32 0.0, %v5663
        %v5665 = vpop.f32.mrb[0].mxu0
        %5666 = vmatprep.mubr.f32.mxu0 0.0
        %5667 = vmatmul.mubr.f32.gmra.mrb[0].mxu0 %v5073
        %v5668 = vpop.f32.mrb[0].mxu0
        %v5669 = vadd.f32 0.0, %v5668
        %v5670 = vpop.f32.mrb[0].mxu0
        %5671 = vmatprep.mubr.f32.mxu0 0.0
        %5672 = vmatmul.mubr.f32.gmra.mrb[0].mxu0 %v5076
        %v5673 = vpop.f32.mrb[0].mxu0
        %v5674 = vadd.f32 0.0, %v5673
        %v5675 = vpop.f32.mrb[0].mxu0
        %5676 = vmatprep.mubr.f32.mxu0 0.0
        %5677 = vmatmul.mubr.f32.gmra.mrb[0].mxu0 %v5079
        %v5678 = vpop.f32.mrb[0].mxu0
        %v5679 = vadd.f32 0.0, %v5678
        %v5680 = vpop.f32.mrb[0].mxu0
        %5681 = vmatprep.mubr.f32.mxu0 0.0
        %5682 = vmatmul.mubr.f32.gmra.mrb[0].mxu0 %v5082
        %v5683 = vpop.f32.mrb[0].mxu0
        %v5684 = vadd.f32 0.0, %v5683
        %v5685 = vpop.f32.mrb[0].mxu0
        %5686 = vmatprep.mubr.f32.mxu0 0.0
        %5687 = vmatmul.mubr.f32.gmra.mrb[0].mxu0 %v5085
        %v5688 = vpop.f32.mrb[0].mxu0
        %v5689 = vadd.f32 0.0, %v5688
        %v5690 = vpop.f32.mrb[0].mxu0
        %5691 = vmatprep.mubr.f32.mxu0 0.0
        %5692 = vmatmul.mubr.f32.gmra.mrb[0].mxu0 %v5088
        %v5693 = vpop.f32.mrb[0].mxu0
        %v5694 = vadd.f32 0.0, %v5693
        %v5695 = vpop.f32.mrb[0].mxu0
        %5696 = vmatprep.mubr.f32.mxu0 0.0
        %5697 = vmatmul.mubr.f32.gmra.mrb[0].mxu0 %v5091
        %v5698 = vpop.f32.mrb[0].mxu0
        %v5699 = vadd.f32 0.0, %v5698
        %v5700 = vpop.f32.mrb[0].mxu0
        %5701 = vmatprep.mubr.f32.mxu0 0.0
        %5702 = vmatmul.mubr.f32.gmra.mrb[0].mxu0 %v5094
        %v5703 = vpop.f32.mrb[0].mxu0
        %v5704 = vadd.f32 0.0, %v5703
        %v5705 = vpop.f32.mrb[0].mxu0
        %5706 = vmatprep.mubr.f32.mxu0 0.0
        %5707 = vmatmul.mubr.f32.gmra.mrb[0].mxu0 %v5097
        %v5708 = vpop.f32.mrb[0].mxu0
        %v5709 = vadd.f32 0.0, %v5708
        %v5710 = vpop.f32.mrb[0].mxu0
        %5711 = vmatprep.mubr.f32.mxu0 0.0
        %5712 = vmatmul.mubr.f32.gmra.mrb[0].mxu0 %v5100
        %v5713 = vpop.f32.mrb[0].mxu0
        %v5714 = vadd.f32 0.0, %v5713
        %v5715 = vpop.f32.mrb[0].mxu0
        %5716 = vmatprep.mubr.f32.mxu0 0.0
        %5717 = vmatmul.mubr.f32.gmra.mrb[0].mxu0 %v5103
        %v5718 = vpop.f32.mrb[0].mxu0
        %v5719 = vadd.f32 0.0, %v5718
        %v5720 = vpop.f32.mrb[0].mxu0
        %5721 = vmatprep.mubr.f32.mxu0 0.0
        %5722 = vmatmul.mubr.f32.gmra.mrb[0].mxu0 %v5106
        %v5723 = vpop.f32.mrb[0].mxu0
        %v5724 = vadd.f32 0.0, %v5723
        %v5725 = vpop.f32.mrb[0].mxu0
        %5726 = vmatprep.mubr.f32.mxu0 0.0
        %5727 = vmatmul.mubr.f32.gmra.mrb[0].mxu0 %v5109
        %v5728 = vpop.f32.mrb[0].mxu0
        %v5729 = vadd.f32 0.0, %v5728
        %v5730 = vpop.f32.mrb[0].mxu0
        %5731 = vmatprep.mubr.f32.mxu0 0.0
        %5732 = vmatmul.mubr.f32.gmra.mrb[0].mxu0 %v5112
        %v5733 = vpop.f32.mrb[0].mxu0
        %v5734 = vadd.f32 0.0, %v5733
        %v5735 = vpop.f32.mrb[0].mxu0
        %5736 = vmatprep.mubr.f32.mxu0 0.0
        %5737 = vmatmul.mubr.f32.gmra.mrb[0].mxu0 %v5115
        %v5738 = vpop.f32.mrb[0].mxu0
        %v5739 = vadd.f32 0.0, %v5738
        %v5740 = vpop.f32.mrb[0].mxu0
        %5741 = vmatprep.mubr.f32.mxu0 0.0
        %5742 = vmatmul.mubr.f32.gmra.mrb[0].mxu0 %v5118
        %v5743 = vpop.f32.mrb[0].mxu0
        %v5744 = vadd.f32 0.0, %v5743
        %v5745 = vpop.f32.mrb[0].mxu0
        %5746 = vmatprep.mubr.f32.mxu0 0.0
        %5747 = vmatmul.mubr.f32.gmra.mrb[0].mxu0 %v5121
        %v5748 = vpop.f32.mrb[0].mxu0
        %v5749 = vadd.f32 0.0, %v5748
        %v5750 = vpop.f32.mrb[0].mxu0
        %5751 = vmatprep.mubr.f32.mxu0 0.0
        %5752 = vmatmul.mubr.f32.gmra.mrb[0].mxu0 %v5124
        %v5753 = vpop.f32.mrb[0].mxu0
        %v5754 = vadd.f32 0.0, %v5753
        %v5755 = vpop.f32.mrb[0].mxu0
        %5756 = vmatprep.mubr.f32.mxu0 0.0
        %5757 = vmatmul.mubr.f32.gmra.mrb[0].mxu0 %v5127
        %v5758 = vpop.f32.mrb[0].mxu0
        %v5759 = vadd.f32 0.0, %v5758
        %v5760 = vpop.f32.mrb[0].mxu0
        %5761 = vmatprep.mubr.f32.mxu0 0.0
        %5762 = vmatmul.mubr.f32.gmra.mrb[0].mxu0 %v5130
        %v5763 = vpop.f32.mrb[0].mxu0
        %v5764 = vadd.f32 0.0, %v5763
        %v5765 = vpop.f32.mrb[0].mxu0
        %5766 = vmatprep.mubr.f32.mxu0 0.0
        %5767 = vmatmul.mubr.f32.gmra.mrb[0].mxu0 %v5133
        %v5768 = vpop.f32.mrb[0].mxu0
        %v5769 = vadd.f32 0.0, %v5768
        %v5770 = vpop.f32.mrb[0].mxu0
        %5771 = vmatprep.mubr.f32.mxu0 0.0
        %5772 = vmatmul.mubr.f32.gmra.mrb[0].mxu0 %v5136
        %v5773 = vpop.f32.mrb[0].mxu0
        %v5774 = vadd.f32 0.0, %v5773
        %v5775 = vpop.f32.mrb[0].mxu0
        %5776 = vmatprep.mubr.f32.mxu0 0.0
        %5777 = vmatmul.mubr.f32.gmra.mrb[0].mxu0 %v5139
        %v5778 = vpop.f32.mrb[0].mxu0
        %v5779 = vadd.f32 0.0, %v5778
        %v5780 = vpop.f32.mrb[0].mxu0
        %5781 = vmatprep.mubr.f32.mxu0 0.0
        %5782 = vmatmul.mubr.f32.gmra.mrb[0].mxu0 %v5142
        %v5783 = vpop.f32.mrb[0].mxu0
        %v5784 = vadd.f32 0.0, %v5783
        %v5785 = vpop.f32.mrb[0].mxu0
        %5786 = vmatprep.mubr.f32.mxu0 0.0
        %5787 = vmatmul.mubr.f32.gmra.mrb[0].mxu0 %v5145
        %v5788 = vpop.f32.mrb[0].mxu0
        %v5789 = vadd.f32 0.0, %v5788
        %v5790 = vpop.f32.mrb[0].mxu0
        %5791 = vmatprep.mubr.f32.mxu0 0.0
        %5792 = vmatmul.mubr.f32.gmra.mrb[0].mxu0 %v5148
        %v5793 = vpop.f32.mrb[0].mxu0
        %v5794 = vadd.f32 0.0, %v5793
        %v5795 = vpop.f32.mrb[0].mxu0
        %5796 = vmatprep.mubr.f32.mxu0 0.0
        %5797 = vmatmul.mubr.f32.gmra.mrb[0].mxu0 %v5151
        %v5798 = vpop.f32.mrb[0].mxu0
        %v5799 = vadd.f32 0.0, %v5798
        %v5800 = vpop.f32.mrb[0].mxu0
        %5801 = vmatprep.mubr.f32.mxu0 0.0
        %5802 = vmatmul.mubr.f32.gmra.mrb[0].mxu0 %v5154
        %v5803 = vpop.f32.mrb[0].mxu0
        %v5804 = vadd.f32 0.0, %v5803
        %v5805 = vpop.f32.mrb[0].mxu0
        %5806 = vmatprep.mubr.f32.mxu0 0.0
        %5807 = vmatmul.mubr.f32.gmra.mrb[0].mxu0 %v5157
        %v5808 = vpop.f32.mrb[0].mxu0
        %v5809 = vadd.f32 0.0, %v5808
        %v5810 = vpop.f32.mrb[0].mxu0
        %5811 = vmatprep.mubr.f32.mxu0 0.0
        %5812 = vmatmul.mubr.f32.gmra.mrb[0].mxu0 %v5160
        %v5813 = vpop.f32.mrb[0].mxu0
        %v5814 = vadd.f32 0.0, %v5813
        %v5815 = vpop.f32.mrb[0].mxu0
        %5816 = vmatprep.mubr.f32.mxu0 0.0
        %5817 = vmatmul.mubr.f32.gmra.mrb[0].mxu0 %v5163
        %v5818 = vpop.f32.mrb[0].mxu0
        %v5819 = vadd.f32 0.0, %v5818
        %v5820 = vpop.f32.mrb[0].mxu0
        %5821 = vmatprep.mubr.f32.mxu0 0.0
        %5822 = vmatmul.mubr.f32.gmra.mrb[0].mxu0 %v5166
        %v5823 = vpop.f32.mrb[0].mxu0
        %v5824 = vadd.f32 0.0, %v5823
        %v5825 = vpop.f32.mrb[0].mxu0
        %5826 = vmatprep.mubr.f32.mxu0 0.0
        %5827 = vmatmul.mubr.f32.gmra.mrb[0].mxu0 %v5169
        %v5828 = vpop.f32.mrb[0].mxu0
        %v5829 = vadd.f32 0.0, %v5828
        %v5830 = vpop.f32.mrb[0].mxu0
        %5831 = vmatprep.mubr.f32.mxu0 0.0
        %5832 = vmatmul.mubr.f32.gmra.mrb[0].mxu0 %v5172
        %v5833 = vpop.f32.mrb[0].mxu0
        %v5834 = vadd.f32 0.0, %v5833
        %v5835 = vpop.f32.mrb[0].mxu0
        %5836 = vmatprep.mubr.f32.mxu0 0.0
        %5837 = vmatmul.mubr.f32.gmra.mrb[0].mxu0 %v5175
        %v5838 = vpop.f32.mrb[0].mxu0
        %v5839 = vadd.f32 0.0, %v5838
        %v5840 = vpop.f32.mrb[0].mxu0
        %5841 = vmatprep.mubr.f32.mxu0 0.0
        %5842 = vmatmul.mubr.f32.gmra.mrb[0].mxu0 %v5178
        %v5843 = vpop.f32.mrb[0].mxu0
        %v5844 = vadd.f32 0.0, %v5843
        %v5845 = vpop.f32.mrb[0].mxu0
        %5846 = vmatprep.mubr.f32.mxu0 0.0
        %5847 = vmatmul.mubr.f32.gmra.mrb[0].mxu0 %v5181
        %v5848 = vpop.f32.mrb[0].mxu0
        %v5849 = vadd.f32 0.0, %v5848
        %v5850 = vpop.f32.mrb[0].mxu0
        %5851 = vmatprep.mubr.f32.mxu0 0.0
        %5852 = vmatmul.mubr.f32.gmra.mrb[0].mxu0 %v5184
        %v5853 = vpop.f32.mrb[0].mxu0
        %v5854 = vadd.f32 0.0, %v5853
        %v5855 = vpop.f32.mrb[0].mxu0
        %5856 = vmatprep.mubr.f32.mxu0 0.0
        %5857 = vmatmul.mubr.f32.gmra.mrb[0].mxu0 %v5187
        %v5858 = vpop.f32.mrb[0].mxu0
        %v5859 = vadd.f32 0.0, %v5858
        %v5860 = vpop.f32.mrb[0].mxu0
        %5861 = vmatprep.mubr.f32.mxu0 0.0
        %5862 = vmatmul.mubr.f32.gmra.mrb[0].mxu0 %v5190
        %v5863 = vpop.f32.mrb[0].mxu0
        %v5864 = vadd.f32 0.0, %v5863
        %v5865 = vpop.f32.mrb[0].mxu0
        %5866 = vmatprep.mubr.f32.mxu0 0.0
        %5867 = vmatmul.mubr.f32.gmra.mrb[0].mxu0 %v5193
        %v5868 = vpop.f32.mrb[0].mxu0
        %v5869 = vadd.f32 0.0, %v5868
        %v5870 = vpop.f32.mrb[0].mxu0
        %5871 = vmatprep.mubr.f32.mxu0 0.0
        %5872 = vmatmul.mubr.f32.gmra.mrb[0].mxu0 %v5196
        %v5873 = vpop.f32.mrb[0].mxu0
        %v5874 = vadd.f32 0.0, %v5873
        %v5875 = vpop.f32.mrb[0].mxu0
        %5876 = vmatprep.mubr.f32.mxu0 0.0
        %5877 = vmatmul.mubr.f32.gmra.mrb[0].mxu0 %v5199
        %v5878 = vpop.f32.mrb[0].mxu0
        %v5879 = vadd.f32 0.0, %v5878
        %v5880 = vpop.f32.mrb[0].mxu0
        %5881 = vmatprep.mubr.f32.mxu0 0.0
        %5882 = vmatmul.mubr.f32.gmra.mrb[0].mxu0 %v5202
        %v5883 = vpop.f32.mrb[0].mxu0
        %v5884 = vadd.f32 0.0, %v5883
        %v5885 = vpop.f32.mrb[0].mxu0
        %5886 = vmatprep.mubr.f32.mxu0 0.0
        %5887 = vmatmul.mubr.f32.gmra.mrb[0].mxu0 %v5205
        %v5888 = vpop.f32.mrb[0].mxu0
        %v5889 = vadd.f32 0.0, %v5888
        %v5890 = vpop.f32.mrb[0].mxu0
        %5891 = vmatprep.mubr.f32.mxu0 0.0
        %5892 = vmatmul.mubr.f32.gmra.mrb[0].mxu0 %v5208
        %v5893 = vpop.f32.mrb[0].mxu0
        %v5894 = vadd.f32 0.0, %v5893
        %v5895 = vpop.f32.mrb[0].mxu0
        %5896 = vmatprep.mubr.f32.mxu0 0.0
        %5897 = vmatmul.mubr.f32.gmra.mrb[0].mxu0 %v5211
        %v5898 = vpop.f32.mrb[0].mxu0
        %v5899 = vadd.f32 0.0, %v5898
        %v5900 = vpop.f32.mrb[0].mxu0
        %5901 = vmatprep.mubr.f32.mxu0 0.0
        %5902 = vmatmul.mubr.f32.gmra.mrb[0].mxu0 %v5214
        %v5903 = vpop.f32.mrb[0].mxu0
        %v5904 = vadd.f32 0.0, %v5903
        %v5905 = vpop.f32.mrb[0].mxu0
        %5906 = vmatprep.mubr.f32.mxu0 0.0
        %5907 = vmatmul.mubr.f32.gmra.mrb[0].mxu0 %v5217
        %v5908 = vpop.f32.mrb[0].mxu0
        %v5909 = vadd.f32 0.0, %v5908
        %v5910 = vpop.f32.mrb[0].mxu0
        %5911 = vmatprep.mubr.f32.mxu0 0.0
        %5912 = vmatmul.mubr.f32.gmra.mrb[0].mxu0 %v5220
        %v5913 = vpop.f32.mrb[0].mxu0
        %v5914 = vadd.f32 0.0, %v5913
        %v5915 = vpop.f32.mrb[0].mxu0
        %5916 = vmatprep.mubr.f32.mxu0 0.0
        %5917 = vmatmul.mubr.f32.gmra.mrb[0].mxu0 %v5223
        %v5918 = vpop.f32.mrb[0].mxu0
        %v5919 = vadd.f32 0.0, %v5918
        %v5920 = vpop.f32.mrb[0].mxu0
        %5921 = vmatprep.mubr.f32.mxu0 0.0
        %5922 = vmatmul.mubr.f32.gmra.mrb[0].mxu0 %v5226
        %v5923 = vpop.f32.mrb[0].mxu0
        %v5924 = vadd.f32 0.0, %v5923
        %v5925 = vpop.f32.mrb[0].mxu0
        %5926 = vmatprep.mubr.f32.mxu0 0.0
        %5927 = vmatmul.mubr.f32.gmra.mrb[0].mxu0 %v5229
        %v5928 = vpop.f32.mrb[0].mxu0
        %v5929 = vadd.f32 0.0, %v5928
        %v5930 = vpop.f32.mrb[0].mxu0
        %5931 = vmatprep.mubr.f32.mxu0 0.0
        %5932 = vmatmul.mubr.f32.gmra.mrb[0].mxu0 %v5232
        %v5933 = vpop.f32.mrb[0].mxu0
        %v5934 = vadd.f32 0.0, %v5933
        %v5935 = vpop.f32.mrb[0].mxu0
        %5936 = vmatprep.mubr.f32.mxu0 0.0
        %5937 = vmatmul.mubr.f32.gmra.mrb[0].mxu0 %v5235
        %v5938 = vpop.f32.mrb[0].mxu0
        %v5939 = vadd.f32 0.0, %v5938
        %v5940 = vpop.f32.mrb[0].mxu0
        %5941 = vdwg.mxu0
        %v5942 = vmul.f32 %v5304, %v2883
        %v5943 = vmul.f32 %v5309, %v2885
        %v5944 = vmul.f32 %v5314, %v2887
        %v5945 = vmul.f32 %v5319, %v2889
        %v5946 = vmul.f32 %v5324, %v2891
        %v5947 = vmul.f32 %v5329, %v2893
        %v5948 = vmul.f32 %v5334, %v2895
        %v5949 = vmul.f32 %v5339, %v2897
        %v5950 = vmul.f32 %v5344, %v2899
        %v5951 = vmul.f32 %v5349, %v2901
        %v5952 = vmul.f32 %v5354, %v2903
        %v5953 = vmul.f32 %v5359, %v2905
        %v5954 = vmul.f32 %v5364, %v2907
        %v5955 = vmul.f32 %v5369, %v2909
        %v5956 = vmul.f32 %v5374, %v2911
        %v5957 = vmul.f32 %v5379, %v2913
        %v5958 = vmul.f32 %v5384, %v2915
        %v5959 = vmul.f32 %v5389, %v2917
        %v5960 = vmul.f32 %v5394, %v2919
        %v5961 = vmul.f32 %v5399, %v2921
        %v5962 = vmul.f32 %v5404, %v2923
        %v5963 = vmul.f32 %v5409, %v2925
        %v5964 = vmul.f32 %v5414, %v2927
        %v5965 = vmul.f32 %v5419, %v2929
        %v5966 = vmul.f32 %v5424, %v2931
        %v5967 = vmul.f32 %v5429, %v2933
        %v5968 = vmul.f32 %v5434, %v2935
        %v5969 = vmul.f32 %v5439, %v2937
        %v5970 = vmul.f32 %v5444, %v2939
        %v5971 = vmul.f32 %v5449, %v2941
        %v5972 = vmul.f32 %v5454, %v2943
        %v5973 = vmul.f32 %v5459, %v2945
        %v5974 = vmul.f32 %v5464, %v2947
        %v5975 = vmul.f32 %v5469, %v2949
        %v5976 = vmul.f32 %v5474, %v2951
        %v5977 = vmul.f32 %v5479, %v2953
        %v5978 = vmul.f32 %v5484, %v2955
        %v5979 = vmul.f32 %v5489, %v2957
        %v5980 = vmul.f32 %v5494, %v2959
        %v5981 = vmul.f32 %v5499, %v2961
        %v5982 = vmul.f32 %v5504, %v2963
        %v5983 = vmul.f32 %v5509, %v2965
        %v5984 = vmul.f32 %v5514, %v2967
        %v5985 = vmul.f32 %v5519, %v2969
        %v5986 = vmul.f32 %v5524, %v2971
        %v5987 = vmul.f32 %v5529, %v2973
        %v5988 = vmul.f32 %v5534, %v2975
        %v5989 = vmul.f32 %v5539, %v2977
        %v5990 = vmul.f32 %v5544, %v2979
        %v5991 = vmul.f32 %v5549, %v2981
        %v5992 = vmul.f32 %v5554, %v2983
        %v5993 = vmul.f32 %v5559, %v2985
        %v5994 = vmul.f32 %v5564, %v2987
        %v5995 = vmul.f32 %v5569, %v2989
        %v5996 = vmul.f32 %v5574, %v2991
        %v5997 = vmul.f32 %v5579, %v2993
        %v5998 = vmul.f32 %v5584, %v2995
        %v5999 = vmul.f32 %v5589, %v2997
        %v6000 = vmul.f32 %v5594, %v2999
        %v6001 = vmul.f32 %v5599, %v3001
        %v6002 = vmul.f32 %v5604, %v3003
        %v6003 = vmul.f32 %v5609, %v3005
        %v6004 = vmul.f32 %v5614, %v3007
        %v6005 = vmul.f32 %v5619, %v3009
        %v6006 = vadd.f32 %v5942, %v5974
        %v6007 = vadd.f32 %v5943, %v5975
        %v6008 = vadd.f32 %v5944, %v5976
        %v6009 = vadd.f32 %v5945, %v5977
        %v6010 = vadd.f32 %v5946, %v5978
        %v6011 = vadd.f32 %v5947, %v5979
        %v6012 = vadd.f32 %v5948, %v5980
        %v6013 = vadd.f32 %v5949, %v5981
        %v6014 = vadd.f32 %v5950, %v5982
        %v6015 = vadd.f32 %v5951, %v5983
        %v6016 = vadd.f32 %v5952, %v5984
        %v6017 = vadd.f32 %v5953, %v5985
        %v6018 = vadd.f32 %v5954, %v5986
        %v6019 = vadd.f32 %v5955, %v5987
        %v6020 = vadd.f32 %v5956, %v5988
        %v6021 = vadd.f32 %v5957, %v5989
        %v6022 = vadd.f32 %v5958, %v5990
        %v6023 = vadd.f32 %v5959, %v5991
        %v6024 = vadd.f32 %v5960, %v5992
        %v6025 = vadd.f32 %v5961, %v5993
        %v6026 = vadd.f32 %v5962, %v5994
        %v6027 = vadd.f32 %v5963, %v5995
        %v6028 = vadd.f32 %v5964, %v5996
        %v6029 = vadd.f32 %v5965, %v5997
        %v6030 = vadd.f32 %v5966, %v5998
        %v6031 = vadd.f32 %v5967, %v5999
        %v6032 = vadd.f32 %v5968, %v6000
        %v6033 = vadd.f32 %v5969, %v6001
        %v6034 = vadd.f32 %v5970, %v6002
        %v6035 = vadd.f32 %v5971, %v6003
        %v6036 = vadd.f32 %v5972, %v6004
        %v6037 = vadd.f32 %v5973, %v6005
        %v6038 = vmul.f32 %v5624, %v3011
        %v6039 = vmul.f32 %v5629, %v3013
        %v6040 = vmul.f32 %v5634, %v3015
        %v6041 = vmul.f32 %v5639, %v3017
        %v6042 = vmul.f32 %v5644, %v3019
        %v6043 = vmul.f32 %v5649, %v3021
        %v6044 = vmul.f32 %v5654, %v3023
        %v6045 = vmul.f32 %v5659, %v3025
        %v6046 = vmul.f32 %v5664, %v3027
        %v6047 = vmul.f32 %v5669, %v3029
        %v6048 = vmul.f32 %v5674, %v3031
        %v6049 = vmul.f32 %v5679, %v3033
        %v6050 = vmul.f32 %v5684, %v3035
        %v6051 = vmul.f32 %v5689, %v3037
        %v6052 = vmul.f32 %v5694, %v3039
        %v6053 = vmul.f32 %v5699, %v3041
        %v6054 = vmul.f32 %v5704, %v3043
        %v6055 = vmul.f32 %v5709, %v3045
        %v6056 = vmul.f32 %v5714, %v3047
        %v6057 = vmul.f32 %v5719, %v3049
        %v6058 = vmul.f32 %v5724, %v3051
        %v6059 = vmul.f32 %v5729, %v3053
        %v6060 = vmul.f32 %v5734, %v3055
        %v6061 = vmul.f32 %v5739, %v3057
        %v6062 = vmul.f32 %v5744, %v3059
        %v6063 = vmul.f32 %v5749, %v3061
        %v6064 = vmul.f32 %v5754, %v3063
        %v6065 = vmul.f32 %v5759, %v3065
        %v6066 = vmul.f32 %v5764, %v3067
        %v6067 = vmul.f32 %v5769, %v3069
        %v6068 = vmul.f32 %v5774, %v3071
        %v6069 = vmul.f32 %v5779, %v3073
        %v6070 = vadd.f32 %v6006, %v6038
        %v6071 = vadd.f32 %v6007, %v6039
        %v6072 = vadd.f32 %v6008, %v6040
        %v6073 = vadd.f32 %v6009, %v6041
        %v6074 = vadd.f32 %v6010, %v6042
        %v6075 = vadd.f32 %v6011, %v6043
        %v6076 = vadd.f32 %v6012, %v6044
        %v6077 = vadd.f32 %v6013, %v6045
        %v6078 = vadd.f32 %v6014, %v6046
        %v6079 = vadd.f32 %v6015, %v6047
        %v6080 = vadd.f32 %v6016, %v6048
        %v6081 = vadd.f32 %v6017, %v6049
        %v6082 = vadd.f32 %v6018, %v6050
        %v6083 = vadd.f32 %v6019, %v6051
        %v6084 = vadd.f32 %v6020, %v6052
        %v6085 = vadd.f32 %v6021, %v6053
        %v6086 = vadd.f32 %v6022, %v6054
        %v6087 = vadd.f32 %v6023, %v6055
        %v6088 = vadd.f32 %v6024, %v6056
        %v6089 = vadd.f32 %v6025, %v6057
        %v6090 = vadd.f32 %v6026, %v6058
        %v6091 = vadd.f32 %v6027, %v6059
        %v6092 = vadd.f32 %v6028, %v6060
        %v6093 = vadd.f32 %v6029, %v6061
        %v6094 = vadd.f32 %v6030, %v6062
        %v6095 = vadd.f32 %v6031, %v6063
        %v6096 = vadd.f32 %v6032, %v6064
        %v6097 = vadd.f32 %v6033, %v6065
        %v6098 = vadd.f32 %v6034, %v6066
        %v6099 = vadd.f32 %v6035, %v6067
        %v6100 = vadd.f32 %v6036, %v6068
        %v6101 = vadd.f32 %v6037, %v6069
        %v6102 = vmul.f32 %v5784, %v3075
        %v6103 = vmul.f32 %v5789, %v3077
        %v6104 = vmul.f32 %v5794, %v3079
        %v6105 = vmul.f32 %v5799, %v3081
        %v6106 = vmul.f32 %v5804, %v3083
        %v6107 = vmul.f32 %v5809, %v3085
        %v6108 = vmul.f32 %v5814, %v3087
        %v6109 = vmul.f32 %v5819, %v3089
        %v6110 = vmul.f32 %v5824, %v3091
        %v6111 = vmul.f32 %v5829, %v3093
        %v6112 = vmul.f32 %v5834, %v3095
        %v6113 = vmul.f32 %v5839, %v3097
        %v6114 = vmul.f32 %v5844, %v3099
        %v6115 = vmul.f32 %v5849, %v3101
        %v6116 = vmul.f32 %v5854, %v3103
        %v6117 = vmul.f32 %v5859, %v3105
        %v6118 = vmul.f32 %v5864, %v3107
        %v6119 = vmul.f32 %v5869, %v3109
        %v6120 = vmul.f32 %v5874, %v3111
        %v6121 = vmul.f32 %v5879, %v3113
        %v6122 = vmul.f32 %v5884, %v3115
        %v6123 = vmul.f32 %v5889, %v3117
        %v6124 = vmul.f32 %v5894, %v3119
        %v6125 = vmul.f32 %v5899, %v3121
        %v6126 = vmul.f32 %v5904, %v3123
        %v6127 = vmul.f32 %v5909, %v3125
        %v6128 = vmul.f32 %v5914, %v3127
        %v6129 = vmul.f32 %v5919, %v3129
        %v6130 = vmul.f32 %v5924, %v3131
        %v6131 = vmul.f32 %v5929, %v3133
        %v6132 = vmul.f32 %v5934, %v3135
        %v6133 = vmul.f32 %v5939, %v3137
        %v6134 = vadd.f32 %v6070, %v6102
        %v6135 = vadd.f32 %v6071, %v6103
        %v6136 = vadd.f32 %v6072, %v6104
        %v6137 = vadd.f32 %v6073, %v6105
        %v6138 = vadd.f32 %v6074, %v6106
        %v6139 = vadd.f32 %v6075, %v6107
        %v6140 = vadd.f32 %v6076, %v6108
        %v6141 = vadd.f32 %v6077, %v6109
        %v6142 = vadd.f32 %v6078, %v6110
        %v6143 = vadd.f32 %v6079, %v6111
        %v6144 = vadd.f32 %v6080, %v6112
        %v6145 = vadd.f32 %v6081, %v6113
        %v6146 = vadd.f32 %v6082, %v6114
        %v6147 = vadd.f32 %v6083, %v6115
        %v6148 = vadd.f32 %v6084, %v6116
        %v6149 = vadd.f32 %v6085, %v6117
        %v6150 = vadd.f32 %v6086, %v6118
        %v6151 = vadd.f32 %v6087, %v6119
        %v6152 = vadd.f32 %v6088, %v6120
        %v6153 = vadd.f32 %v6089, %v6121
        %v6154 = vadd.f32 %v6090, %v6122
        %v6155 = vadd.f32 %v6091, %v6123
        %v6156 = vadd.f32 %v6092, %v6124
        %v6157 = vadd.f32 %v6093, %v6125
        %v6158 = vadd.f32 %v6094, %v6126
        %v6159 = vadd.f32 %v6095, %v6127
        %v6160 = vadd.f32 %v6096, %v6128
        %v6161 = vadd.f32 %v6097, %v6129
        %v6162 = vadd.f32 %v6098, %v6130
        %v6163 = vadd.f32 %v6099, %v6131
        %v6164 = vadd.f32 %v6100, %v6132
        %v6165 = vadd.f32 %v6101, %v6133
        %v6166 = vpack.c.bf16 %v6135, %v6134
        %v6167 = vpack.c.bf16 %v6137, %v6136
        %v6168 = vpack.c.bf16 %v6139, %v6138
        %v6169 = vpack.c.bf16 %v6141, %v6140
        %v6170 = vpack.c.bf16 %v6143, %v6142
        %v6171 = vpack.c.bf16 %v6145, %v6144
        %v6172 = vpack.c.bf16 %v6147, %v6146
        %v6173 = vpack.c.bf16 %v6149, %v6148
        %v6174 = vpack.c.bf16 %v6151, %v6150
        %v6175 = vpack.c.bf16 %v6153, %v6152
        %v6176 = vpack.c.bf16 %v6155, %v6154
        %v6177 = vpack.c.bf16 %v6157, %v6156
        %v6178 = vpack.c.bf16 %v6159, %v6158
        %v6179 = vpack.c.bf16 %v6161, %v6160
        %v6180 = vpack.c.bf16 %v6163, %v6162
        %v6181 = vpack.c.bf16 %v6165, %v6164
        %v6182 = vld [vmem:[#allocation14] sm:$0xf]
        %v6183 = vld [vmem:[#allocation14 + $0x4] sm:$0xf]
        %v6184 = vld [vmem:[#allocation14 + $0x8] sm:$0xf]
        %v6185 = vld [vmem:[#allocation14 + $0xc] sm:$0xf]
        %v6186 = vld [vmem:[#allocation14 + $0x10] sm:$0xf]
        %v6187 = vld [vmem:[#allocation14 + $0x14] sm:$0xf]
        %v6188 = vld [vmem:[#allocation14 + $0x18] sm:$0xf]
        %v6189 = vld [vmem:[#allocation14 + $0x1c] sm:$0xf]
        %v6190 = vld [vmem:[#allocation14 + $0x20] sm:$0xf]
        %v6191 = vld [vmem:[#allocation14 + $0x24] sm:$0xf]
        %v6192 = vld [vmem:[#allocation14 + $0x28] sm:$0xf]
        %v6193 = vld [vmem:[#allocation14 + $0x2c] sm:$0xf]
        %v6194 = vld [vmem:[#allocation14 + $0x30] sm:$0xf]
        %v6195 = vld [vmem:[#allocation14 + $0x34] sm:$0xf]
        %v6196 = vld [vmem:[#allocation14 + $0x38] sm:$0xf]
        %v6197 = vld [vmem:[#allocation14 + $0x3c] sm:$0xf]
        %v6198 = vld [vmem:[#allocation16] sm:$0x1]
        %v6200 = vlaneseq
        %v6201 = vshrl.u32 %v6200, 7
        %v6202 = vsub.s32 0, %v6201
        %v6203 = vrot.slane %v6198, %v6202
        %v6221 = vunpack.c.l.b16 %v6182
        %v6222 = vunpack.c.l.b16 %v6183
        %v6223 = vunpack.c.l.b16 %v6184
        %v6224 = vunpack.c.l.b16 %v6185
        %v6225 = vunpack.c.l.b16 %v6186
        %v6226 = vunpack.c.l.b16 %v6187
        %v6227 = vunpack.c.l.b16 %v6188
        %v6228 = vunpack.c.l.b16 %v6189
        %v6229 = vunpack.c.l.b16 %v6190
        %v6230 = vunpack.c.l.b16 %v6191
        %v6231 = vunpack.c.l.b16 %v6192
        %v6232 = vunpack.c.l.b16 %v6193
        %v6233 = vunpack.c.l.b16 %v6194
        %v6234 = vunpack.c.l.b16 %v6195
        %v6235 = vunpack.c.l.b16 %v6196
        %v6236 = vunpack.c.l.b16 %v6197
        %v6237 = vpack.c.b16 %v6222, %v6221
        %v6238 = vpack.c.b16 %v6224, %v6223
        %v6239 = vpack.c.b16 %v6226, %v6225
        %v6240 = vpack.c.b16 %v6228, %v6227
        %v6241 = vpack.c.b16 %v6230, %v6229
        %v6242 = vpack.c.b16 %v6232, %v6231
        %v6243 = vpack.c.b16 %v6234, %v6233
        %v6244 = vpack.c.b16 %v6236, %v6235
        %6253 = vmatprep.subr.bf16.mxu0 0
        %6254 = vmatpush1.bf16.msra.mxu0 %v6237
        %6255 = vmatprep.subr.bf16.mxu0 0
        %6256 = vmatpush1.bf16.msra.mxu0 %v6238
        %6257 = vmatprep.subr.bf16.mxu0 0
        %6258 = vmatpush1.bf16.msra.mxu0 %v6239
        %6259 = vmatprep.subr.bf16.mxu0 0
        %6260 = vmatpush1.bf16.msra.mxu0 %v6240
        %6261 = vmatprep.subr.bf16.mxu0 0
        %6262 = vmatpush1.bf16.msra.mxu0 %v6241
        %6263 = vmatprep.subr.bf16.mxu0 0
        %6264 = vmatpush1.bf16.msra.mxu0 %v6242
        %6265 = vmatprep.subr.bf16.mxu0 0
        %6266 = vmatpush1.bf16.msra.mxu0 %v6243
        %6267 = vmatprep.subr.bf16.mxu0 0
        %6268 = vmatpush1.bf16.msra.mxu0 %v6244
        %6269 = vmatprep.subr.bf16.mxu0 0
        %6270 = vmatpush1.bf16.msra.mxu0 0
        %6271 = vmatprep.subr.bf16.mxu0 0
        %6272 = vmatpush1.bf16.msra.mxu0 0
        %6273 = vmatprep.subr.bf16.mxu0 0
        %6274 = vmatpush1.bf16.msra.mxu0 0
        %6275 = vmatprep.subr.bf16.mxu0 0
        %6276 = vmatpush1.bf16.msra.mxu0 0
        %6277 = vmatprep.subr.bf16.mxu0 0
        %6278 = vmatpush1.bf16.msra.mxu0 0
        %6279 = vmatprep.subr.bf16.mxu0 0
        %6280 = vmatpush1.bf16.msra.mxu0 0
        %6281 = vmatprep.subr.bf16.mxu0 0
        %6282 = vmatpush1.bf16.msra.mxu0 0
        %6283 = vmatprep.subr.bf16.mxu0 0
        %6284 = vmatpush1.bf16.msra.mxu0 0
        %6285 = vmatprep.mubr.bf16.mxu0 0
        %6286 = vmatmul.mubr.bf16.gmra.mrb[0].mxu0 %v6166
        %v6287 = vpop.f32.mrb[0].mxu0
        %v6288 = vadd.f32 %v6203, %v6287
        %v6289 = vpop.f32.mrb[0].mxu0
        %v6290 = vpop.f32.mrb[0].mxu0
        %v6291 = vadd.f32 %v6203, %v6290
        %v6292 = vpop.f32.mrb[0].mxu0
        %6293 = vmatprep.mubr.bf16.mxu0 0
        %6294 = vmatmul.mubr.bf16.gmra.mrb[0].mxu0 %v6167
        %v6295 = vpop.f32.mrb[0].mxu0
        %v6296 = vadd.f32 %v6203, %v6295
        %v6297 = vpop.f32.mrb[0].mxu0
        %v6298 = vpop.f32.mrb[0].mxu0
        %v6299 = vadd.f32 %v6203, %v6298
        %v6300 = vpop.f32.mrb[0].mxu0
        %6301 = vmatprep.mubr.bf16.mxu0 0
        %6302 = vmatmul.mubr.bf16.gmra.mrb[0].mxu0 %v6168
        %v6303 = vpop.f32.mrb[0].mxu0
        %v6304 = vadd.f32 %v6203, %v6303
        %v6305 = vpop.f32.mrb[0].mxu0
        %v6306 = vpop.f32.mrb[0].mxu0
        %v6307 = vadd.f32 %v6203, %v6306
        %v6308 = vpop.f32.mrb[0].mxu0
        %6309 = vmatprep.mubr.bf16.mxu0 0
        %6310 = vmatmul.mubr.bf16.gmra.mrb[0].mxu0 %v6169
        %v6311 = vpop.f32.mrb[0].mxu0
        %v6312 = vadd.f32 %v6203, %v6311
        %v6313 = vpop.f32.mrb[0].mxu0
        %v6314 = vpop.f32.mrb[0].mxu0
        %v6315 = vadd.f32 %v6203, %v6314
        %v6316 = vpop.f32.mrb[0].mxu0
        %6317 = vmatprep.mubr.bf16.mxu0 0
        %6318 = vmatmul.mubr.bf16.gmra.mrb[0].mxu0 %v6170
        %v6319 = vpop.f32.mrb[0].mxu0
        %v6320 = vadd.f32 %v6203, %v6319
        %v6321 = vpop.f32.mrb[0].mxu0
        %v6322 = vpop.f32.mrb[0].mxu0
        %v6323 = vadd.f32 %v6203, %v6322
        %v6324 = vpop.f32.mrb[0].mxu0
        %6325 = vmatprep.mubr.bf16.mxu0 0
        %6326 = vmatmul.mubr.bf16.gmra.mrb[0].mxu0 %v6171
        %v6327 = vpop.f32.mrb[0].mxu0
        %v6328 = vadd.f32 %v6203, %v6327
        %v6329 = vpop.f32.mrb[0].mxu0
        %v6330 = vpop.f32.mrb[0].mxu0
        %v6331 = vadd.f32 %v6203, %v6330
        %v6332 = vpop.f32.mrb[0].mxu0
        %6333 = vmatprep.mubr.bf16.mxu0 0
        %6334 = vmatmul.mubr.bf16.gmra.mrb[0].mxu0 %v6172
        %v6335 = vpop.f32.mrb[0].mxu0
        %v6336 = vadd.f32 %v6203, %v6335
        %v6337 = vpop.f32.mrb[0].mxu0
        %v6338 = vpop.f32.mrb[0].mxu0
        %v6339 = vadd.f32 %v6203, %v6338
        %v6340 = vpop.f32.mrb[0].mxu0
        %6341 = vmatprep.mubr.bf16.mxu0 0
        %6342 = vmatmul.mubr.bf16.gmra.mrb[0].mxu0 %v6173
        %v6343 = vpop.f32.mrb[0].mxu0
        %v6344 = vadd.f32 %v6203, %v6343
        %v6345 = vpop.f32.mrb[0].mxu0
        %v6346 = vpop.f32.mrb[0].mxu0
        %v6347 = vadd.f32 %v6203, %v6346
        %v6348 = vpop.f32.mrb[0].mxu0
        %6349 = vmatprep.mubr.bf16.mxu0 0
        %6350 = vmatmul.mubr.bf16.gmra.mrb[0].mxu0 %v6174
        %v6351 = vpop.f32.mrb[0].mxu0
        %v6352 = vadd.f32 %v6203, %v6351
        %v6353 = vpop.f32.mrb[0].mxu0
        %v6354 = vpop.f32.mrb[0].mxu0
        %v6355 = vadd.f32 %v6203, %v6354
        %v6356 = vpop.f32.mrb[0].mxu0
        %6357 = vmatprep.mubr.bf16.mxu0 0
        %6358 = vmatmul.mubr.bf16.gmra.mrb[0].mxu0 %v6175
        %v6359 = vpop.f32.mrb[0].mxu0
        %v6360 = vadd.f32 %v6203, %v6359
        %v6361 = vpop.f32.mrb[0].mxu0
        %v6362 = vpop.f32.mrb[0].mxu0
        %v6363 = vadd.f32 %v6203, %v6362
        %v6364 = vpop.f32.mrb[0].mxu0
        %6365 = vmatprep.mubr.bf16.mxu0 0
        %6366 = vmatmul.mubr.bf16.gmra.mrb[0].mxu0 %v6176
        %v6367 = vpop.f32.mrb[0].mxu0
        %v6368 = vadd.f32 %v6203, %v6367
        %v6369 = vpop.f32.mrb[0].mxu0
        %v6370 = vpop.f32.mrb[0].mxu0
        %v6371 = vadd.f32 %v6203, %v6370
        %v6372 = vpop.f32.mrb[0].mxu0
        %6373 = vmatprep.mubr.bf16.mxu0 0
        %6374 = vmatmul.mubr.bf16.gmra.mrb[0].mxu0 %v6177
        %v6375 = vpop.f32.mrb[0].mxu0
        %v6376 = vadd.f32 %v6203, %v6375
        %v6377 = vpop.f32.mrb[0].mxu0
        %v6378 = vpop.f32.mrb[0].mxu0
        %v6379 = vadd.f32 %v6203, %v6378
        %v6380 = vpop.f32.mrb[0].mxu0
        %6381 = vmatprep.mubr.bf16.mxu0 0
        %6382 = vmatmul.mubr.bf16.gmra.mrb[0].mxu0 %v6178
        %v6383 = vpop.f32.mrb[0].mxu0
        %v6384 = vadd.f32 %v6203, %v6383
        %v6385 = vpop.f32.mrb[0].mxu0
        %v6386 = vpop.f32.mrb[0].mxu0
        %v6387 = vadd.f32 %v6203, %v6386
        %v6388 = vpop.f32.mrb[0].mxu0
        %6389 = vmatprep.mubr.bf16.mxu0 0
        %6390 = vmatmul.mubr.bf16.gmra.mrb[0].mxu0 %v6179
        %v6391 = vpop.f32.mrb[0].mxu0
        %v6392 = vadd.f32 %v6203, %v6391
        %v6393 = vpop.f32.mrb[0].mxu0
        %v6394 = vpop.f32.mrb[0].mxu0
        %v6395 = vadd.f32 %v6203, %v6394
        %v6396 = vpop.f32.mrb[0].mxu0
        %6397 = vmatprep.mubr.bf16.mxu0 0
        %6398 = vmatmul.mubr.bf16.gmra.mrb[0].mxu0 %v6180
        %v6399 = vpop.f32.mrb[0].mxu0
        %v6400 = vadd.f32 %v6203, %v6399
        %v6401 = vpop.f32.mrb[0].mxu0
        %v6402 = vpop.f32.mrb[0].mxu0
        %v6403 = vadd.f32 %v6203, %v6402
        %v6404 = vpop.f32.mrb[0].mxu0
        %6405 = vmatprep.mubr.bf16.mxu0 0
        %6406 = vmatmul.mubr.bf16.gmra.mrb[0].mxu0 %v6181
        %v6407 = vpop.f32.mrb[0].mxu0
        %v6408 = vadd.f32 %v6203, %v6407
        %v6409 = vpop.f32.mrb[0].mxu0
        %v6410 = vpop.f32.mrb[0].mxu0
        %v6411 = vadd.f32 %v6203, %v6410
        %v6412 = vpop.f32.mrb[0].mxu0
        %6413 = vdwg.mxu0
        %v6414 = vadd.f32 %v6288, %v1179
        %v6415 = vadd.f32 %v6291, %v1182
        %v6416 = vadd.f32 %v6296, %v1187
        %v6417 = vadd.f32 %v6299, %v1190
        %v6418 = vadd.f32 %v6304, %v1195
        %v6419 = vadd.f32 %v6307, %v1198
        %v6420 = vadd.f32 %v6312, %v1203
        %v6421 = vadd.f32 %v6315, %v1206
        %v6422 = vadd.f32 %v6320, %v1211
        %v6423 = vadd.f32 %v6323, %v1214
        %v6424 = vadd.f32 %v6328, %v1219
        %v6425 = vadd.f32 %v6331, %v1222
        %v6426 = vadd.f32 %v6336, %v1227
        %v6427 = vadd.f32 %v6339, %v1230
        %v6428 = vadd.f32 %v6344, %v1235
        %v6429 = vadd.f32 %v6347, %v1238
        %v6430 = vadd.f32 %v6352, %v1243
        %v6431 = vadd.f32 %v6355, %v1246
        %v6432 = vadd.f32 %v6360, %v1251
        %v6433 = vadd.f32 %v6363, %v1254
        %v6434 = vadd.f32 %v6368, %v1259
        %v6435 = vadd.f32 %v6371, %v1262
        %v6436 = vadd.f32 %v6376, %v1267
        %v6437 = vadd.f32 %v6379, %v1270
        %v6438 = vadd.f32 %v6384, %v1275
        %v6439 = vadd.f32 %v6387, %v1278
        %v6440 = vadd.f32 %v6392, %v1283
        %v6441 = vadd.f32 %v6395, %v1286
        %v6442 = vadd.f32 %v6400, %v1291
        %v6443 = vadd.f32 %v6403, %v1294
        %v6444 = vadd.f32 %v6408, %v1299
        %v6445 = vadd.f32 %v6411, %v1302
        %6446 = vadd.xlane.f32.xlu0 %v6414
        %v6447 = vpop.xlane.xlu0 %6446
        %6448 = vadd.xlane.f32.xlu0 %v6415
        %v6449 = vpop.xlane.xlu0 %6448
        %6450 = vadd.xlane.f32.xlu0 %v6416
        %v6451 = vpop.xlane.xlu0 %6450
        %6452 = vadd.xlane.f32.xlu0 %v6417
        %v6453 = vpop.xlane.xlu0 %6452
        %6454 = vadd.xlane.f32.xlu0 %v6418
        %v6455 = vpop.xlane.xlu0 %6454
        %6456 = vadd.xlane.f32.xlu0 %v6419
        %v6457 = vpop.xlane.xlu0 %6456
        %6458 = vadd.xlane.f32.xlu0 %v6420
        %v6459 = vpop.xlane.xlu0 %6458
        %6460 = vadd.xlane.f32.xlu0 %v6421
        %v6461 = vpop.xlane.xlu0 %6460
        %6462 = vadd.xlane.f32.xlu0 %v6422
        %v6463 = vpop.xlane.xlu0 %6462
        %6464 = vadd.xlane.f32.xlu0 %v6423
        %v6465 = vpop.xlane.xlu0 %6464
        %6466 = vadd.xlane.f32.xlu0 %v6424
        %v6467 = vpop.xlane.xlu0 %6466
        %6468 = vadd.xlane.f32.xlu0 %v6425
        %v6469 = vpop.xlane.xlu0 %6468
        %6470 = vadd.xlane.f32.xlu0 %v6426
        %v6471 = vpop.xlane.xlu0 %6470
        %6472 = vadd.xlane.f32.xlu0 %v6427
        %v6473 = vpop.xlane.xlu0 %6472
        %6474 = vadd.xlane.f32.xlu0 %v6428
        %v6475 = vpop.xlane.xlu0 %6474
        %6476 = vadd.xlane.f32.xlu0 %v6429
        %v6477 = vpop.xlane.xlu0 %6476
        %6478 = vadd.xlane.f32.xlu0 %v6430
        %v6479 = vpop.xlane.xlu0 %6478
        %6480 = vadd.xlane.f32.xlu0 %v6431
        %v6481 = vpop.xlane.xlu0 %6480
        %6482 = vadd.xlane.f32.xlu0 %v6432
        %v6483 = vpop.xlane.xlu0 %6482
        %6484 = vadd.xlane.f32.xlu0 %v6433
        %v6485 = vpop.xlane.xlu0 %6484
        %6486 = vadd.xlane.f32.xlu0 %v6434
        %v6487 = vpop.xlane.xlu0 %6486
        %6488 = vadd.xlane.f32.xlu0 %v6435
        %v6489 = vpop.xlane.xlu0 %6488
        %6490 = vadd.xlane.f32.xlu0 %v6436
        %v6491 = vpop.xlane.xlu0 %6490
        %6492 = vadd.xlane.f32.xlu0 %v6437
        %v6493 = vpop.xlane.xlu0 %6492
        %6494 = vadd.xlane.f32.xlu0 %v6438
        %v6495 = vpop.xlane.xlu0 %6494
        %6496 = vadd.xlane.f32.xlu0 %v6439
        %v6497 = vpop.xlane.xlu0 %6496
        %6498 = vadd.xlane.f32.xlu0 %v6440
        %v6499 = vpop.xlane.xlu0 %6498
        %6500 = vadd.xlane.f32.xlu0 %v6441
        %v6501 = vpop.xlane.xlu0 %6500
        %6502 = vadd.xlane.f32.xlu0 %v6442
        %v6503 = vpop.xlane.xlu0 %6502
        %6504 = vadd.xlane.f32.xlu0 %v6443
        %v6505 = vpop.xlane.xlu0 %6504
        %6506 = vadd.xlane.f32.xlu0 %v6444
        %v6507 = vpop.xlane.xlu0 %6506
        %6508 = vadd.xlane.f32.xlu0 %v6445
        %v6509 = vpop.xlane.xlu0 %6508
        %v6510 = vrcp.pop 128.0
        %v6511 = vmul.f32 %v6447, %v6510
        %v6512 = vmul.f32 %v6449, %v6510
        %v6513 = vmul.f32 %v6451, %v6510
        %v6514 = vmul.f32 %v6453, %v6510
        %v6515 = vmul.f32 %v6455, %v6510
        %v6516 = vmul.f32 %v6457, %v6510
        %v6517 = vmul.f32 %v6459, %v6510
        %v6518 = vmul.f32 %v6461, %v6510
        %v6519 = vmul.f32 %v6463, %v6510
        %v6520 = vmul.f32 %v6465, %v6510
        %v6521 = vmul.f32 %v6467, %v6510
        %v6522 = vmul.f32 %v6469, %v6510
        %v6523 = vmul.f32 %v6471, %v6510
        %v6524 = vmul.f32 %v6473, %v6510
        %v6525 = vmul.f32 %v6475, %v6510
        %v6526 = vmul.f32 %v6477, %v6510
        %v6527 = vmul.f32 %v6479, %v6510
        %v6528 = vmul.f32 %v6481, %v6510
        %v6529 = vmul.f32 %v6483, %v6510
        %v6530 = vmul.f32 %v6485, %v6510
        %v6531 = vmul.f32 %v6487, %v6510
        %v6532 = vmul.f32 %v6489, %v6510
        %v6533 = vmul.f32 %v6491, %v6510
        %v6534 = vmul.f32 %v6493, %v6510
        %v6535 = vmul.f32 %v6495, %v6510
        %v6536 = vmul.f32 %v6497, %v6510
        %v6537 = vmul.f32 %v6499, %v6510
        %v6538 = vmul.f32 %v6501, %v6510
        %v6539 = vmul.f32 %v6503, %v6510
        %v6540 = vmul.f32 %v6505, %v6510
        %v6541 = vmul.f32 %v6507, %v6510
        %v6542 = vmul.f32 %v6509, %v6510
        %v6543 = vsub.f32 %v6414, %v6511
        %v6544 = vsub.f32 %v6415, %v6512
        %v6545 = vsub.f32 %v6416, %v6513
        %v6546 = vsub.f32 %v6417, %v6514
        %v6547 = vsub.f32 %v6418, %v6515
        %v6548 = vsub.f32 %v6419, %v6516
        %v6549 = vsub.f32 %v6420, %v6517
        %v6550 = vsub.f32 %v6421, %v6518
        %v6551 = vsub.f32 %v6422, %v6519
        %v6552 = vsub.f32 %v6423, %v6520
        %v6553 = vsub.f32 %v6424, %v6521
        %v6554 = vsub.f32 %v6425, %v6522
        %v6555 = vsub.f32 %v6426, %v6523
        %v6556 = vsub.f32 %v6427, %v6524
        %v6557 = vsub.f32 %v6428, %v6525
        %v6558 = vsub.f32 %v6429, %v6526
        %v6559 = vsub.f32 %v6430, %v6527
        %v6560 = vsub.f32 %v6431, %v6528
        %v6561 = vsub.f32 %v6432, %v6529
        %v6562 = vsub.f32 %v6433, %v6530
        %v6563 = vsub.f32 %v6434, %v6531
        %v6564 = vsub.f32 %v6435, %v6532
        %v6565 = vsub.f32 %v6436, %v6533
        %v6566 = vsub.f32 %v6437, %v6534
        %v6567 = vsub.f32 %v6438, %v6535
        %v6568 = vsub.f32 %v6439, %v6536
        %v6569 = vsub.f32 %v6440, %v6537
        %v6570 = vsub.f32 %v6441, %v6538
        %v6571 = vsub.f32 %v6442, %v6539
        %v6572 = vsub.f32 %v6443, %v6540
        %v6573 = vsub.f32 %v6444, %v6541
        %v6574 = vsub.f32 %v6445, %v6542
        %v6575 = vmul.f32 %v6543, %v6543
        %v6576 = vmul.f32 %v6544, %v6544
        %v6577 = vmul.f32 %v6545, %v6545
        %v6578 = vmul.f32 %v6546, %v6546
        %v6579 = vmul.f32 %v6547, %v6547
        %v6580 = vmul.f32 %v6548, %v6548
        %v6581 = vmul.f32 %v6549, %v6549
        %v6582 = vmul.f32 %v6550, %v6550
        %v6583 = vmul.f32 %v6551, %v6551
        %v6584 = vmul.f32 %v6552, %v6552
        %v6585 = vmul.f32 %v6553, %v6553
        %v6586 = vmul.f32 %v6554, %v6554
        %v6587 = vmul.f32 %v6555, %v6555
        %v6588 = vmul.f32 %v6556, %v6556
        %v6589 = vmul.f32 %v6557, %v6557
        %v6590 = vmul.f32 %v6558, %v6558
        %v6591 = vmul.f32 %v6559, %v6559
        %v6592 = vmul.f32 %v6560, %v6560
        %v6593 = vmul.f32 %v6561, %v6561
        %v6594 = vmul.f32 %v6562, %v6562
        %v6595 = vmul.f32 %v6563, %v6563
        %v6596 = vmul.f32 %v6564, %v6564
        %v6597 = vmul.f32 %v6565, %v6565
        %v6598 = vmul.f32 %v6566, %v6566
        %v6599 = vmul.f32 %v6567, %v6567
        %v6600 = vmul.f32 %v6568, %v6568
        %v6601 = vmul.f32 %v6569, %v6569
        %v6602 = vmul.f32 %v6570, %v6570
        %v6603 = vmul.f32 %v6571, %v6571
        %v6604 = vmul.f32 %v6572, %v6572
        %v6605 = vmul.f32 %v6573, %v6573
        %v6606 = vmul.f32 %v6574, %v6574
        %6607 = vadd.xlane.f32.xlu0 %v6575
        %v6608 = vpop.xlane.xlu0 %6607
        %6609 = vadd.xlane.f32.xlu0 %v6576
        %v6610 = vpop.xlane.xlu0 %6609
        %6611 = vadd.xlane.f32.xlu0 %v6577
        %v6612 = vpop.xlane.xlu0 %6611
        %6613 = vadd.xlane.f32.xlu0 %v6578
        %v6614 = vpop.xlane.xlu0 %6613
        %6615 = vadd.xlane.f32.xlu0 %v6579
        %v6616 = vpop.xlane.xlu0 %6615
        %6617 = vadd.xlane.f32.xlu0 %v6580
        %v6618 = vpop.xlane.xlu0 %6617
        %6619 = vadd.xlane.f32.xlu0 %v6581
        %v6620 = vpop.xlane.xlu0 %6619
        %6621 = vadd.xlane.f32.xlu0 %v6582
        %v6622 = vpop.xlane.xlu0 %6621
        %6623 = vadd.xlane.f32.xlu0 %v6583
        %v6624 = vpop.xlane.xlu0 %6623
        %6625 = vadd.xlane.f32.xlu0 %v6584
        %v6626 = vpop.xlane.xlu0 %6625
        %6627 = vadd.xlane.f32.xlu0 %v6585
        %v6628 = vpop.xlane.xlu0 %6627
        %6629 = vadd.xlane.f32.xlu0 %v6586
        %v6630 = vpop.xlane.xlu0 %6629
        %6631 = vadd.xlane.f32.xlu0 %v6587
        %v6632 = vpop.xlane.xlu0 %6631
        %6633 = vadd.xlane.f32.xlu0 %v6588
        %v6634 = vpop.xlane.xlu0 %6633
        %6635 = vadd.xlane.f32.xlu0 %v6589
        %v6636 = vpop.xlane.xlu0 %6635
        %6637 = vadd.xlane.f32.xlu0 %v6590
        %v6638 = vpop.xlane.xlu0 %6637
        %6639 = vadd.xlane.f32.xlu0 %v6591
        %v6640 = vpop.xlane.xlu0 %6639
        %6641 = vadd.xlane.f32.xlu0 %v6592
        %v6642 = vpop.xlane.xlu0 %6641
        %6643 = vadd.xlane.f32.xlu0 %v6593
        %v6644 = vpop.xlane.xlu0 %6643
        %6645 = vadd.xlane.f32.xlu0 %v6594
        %v6646 = vpop.xlane.xlu0 %6645
        %6647 = vadd.xlane.f32.xlu0 %v6595
        %v6648 = vpop.xlane.xlu0 %6647
        %6649 = vadd.xlane.f32.xlu0 %v6596
        %v6650 = vpop.xlane.xlu0 %6649
        %6651 = vadd.xlane.f32.xlu0 %v6597
        %v6652 = vpop.xlane.xlu0 %6651
        %6653 = vadd.xlane.f32.xlu0 %v6598
        %v6654 = vpop.xlane.xlu0 %6653
        %6655 = vadd.xlane.f32.xlu0 %v6599
        %v6656 = vpop.xlane.xlu0 %6655
        %6657 = vadd.xlane.f32.xlu0 %v6600
        %v6658 = vpop.xlane.xlu0 %6657
        %6659 = vadd.xlane.f32.xlu0 %v6601
        %v6660 = vpop.xlane.xlu0 %6659
        %6661 = vadd.xlane.f32.xlu0 %v6602
        %v6662 = vpop.xlane.xlu0 %6661
        %6663 = vadd.xlane.f32.xlu0 %v6603
        %v6664 = vpop.xlane.xlu0 %6663
        %6665 = vadd.xlane.f32.xlu0 %v6604
        %v6666 = vpop.xlane.xlu0 %6665
        %6667 = vadd.xlane.f32.xlu0 %v6605
        %v6668 = vpop.xlane.xlu0 %6667
        %6669 = vadd.xlane.f32.xlu0 %v6606
        %v6670 = vpop.xlane.xlu0 %6669
        %v6671 = vmul.f32 %v6608, %v6510
        %v6672 = vmul.f32 %v6610, %v6510
        %v6673 = vmul.f32 %v6612, %v6510
        %v6674 = vmul.f32 %v6614, %v6510
        %v6675 = vmul.f32 %v6616, %v6510
        %v6676 = vmul.f32 %v6618, %v6510
        %v6677 = vmul.f32 %v6620, %v6510
        %v6678 = vmul.f32 %v6622, %v6510
        %v6679 = vmul.f32 %v6624, %v6510
        %v6680 = vmul.f32 %v6626, %v6510
        %v6681 = vmul.f32 %v6628, %v6510
        %v6682 = vmul.f32 %v6630, %v6510
        %v6683 = vmul.f32 %v6632, %v6510
        %v6684 = vmul.f32 %v6634, %v6510
        %v6685 = vmul.f32 %v6636, %v6510
        %v6686 = vmul.f32 %v6638, %v6510
        %v6687 = vmul.f32 %v6640, %v6510
        %v6688 = vmul.f32 %v6642, %v6510
        %v6689 = vmul.f32 %v6644, %v6510
        %v6690 = vmul.f32 %v6646, %v6510
        %v6691 = vmul.f32 %v6648, %v6510
        %v6692 = vmul.f32 %v6650, %v6510
        %v6693 = vmul.f32 %v6652, %v6510
        %v6694 = vmul.f32 %v6654, %v6510
        %v6695 = vmul.f32 %v6656, %v6510
        %v6696 = vmul.f32 %v6658, %v6510
        %v6697 = vmul.f32 %v6660, %v6510
        %v6698 = vmul.f32 %v6662, %v6510
        %v6699 = vmul.f32 %v6664, %v6510
        %v6700 = vmul.f32 %v6666, %v6510
        %v6701 = vmul.f32 %v6668, %v6510
        %v6702 = vmul.f32 %v6670, %v6510
        %v6703 = vadd.f32 %v6671, 1e-05
        %v6704 = vadd.f32 %v6672, 1e-05
        %v6705 = vadd.f32 %v6673, 1e-05
        %v6706 = vadd.f32 %v6674, 1e-05
        %v6707 = vadd.f32 %v6675, 1e-05
        %v6708 = vadd.f32 %v6676, 1e-05
        %v6709 = vadd.f32 %v6677, 1e-05
        %v6710 = vadd.f32 %v6678, 1e-05
        %v6711 = vadd.f32 %v6679, 1e-05
        %v6712 = vadd.f32 %v6680, 1e-05
        %v6713 = vadd.f32 %v6681, 1e-05
        %v6714 = vadd.f32 %v6682, 1e-05
        %v6715 = vadd.f32 %v6683, 1e-05
        %v6716 = vadd.f32 %v6684, 1e-05
        %v6717 = vadd.f32 %v6685, 1e-05
        %v6718 = vadd.f32 %v6686, 1e-05
        %v6719 = vadd.f32 %v6687, 1e-05
        %v6720 = vadd.f32 %v6688, 1e-05
        %v6721 = vadd.f32 %v6689, 1e-05
        %v6722 = vadd.f32 %v6690, 1e-05
        %v6723 = vadd.f32 %v6691, 1e-05
        %v6724 = vadd.f32 %v6692, 1e-05
        %v6725 = vadd.f32 %v6693, 1e-05
        %v6726 = vadd.f32 %v6694, 1e-05
        %v6727 = vadd.f32 %v6695, 1e-05
        %v6728 = vadd.f32 %v6696, 1e-05
        %v6729 = vadd.f32 %v6697, 1e-05
        %v6730 = vadd.f32 %v6698, 1e-05
        %v6731 = vadd.f32 %v6699, 1e-05
        %v6732 = vadd.f32 %v6700, 1e-05
        %v6733 = vadd.f32 %v6701, 1e-05
        %v6734 = vadd.f32 %v6702, 1e-05
        %v6735 = vrsqrt.pop %v6703
        %v6736 = vrsqrt.pop %v6704
        %v6737 = vrsqrt.pop %v6705
        %v6738 = vrsqrt.pop %v6706
        %v6739 = vrsqrt.pop %v6707
        %v6740 = vrsqrt.pop %v6708
        %v6741 = vrsqrt.pop %v6709
        %v6742 = vrsqrt.pop %v6710
        %v6743 = vrsqrt.pop %v6711
        %v6744 = vrsqrt.pop %v6712
        %v6745 = vrsqrt.pop %v6713
        %v6746 = vrsqrt.pop %v6714
        %v6747 = vrsqrt.pop %v6715
        %v6748 = vrsqrt.pop %v6716
        %v6749 = vrsqrt.pop %v6717
        %v6750 = vrsqrt.pop %v6718
        %v6751 = vrsqrt.pop %v6719
        %v6752 = vrsqrt.pop %v6720
        %v6753 = vrsqrt.pop %v6721
        %v6754 = vrsqrt.pop %v6722
        %v6755 = vrsqrt.pop %v6723
        %v6756 = vrsqrt.pop %v6724
        %v6757 = vrsqrt.pop %v6725
        %v6758 = vrsqrt.pop %v6726
        %v6759 = vrsqrt.pop %v6727
        %v6760 = vrsqrt.pop %v6728
        %v6761 = vrsqrt.pop %v6729
        %v6762 = vrsqrt.pop %v6730
        %v6763 = vrsqrt.pop %v6731
        %v6764 = vrsqrt.pop %v6732
        %v6765 = vrsqrt.pop %v6733
        %v6766 = vrsqrt.pop %v6734
        %v6767 = vmul.f32 %v6543, %v6735
        %v6768 = vmul.f32 %v6544, %v6736
        %v6769 = vmul.f32 %v6545, %v6737
        %v6770 = vmul.f32 %v6546, %v6738
        %v6771 = vmul.f32 %v6547, %v6739
        %v6772 = vmul.f32 %v6548, %v6740
        %v6773 = vmul.f32 %v6549, %v6741
        %v6774 = vmul.f32 %v6550, %v6742
        %v6775 = vmul.f32 %v6551, %v6743
        %v6776 = vmul.f32 %v6552, %v6744
        %v6777 = vmul.f32 %v6553, %v6745
        %v6778 = vmul.f32 %v6554, %v6746
        %v6779 = vmul.f32 %v6555, %v6747
        %v6780 = vmul.f32 %v6556, %v6748
        %v6781 = vmul.f32 %v6557, %v6749
        %v6782 = vmul.f32 %v6558, %v6750
        %v6783 = vmul.f32 %v6559, %v6751
        %v6784 = vmul.f32 %v6560, %v6752
        %v6785 = vmul.f32 %v6561, %v6753
        %v6786 = vmul.f32 %v6562, %v6754
        %v6787 = vmul.f32 %v6563, %v6755
        %v6788 = vmul.f32 %v6564, %v6756
        %v6789 = vmul.f32 %v6565, %v6757
        %v6790 = vmul.f32 %v6566, %v6758
        %v6791 = vmul.f32 %v6567, %v6759
        %v6792 = vmul.f32 %v6568, %v6760
        %v6793 = vmul.f32 %v6569, %v6761
        %v6794 = vmul.f32 %v6570, %v6762
        %v6795 = vmul.f32 %v6571, %v6763
        %v6796 = vmul.f32 %v6572, %v6764
        %v6797 = vmul.f32 %v6573, %v6765
        %v6798 = vmul.f32 %v6574, %v6766
        %v6799 = vld [vmem:[#allocation19] sm:$0x1]
        %v6801 = vlaneseq
        %v6802 = vshrl.u32 %v6801, 7
        %v6803 = vsub.s32 0, %v6802
        %v6804 = vrot.slane %v6799, %v6803
        %v6806 = vmul.f32 %v6767, %v6804
        %v6807 = vmul.f32 %v6768, %v6804
        %v6808 = vmul.f32 %v6769, %v6804
        %v6809 = vmul.f32 %v6770, %v6804
        %v6810 = vmul.f32 %v6771, %v6804
        %v6811 = vmul.f32 %v6772, %v6804
        %v6812 = vmul.f32 %v6773, %v6804
        %v6813 = vmul.f32 %v6774, %v6804
        %v6814 = vmul.f32 %v6775, %v6804
        %v6815 = vmul.f32 %v6776, %v6804
        %v6816 = vmul.f32 %v6777, %v6804
        %v6817 = vmul.f32 %v6778, %v6804
        %v6818 = vmul.f32 %v6779, %v6804
        %v6819 = vmul.f32 %v6780, %v6804
        %v6820 = vmul.f32 %v6781, %v6804
        %v6821 = vmul.f32 %v6782, %v6804
        %v6822 = vmul.f32 %v6783, %v6804
        %v6823 = vmul.f32 %v6784, %v6804
        %v6824 = vmul.f32 %v6785, %v6804
        %v6825 = vmul.f32 %v6786, %v6804
        %v6826 = vmul.f32 %v6787, %v6804
        %v6827 = vmul.f32 %v6788, %v6804
        %v6828 = vmul.f32 %v6789, %v6804
        %v6829 = vmul.f32 %v6790, %v6804
        %v6830 = vmul.f32 %v6791, %v6804
        %v6831 = vmul.f32 %v6792, %v6804
        %v6832 = vmul.f32 %v6793, %v6804
        %v6833 = vmul.f32 %v6794, %v6804
        %v6834 = vmul.f32 %v6795, %v6804
        %v6835 = vmul.f32 %v6796, %v6804
        %v6836 = vmul.f32 %v6797, %v6804
        %v6837 = vmul.f32 %v6798, %v6804
        %v6838 = vld [vmem:[#allocation20] sm:$0x1]
        %v6840 = vlaneseq
        %v6841 = vshrl.u32 %v6840, 7
        %v6842 = vsub.s32 0, %v6841
        %v6843 = vrot.slane %v6838, %v6842
        %v6845 = vadd.f32 %v6806, %v6843
        %v6846 = vadd.f32 %v6807, %v6843
        %v6847 = vadd.f32 %v6808, %v6843
        %v6848 = vadd.f32 %v6809, %v6843
        %v6849 = vadd.f32 %v6810, %v6843
        %v6850 = vadd.f32 %v6811, %v6843
        %v6851 = vadd.f32 %v6812, %v6843
        %v6852 = vadd.f32 %v6813, %v6843
        %v6853 = vadd.f32 %v6814, %v6843
        %v6854 = vadd.f32 %v6815, %v6843
        %v6855 = vadd.f32 %v6816, %v6843
        %v6856 = vadd.f32 %v6817, %v6843
        %v6857 = vadd.f32 %v6818, %v6843
        %v6858 = vadd.f32 %v6819, %v6843
        %v6859 = vadd.f32 %v6820, %v6843
        %v6860 = vadd.f32 %v6821, %v6843
        %v6861 = vadd.f32 %v6822, %v6843
        %v6862 = vadd.f32 %v6823, %v6843
        %v6863 = vadd.f32 %v6824, %v6843
        %v6864 = vadd.f32 %v6825, %v6843
        %v6865 = vadd.f32 %v6826, %v6843
        %v6866 = vadd.f32 %v6827, %v6843
        %v6867 = vadd.f32 %v6828, %v6843
        %v6868 = vadd.f32 %v6829, %v6843
        %v6869 = vadd.f32 %v6830, %v6843
        %v6870 = vadd.f32 %v6831, %v6843
        %v6871 = vadd.f32 %v6832, %v6843
        %v6872 = vadd.f32 %v6833, %v6843
        %v6873 = vadd.f32 %v6834, %v6843
        %v6874 = vadd.f32 %v6835, %v6843
        %v6875 = vadd.f32 %v6836, %v6843
        %v6876 = vadd.f32 %v6837, %v6843
        %v6877 = vpack.c.bf16 %v6846, %v6845
        %v6878 = vpack.c.bf16 %v6848, %v6847
        %v6879 = vpack.c.bf16 %v6850, %v6849
        %v6880 = vpack.c.bf16 %v6852, %v6851
        %v6881 = vpack.c.bf16 %v6854, %v6853
        %v6882 = vpack.c.bf16 %v6856, %v6855
        %v6883 = vpack.c.bf16 %v6858, %v6857
        %v6884 = vpack.c.bf16 %v6860, %v6859
        %v6885 = vpack.c.bf16 %v6862, %v6861
        %v6886 = vpack.c.bf16 %v6864, %v6863
        %v6887 = vpack.c.bf16 %v6866, %v6865
        %v6888 = vpack.c.bf16 %v6868, %v6867
        %v6889 = vpack.c.bf16 %v6870, %v6869
        %v6890 = vpack.c.bf16 %v6872, %v6871
        %v6891 = vpack.c.bf16 %v6874, %v6873
        %v6892 = vpack.c.bf16 %v6876, %v6875
        %v6893 = vld [vmem:[#allocation22] sm:$0xff]
        %v6894 = vld [vmem:[#allocation22 + $0x8] sm:$0xff]
        %v6895 = vld [vmem:[#allocation22 + $0x10] sm:$0xff]
        %v6896 = vld [vmem:[#allocation22 + $0x18] sm:$0xff]
        %v6897 = vld [vmem:[#allocation22 + $0x20] sm:$0xff]
        %v6898 = vld [vmem:[#allocation22 + $0x28] sm:$0xff]
        %v6899 = vld [vmem:[#allocation22 + $0x30] sm:$0xff]
        %v6900 = vld [vmem:[#allocation22 + $0x38] sm:$0xff]
        %v6901 = vld [vmem:[#allocation22 + $0x40] sm:$0xff]
        %v6902 = vld [vmem:[#allocation22 + $0x48] sm:$0xff]
        %v6903 = vld [vmem:[#allocation22 + $0x50] sm:$0xff]
        %v6904 = vld [vmem:[#allocation22 + $0x58] sm:$0xff]
        %v6905 = vld [vmem:[#allocation22 + $0x60] sm:$0xff]
        %v6906 = vld [vmem:[#allocation22 + $0x68] sm:$0xff]
        %v6907 = vld [vmem:[#allocation22 + $0x70] sm:$0xff]
        %v6908 = vld [vmem:[#allocation22 + $0x78] sm:$0xff]
        %v6909 = vld [vmem:[#allocation22 + $0x80] sm:$0xff]
        %v6910 = vld [vmem:[#allocation22 + $0x88] sm:$0xff]
        %v6911 = vld [vmem:[#allocation22 + $0x90] sm:$0xff]
        %v6912 = vld [vmem:[#allocation22 + $0x98] sm:$0xff]
        %v6913 = vld [vmem:[#allocation22 + $0xa0] sm:$0xff]
        %v6914 = vld [vmem:[#allocation22 + $0xa8] sm:$0xff]
        %v6915 = vld [vmem:[#allocation22 + $0xb0] sm:$0xff]
        %v6916 = vld [vmem:[#allocation22 + $0xb8] sm:$0xff]
        %v6917 = vld [vmem:[#allocation22 + $0xc0] sm:$0xff]
        %v6918 = vld [vmem:[#allocation22 + $0xc8] sm:$0xff]
        %v6919 = vld [vmem:[#allocation22 + $0xd0] sm:$0xff]
        %v6920 = vld [vmem:[#allocation22 + $0xd8] sm:$0xff]
        %v6921 = vld [vmem:[#allocation22 + $0xe0] sm:$0xff]
        %v6922 = vld [vmem:[#allocation22 + $0xe8] sm:$0xff]
        %v6923 = vld [vmem:[#allocation22 + $0xf0] sm:$0xff]
        %v6924 = vld [vmem:[#allocation22 + $0xf8] sm:$0xff]
        %v6925 = vld [vmem:[#allocation23] sm:$0xf]
        %v6927 = vlaneseq
        %v6928 = vshrl.u32 %v6927, 7
        %v6929 = vsub.s32 0, %v6928
        %v6930 = vrot.slane %v6925, %v6929
        %v6931 = vlaneseq
        %v6932 = vshrl.u32 %v6931, 7
        %v6933 = vsub.s32 1, %v6932
        %v6934 = vrot.slane %v6925, %v6933
        %v6935 = vlaneseq
        %v6936 = vshrl.u32 %v6935, 7
        %v6937 = vsub.s32 2, %v6936
        %v6938 = vrot.slane %v6925, %v6937
        %v6939 = vlaneseq
        %v6940 = vshrl.u32 %v6939, 7
        %v6941 = vsub.s32 3, %v6940
        %v6942 = vrot.slane %v6925, %v6941
        %v6979 = vunpack.c.l.b16 %v6893
        %v6980 = vunpack.c.h.b16 %v6893
        %v6981 = vunpack.c.l.b16 %v6894
        %v6982 = vunpack.c.h.b16 %v6894
        %v6983 = vunpack.c.l.b16 %v6895
        %v6984 = vunpack.c.h.b16 %v6895
        %v6985 = vunpack.c.l.b16 %v6896
        %v6986 = vunpack.c.h.b16 %v6896
        %v6987 = vunpack.c.l.b16 %v6897
        %v6988 = vunpack.c.h.b16 %v6897
        %v6989 = vunpack.c.l.b16 %v6898
        %v6990 = vunpack.c.h.b16 %v6898
        %v6991 = vunpack.c.l.b16 %v6899
        %v6992 = vunpack.c.h.b16 %v6899
        %v6993 = vunpack.c.l.b16 %v6900
        %v6994 = vunpack.c.h.b16 %v6900
        %v6995 = vunpack.c.l.b16 %v6901
        %v6996 = vunpack.c.h.b16 %v6901
        %v6997 = vunpack.c.l.b16 %v6902
        %v6998 = vunpack.c.h.b16 %v6902
        %v6999 = vunpack.c.l.b16 %v6903
        %v7000 = vunpack.c.h.b16 %v6903
        %v7001 = vunpack.c.l.b16 %v6904
        %v7002 = vunpack.c.h.b16 %v6904
        %v7003 = vunpack.c.l.b16 %v6905
        %v7004 = vunpack.c.h.b16 %v6905
        %v7005 = vunpack.c.l.b16 %v6906
        %v7006 = vunpack.c.h.b16 %v6906
        %v7007 = vunpack.c.l.b16 %v6907
        %v7008 = vunpack.c.h.b16 %v6907
        %v7009 = vunpack.c.l.b16 %v6908
        %v7010 = vunpack.c.h.b16 %v6908
        %v7011 = vunpack.c.l.b16 %v6909
        %v7012 = vunpack.c.h.b16 %v6909
        %v7013 = vunpack.c.l.b16 %v6910
        %v7014 = vunpack.c.h.b16 %v6910
        %v7015 = vunpack.c.l.b16 %v6911
        %v7016 = vunpack.c.h.b16 %v6911
        %v7017 = vunpack.c.l.b16 %v6912
        %v7018 = vunpack.c.h.b16 %v6912
        %v7019 = vunpack.c.l.b16 %v6913
        %v7020 = vunpack.c.h.b16 %v6913
        %v7021 = vunpack.c.l.b16 %v6914
        %v7022 = vunpack.c.h.b16 %v6914
        %v7023 = vunpack.c.l.b16 %v6915
        %v7024 = vunpack.c.h.b16 %v6915
        %v7025 = vunpack.c.l.b16 %v6916
        %v7026 = vunpack.c.h.b16 %v6916
        %v7027 = vunpack.c.l.b16 %v6917
        %v7028 = vunpack.c.h.b16 %v6917
        %v7029 = vunpack.c.l.b16 %v6918
        %v7030 = vunpack.c.h.b16 %v6918
        %v7031 = vunpack.c.l.b16 %v6919
        %v7032 = vunpack.c.h.b16 %v6919
        %v7033 = vunpack.c.l.b16 %v6920
        %v7034 = vunpack.c.h.b16 %v6920
        %v7035 = vunpack.c.l.b16 %v6921
        %v7036 = vunpack.c.h.b16 %v6921
        %v7037 = vunpack.c.l.b16 %v6922
        %v7038 = vunpack.c.h.b16 %v6922
        %v7039 = vunpack.c.l.b16 %v6923
        %v7040 = vunpack.c.h.b16 %v6923
        %v7041 = vunpack.c.l.b16 %v6924
        %v7042 = vunpack.c.h.b16 %v6924
        %v7043 = vpack.c.b16 %v6983, %v6979
        %v7044 = vpack.c.b16 %v6984, %v6980
        %v7045 = vpack.c.b16 %v6985, %v6981
        %v7046 = vpack.c.b16 %v6986, %v6982
        %v7047 = vpack.c.b16 %v6991, %v6987
        %v7048 = vpack.c.b16 %v6992, %v6988
        %v7049 = vpack.c.b16 %v6993, %v6989
        %v7050 = vpack.c.b16 %v6994, %v6990
        %v7051 = vpack.c.b16 %v6999, %v6995
        %v7052 = vpack.c.b16 %v7000, %v6996
        %v7053 = vpack.c.b16 %v7001, %v6997
        %v7054 = vpack.c.b16 %v7002, %v6998
        %v7055 = vpack.c.b16 %v7007, %v7003
        %v7056 = vpack.c.b16 %v7008, %v7004
        %v7057 = vpack.c.b16 %v7009, %v7005
        %v7058 = vpack.c.b16 %v7010, %v7006
        %v7059 = vpack.c.b16 %v7015, %v7011
        %v7060 = vpack.c.b16 %v7016, %v7012
        %v7061 = vpack.c.b16 %v7017, %v7013
        %v7062 = vpack.c.b16 %v7018, %v7014
        %v7063 = vpack.c.b16 %v7023, %v7019
        %v7064 = vpack.c.b16 %v7024, %v7020
        %v7065 = vpack.c.b16 %v7025, %v7021
        %v7066 = vpack.c.b16 %v7026, %v7022
        %v7067 = vpack.c.b16 %v7031, %v7027
        %v7068 = vpack.c.b16 %v7032, %v7028
        %v7069 = vpack.c.b16 %v7033, %v7029
        %v7070 = vpack.c.b16 %v7034, %v7030
        %v7071 = vpack.c.b16 %v7039, %v7035
        %v7072 = vpack.c.b16 %v7040, %v7036
        %v7073 = vpack.c.b16 %v7041, %v7037
        %v7074 = vpack.c.b16 %v7042, %v7038
        %7107 = vmatprep.subr.bf16.mxu0 %v7044
        %7108 = vmatpush1.bf16.msra.mxu0 %v7043
        %7109 = vmatprep.subr.bf16.mxu0 %v7048
        %7110 = vmatpush1.bf16.msra.mxu0 %v7047
        %7111 = vmatprep.subr.bf16.mxu0 %v7052
        %7112 = vmatpush1.bf16.msra.mxu0 %v7051
        %7113 = vmatprep.subr.bf16.mxu0 %v7056
        %7114 = vmatpush1.bf16.msra.mxu0 %v7055
        %7115 = vmatprep.subr.bf16.mxu0 %v7060
        %7116 = vmatpush1.bf16.msra.mxu0 %v7059
        %7117 = vmatprep.subr.bf16.mxu0 %v7064
        %7118 = vmatpush1.bf16.msra.mxu0 %v7063
        %7119 = vmatprep.subr.bf16.mxu0 %v7068
        %7120 = vmatpush1.bf16.msra.mxu0 %v7067
        %7121 = vmatprep.subr.bf16.mxu0 %v7072
        %7122 = vmatpush1.bf16.msra.mxu0 %v7071
        %7123 = vmatprep.subr.bf16.mxu0 0
        %7124 = vmatpush1.bf16.msra.mxu0 0
        %7125 = vmatprep.subr.bf16.mxu0 0
        %7126 = vmatpush1.bf16.msra.mxu0 0
        %7127 = vmatprep.subr.bf16.mxu0 0
        %7128 = vmatpush1.bf16.msra.mxu0 0
        %7129 = vmatprep.subr.bf16.mxu0 0
        %7130 = vmatpush1.bf16.msra.mxu0 0
        %7131 = vmatprep.subr.bf16.mxu0 0
        %7132 = vmatpush1.bf16.msra.mxu0 0
        %7133 = vmatprep.subr.bf16.mxu0 0
        %7134 = vmatpush1.bf16.msra.mxu0 0
        %7135 = vmatprep.subr.bf16.mxu0 0
        %7136 = vmatpush1.bf16.msra.mxu0 0
        %7137 = vmatprep.subr.bf16.mxu0 0
        %7138 = vmatpush1.bf16.msra.mxu0 0
        %7139 = vmatprep.mubr.bf16.mxu0 0
        %7140 = vmatmul.mubr.bf16.gmra.mrb[0].mxu0 %v6877
        %v7141 = vpop.f32.mrb[0].mxu0
        %v7142 = vadd.f32 %v6930, %v7141
        %v7143 = vpop.f32.mrb[0].mxu0
        %v7144 = vadd.f32 %v6934, %v7143
        %v7145 = vpop.f32.mrb[0].mxu0
        %v7146 = vadd.f32 %v6930, %v7145
        %v7147 = vpop.f32.mrb[0].mxu0
        %v7148 = vadd.f32 %v6934, %v7147
        %7149 = vmatprep.mubr.bf16.mxu0 0
        %7150 = vmatmul.mubr.bf16.gmra.mrb[0].mxu0 %v6878
        %v7151 = vpop.f32.mrb[0].mxu0
        %v7152 = vadd.f32 %v6930, %v7151
        %v7153 = vpop.f32.mrb[0].mxu0
        %v7154 = vadd.f32 %v6934, %v7153
        %v7155 = vpop.f32.mrb[0].mxu0
        %v7156 = vadd.f32 %v6930, %v7155
        %v7157 = vpop.f32.mrb[0].mxu0
        %v7158 = vadd.f32 %v6934, %v7157
        %7159 = vmatprep.mubr.bf16.mxu0 0
        %7160 = vmatmul.mubr.bf16.gmra.mrb[0].mxu0 %v6879
        %v7161 = vpop.f32.mrb[0].mxu0
        %v7162 = vadd.f32 %v6930, %v7161
        %v7163 = vpop.f32.mrb[0].mxu0
        %v7164 = vadd.f32 %v6934, %v7163
        %v7165 = vpop.f32.mrb[0].mxu0
        %v7166 = vadd.f32 %v6930, %v7165
        %v7167 = vpop.f32.mrb[0].mxu0
        %v7168 = vadd.f32 %v6934, %v7167
        %7169 = vmatprep.mubr.bf16.mxu0 0
        %7170 = vmatmul.mubr.bf16.gmra.mrb[0].mxu0 %v6880
        %v7171 = vpop.f32.mrb[0].mxu0
        %v7172 = vadd.f32 %v6930, %v7171
        %v7173 = vpop.f32.mrb[0].mxu0
        %v7174 = vadd.f32 %v6934, %v7173
        %v7175 = vpop.f32.mrb[0].mxu0
        %v7176 = vadd.f32 %v6930, %v7175
        %v7177 = vpop.f32.mrb[0].mxu0
        %v7178 = vadd.f32 %v6934, %v7177
        %7179 = vmatprep.mubr.bf16.mxu0 0
        %7180 = vmatmul.mubr.bf16.gmra.mrb[0].mxu0 %v6881
        %v7181 = vpop.f32.mrb[0].mxu0
        %v7182 = vadd.f32 %v6930, %v7181
        %v7183 = vpop.f32.mrb[0].mxu0
        %v7184 = vadd.f32 %v6934, %v7183
        %v7185 = vpop.f32.mrb[0].mxu0
        %v7186 = vadd.f32 %v6930, %v7185
        %v7187 = vpop.f32.mrb[0].mxu0
        %v7188 = vadd.f32 %v6934, %v7187
        %7189 = vmatprep.mubr.bf16.mxu0 0
        %7190 = vmatmul.mubr.bf16.gmra.mrb[0].mxu0 %v6882
        %v7191 = vpop.f32.mrb[0].mxu0
        %v7192 = vadd.f32 %v6930, %v7191
        %v7193 = vpop.f32.mrb[0].mxu0
        %v7194 = vadd.f32 %v6934, %v7193
        %v7195 = vpop.f32.mrb[0].mxu0
        %v7196 = vadd.f32 %v6930, %v7195
        %v7197 = vpop.f32.mrb[0].mxu0
        %v7198 = vadd.f32 %v6934, %v7197
        %7199 = vmatprep.mubr.bf16.mxu0 0
        %7200 = vmatmul.mubr.bf16.gmra.mrb[0].mxu0 %v6883
        %v7201 = vpop.f32.mrb[0].mxu0
        %v7202 = vadd.f32 %v6930, %v7201
        %v7203 = vpop.f32.mrb[0].mxu0
        %v7204 = vadd.f32 %v6934, %v7203
        %v7205 = vpop.f32.mrb[0].mxu0
        %v7206 = vadd.f32 %v6930, %v7205
        %v7207 = vpop.f32.mrb[0].mxu0
        %v7208 = vadd.f32 %v6934, %v7207
        %7209 = vmatprep.mubr.bf16.mxu0 0
        %7210 = vmatmul.mubr.bf16.gmra.mrb[0].mxu0 %v6884
        %v7211 = vpop.f32.mrb[0].mxu0
        %v7212 = vadd.f32 %v6930, %v7211
        %v7213 = vpop.f32.mrb[0].mxu0
        %v7214 = vadd.f32 %v6934, %v7213
        %v7215 = vpop.f32.mrb[0].mxu0
        %v7216 = vadd.f32 %v6930, %v7215
        %v7217 = vpop.f32.mrb[0].mxu0
        %v7218 = vadd.f32 %v6934, %v7217
        %7219 = vmatprep.mubr.bf16.mxu0 0
        %7220 = vmatmul.mubr.bf16.gmra.mrb[0].mxu0 %v6885
        %v7221 = vpop.f32.mrb[0].mxu0
        %v7222 = vadd.f32 %v6930, %v7221
        %v7223 = vpop.f32.mrb[0].mxu0
        %v7224 = vadd.f32 %v6934, %v7223
        %v7225 = vpop.f32.mrb[0].mxu0
        %v7226 = vadd.f32 %v6930, %v7225
        %v7227 = vpop.f32.mrb[0].mxu0
        %v7228 = vadd.f32 %v6934, %v7227
        %7229 = vmatprep.mubr.bf16.mxu0 0
        %7230 = vmatmul.mubr.bf16.gmra.mrb[0].mxu0 %v6886
        %v7231 = vpop.f32.mrb[0].mxu0
        %v7232 = vadd.f32 %v6930, %v7231
        %v7233 = vpop.f32.mrb[0].mxu0
        %v7234 = vadd.f32 %v6934, %v7233
        %v7235 = vpop.f32.mrb[0].mxu0
        %v7236 = vadd.f32 %v6930, %v7235
        %v7237 = vpop.f32.mrb[0].mxu0
        %v7238 = vadd.f32 %v6934, %v7237
        %7239 = vmatprep.mubr.bf16.mxu0 0
        %7240 = vmatmul.mubr.bf16.gmra.mrb[0].mxu0 %v6887
        %v7241 = vpop.f32.mrb[0].mxu0
        %v7242 = vadd.f32 %v6930, %v7241
        %v7243 = vpop.f32.mrb[0].mxu0
        %v7244 = vadd.f32 %v6934, %v7243
        %v7245 = vpop.f32.mrb[0].mxu0
        %v7246 = vadd.f32 %v6930, %v7245
        %v7247 = vpop.f32.mrb[0].mxu0
        %v7248 = vadd.f32 %v6934, %v7247
        %7249 = vmatprep.mubr.bf16.mxu0 0
        %7250 = vmatmul.mubr.bf16.gmra.mrb[0].mxu0 %v6888
        %v7251 = vpop.f32.mrb[0].mxu0
        %v7252 = vadd.f32 %v6930, %v7251
        %v7253 = vpop.f32.mrb[0].mxu0
        %v7254 = vadd.f32 %v6934, %v7253
        %v7255 = vpop.f32.mrb[0].mxu0
        %v7256 = vadd.f32 %v6930, %v7255
        %v7257 = vpop.f32.mrb[0].mxu0
        %v7258 = vadd.f32 %v6934, %v7257
        %7259 = vmatprep.mubr.bf16.mxu0 0
        %7260 = vmatmul.mubr.bf16.gmra.mrb[0].mxu0 %v6889
        %v7261 = vpop.f32.mrb[0].mxu0
        %v7262 = vadd.f32 %v6930, %v7261
        %v7263 = vpop.f32.mrb[0].mxu0
        %v7264 = vadd.f32 %v6934, %v7263
        %v7265 = vpop.f32.mrb[0].mxu0
        %v7266 = vadd.f32 %v6930, %v7265
        %v7267 = vpop.f32.mrb[0].mxu0
        %v7268 = vadd.f32 %v6934, %v7267
        %7269 = vmatprep.mubr.bf16.mxu0 0
        %7270 = vmatmul.mubr.bf16.gmra.mrb[0].mxu0 %v6890
        %v7271 = vpop.f32.mrb[0].mxu0
        %v7272 = vadd.f32 %v6930, %v7271
        %v7273 = vpop.f32.mrb[0].mxu0
        %v7274 = vadd.f32 %v6934, %v7273
        %v7275 = vpop.f32.mrb[0].mxu0
        %v7276 = vadd.f32 %v6930, %v7275
        %v7277 = vpop.f32.mrb[0].mxu0
        %v7278 = vadd.f32 %v6934, %v7277
        %7279 = vmatprep.mubr.bf16.mxu0 0
        %7280 = vmatmul.mubr.bf16.gmra.mrb[0].mxu0 %v6891
        %v7281 = vpop.f32.mrb[0].mxu0
        %v7282 = vadd.f32 %v6930, %v7281
        %v7283 = vpop.f32.mrb[0].mxu0
        %v7284 = vadd.f32 %v6934, %v7283
        %v7285 = vpop.f32.mrb[0].mxu0
        %v7286 = vadd.f32 %v6930, %v7285
        %v7287 = vpop.f32.mrb[0].mxu0
        %v7288 = vadd.f32 %v6934, %v7287
        %7289 = vmatprep.mubr.bf16.mxu0 0
        %7290 = vmatmul.mubr.bf16.gmra.mrb[0].mxu0 %v6892
        %v7291 = vpop.f32.mrb[0].mxu0
        %v7292 = vadd.f32 %v6930, %v7291
        %v7293 = vpop.f32.mrb[0].mxu0
        %v7294 = vadd.f32 %v6934, %v7293
        %v7295 = vpop.f32.mrb[0].mxu0
        %v7296 = vadd.f32 %v6930, %v7295
        %v7297 = vpop.f32.mrb[0].mxu0
        %v7298 = vadd.f32 %v6934, %v7297
        %7299 = vdwg.mxu0
        %7300 = vmatprep.subr.bf16.mxu0 %v7046
        %7301 = vmatpush1.bf16.msra.mxu0 %v7045
        %7302 = vmatprep.subr.bf16.mxu0 %v7050
        %7303 = vmatpush1.bf16.msra.mxu0 %v7049
        %7304 = vmatprep.subr.bf16.mxu0 %v7054
        %7305 = vmatpush1.bf16.msra.mxu0 %v7053
        %7306 = vmatprep.subr.bf16.mxu0 %v7058
        %7307 = vmatpush1.bf16.msra.mxu0 %v7057
        %7308 = vmatprep.subr.bf16.mxu0 %v7062
        %7309 = vmatpush1.bf16.msra.mxu0 %v7061
        %7310 = vmatprep.subr.bf16.mxu0 %v7066
        %7311 = vmatpush1.bf16.msra.mxu0 %v7065
        %7312 = vmatprep.subr.bf16.mxu0 %v7070
        %7313 = vmatpush1.bf16.msra.mxu0 %v7069
        %7314 = vmatprep.subr.bf16.mxu0 %v7074
        %7315 = vmatpush1.bf16.msra.mxu0 %v7073
        %7316 = vmatprep.subr.bf16.mxu0 0
        %7317 = vmatpush1.bf16.msra.mxu0 0
        %7318 = vmatprep.subr.bf16.mxu0 0
        %7319 = vmatpush1.bf16.msra.mxu0 0
        %7320 = vmatprep.subr.bf16.mxu0 0
        %7321 = vmatpush1.bf16.msra.mxu0 0
        %7322 = vmatprep.subr.bf16.mxu0 0
        %7323 = vmatpush1.bf16.msra.mxu0 0
        %7324 = vmatprep.subr.bf16.mxu0 0
        %7325 = vmatpush1.bf16.msra.mxu0 0
        %7326 = vmatprep.subr.bf16.mxu0 0
        %7327 = vmatpush1.bf16.msra.mxu0 0
        %7328 = vmatprep.subr.bf16.mxu0 0
        %7329 = vmatpush1.bf16.msra.mxu0 0
        %7330 = vmatprep.subr.bf16.mxu0 0
        %7331 = vmatpush1.bf16.msra.mxu0 0
        %7332 = vmatprep.mubr.bf16.mxu0 0
        %7333 = vmatmul.mubr.bf16.gmra.mrb[0].mxu0 %v6877
        %v7334 = vpop.f32.mrb[0].mxu0
        %v7335 = vadd.f32 %v6938, %v7334
        %v7336 = vpop.f32.mrb[0].mxu0
        %v7337 = vadd.f32 %v6942, %v7336
        %v7338 = vpop.f32.mrb[0].mxu0
        %v7339 = vadd.f32 %v6938, %v7338
        %v7340 = vpop.f32.mrb[0].mxu0
        %v7341 = vadd.f32 %v6942, %v7340
        %7342 = vmatprep.mubr.bf16.mxu0 0
        %7343 = vmatmul.mubr.bf16.gmra.mrb[0].mxu0 %v6878
        %v7344 = vpop.f32.mrb[0].mxu0
        %v7345 = vadd.f32 %v6938, %v7344
        %v7346 = vpop.f32.mrb[0].mxu0
        %v7347 = vadd.f32 %v6942, %v7346
        %v7348 = vpop.f32.mrb[0].mxu0
        %v7349 = vadd.f32 %v6938, %v7348
        %v7350 = vpop.f32.mrb[0].mxu0
        %v7351 = vadd.f32 %v6942, %v7350
        %7352 = vmatprep.mubr.bf16.mxu0 0
        %7353 = vmatmul.mubr.bf16.gmra.mrb[0].mxu0 %v6879
        %v7354 = vpop.f32.mrb[0].mxu0
        %v7355 = vadd.f32 %v6938, %v7354
        %v7356 = vpop.f32.mrb[0].mxu0
        %v7357 = vadd.f32 %v6942, %v7356
        %v7358 = vpop.f32.mrb[0].mxu0
        %v7359 = vadd.f32 %v6938, %v7358
        %v7360 = vpop.f32.mrb[0].mxu0
        %v7361 = vadd.f32 %v6942, %v7360
        %7362 = vmatprep.mubr.bf16.mxu0 0
        %7363 = vmatmul.mubr.bf16.gmra.mrb[0].mxu0 %v6880
        %v7364 = vpop.f32.mrb[0].mxu0
        %v7365 = vadd.f32 %v6938, %v7364
        %v7366 = vpop.f32.mrb[0].mxu0
        %v7367 = vadd.f32 %v6942, %v7366
        %v7368 = vpop.f32.mrb[0].mxu0
        %v7369 = vadd.f32 %v6938, %v7368
        %v7370 = vpop.f32.mrb[0].mxu0
        %v7371 = vadd.f32 %v6942, %v7370
        %7372 = vmatprep.mubr.bf16.mxu0 0
        %7373 = vmatmul.mubr.bf16.gmra.mrb[0].mxu0 %v6881
        %v7374 = vpop.f32.mrb[0].mxu0
        %v7375 = vadd.f32 %v6938, %v7374
        %v7376 = vpop.f32.mrb[0].mxu0
        %v7377 = vadd.f32 %v6942, %v7376
        %v7378 = vpop.f32.mrb[0].mxu0
        %v7379 = vadd.f32 %v6938, %v7378
        %v7380 = vpop.f32.mrb[0].mxu0
        %v7381 = vadd.f32 %v6942, %v7380
        %7382 = vmatprep.mubr.bf16.mxu0 0
        %7383 = vmatmul.mubr.bf16.gmra.mrb[0].mxu0 %v6882
        %v7384 = vpop.f32.mrb[0].mxu0
        %v7385 = vadd.f32 %v6938, %v7384
        %v7386 = vpop.f32.mrb[0].mxu0
        %v7387 = vadd.f32 %v6942, %v7386
        %v7388 = vpop.f32.mrb[0].mxu0
        %v7389 = vadd.f32 %v6938, %v7388
        %v7390 = vpop.f32.mrb[0].mxu0
        %v7391 = vadd.f32 %v6942, %v7390
        %7392 = vmatprep.mubr.bf16.mxu0 0
        %7393 = vmatmul.mubr.bf16.gmra.mrb[0].mxu0 %v6883
        %v7394 = vpop.f32.mrb[0].mxu0
        %v7395 = vadd.f32 %v6938, %v7394
        %v7396 = vpop.f32.mrb[0].mxu0
        %v7397 = vadd.f32 %v6942, %v7396
        %v7398 = vpop.f32.mrb[0].mxu0
        %v7399 = vadd.f32 %v6938, %v7398
        %v7400 = vpop.f32.mrb[0].mxu0
        %v7401 = vadd.f32 %v6942, %v7400
        %7402 = vmatprep.mubr.bf16.mxu0 0
        %7403 = vmatmul.mubr.bf16.gmra.mrb[0].mxu0 %v6884
        %v7404 = vpop.f32.mrb[0].mxu0
        %v7405 = vadd.f32 %v6938, %v7404
        %v7406 = vpop.f32.mrb[0].mxu0
        %v7407 = vadd.f32 %v6942, %v7406
        %v7408 = vpop.f32.mrb[0].mxu0
        %v7409 = vadd.f32 %v6938, %v7408
        %v7410 = vpop.f32.mrb[0].mxu0
        %v7411 = vadd.f32 %v6942, %v7410
        %7412 = vmatprep.mubr.bf16.mxu0 0
        %7413 = vmatmul.mubr.bf16.gmra.mrb[0].mxu0 %v6885
        %v7414 = vpop.f32.mrb[0].mxu0
        %v7415 = vadd.f32 %v6938, %v7414
        %v7416 = vpop.f32.mrb[0].mxu0
        %v7417 = vadd.f32 %v6942, %v7416
        %v7418 = vpop.f32.mrb[0].mxu0
        %v7419 = vadd.f32 %v6938, %v7418
        %v7420 = vpop.f32.mrb[0].mxu0
        %v7421 = vadd.f32 %v6942, %v7420
        %7422 = vmatprep.mubr.bf16.mxu0 0
        %7423 = vmatmul.mubr.bf16.gmra.mrb[0].mxu0 %v6886
        %v7424 = vpop.f32.mrb[0].mxu0
        %v7425 = vadd.f32 %v6938, %v7424
        %v7426 = vpop.f32.mrb[0].mxu0
        %v7427 = vadd.f32 %v6942, %v7426
        %v7428 = vpop.f32.mrb[0].mxu0
        %v7429 = vadd.f32 %v6938, %v7428
        %v7430 = vpop.f32.mrb[0].mxu0
        %v7431 = vadd.f32 %v6942, %v7430
        %7432 = vmatprep.mubr.bf16.mxu0 0
        %7433 = vmatmul.mubr.bf16.gmra.mrb[0].mxu0 %v6887
        %v7434 = vpop.f32.mrb[0].mxu0
        %v7435 = vadd.f32 %v6938, %v7434
        %v7436 = vpop.f32.mrb[0].mxu0
        %v7437 = vadd.f32 %v6942, %v7436
        %v7438 = vpop.f32.mrb[0].mxu0
        %v7439 = vadd.f32 %v6938, %v7438
        %v7440 = vpop.f32.mrb[0].mxu0
        %v7441 = vadd.f32 %v6942, %v7440
        %7442 = vmatprep.mubr.bf16.mxu0 0
        %7443 = vmatmul.mubr.bf16.gmra.mrb[0].mxu0 %v6888
        %v7444 = vpop.f32.mrb[0].mxu0
        %v7445 = vadd.f32 %v6938, %v7444
        %v7446 = vpop.f32.mrb[0].mxu0
        %v7447 = vadd.f32 %v6942, %v7446
        %v7448 = vpop.f32.mrb[0].mxu0
        %v7449 = vadd.f32 %v6938, %v7448
        %v7450 = vpop.f32.mrb[0].mxu0
        %v7451 = vadd.f32 %v6942, %v7450
        %7452 = vmatprep.mubr.bf16.mxu0 0
        %7453 = vmatmul.mubr.bf16.gmra.mrb[0].mxu0 %v6889
        %v7454 = vpop.f32.mrb[0].mxu0
        %v7455 = vadd.f32 %v6938, %v7454
        %v7456 = vpop.f32.mrb[0].mxu0
        %v7457 = vadd.f32 %v6942, %v7456
        %v7458 = vpop.f32.mrb[0].mxu0
        %v7459 = vadd.f32 %v6938, %v7458
        %v7460 = vpop.f32.mrb[0].mxu0
        %v7461 = vadd.f32 %v6942, %v7460
        %7462 = vmatprep.mubr.bf16.mxu0 0
        %7463 = vmatmul.mubr.bf16.gmra.mrb[0].mxu0 %v6890
        %v7464 = vpop.f32.mrb[0].mxu0
        %v7465 = vadd.f32 %v6938, %v7464
        %v7466 = vpop.f32.mrb[0].mxu0
        %v7467 = vadd.f32 %v6942, %v7466
        %v7468 = vpop.f32.mrb[0].mxu0
        %v7469 = vadd.f32 %v6938, %v7468
        %v7470 = vpop.f32.mrb[0].mxu0
        %v7471 = vadd.f32 %v6942, %v7470
        %7472 = vmatprep.mubr.bf16.mxu0 0
        %7473 = vmatmul.mubr.bf16.gmra.mrb[0].mxu0 %v6891
        %v7474 = vpop.f32.mrb[0].mxu0
        %v7475 = vadd.f32 %v6938, %v7474
        %v7476 = vpop.f32.mrb[0].mxu0
        %v7477 = vadd.f32 %v6942, %v7476
        %v7478 = vpop.f32.mrb[0].mxu0
        %v7479 = vadd.f32 %v6938, %v7478
        %v7480 = vpop.f32.mrb[0].mxu0
        %v7481 = vadd.f32 %v6942, %v7480
        %7482 = vmatprep.mubr.bf16.mxu0 0
        %7483 = vmatmul.mubr.bf16.gmra.mrb[0].mxu0 %v6892
        %v7484 = vpop.f32.mrb[0].mxu0
        %v7485 = vadd.f32 %v6938, %v7484
        %v7486 = vpop.f32.mrb[0].mxu0
        %v7487 = vadd.f32 %v6942, %v7486
        %v7488 = vpop.f32.mrb[0].mxu0
        %v7489 = vadd.f32 %v6938, %v7488
        %v7490 = vpop.f32.mrb[0].mxu0
        %v7491 = vadd.f32 %v6942, %v7490
        %7492 = vdwg.mxu0
        %v7493 = vmax.f32 %v7142, 0.0
        %v7494 = vmax.f32 %v7144, 0.0
        %v7495 = vmax.f32 %v7335, 0.0
        %v7496 = vmax.f32 %v7337, 0.0
        %v7497 = vmax.f32 %v7146, 0.0
        %v7498 = vmax.f32 %v7148, 0.0
        %v7499 = vmax.f32 %v7339, 0.0
        %v7500 = vmax.f32 %v7341, 0.0
        %v7501 = vmax.f32 %v7152, 0.0
        %v7502 = vmax.f32 %v7154, 0.0
        %v7503 = vmax.f32 %v7345, 0.0
        %v7504 = vmax.f32 %v7347, 0.0
        %v7505 = vmax.f32 %v7156, 0.0
        %v7506 = vmax.f32 %v7158, 0.0
        %v7507 = vmax.f32 %v7349, 0.0
        %v7508 = vmax.f32 %v7351, 0.0
        %v7509 = vmax.f32 %v7162, 0.0
        %v7510 = vmax.f32 %v7164, 0.0
        %v7511 = vmax.f32 %v7355, 0.0
        %v7512 = vmax.f32 %v7357, 0.0
        %v7513 = vmax.f32 %v7166, 0.0
        %v7514 = vmax.f32 %v7168, 0.0
        %v7515 = vmax.f32 %v7359, 0.0
        %v7516 = vmax.f32 %v7361, 0.0
        %v7517 = vmax.f32 %v7172, 0.0
        %v7518 = vmax.f32 %v7174, 0.0
        %v7519 = vmax.f32 %v7365, 0.0
        %v7520 = vmax.f32 %v7367, 0.0
        %v7521 = vmax.f32 %v7176, 0.0
        %v7522 = vmax.f32 %v7178, 0.0
        %v7523 = vmax.f32 %v7369, 0.0
        %v7524 = vmax.f32 %v7371, 0.0
        %v7525 = vmax.f32 %v7182, 0.0
        %v7526 = vmax.f32 %v7184, 0.0
        %v7527 = vmax.f32 %v7375, 0.0
        %v7528 = vmax.f32 %v7377, 0.0
        %v7529 = vmax.f32 %v7186, 0.0
        %v7530 = vmax.f32 %v7188, 0.0
        %v7531 = vmax.f32 %v7379, 0.0
        %v7532 = vmax.f32 %v7381, 0.0
        %v7533 = vmax.f32 %v7192, 0.0
        %v7534 = vmax.f32 %v7194, 0.0
        %v7535 = vmax.f32 %v7385, 0.0
        %v7536 = vmax.f32 %v7387, 0.0
        %v7537 = vmax.f32 %v7196, 0.0
        %v7538 = vmax.f32 %v7198, 0.0
        %v7539 = vmax.f32 %v7389, 0.0
        %v7540 = vmax.f32 %v7391, 0.0
        %v7541 = vmax.f32 %v7202, 0.0
        %v7542 = vmax.f32 %v7204, 0.0
        %v7543 = vmax.f32 %v7395, 0.0
        %v7544 = vmax.f32 %v7397, 0.0
        %v7545 = vmax.f32 %v7206, 0.0
        %v7546 = vmax.f32 %v7208, 0.0
        %v7547 = vmax.f32 %v7399, 0.0
        %v7548 = vmax.f32 %v7401, 0.0
        %v7549 = vmax.f32 %v7212, 0.0
        %v7550 = vmax.f32 %v7214, 0.0
        %v7551 = vmax.f32 %v7405, 0.0
        %v7552 = vmax.f32 %v7407, 0.0
        %v7553 = vmax.f32 %v7216, 0.0
        %v7554 = vmax.f32 %v7218, 0.0
        %v7555 = vmax.f32 %v7409, 0.0
        %v7556 = vmax.f32 %v7411, 0.0
        %v7557 = vmax.f32 %v7222, 0.0
        %v7558 = vmax.f32 %v7224, 0.0
        %v7559 = vmax.f32 %v7415, 0.0
        %v7560 = vmax.f32 %v7417, 0.0
        %v7561 = vmax.f32 %v7226, 0.0
        %v7562 = vmax.f32 %v7228, 0.0
        %v7563 = vmax.f32 %v7419, 0.0
        %v7564 = vmax.f32 %v7421, 0.0
        %v7565 = vmax.f32 %v7232, 0.0
        %v7566 = vmax.f32 %v7234, 0.0
        %v7567 = vmax.f32 %v7425, 0.0
        %v7568 = vmax.f32 %v7427, 0.0
        %v7569 = vmax.f32 %v7236, 0.0
        %v7570 = vmax.f32 %v7238, 0.0
        %v7571 = vmax.f32 %v7429, 0.0
        %v7572 = vmax.f32 %v7431, 0.0
        %v7573 = vmax.f32 %v7242, 0.0
        %v7574 = vmax.f32 %v7244, 0.0
        %v7575 = vmax.f32 %v7435, 0.0
        %v7576 = vmax.f32 %v7437, 0.0
        %v7577 = vmax.f32 %v7246, 0.0
        %v7578 = vmax.f32 %v7248, 0.0
        %v7579 = vmax.f32 %v7439, 0.0
        %v7580 = vmax.f32 %v7441, 0.0
        %v7581 = vmax.f32 %v7252, 0.0
        %v7582 = vmax.f32 %v7254, 0.0
        %v7583 = vmax.f32 %v7445, 0.0
        %v7584 = vmax.f32 %v7447, 0.0
        %v7585 = vmax.f32 %v7256, 0.0
        %v7586 = vmax.f32 %v7258, 0.0
        %v7587 = vmax.f32 %v7449, 0.0
        %v7588 = vmax.f32 %v7451, 0.0
        %v7589 = vmax.f32 %v7262, 0.0
        %v7590 = vmax.f32 %v7264, 0.0
        %v7591 = vmax.f32 %v7455, 0.0
        %v7592 = vmax.f32 %v7457, 0.0
        %v7593 = vmax.f32 %v7266, 0.0
        %v7594 = vmax.f32 %v7268, 0.0
        %v7595 = vmax.f32 %v7459, 0.0
        %v7596 = vmax.f32 %v7461, 0.0
        %v7597 = vmax.f32 %v7272, 0.0
        %v7598 = vmax.f32 %v7274, 0.0
        %v7599 = vmax.f32 %v7465, 0.0
        %v7600 = vmax.f32 %v7467, 0.0
        %v7601 = vmax.f32 %v7276, 0.0
        %v7602 = vmax.f32 %v7278, 0.0
        %v7603 = vmax.f32 %v7469, 0.0
        %v7604 = vmax.f32 %v7471, 0.0
        %v7605 = vmax.f32 %v7282, 0.0
        %v7606 = vmax.f32 %v7284, 0.0
        %v7607 = vmax.f32 %v7475, 0.0
        %v7608 = vmax.f32 %v7477, 0.0
        %v7609 = vmax.f32 %v7286, 0.0
        %v7610 = vmax.f32 %v7288, 0.0
        %v7611 = vmax.f32 %v7479, 0.0
        %v7612 = vmax.f32 %v7481, 0.0
        %v7613 = vmax.f32 %v7292, 0.0
        %v7614 = vmax.f32 %v7294, 0.0
        %v7615 = vmax.f32 %v7485, 0.0
        %v7616 = vmax.f32 %v7487, 0.0
        %v7617 = vmax.f32 %v7296, 0.0
        %v7618 = vmax.f32 %v7298, 0.0
        %v7619 = vmax.f32 %v7489, 0.0
        %v7620 = vmax.f32 %v7491, 0.0
        %v7621 = vpack.c.bf16 %v7497, %v7493
        %v7622 = vpack.c.bf16 %v7498, %v7494
        %v7623 = vpack.c.bf16 %v7499, %v7495
        %v7624 = vpack.c.bf16 %v7500, %v7496
        %v7625 = vpack.c.bf16 %v7505, %v7501
        %v7626 = vpack.c.bf16 %v7506, %v7502
        %v7627 = vpack.c.bf16 %v7507, %v7503
        %v7628 = vpack.c.bf16 %v7508, %v7504
        %v7629 = vpack.c.bf16 %v7513, %v7509
        %v7630 = vpack.c.bf16 %v7514, %v7510
        %v7631 = vpack.c.bf16 %v7515, %v7511
        %v7632 = vpack.c.bf16 %v7516, %v7512
        %v7633 = vpack.c.bf16 %v7521, %v7517
        %v7634 = vpack.c.bf16 %v7522, %v7518
        %v7635 = vpack.c.bf16 %v7523, %v7519
        %v7636 = vpack.c.bf16 %v7524, %v7520
        %v7637 = vpack.c.bf16 %v7529, %v7525
        %v7638 = vpack.c.bf16 %v7530, %v7526
        %v7639 = vpack.c.bf16 %v7531, %v7527
        %v7640 = vpack.c.bf16 %v7532, %v7528
        %v7641 = vpack.c.bf16 %v7537, %v7533
        %v7642 = vpack.c.bf16 %v7538, %v7534
        %v7643 = vpack.c.bf16 %v7539, %v7535
        %v7644 = vpack.c.bf16 %v7540, %v7536
        %v7645 = vpack.c.bf16 %v7545, %v7541
        %v7646 = vpack.c.bf16 %v7546, %v7542
        %v7647 = vpack.c.bf16 %v7547, %v7543
        %v7648 = vpack.c.bf16 %v7548, %v7544
        %v7649 = vpack.c.bf16 %v7553, %v7549
        %v7650 = vpack.c.bf16 %v7554, %v7550
        %v7651 = vpack.c.bf16 %v7555, %v7551
        %v7652 = vpack.c.bf16 %v7556, %v7552
        %v7653 = vpack.c.bf16 %v7561, %v7557
        %v7654 = vpack.c.bf16 %v7562, %v7558
        %v7655 = vpack.c.bf16 %v7563, %v7559
        %v7656 = vpack.c.bf16 %v7564, %v7560
        %v7657 = vpack.c.bf16 %v7569, %v7565
        %v7658 = vpack.c.bf16 %v7570, %v7566
        %v7659 = vpack.c.bf16 %v7571, %v7567
        %v7660 = vpack.c.bf16 %v7572, %v7568
        %v7661 = vpack.c.bf16 %v7577, %v7573
        %v7662 = vpack.c.bf16 %v7578, %v7574
        %v7663 = vpack.c.bf16 %v7579, %v7575
        %v7664 = vpack.c.bf16 %v7580, %v7576
        %v7665 = vpack.c.bf16 %v7585, %v7581
        %v7666 = vpack.c.bf16 %v7586, %v7582
        %v7667 = vpack.c.bf16 %v7587, %v7583
        %v7668 = vpack.c.bf16 %v7588, %v7584
        %v7669 = vpack.c.bf16 %v7593, %v7589
        %v7670 = vpack.c.bf16 %v7594, %v7590
        %v7671 = vpack.c.bf16 %v7595, %v7591
        %v7672 = vpack.c.bf16 %v7596, %v7592
        %v7673 = vpack.c.bf16 %v7601, %v7597
        %v7674 = vpack.c.bf16 %v7602, %v7598
        %v7675 = vpack.c.bf16 %v7603, %v7599
        %v7676 = vpack.c.bf16 %v7604, %v7600
        %v7677 = vpack.c.bf16 %v7609, %v7605
        %v7678 = vpack.c.bf16 %v7610, %v7606
        %v7679 = vpack.c.bf16 %v7611, %v7607
        %v7680 = vpack.c.bf16 %v7612, %v7608
        %v7681 = vpack.c.bf16 %v7617, %v7613
        %v7682 = vpack.c.bf16 %v7618, %v7614
        %v7683 = vpack.c.bf16 %v7619, %v7615
        %v7684 = vpack.c.bf16 %v7620, %v7616
        %v7685 = vld [vmem:[#allocation25] sm:$0xf]
        %v7686 = vld [vmem:[#allocation25 + $0x4] sm:$0xf]
        %v7687 = vld [vmem:[#allocation25 + $0x8] sm:$0xf]
        %v7688 = vld [vmem:[#allocation25 + $0xc] sm:$0xf]
        %v7689 = vld [vmem:[#allocation25 + $0x10] sm:$0xf]
        %v7690 = vld [vmem:[#allocation25 + $0x14] sm:$0xf]
        %v7691 = vld [vmem:[#allocation25 + $0x18] sm:$0xf]
        %v7692 = vld [vmem:[#allocation25 + $0x1c] sm:$0xf]
        %v7693 = vld [vmem:[#allocation25 + $0x20] sm:$0xf]
        %v7694 = vld [vmem:[#allocation25 + $0x24] sm:$0xf]
        %v7695 = vld [vmem:[#allocation25 + $0x28] sm:$0xf]
        %v7696 = vld [vmem:[#allocation25 + $0x2c] sm:$0xf]
        %v7697 = vld [vmem:[#allocation25 + $0x30] sm:$0xf]
        %v7698 = vld [vmem:[#allocation25 + $0x34] sm:$0xf]
        %v7699 = vld [vmem:[#allocation25 + $0x38] sm:$0xf]
        %v7700 = vld [vmem:[#allocation25 + $0x3c] sm:$0xf]
        %v7701 = vld [vmem:[#allocation25 + $0x40] sm:$0xf]
        %v7702 = vld [vmem:[#allocation25 + $0x44] sm:$0xf]
        %v7703 = vld [vmem:[#allocation25 + $0x48] sm:$0xf]
        %v7704 = vld [vmem:[#allocation25 + $0x4c] sm:$0xf]
        %v7705 = vld [vmem:[#allocation25 + $0x50] sm:$0xf]
        %v7706 = vld [vmem:[#allocation25 + $0x54] sm:$0xf]
        %v7707 = vld [vmem:[#allocation25 + $0x58] sm:$0xf]
        %v7708 = vld [vmem:[#allocation25 + $0x5c] sm:$0xf]
        %v7709 = vld [vmem:[#allocation25 + $0x60] sm:$0xf]
        %v7710 = vld [vmem:[#allocation25 + $0x64] sm:$0xf]
        %v7711 = vld [vmem:[#allocation25 + $0x68] sm:$0xf]
        %v7712 = vld [vmem:[#allocation25 + $0x6c] sm:$0xf]
        %v7713 = vld [vmem:[#allocation25 + $0x70] sm:$0xf]
        %v7714 = vld [vmem:[#allocation25 + $0x74] sm:$0xf]
        %v7715 = vld [vmem:[#allocation25 + $0x78] sm:$0xf]
        %v7716 = vld [vmem:[#allocation25 + $0x7c] sm:$0xf]
        %v7717 = vld [vmem:[#allocation25 + $0x80] sm:$0xf]
        %v7718 = vld [vmem:[#allocation25 + $0x84] sm:$0xf]
        %v7719 = vld [vmem:[#allocation25 + $0x88] sm:$0xf]
        %v7720 = vld [vmem:[#allocation25 + $0x8c] sm:$0xf]
        %v7721 = vld [vmem:[#allocation25 + $0x90] sm:$0xf]
        %v7722 = vld [vmem:[#allocation25 + $0x94] sm:$0xf]
        %v7723 = vld [vmem:[#allocation25 + $0x98] sm:$0xf]
        %v7724 = vld [vmem:[#allocation25 + $0x9c] sm:$0xf]
        %v7725 = vld [vmem:[#allocation25 + $0xa0] sm:$0xf]
        %v7726 = vld [vmem:[#allocation25 + $0xa4] sm:$0xf]
        %v7727 = vld [vmem:[#allocation25 + $0xa8] sm:$0xf]
        %v7728 = vld [vmem:[#allocation25 + $0xac] sm:$0xf]
        %v7729 = vld [vmem:[#allocation25 + $0xb0] sm:$0xf]
        %v7730 = vld [vmem:[#allocation25 + $0xb4] sm:$0xf]
        %v7731 = vld [vmem:[#allocation25 + $0xb8] sm:$0xf]
        %v7732 = vld [vmem:[#allocation25 + $0xbc] sm:$0xf]
        %v7733 = vld [vmem:[#allocation25 + $0xc0] sm:$0xf]
        %v7734 = vld [vmem:[#allocation25 + $0xc4] sm:$0xf]
        %v7735 = vld [vmem:[#allocation25 + $0xc8] sm:$0xf]
        %v7736 = vld [vmem:[#allocation25 + $0xcc] sm:$0xf]
        %v7737 = vld [vmem:[#allocation25 + $0xd0] sm:$0xf]
        %v7738 = vld [vmem:[#allocation25 + $0xd4] sm:$0xf]
        %v7739 = vld [vmem:[#allocation25 + $0xd8] sm:$0xf]
        %v7740 = vld [vmem:[#allocation25 + $0xdc] sm:$0xf]
        %v7741 = vld [vmem:[#allocation25 + $0xe0] sm:$0xf]
        %v7742 = vld [vmem:[#allocation25 + $0xe4] sm:$0xf]
        %v7743 = vld [vmem:[#allocation25 + $0xe8] sm:$0xf]
        %v7744 = vld [vmem:[#allocation25 + $0xec] sm:$0xf]
        %v7745 = vld [vmem:[#allocation25 + $0xf0] sm:$0xf]
        %v7746 = vld [vmem:[#allocation25 + $0xf4] sm:$0xf]
        %v7747 = vld [vmem:[#allocation25 + $0xf8] sm:$0xf]
        %v7748 = vld [vmem:[#allocation25 + $0xfc] sm:$0xf]
        %v7749 = vld [vmem:[%s17] sm:$0x1]
        %v7751 = vlaneseq
        %v7752 = vshrl.u32 %v7751, 7
        %v7753 = vsub.s32 0, %v7752
        %v7754 = vrot.slane %v7749, %v7753
        %v7820 = vunpack.c.l.b16 %v7685
        %v7821 = vunpack.c.l.b16 %v7686
        %v7822 = vunpack.c.l.b16 %v7687
        %v7823 = vunpack.c.l.b16 %v7688
        %v7824 = vunpack.c.l.b16 %v7689
        %v7825 = vunpack.c.l.b16 %v7690
        %v7826 = vunpack.c.l.b16 %v7691
        %v7827 = vunpack.c.l.b16 %v7692
        %v7828 = vunpack.c.l.b16 %v7693
        %v7829 = vunpack.c.l.b16 %v7694
        %v7830 = vunpack.c.l.b16 %v7695
        %v7831 = vunpack.c.l.b16 %v7696
        %v7832 = vunpack.c.l.b16 %v7697
        %v7833 = vunpack.c.l.b16 %v7698
        %v7834 = vunpack.c.l.b16 %v7699
        %v7835 = vunpack.c.l.b16 %v7700
        %v7836 = vunpack.c.l.b16 %v7701
        %v7837 = vunpack.c.l.b16 %v7702
        %v7838 = vunpack.c.l.b16 %v7703
        %v7839 = vunpack.c.l.b16 %v7704
        %v7840 = vunpack.c.l.b16 %v7705
        %v7841 = vunpack.c.l.b16 %v7706
        %v7842 = vunpack.c.l.b16 %v7707
        %v7843 = vunpack.c.l.b16 %v7708
        %v7844 = vunpack.c.l.b16 %v7709
        %v7845 = vunpack.c.l.b16 %v7710
        %v7846 = vunpack.c.l.b16 %v7711
        %v7847 = vunpack.c.l.b16 %v7712
        %v7848 = vunpack.c.l.b16 %v7713
        %v7849 = vunpack.c.l.b16 %v7714
        %v7850 = vunpack.c.l.b16 %v7715
        %v7851 = vunpack.c.l.b16 %v7716
        %v7852 = vunpack.c.l.b16 %v7717
        %v7853 = vunpack.c.l.b16 %v7718
        %v7854 = vunpack.c.l.b16 %v7719
        %v7855 = vunpack.c.l.b16 %v7720
        %v7856 = vunpack.c.l.b16 %v7721
        %v7857 = vunpack.c.l.b16 %v7722
        %v7858 = vunpack.c.l.b16 %v7723
        %v7859 = vunpack.c.l.b16 %v7724
        %v7860 = vunpack.c.l.b16 %v7725
        %v7861 = vunpack.c.l.b16 %v7726
        %v7862 = vunpack.c.l.b16 %v7727
        %v7863 = vunpack.c.l.b16 %v7728
        %v7864 = vunpack.c.l.b16 %v7729
        %v7865 = vunpack.c.l.b16 %v7730
        %v7866 = vunpack.c.l.b16 %v7731
        %v7867 = vunpack.c.l.b16 %v7732
        %v7868 = vunpack.c.l.b16 %v7733
        %v7869 = vunpack.c.l.b16 %v7734
        %v7870 = vunpack.c.l.b16 %v7735
        %v7871 = vunpack.c.l.b16 %v7736
        %v7872 = vunpack.c.l.b16 %v7737
        %v7873 = vunpack.c.l.b16 %v7738
        %v7874 = vunpack.c.l.b16 %v7739
        %v7875 = vunpack.c.l.b16 %v7740
        %v7876 = vunpack.c.l.b16 %v7741
        %v7877 = vunpack.c.l.b16 %v7742
        %v7878 = vunpack.c.l.b16 %v7743
        %v7879 = vunpack.c.l.b16 %v7744
        %v7880 = vunpack.c.l.b16 %v7745
        %v7881 = vunpack.c.l.b16 %v7746
        %v7882 = vunpack.c.l.b16 %v7747
        %v7883 = vunpack.c.l.b16 %v7748
        %v7884 = vpack.c.b16 %v7821, %v7820
        %v7885 = vpack.c.b16 %v7823, %v7822
        %v7886 = vpack.c.b16 %v7825, %v7824
        %v7887 = vpack.c.b16 %v7827, %v7826
        %v7888 = vpack.c.b16 %v7829, %v7828
        %v7889 = vpack.c.b16 %v7831, %v7830
        %v7890 = vpack.c.b16 %v7833, %v7832
        %v7891 = vpack.c.b16 %v7835, %v7834
        %v7892 = vpack.c.b16 %v7837, %v7836
        %v7893 = vpack.c.b16 %v7839, %v7838
        %v7894 = vpack.c.b16 %v7841, %v7840
        %v7895 = vpack.c.b16 %v7843, %v7842
        %v7896 = vpack.c.b16 %v7845, %v7844
        %v7897 = vpack.c.b16 %v7847, %v7846
        %v7898 = vpack.c.b16 %v7849, %v7848
        %v7899 = vpack.c.b16 %v7851, %v7850
        %v7900 = vpack.c.b16 %v7853, %v7852
        %v7901 = vpack.c.b16 %v7855, %v7854
        %v7902 = vpack.c.b16 %v7857, %v7856
        %v7903 = vpack.c.b16 %v7859, %v7858
        %v7904 = vpack.c.b16 %v7861, %v7860
        %v7905 = vpack.c.b16 %v7863, %v7862
        %v7906 = vpack.c.b16 %v7865, %v7864
        %v7907 = vpack.c.b16 %v7867, %v7866
        %v7908 = vpack.c.b16 %v7869, %v7868
        %v7909 = vpack.c.b16 %v7871, %v7870
        %v7910 = vpack.c.b16 %v7873, %v7872
        %v7911 = vpack.c.b16 %v7875, %v7874
        %v7912 = vpack.c.b16 %v7877, %v7876
        %v7913 = vpack.c.b16 %v7879, %v7878
        %v7914 = vpack.c.b16 %v7881, %v7880
        %v7915 = vpack.c.b16 %v7883, %v7882
        %7948 = vmatprep.subr.bf16.mxu0 0
        %7949 = vmatpush1.bf16.msra.mxu0 %v7884
        %7950 = vmatprep.subr.bf16.mxu0 0
        %7951 = vmatpush1.bf16.msra.mxu0 %v7885
        %7952 = vmatprep.subr.bf16.mxu0 0
        %7953 = vmatpush1.bf16.msra.mxu0 %v7886
        %7954 = vmatprep.subr.bf16.mxu0 0
        %7955 = vmatpush1.bf16.msra.mxu0 %v7887
        %7956 = vmatprep.subr.bf16.mxu0 0
        %7957 = vmatpush1.bf16.msra.mxu0 %v7888
        %7958 = vmatprep.subr.bf16.mxu0 0
        %7959 = vmatpush1.bf16.msra.mxu0 %v7889
        %7960 = vmatprep.subr.bf16.mxu0 0
        %7961 = vmatpush1.bf16.msra.mxu0 %v7890
        %7962 = vmatprep.subr.bf16.mxu0 0
        %7963 = vmatpush1.bf16.msra.mxu0 %v7891
        %7964 = vmatprep.subr.bf16.mxu0 0
        %7965 = vmatpush1.bf16.msra.mxu0 %v7892
        %7966 = vmatprep.subr.bf16.mxu0 0
        %7967 = vmatpush1.bf16.msra.mxu0 %v7893
        %7968 = vmatprep.subr.bf16.mxu0 0
        %7969 = vmatpush1.bf16.msra.mxu0 %v7894
        %7970 = vmatprep.subr.bf16.mxu0 0
        %7971 = vmatpush1.bf16.msra.mxu0 %v7895
        %7972 = vmatprep.subr.bf16.mxu0 0
        %7973 = vmatpush1.bf16.msra.mxu0 %v7896
        %7974 = vmatprep.subr.bf16.mxu0 0
        %7975 = vmatpush1.bf16.msra.mxu0 %v7897
        %7976 = vmatprep.subr.bf16.mxu0 0
        %7977 = vmatpush1.bf16.msra.mxu0 %v7898
        %7978 = vmatprep.subr.bf16.mxu0 0
        %7979 = vmatpush1.bf16.msra.mxu0 %v7899
        %7980 = vmatprep.mubr.bf16.mxu0 %v7622
        %7981 = vmatmul.mubr.bf16.gmra.mrb[0].mxu0 %v7621
        %v7982 = vpop.f32.mrb[0].mxu0
        %v7983 = vadd.f32 %v7754, %v7982
        %v7984 = vpop.f32.mrb[0].mxu0
        %v7985 = vpop.f32.mrb[0].mxu0
        %v7986 = vadd.f32 %v7754, %v7985
        %v7987 = vpop.f32.mrb[0].mxu0
        %7988 = vmatprep.mubr.bf16.mxu0 %v7626
        %7989 = vmatmul.mubr.bf16.gmra.mrb[0].mxu0 %v7625
        %v7990 = vpop.f32.mrb[0].mxu0
        %v7991 = vadd.f32 %v7754, %v7990
        %v7992 = vpop.f32.mrb[0].mxu0
        %v7993 = vpop.f32.mrb[0].mxu0
        %v7994 = vadd.f32 %v7754, %v7993
        %v7995 = vpop.f32.mrb[0].mxu0
        %7996 = vmatprep.mubr.bf16.mxu0 %v7630
        %7997 = vmatmul.mubr.bf16.gmra.mrb[0].mxu0 %v7629
        %v7998 = vpop.f32.mrb[0].mxu0
        %v7999 = vadd.f32 %v7754, %v7998
        %v8000 = vpop.f32.mrb[0].mxu0
        %v8001 = vpop.f32.mrb[0].mxu0
        %v8002 = vadd.f32 %v7754, %v8001
        %v8003 = vpop.f32.mrb[0].mxu0
        %8004 = vmatprep.mubr.bf16.mxu0 %v7634
        %8005 = vmatmul.mubr.bf16.gmra.mrb[0].mxu0 %v7633
        %v8006 = vpop.f32.mrb[0].mxu0
        %v8007 = vadd.f32 %v7754, %v8006
        %v8008 = vpop.f32.mrb[0].mxu0
        %v8009 = vpop.f32.mrb[0].mxu0
        %v8010 = vadd.f32 %v7754, %v8009
        %v8011 = vpop.f32.mrb[0].mxu0
        %8012 = vmatprep.mubr.bf16.mxu0 %v7638
        %8013 = vmatmul.mubr.bf16.gmra.mrb[0].mxu0 %v7637
        %v8014 = vpop.f32.mrb[0].mxu0
        %v8015 = vadd.f32 %v7754, %v8014
        %v8016 = vpop.f32.mrb[0].mxu0
        %v8017 = vpop.f32.mrb[0].mxu0
        %v8018 = vadd.f32 %v7754, %v8017
        %v8019 = vpop.f32.mrb[0].mxu0
        %8020 = vmatprep.mubr.bf16.mxu0 %v7642
        %8021 = vmatmul.mubr.bf16.gmra.mrb[0].mxu0 %v7641
        %v8022 = vpop.f32.mrb[0].mxu0
        %v8023 = vadd.f32 %v7754, %v8022
        %v8024 = vpop.f32.mrb[0].mxu0
        %v8025 = vpop.f32.mrb[0].mxu0
        %v8026 = vadd.f32 %v7754, %v8025
        %v8027 = vpop.f32.mrb[0].mxu0
        %8028 = vmatprep.mubr.bf16.mxu0 %v7646
        %8029 = vmatmul.mubr.bf16.gmra.mrb[0].mxu0 %v7645
        %v8030 = vpop.f32.mrb[0].mxu0
        %v8031 = vadd.f32 %v7754, %v8030
        %v8032 = vpop.f32.mrb[0].mxu0
        %v8033 = vpop.f32.mrb[0].mxu0
        %v8034 = vadd.f32 %v7754, %v8033
        %v8035 = vpop.f32.mrb[0].mxu0
        %8036 = vmatprep.mubr.bf16.mxu0 %v7650
        %8037 = vmatmul.mubr.bf16.gmra.mrb[0].mxu0 %v7649
        %v8038 = vpop.f32.mrb[0].mxu0
        %v8039 = vadd.f32 %v7754, %v8038
        %v8040 = vpop.f32.mrb[0].mxu0
        %v8041 = vpop.f32.mrb[0].mxu0
        %v8042 = vadd.f32 %v7754, %v8041
        %v8043 = vpop.f32.mrb[0].mxu0
        %8044 = vmatprep.mubr.bf16.mxu0 %v7654
        %8045 = vmatmul.mubr.bf16.gmra.mrb[0].mxu0 %v7653
        %v8046 = vpop.f32.mrb[0].mxu0
        %v8047 = vadd.f32 %v7754, %v8046
        %v8048 = vpop.f32.mrb[0].mxu0
        %v8049 = vpop.f32.mrb[0].mxu0
        %v8050 = vadd.f32 %v7754, %v8049
        %v8051 = vpop.f32.mrb[0].mxu0
        %8052 = vmatprep.mubr.bf16.mxu0 %v7658
        %8053 = vmatmul.mubr.bf16.gmra.mrb[0].mxu0 %v7657
        %v8054 = vpop.f32.mrb[0].mxu0
        %v8055 = vadd.f32 %v7754, %v8054
        %v8056 = vpop.f32.mrb[0].mxu0
        %v8057 = vpop.f32.mrb[0].mxu0
        %v8058 = vadd.f32 %v7754, %v8057
        %v8059 = vpop.f32.mrb[0].mxu0
        %8060 = vmatprep.mubr.bf16.mxu0 %v7662
        %8061 = vmatmul.mubr.bf16.gmra.mrb[0].mxu0 %v7661
        %v8062 = vpop.f32.mrb[0].mxu0
        %v8063 = vadd.f32 %v7754, %v8062
        %v8064 = vpop.f32.mrb[0].mxu0
        %v8065 = vpop.f32.mrb[0].mxu0
        %v8066 = vadd.f32 %v7754, %v8065
        %v8067 = vpop.f32.mrb[0].mxu0
        %8068 = vmatprep.mubr.bf16.mxu0 %v7666
        %8069 = vmatmul.mubr.bf16.gmra.mrb[0].mxu0 %v7665
        %v8070 = vpop.f32.mrb[0].mxu0
        %v8071 = vadd.f32 %v7754, %v8070
        %v8072 = vpop.f32.mrb[0].mxu0
        %v8073 = vpop.f32.mrb[0].mxu0
        %v8074 = vadd.f32 %v7754, %v8073
        %v8075 = vpop.f32.mrb[0].mxu0
        %8076 = vmatprep.mubr.bf16.mxu0 %v7670
        %8077 = vmatmul.mubr.bf16.gmra.mrb[0].mxu0 %v7669
        %v8078 = vpop.f32.mrb[0].mxu0
        %v8079 = vadd.f32 %v7754, %v8078
        %v8080 = vpop.f32.mrb[0].mxu0
        %v8081 = vpop.f32.mrb[0].mxu0
        %v8082 = vadd.f32 %v7754, %v8081
        %v8083 = vpop.f32.mrb[0].mxu0
        %8084 = vmatprep.mubr.bf16.mxu0 %v7674
        %8085 = vmatmul.mubr.bf16.gmra.mrb[0].mxu0 %v7673
        %v8086 = vpop.f32.mrb[0].mxu0
        %v8087 = vadd.f32 %v7754, %v8086
        %v8088 = vpop.f32.mrb[0].mxu0
        %v8089 = vpop.f32.mrb[0].mxu0
        %v8090 = vadd.f32 %v7754, %v8089
        %v8091 = vpop.f32.mrb[0].mxu0
        %8092 = vmatprep.mubr.bf16.mxu0 %v7678
        %8093 = vmatmul.mubr.bf16.gmra.mrb[0].mxu0 %v7677
        %v8094 = vpop.f32.mrb[0].mxu0
        %v8095 = vadd.f32 %v7754, %v8094
        %v8096 = vpop.f32.mrb[0].mxu0
        %v8097 = vpop.f32.mrb[0].mxu0
        %v8098 = vadd.f32 %v7754, %v8097
        %v8099 = vpop.f32.mrb[0].mxu0
        %8100 = vmatprep.mubr.bf16.mxu0 %v7682
        %8101 = vmatmul.mubr.bf16.gmra.mrb[0].mxu0 %v7681
        %v8102 = vpop.f32.mrb[0].mxu0
        %v8103 = vadd.f32 %v7754, %v8102
        %v8104 = vpop.f32.mrb[0].mxu0
        %v8105 = vpop.f32.mrb[0].mxu0
        %v8106 = vadd.f32 %v7754, %v8105
        %v8107 = vpop.f32.mrb[0].mxu0
        %8108 = vdwg.mxu0
        %8109 = vmatprep.subr.bf16.mxu0 0
        %8110 = vmatpush1.bf16.msra.mxu0 %v7900
        %8111 = vmatprep.subr.bf16.mxu0 0
        %8112 = vmatpush1.bf16.msra.mxu0 %v7901
        %8113 = vmatprep.subr.bf16.mxu0 0
        %8114 = vmatpush1.bf16.msra.mxu0 %v7902
        %8115 = vmatprep.subr.bf16.mxu0 0
        %8116 = vmatpush1.bf16.msra.mxu0 %v7903
        %8117 = vmatprep.subr.bf16.mxu0 0
        %8118 = vmatpush1.bf16.msra.mxu0 %v7904
        %8119 = vmatprep.subr.bf16.mxu0 0
        %8120 = vmatpush1.bf16.msra.mxu0 %v7905
        %8121 = vmatprep.subr.bf16.mxu0 0
        %8122 = vmatpush1.bf16.msra.mxu0 %v7906
        %8123 = vmatprep.subr.bf16.mxu0 0
        %8124 = vmatpush1.bf16.msra.mxu0 %v7907
        %8125 = vmatprep.subr.bf16.mxu0 0
        %8126 = vmatpush1.bf16.msra.mxu0 %v7908
        %8127 = vmatprep.subr.bf16.mxu0 0
        %8128 = vmatpush1.bf16.msra.mxu0 %v7909
        %8129 = vmatprep.subr.bf16.mxu0 0
        %8130 = vmatpush1.bf16.msra.mxu0 %v7910
        %8131 = vmatprep.subr.bf16.mxu0 0
        %8132 = vmatpush1.bf16.msra.mxu0 %v7911
        %8133 = vmatprep.subr.bf16.mxu0 0
        %8134 = vmatpush1.bf16.msra.mxu0 %v7912
        %8135 = vmatprep.subr.bf16.mxu0 0
        %8136 = vmatpush1.bf16.msra.mxu0 %v7913
        %8137 = vmatprep.subr.bf16.mxu0 0
        %8138 = vmatpush1.bf16.msra.mxu0 %v7914
        %8139 = vmatprep.subr.bf16.mxu0 0
        %8140 = vmatpush1.bf16.msra.mxu0 %v7915
        %8141 = vmatprep.mubr.bf16.mxu0 %v7624
        %8142 = vmatmul.mubr.bf16.gmra.mrb[0].mxu0 %v7623
        %v8143 = vpop.f32.mrb[0].mxu0
        %v8144 = vadd.f32 %v7983, %v8143
        %v8145 = vpop.f32.mrb[0].mxu0
        %v8146 = vpop.f32.mrb[0].mxu0
        %v8147 = vadd.f32 %v7986, %v8146
        %v8148 = vpop.f32.mrb[0].mxu0
        %8149 = vmatprep.mubr.bf16.mxu0 %v7628
        %8150 = vmatmul.mubr.bf16.gmra.mrb[0].mxu0 %v7627
        %v8151 = vpop.f32.mrb[0].mxu0
        %v8152 = vadd.f32 %v7991, %v8151
        %v8153 = vpop.f32.mrb[0].mxu0
        %v8154 = vpop.f32.mrb[0].mxu0
        %v8155 = vadd.f32 %v7994, %v8154
        %v8156 = vpop.f32.mrb[0].mxu0
        %8157 = vmatprep.mubr.bf16.mxu0 %v7632
        %8158 = vmatmul.mubr.bf16.gmra.mrb[0].mxu0 %v7631
        %v8159 = vpop.f32.mrb[0].mxu0
        %v8160 = vadd.f32 %v7999, %v8159
        %v8161 = vpop.f32.mrb[0].mxu0
        %v8162 = vpop.f32.mrb[0].mxu0
        %v8163 = vadd.f32 %v8002, %v8162
        %v8164 = vpop.f32.mrb[0].mxu0
        %8165 = vmatprep.mubr.bf16.mxu0 %v7636
        %8166 = vmatmul.mubr.bf16.gmra.mrb[0].mxu0 %v7635
        %v8167 = vpop.f32.mrb[0].mxu0
        %v8168 = vadd.f32 %v8007, %v8167
        %v8169 = vpop.f32.mrb[0].mxu0
        %v8170 = vpop.f32.mrb[0].mxu0
        %v8171 = vadd.f32 %v8010, %v8170
        %v8172 = vpop.f32.mrb[0].mxu0
        %8173 = vmatprep.mubr.bf16.mxu0 %v7640
        %8174 = vmatmul.mubr.bf16.gmra.mrb[0].mxu0 %v7639
        %v8175 = vpop.f32.mrb[0].mxu0
        %v8176 = vadd.f32 %v8015, %v8175
        %v8177 = vpop.f32.mrb[0].mxu0
        %v8178 = vpop.f32.mrb[0].mxu0
        %v8179 = vadd.f32 %v8018, %v8178
        %v8180 = vpop.f32.mrb[0].mxu0
        %8181 = vmatprep.mubr.bf16.mxu0 %v7644
        %8182 = vmatmul.mubr.bf16.gmra.mrb[0].mxu0 %v7643
        %v8183 = vpop.f32.mrb[0].mxu0
        %v8184 = vadd.f32 %v8023, %v8183
        %v8185 = vpop.f32.mrb[0].mxu0
        %v8186 = vpop.f32.mrb[0].mxu0
        %v8187 = vadd.f32 %v8026, %v8186
        %v8188 = vpop.f32.mrb[0].mxu0
        %8189 = vmatprep.mubr.bf16.mxu0 %v7648
        %8190 = vmatmul.mubr.bf16.gmra.mrb[0].mxu0 %v7647
        %v8191 = vpop.f32.mrb[0].mxu0
        %v8192 = vadd.f32 %v8031, %v8191
        %v8193 = vpop.f32.mrb[0].mxu0
        %v8194 = vpop.f32.mrb[0].mxu0
        %v8195 = vadd.f32 %v8034, %v8194
        %v8196 = vpop.f32.mrb[0].mxu0
        %8197 = vmatprep.mubr.bf16.mxu0 %v7652
        %8198 = vmatmul.mubr.bf16.gmra.mrb[0].mxu0 %v7651
        %v8199 = vpop.f32.mrb[0].mxu0
        %v8200 = vadd.f32 %v8039, %v8199
        %v8201 = vpop.f32.mrb[0].mxu0
        %v8202 = vpop.f32.mrb[0].mxu0
        %v8203 = vadd.f32 %v8042, %v8202
        %v8204 = vpop.f32.mrb[0].mxu0
        %8205 = vmatprep.mubr.bf16.mxu0 %v7656
        %8206 = vmatmul.mubr.bf16.gmra.mrb[0].mxu0 %v7655
        %v8207 = vpop.f32.mrb[0].mxu0
        %v8208 = vadd.f32 %v8047, %v8207
        %v8209 = vpop.f32.mrb[0].mxu0
        %v8210 = vpop.f32.mrb[0].mxu0
        %v8211 = vadd.f32 %v8050, %v8210
        %v8212 = vpop.f32.mrb[0].mxu0
        %8213 = vmatprep.mubr.bf16.mxu0 %v7660
        %8214 = vmatmul.mubr.bf16.gmra.mrb[0].mxu0 %v7659
        %v8215 = vpop.f32.mrb[0].mxu0
        %v8216 = vadd.f32 %v8055, %v8215
        %v8217 = vpop.f32.mrb[0].mxu0
        %v8218 = vpop.f32.mrb[0].mxu0
        %v8219 = vadd.f32 %v8058, %v8218
        %v8220 = vpop.f32.mrb[0].mxu0
        %8221 = vmatprep.mubr.bf16.mxu0 %v7664
        %8222 = vmatmul.mubr.bf16.gmra.mrb[0].mxu0 %v7663
        %v8223 = vpop.f32.mrb[0].mxu0
        %v8224 = vadd.f32 %v8063, %v8223
        %v8225 = vpop.f32.mrb[0].mxu0
        %v8226 = vpop.f32.mrb[0].mxu0
        %v8227 = vadd.f32 %v8066, %v8226
        %v8228 = vpop.f32.mrb[0].mxu0
        %8229 = vmatprep.mubr.bf16.mxu0 %v7668
        %8230 = vmatmul.mubr.bf16.gmra.mrb[0].mxu0 %v7667
        %v8231 = vpop.f32.mrb[0].mxu0
        %v8232 = vadd.f32 %v8071, %v8231
        %v8233 = vpop.f32.mrb[0].mxu0
        %v8234 = vpop.f32.mrb[0].mxu0
        %v8235 = vadd.f32 %v8074, %v8234
        %v8236 = vpop.f32.mrb[0].mxu0
        %8237 = vmatprep.mubr.bf16.mxu0 %v7672
        %8238 = vmatmul.mubr.bf16.gmra.mrb[0].mxu0 %v7671
        %v8239 = vpop.f32.mrb[0].mxu0
        %v8240 = vadd.f32 %v8079, %v8239
        %v8241 = vpop.f32.mrb[0].mxu0
        %v8242 = vpop.f32.mrb[0].mxu0
        %v8243 = vadd.f32 %v8082, %v8242
        %v8244 = vpop.f32.mrb[0].mxu0
        %8245 = vmatprep.mubr.bf16.mxu0 %v7676
        %8246 = vmatmul.mubr.bf16.gmra.mrb[0].mxu0 %v7675
        %v8247 = vpop.f32.mrb[0].mxu0
        %v8248 = vadd.f32 %v8087, %v8247
        %v8249 = vpop.f32.mrb[0].mxu0
        %v8250 = vpop.f32.mrb[0].mxu0
        %v8251 = vadd.f32 %v8090, %v8250
        %v8252 = vpop.f32.mrb[0].mxu0
        %8253 = vmatprep.mubr.bf16.mxu0 %v7680
        %8254 = vmatmul.mubr.bf16.gmra.mrb[0].mxu0 %v7679
        %v8255 = vpop.f32.mrb[0].mxu0
        %v8256 = vadd.f32 %v8095, %v8255
        %v8257 = vpop.f32.mrb[0].mxu0
        %v8258 = vpop.f32.mrb[0].mxu0
        %v8259 = vadd.f32 %v8098, %v8258
        %v8260 = vpop.f32.mrb[0].mxu0
        %8261 = vmatprep.mubr.bf16.mxu0 %v7684
        %8262 = vmatmul.mubr.bf16.gmra.mrb[0].mxu0 %v7683
        %v8263 = vpop.f32.mrb[0].mxu0
        %v8264 = vadd.f32 %v8103, %v8263
        %v8265 = vpop.f32.mrb[0].mxu0
        %v8266 = vpop.f32.mrb[0].mxu0
        %v8267 = vadd.f32 %v8106, %v8266
        %v8268 = vpop.f32.mrb[0].mxu0
        %8269 = vdwg.mxu0
        %v8270 = vadd.f32 %v8144, %v6845
        %v8271 = vadd.f32 %v8147, %v6846
        %v8272 = vadd.f32 %v8152, %v6847
        %v8273 = vadd.f32 %v8155, %v6848
        %v8274 = vadd.f32 %v8160, %v6849
        %v8275 = vadd.f32 %v8163, %v6850
        %v8276 = vadd.f32 %v8168, %v6851
        %v8277 = vadd.f32 %v8171, %v6852
        %v8278 = vadd.f32 %v8176, %v6853
        %v8279 = vadd.f32 %v8179, %v6854
        %v8280 = vadd.f32 %v8184, %v6855
        %v8281 = vadd.f32 %v8187, %v6856
        %v8282 = vadd.f32 %v8192, %v6857
        %v8283 = vadd.f32 %v8195, %v6858
        %v8284 = vadd.f32 %v8200, %v6859
        %v8285 = vadd.f32 %v8203, %v6860
        %v8286 = vadd.f32 %v8208, %v6861
        %v8287 = vadd.f32 %v8211, %v6862
        %v8288 = vadd.f32 %v8216, %v6863
        %v8289 = vadd.f32 %v8219, %v6864
        %v8290 = vadd.f32 %v8224, %v6865
        %v8291 = vadd.f32 %v8227, %v6866
        %v8292 = vadd.f32 %v8232, %v6867
        %v8293 = vadd.f32 %v8235, %v6868
        %v8294 = vadd.f32 %v8240, %v6869
        %v8295 = vadd.f32 %v8243, %v6870
        %v8296 = vadd.f32 %v8248, %v6871
        %v8297 = vadd.f32 %v8251, %v6872
        %v8298 = vadd.f32 %v8256, %v6873
        %v8299 = vadd.f32 %v8259, %v6874
        %v8300 = vadd.f32 %v8264, %v6875
        %v8301 = vadd.f32 %v8267, %v6876
        %8302 = vadd.xlane.f32.xlu0 %v8270
        %v8303 = vpop.xlane.xlu0 %8302
        %8304 = vadd.xlane.f32.xlu0 %v8271
        %v8305 = vpop.xlane.xlu0 %8304
        %8306 = vadd.xlane.f32.xlu0 %v8272
        %v8307 = vpop.xlane.xlu0 %8306
        %8308 = vadd.xlane.f32.xlu0 %v8273
        %v8309 = vpop.xlane.xlu0 %8308
        %8310 = vadd.xlane.f32.xlu0 %v8274
        %v8311 = vpop.xlane.xlu0 %8310
        %8312 = vadd.xlane.f32.xlu0 %v8275
        %v8313 = vpop.xlane.xlu0 %8312
        %8314 = vadd.xlane.f32.xlu0 %v8276
        %v8315 = vpop.xlane.xlu0 %8314
        %8316 = vadd.xlane.f32.xlu0 %v8277
        %v8317 = vpop.xlane.xlu0 %8316
        %8318 = vadd.xlane.f32.xlu0 %v8278
        %v8319 = vpop.xlane.xlu0 %8318
        %8320 = vadd.xlane.f32.xlu0 %v8279
        %v8321 = vpop.xlane.xlu0 %8320
        %8322 = vadd.xlane.f32.xlu0 %v8280
        %v8323 = vpop.xlane.xlu0 %8322
        %8324 = vadd.xlane.f32.xlu0 %v8281
        %v8325 = vpop.xlane.xlu0 %8324
        %8326 = vadd.xlane.f32.xlu0 %v8282
        %v8327 = vpop.xlane.xlu0 %8326
        %8328 = vadd.xlane.f32.xlu0 %v8283
        %v8329 = vpop.xlane.xlu0 %8328
        %8330 = vadd.xlane.f32.xlu0 %v8284
        %v8331 = vpop.xlane.xlu0 %8330
        %8332 = vadd.xlane.f32.xlu0 %v8285
        %v8333 = vpop.xlane.xlu0 %8332
        %8334 = vadd.xlane.f32.xlu0 %v8286
        %v8335 = vpop.xlane.xlu0 %8334
        %8336 = vadd.xlane.f32.xlu0 %v8287
        %v8337 = vpop.xlane.xlu0 %8336
        %8338 = vadd.xlane.f32.xlu0 %v8288
        %v8339 = vpop.xlane.xlu0 %8338
        %8340 = vadd.xlane.f32.xlu0 %v8289
        %v8341 = vpop.xlane.xlu0 %8340
        %8342 = vadd.xlane.f32.xlu0 %v8290
        %v8343 = vpop.xlane.xlu0 %8342
        %8344 = vadd.xlane.f32.xlu0 %v8291
        %v8345 = vpop.xlane.xlu0 %8344
        %8346 = vadd.xlane.f32.xlu0 %v8292
        %v8347 = vpop.xlane.xlu0 %8346
        %8348 = vadd.xlane.f32.xlu0 %v8293
        %v8349 = vpop.xlane.xlu0 %8348
        %8350 = vadd.xlane.f32.xlu0 %v8294
        %v8351 = vpop.xlane.xlu0 %8350
        %8352 = vadd.xlane.f32.xlu0 %v8295
        %v8353 = vpop.xlane.xlu0 %8352
        %8354 = vadd.xlane.f32.xlu0 %v8296
        %v8355 = vpop.xlane.xlu0 %8354
        %8356 = vadd.xlane.f32.xlu0 %v8297
        %v8357 = vpop.xlane.xlu0 %8356
        %8358 = vadd.xlane.f32.xlu0 %v8298
        %v8359 = vpop.xlane.xlu0 %8358
        %8360 = vadd.xlane.f32.xlu0 %v8299
        %v8361 = vpop.xlane.xlu0 %8360
        %8362 = vadd.xlane.f32.xlu0 %v8300
        %v8363 = vpop.xlane.xlu0 %8362
        %8364 = vadd.xlane.f32.xlu0 %v8301
        %v8365 = vpop.xlane.xlu0 %8364
        %v8366 = vmul.f32 %v8303, %v6510
        %v8367 = vmul.f32 %v8305, %v6510
        %v8368 = vmul.f32 %v8307, %v6510
        %v8369 = vmul.f32 %v8309, %v6510
        %v8370 = vmul.f32 %v8311, %v6510
        %v8371 = vmul.f32 %v8313, %v6510
        %v8372 = vmul.f32 %v8315, %v6510
        %v8373 = vmul.f32 %v8317, %v6510
        %v8374 = vmul.f32 %v8319, %v6510
        %v8375 = vmul.f32 %v8321, %v6510
        %v8376 = vmul.f32 %v8323, %v6510
        %v8377 = vmul.f32 %v8325, %v6510
        %v8378 = vmul.f32 %v8327, %v6510
        %v8379 = vmul.f32 %v8329, %v6510
        %v8380 = vmul.f32 %v8331, %v6510
        %v8381 = vmul.f32 %v8333, %v6510
        %v8382 = vmul.f32 %v8335, %v6510
        %v8383 = vmul.f32 %v8337, %v6510
        %v8384 = vmul.f32 %v8339, %v6510
        %v8385 = vmul.f32 %v8341, %v6510
        %v8386 = vmul.f32 %v8343, %v6510
        %v8387 = vmul.f32 %v8345, %v6510
        %v8388 = vmul.f32 %v8347, %v6510
        %v8389 = vmul.f32 %v8349, %v6510
        %v8390 = vmul.f32 %v8351, %v6510
        %v8391 = vmul.f32 %v8353, %v6510
        %v8392 = vmul.f32 %v8355, %v6510
        %v8393 = vmul.f32 %v8357, %v6510
        %v8394 = vmul.f32 %v8359, %v6510
        %v8395 = vmul.f32 %v8361, %v6510
        %v8396 = vmul.f32 %v8363, %v6510
        %v8397 = vmul.f32 %v8365, %v6510
        %v8398 = vsub.f32 %v8270, %v8366
        %v8399 = vsub.f32 %v8271, %v8367
        %v8400 = vsub.f32 %v8272, %v8368
        %v8401 = vsub.f32 %v8273, %v8369
        %v8402 = vsub.f32 %v8274, %v8370
        %v8403 = vsub.f32 %v8275, %v8371
        %v8404 = vsub.f32 %v8276, %v8372
        %v8405 = vsub.f32 %v8277, %v8373
        %v8406 = vsub.f32 %v8278, %v8374
        %v8407 = vsub.f32 %v8279, %v8375
        %v8408 = vsub.f32 %v8280, %v8376
        %v8409 = vsub.f32 %v8281, %v8377
        %v8410 = vsub.f32 %v8282, %v8378
        %v8411 = vsub.f32 %v8283, %v8379
        %v8412 = vsub.f32 %v8284, %v8380
        %v8413 = vsub.f32 %v8285, %v8381
        %v8414 = vsub.f32 %v8286, %v8382
        %v8415 = vsub.f32 %v8287, %v8383
        %v8416 = vsub.f32 %v8288, %v8384
        %v8417 = vsub.f32 %v8289, %v8385
        %v8418 = vsub.f32 %v8290, %v8386
        %v8419 = vsub.f32 %v8291, %v8387
        %v8420 = vsub.f32 %v8292, %v8388
        %v8421 = vsub.f32 %v8293, %v8389
        %v8422 = vsub.f32 %v8294, %v8390
        %v8423 = vsub.f32 %v8295, %v8391
        %v8424 = vsub.f32 %v8296, %v8392
        %v8425 = vsub.f32 %v8297, %v8393
        %v8426 = vsub.f32 %v8298, %v8394
        %v8427 = vsub.f32 %v8299, %v8395
        %v8428 = vsub.f32 %v8300, %v8396
        %v8429 = vsub.f32 %v8301, %v8397
        %v8430 = vmul.f32 %v8398, %v8398
        %v8431 = vmul.f32 %v8399, %v8399
        %v8432 = vmul.f32 %v8400, %v8400
        %v8433 = vmul.f32 %v8401, %v8401
        %v8434 = vmul.f32 %v8402, %v8402
        %v8435 = vmul.f32 %v8403, %v8403
        %v8436 = vmul.f32 %v8404, %v8404
        %v8437 = vmul.f32 %v8405, %v8405
        %v8438 = vmul.f32 %v8406, %v8406
        %v8439 = vmul.f32 %v8407, %v8407
        %v8440 = vmul.f32 %v8408, %v8408
        %v8441 = vmul.f32 %v8409, %v8409
        %v8442 = vmul.f32 %v8410, %v8410
        %v8443 = vmul.f32 %v8411, %v8411
        %v8444 = vmul.f32 %v8412, %v8412
        %v8445 = vmul.f32 %v8413, %v8413
        %v8446 = vmul.f32 %v8414, %v8414
        %v8447 = vmul.f32 %v8415, %v8415
        %v8448 = vmul.f32 %v8416, %v8416
        %v8449 = vmul.f32 %v8417, %v8417
        %v8450 = vmul.f32 %v8418, %v8418
        %v8451 = vmul.f32 %v8419, %v8419
        %v8452 = vmul.f32 %v8420, %v8420
        %v8453 = vmul.f32 %v8421, %v8421
        %v8454 = vmul.f32 %v8422, %v8422
        %v8455 = vmul.f32 %v8423, %v8423
        %v8456 = vmul.f32 %v8424, %v8424
        %v8457 = vmul.f32 %v8425, %v8425
        %v8458 = vmul.f32 %v8426, %v8426
        %v8459 = vmul.f32 %v8427, %v8427
        %v8460 = vmul.f32 %v8428, %v8428
        %v8461 = vmul.f32 %v8429, %v8429
        %8462 = vadd.xlane.f32.xlu0 %v8430
        %v8463 = vpop.xlane.xlu0 %8462
        %8464 = vadd.xlane.f32.xlu0 %v8431
        %v8465 = vpop.xlane.xlu0 %8464
        %8466 = vadd.xlane.f32.xlu0 %v8432
        %v8467 = vpop.xlane.xlu0 %8466
        %8468 = vadd.xlane.f32.xlu0 %v8433
        %v8469 = vpop.xlane.xlu0 %8468
        %8470 = vadd.xlane.f32.xlu0 %v8434
        %v8471 = vpop.xlane.xlu0 %8470
        %8472 = vadd.xlane.f32.xlu0 %v8435
        %v8473 = vpop.xlane.xlu0 %8472
        %8474 = vadd.xlane.f32.xlu0 %v8436
        %v8475 = vpop.xlane.xlu0 %8474
        %8476 = vadd.xlane.f32.xlu0 %v8437
        %v8477 = vpop.xlane.xlu0 %8476
        %8478 = vadd.xlane.f32.xlu0 %v8438
        %v8479 = vpop.xlane.xlu0 %8478
        %8480 = vadd.xlane.f32.xlu0 %v8439
        %v8481 = vpop.xlane.xlu0 %8480
        %8482 = vadd.xlane.f32.xlu0 %v8440
        %v8483 = vpop.xlane.xlu0 %8482
        %8484 = vadd.xlane.f32.xlu0 %v8441
        %v8485 = vpop.xlane.xlu0 %8484
        %8486 = vadd.xlane.f32.xlu0 %v8442
        %v8487 = vpop.xlane.xlu0 %8486
        %8488 = vadd.xlane.f32.xlu0 %v8443
        %v8489 = vpop.xlane.xlu0 %8488
        %8490 = vadd.xlane.f32.xlu0 %v8444
        %v8491 = vpop.xlane.xlu0 %8490
        %8492 = vadd.xlane.f32.xlu0 %v8445
        %v8493 = vpop.xlane.xlu0 %8492
        %8494 = vadd.xlane.f32.xlu0 %v8446
        %v8495 = vpop.xlane.xlu0 %8494
        %8496 = vadd.xlane.f32.xlu0 %v8447
        %v8497 = vpop.xlane.xlu0 %8496
        %8498 = vadd.xlane.f32.xlu0 %v8448
        %v8499 = vpop.xlane.xlu0 %8498
        %8500 = vadd.xlane.f32.xlu0 %v8449
        %v8501 = vpop.xlane.xlu0 %8500
        %8502 = vadd.xlane.f32.xlu0 %v8450
        %v8503 = vpop.xlane.xlu0 %8502
        %8504 = vadd.xlane.f32.xlu0 %v8451
        %v8505 = vpop.xlane.xlu0 %8504
        %8506 = vadd.xlane.f32.xlu0 %v8452
        %v8507 = vpop.xlane.xlu0 %8506
        %8508 = vadd.xlane.f32.xlu0 %v8453
        %v8509 = vpop.xlane.xlu0 %8508
        %8510 = vadd.xlane.f32.xlu0 %v8454
        %v8511 = vpop.xlane.xlu0 %8510
        %8512 = vadd.xlane.f32.xlu0 %v8455
        %v8513 = vpop.xlane.xlu0 %8512
        %8514 = vadd.xlane.f32.xlu0 %v8456
        %v8515 = vpop.xlane.xlu0 %8514
        %8516 = vadd.xlane.f32.xlu0 %v8457
        %v8517 = vpop.xlane.xlu0 %8516
        %8518 = vadd.xlane.f32.xlu0 %v8458
        %v8519 = vpop.xlane.xlu0 %8518
        %8520 = vadd.xlane.f32.xlu0 %v8459
        %v8521 = vpop.xlane.xlu0 %8520
        %8522 = vadd.xlane.f32.xlu0 %v8460
        %v8523 = vpop.xlane.xlu0 %8522
        %8524 = vadd.xlane.f32.xlu0 %v8461
        %v8525 = vpop.xlane.xlu0 %8524
        %v8526 = vmul.f32 %v8463, %v6510
        %v8527 = vmul.f32 %v8465, %v6510
        %v8528 = vmul.f32 %v8467, %v6510
        %v8529 = vmul.f32 %v8469, %v6510
        %v8530 = vmul.f32 %v8471, %v6510
        %v8531 = vmul.f32 %v8473, %v6510
        %v8532 = vmul.f32 %v8475, %v6510
        %v8533 = vmul.f32 %v8477, %v6510
        %v8534 = vmul.f32 %v8479, %v6510
        %v8535 = vmul.f32 %v8481, %v6510
        %v8536 = vmul.f32 %v8483, %v6510
        %v8537 = vmul.f32 %v8485, %v6510
        %v8538 = vmul.f32 %v8487, %v6510
        %v8539 = vmul.f32 %v8489, %v6510
        %v8540 = vmul.f32 %v8491, %v6510
        %v8541 = vmul.f32 %v8493, %v6510
        %v8542 = vmul.f32 %v8495, %v6510
        %v8543 = vmul.f32 %v8497, %v6510
        %v8544 = vmul.f32 %v8499, %v6510
        %v8545 = vmul.f32 %v8501, %v6510
        %v8546 = vmul.f32 %v8503, %v6510
        %v8547 = vmul.f32 %v8505, %v6510
        %v8548 = vmul.f32 %v8507, %v6510
        %v8549 = vmul.f32 %v8509, %v6510
        %v8550 = vmul.f32 %v8511, %v6510
        %v8551 = vmul.f32 %v8513, %v6510
        %v8552 = vmul.f32 %v8515, %v6510
        %v8553 = vmul.f32 %v8517, %v6510
        %v8554 = vmul.f32 %v8519, %v6510
        %v8555 = vmul.f32 %v8521, %v6510
        %v8556 = vmul.f32 %v8523, %v6510
        %v8557 = vmul.f32 %v8525, %v6510
        %v8558 = vadd.f32 %v8526, 1e-05
        %v8559 = vadd.f32 %v8527, 1e-05
        %v8560 = vadd.f32 %v8528, 1e-05
        %v8561 = vadd.f32 %v8529, 1e-05
        %v8562 = vadd.f32 %v8530, 1e-05
        %v8563 = vadd.f32 %v8531, 1e-05
        %v8564 = vadd.f32 %v8532, 1e-05
        %v8565 = vadd.f32 %v8533, 1e-05
        %v8566 = vadd.f32 %v8534, 1e-05
        %v8567 = vadd.f32 %v8535, 1e-05
        %v8568 = vadd.f32 %v8536, 1e-05
        %v8569 = vadd.f32 %v8537, 1e-05
        %v8570 = vadd.f32 %v8538, 1e-05
        %v8571 = vadd.f32 %v8539, 1e-05
        %v8572 = vadd.f32 %v8540, 1e-05
        %v8573 = vadd.f32 %v8541, 1e-05
        %v8574 = vadd.f32 %v8542, 1e-05
        %v8575 = vadd.f32 %v8543, 1e-05
        %v8576 = vadd.f32 %v8544, 1e-05
        %v8577 = vadd.f32 %v8545, 1e-05
        %v8578 = vadd.f32 %v8546, 1e-05
        %v8579 = vadd.f32 %v8547, 1e-05
        %v8580 = vadd.f32 %v8548, 1e-05
        %v8581 = vadd.f32 %v8549, 1e-05
        %v8582 = vadd.f32 %v8550, 1e-05
        %v8583 = vadd.f32 %v8551, 1e-05
        %v8584 = vadd.f32 %v8552, 1e-05
        %v8585 = vadd.f32 %v8553, 1e-05
        %v8586 = vadd.f32 %v8554, 1e-05
        %v8587 = vadd.f32 %v8555, 1e-05
        %v8588 = vadd.f32 %v8556, 1e-05
        %v8589 = vadd.f32 %v8557, 1e-05
        %v8590 = vrsqrt.pop %v8558
        %v8591 = vrsqrt.pop %v8559
        %v8592 = vrsqrt.pop %v8560
        %v8593 = vrsqrt.pop %v8561
        %v8594 = vrsqrt.pop %v8562
        %v8595 = vrsqrt.pop %v8563
        %v8596 = vrsqrt.pop %v8564
        %v8597 = vrsqrt.pop %v8565
        %v8598 = vrsqrt.pop %v8566
        %v8599 = vrsqrt.pop %v8567
        %v8600 = vrsqrt.pop %v8568
        %v8601 = vrsqrt.pop %v8569
        %v8602 = vrsqrt.pop %v8570
        %v8603 = vrsqrt.pop %v8571
        %v8604 = vrsqrt.pop %v8572
        %v8605 = vrsqrt.pop %v8573
        %v8606 = vrsqrt.pop %v8574
        %v8607 = vrsqrt.pop %v8575
        %v8608 = vrsqrt.pop %v8576
        %v8609 = vrsqrt.pop %v8577
        %v8610 = vrsqrt.pop %v8578
        %v8611 = vrsqrt.pop %v8579
        %v8612 = vrsqrt.pop %v8580
        %v8613 = vrsqrt.pop %v8581
        %v8614 = vrsqrt.pop %v8582
        %v8615 = vrsqrt.pop %v8583
        %v8616 = vrsqrt.pop %v8584
        %v8617 = vrsqrt.pop %v8585
        %v8618 = vrsqrt.pop %v8586
        %v8619 = vrsqrt.pop %v8587
        %v8620 = vrsqrt.pop %v8588
        %v8621 = vrsqrt.pop %v8589
        %v8622 = vmul.f32 %v8398, %v8590
        %v8623 = vmul.f32 %v8399, %v8591
        %v8624 = vmul.f32 %v8400, %v8592
        %v8625 = vmul.f32 %v8401, %v8593
        %v8626 = vmul.f32 %v8402, %v8594
        %v8627 = vmul.f32 %v8403, %v8595
        %v8628 = vmul.f32 %v8404, %v8596
        %v8629 = vmul.f32 %v8405, %v8597
        %v8630 = vmul.f32 %v8406, %v8598
        %v8631 = vmul.f32 %v8407, %v8599
        %v8632 = vmul.f32 %v8408, %v8600
        %v8633 = vmul.f32 %v8409, %v8601
        %v8634 = vmul.f32 %v8410, %v8602
        %v8635 = vmul.f32 %v8411, %v8603
        %v8636 = vmul.f32 %v8412, %v8604
        %v8637 = vmul.f32 %v8413, %v8605
        %v8638 = vmul.f32 %v8414, %v8606
        %v8639 = vmul.f32 %v8415, %v8607
        %v8640 = vmul.f32 %v8416, %v8608
        %v8641 = vmul.f32 %v8417, %v8609
        %v8642 = vmul.f32 %v8418, %v8610
        %v8643 = vmul.f32 %v8419, %v8611
        %v8644 = vmul.f32 %v8420, %v8612
        %v8645 = vmul.f32 %v8421, %v8613
        %v8646 = vmul.f32 %v8422, %v8614
        %v8647 = vmul.f32 %v8423, %v8615
        %v8648 = vmul.f32 %v8424, %v8616
        %v8649 = vmul.f32 %v8425, %v8617
        %v8650 = vmul.f32 %v8426, %v8618
        %v8651 = vmul.f32 %v8427, %v8619
        %v8652 = vmul.f32 %v8428, %v8620
        %v8653 = vmul.f32 %v8429, %v8621
        %v8654 = vld [vmem:[%s18] sm:$0x1]
        %v8656 = vlaneseq
        %v8657 = vshrl.u32 %v8656, 7
        %v8658 = vsub.s32 0, %v8657
        %v8659 = vrot.slane %v8654, %v8658
        %v8661 = vmul.f32 %v8622, %v8659
        %v8662 = vmul.f32 %v8623, %v8659
        %v8663 = vmul.f32 %v8624, %v8659
        %v8664 = vmul.f32 %v8625, %v8659
        %v8665 = vmul.f32 %v8626, %v8659
        %v8666 = vmul.f32 %v8627, %v8659
        %v8667 = vmul.f32 %v8628, %v8659
        %v8668 = vmul.f32 %v8629, %v8659
        %v8669 = vmul.f32 %v8630, %v8659
        %v8670 = vmul.f32 %v8631, %v8659
        %v8671 = vmul.f32 %v8632, %v8659
        %v8672 = vmul.f32 %v8633, %v8659
        %v8673 = vmul.f32 %v8634, %v8659
        %v8674 = vmul.f32 %v8635, %v8659
        %v8675 = vmul.f32 %v8636, %v8659
        %v8676 = vmul.f32 %v8637, %v8659
        %v8677 = vmul.f32 %v8638, %v8659
        %v8678 = vmul.f32 %v8639, %v8659
        %v8679 = vmul.f32 %v8640, %v8659
        %v8680 = vmul.f32 %v8641, %v8659
        %v8681 = vmul.f32 %v8642, %v8659
        %v8682 = vmul.f32 %v8643, %v8659
        %v8683 = vmul.f32 %v8644, %v8659
        %v8684 = vmul.f32 %v8645, %v8659
        %v8685 = vmul.f32 %v8646, %v8659
        %v8686 = vmul.f32 %v8647, %v8659
        %v8687 = vmul.f32 %v8648, %v8659
        %v8688 = vmul.f32 %v8649, %v8659
        %v8689 = vmul.f32 %v8650, %v8659
        %v8690 = vmul.f32 %v8651, %v8659
        %v8691 = vmul.f32 %v8652, %v8659
        %v8692 = vmul.f32 %v8653, %v8659
        %v8693 = vld [vmem:[%s19] sm:$0x1]
        %v8695 = vlaneseq
        %v8696 = vshrl.u32 %v8695, 7
        %v8697 = vsub.s32 0, %v8696
        %v8698 = vrot.slane %v8693, %v8697
        %v8700 = vadd.f32 %v8661, %v8698
        %v8701 = vadd.f32 %v8662, %v8698
        %v8702 = vadd.f32 %v8663, %v8698
        %v8703 = vadd.f32 %v8664, %v8698
        %v8704 = vadd.f32 %v8665, %v8698
        %v8705 = vadd.f32 %v8666, %v8698
        %v8706 = vadd.f32 %v8667, %v8698
        %v8707 = vadd.f32 %v8668, %v8698
        %v8708 = vadd.f32 %v8669, %v8698
        %v8709 = vadd.f32 %v8670, %v8698
        %v8710 = vadd.f32 %v8671, %v8698
        %v8711 = vadd.f32 %v8672, %v8698
        %v8712 = vadd.f32 %v8673, %v8698
        %v8713 = vadd.f32 %v8674, %v8698
        %v8714 = vadd.f32 %v8675, %v8698
        %v8715 = vadd.f32 %v8676, %v8698
        %v8716 = vadd.f32 %v8677, %v8698
        %v8717 = vadd.f32 %v8678, %v8698
        %v8718 = vadd.f32 %v8679, %v8698
        %v8719 = vadd.f32 %v8680, %v8698
        %v8720 = vadd.f32 %v8681, %v8698
        %v8721 = vadd.f32 %v8682, %v8698
        %v8722 = vadd.f32 %v8683, %v8698
        %v8723 = vadd.f32 %v8684, %v8698
        %v8724 = vadd.f32 %v8685, %v8698
        %v8725 = vadd.f32 %v8686, %v8698
        %v8726 = vadd.f32 %v8687, %v8698
        %v8727 = vadd.f32 %v8688, %v8698
        %v8728 = vadd.f32 %v8689, %v8698
        %v8729 = vadd.f32 %v8690, %v8698
        %v8730 = vadd.f32 %v8691, %v8698
        %v8731 = vadd.f32 %v8692, %v8698
        %v8732 = vpack.c.bf16 %v8701, %v8700
        %v8733 = vpack.c.bf16 %v8703, %v8702
        %v8734 = vpack.c.bf16 %v8705, %v8704
        %v8735 = vpack.c.bf16 %v8707, %v8706
        %v8736 = vpack.c.bf16 %v8709, %v8708
        %v8737 = vpack.c.bf16 %v8711, %v8710
        %v8738 = vpack.c.bf16 %v8713, %v8712
        %v8739 = vpack.c.bf16 %v8715, %v8714
        %v8740 = vpack.c.bf16 %v8717, %v8716
        %v8741 = vpack.c.bf16 %v8719, %v8718
        %v8742 = vpack.c.bf16 %v8721, %v8720
        %v8743 = vpack.c.bf16 %v8723, %v8722
        %v8744 = vpack.c.bf16 %v8725, %v8724
        %v8745 = vpack.c.bf16 %v8727, %v8726
        %v8746 = vpack.c.bf16 %v8729, %v8728
        %v8747 = vpack.c.bf16 %v8731, %v8730
        %v8748 = vld [vmem:[%s20] sm:$0xf]
        %v8749 = vld [vmem:[%s20 + $0x4] sm:$0xf]
        %v8750 = vld [vmem:[%s20 + $0x8] sm:$0xf]
        %v8751 = vld [vmem:[%s20 + $0xc] sm:$0xf]
        %v8752 = vld [vmem:[%s20 + $0x10] sm:$0xf]
        %v8753 = vld [vmem:[%s20 + $0x14] sm:$0xf]
        %v8754 = vld [vmem:[%s20 + $0x18] sm:$0xf]
        %v8755 = vld [vmem:[%s20 + $0x1c] sm:$0xf]
        %v8756 = vld [vmem:[%s20 + $0x20] sm:$0xf]
        %v8757 = vld [vmem:[%s20 + $0x24] sm:$0xf]
        %v8758 = vld [vmem:[%s20 + $0x28] sm:$0xf]
        %v8759 = vld [vmem:[%s20 + $0x2c] sm:$0xf]
        %v8760 = vld [vmem:[%s20 + $0x30] sm:$0xf]
        %v8761 = vld [vmem:[%s20 + $0x34] sm:$0xf]
        %v8762 = vld [vmem:[%s20 + $0x38] sm:$0xf]
        %v8763 = vld [vmem:[%s20 + $0x3c] sm:$0xf]
        %v8764 = vld [vmem:[%s21] sm:$0x1]
        %v8766 = vlaneseq
        %v8767 = vshrl.u32 %v8766, 7
        %v8768 = vsub.s32 0, %v8767
        %v8769 = vrot.slane %v8764, %v8768
        %v8787 = vunpack.c.l.b16 %v8748
        %v8788 = vunpack.c.l.b16 %v8749
        %v8789 = vunpack.c.l.b16 %v8750
        %v8790 = vunpack.c.l.b16 %v8751
        %v8791 = vunpack.c.l.b16 %v8752
        %v8792 = vunpack.c.l.b16 %v8753
        %v8793 = vunpack.c.l.b16 %v8754
        %v8794 = vunpack.c.l.b16 %v8755
        %v8795 = vunpack.c.l.b16 %v8756
        %v8796 = vunpack.c.l.b16 %v8757
        %v8797 = vunpack.c.l.b16 %v8758
        %v8798 = vunpack.c.l.b16 %v8759
        %v8799 = vunpack.c.l.b16 %v8760
        %v8800 = vunpack.c.l.b16 %v8761
        %v8801 = vunpack.c.l.b16 %v8762
        %v8802 = vunpack.c.l.b16 %v8763
        %v8803 = vpack.c.b16 %v8788, %v8787
        %v8804 = vpack.c.b16 %v8790, %v8789
        %v8805 = vpack.c.b16 %v8792, %v8791
        %v8806 = vpack.c.b16 %v8794, %v8793
        %v8807 = vpack.c.b16 %v8796, %v8795
        %v8808 = vpack.c.b16 %v8798, %v8797
        %v8809 = vpack.c.b16 %v8800, %v8799
        %v8810 = vpack.c.b16 %v8802, %v8801
        %8819 = vmatprep.subr.bf16.mxu0 0
        %8820 = vmatpush1.bf16.msra.mxu0 %v8803
        %8821 = vmatprep.subr.bf16.mxu0 0
        %8822 = vmatpush1.bf16.msra.mxu0 %v8804
        %8823 = vmatprep.subr.bf16.mxu0 0
        %8824 = vmatpush1.bf16.msra.mxu0 %v8805
        %8825 = vmatprep.subr.bf16.mxu0 0
        %8826 = vmatpush1.bf16.msra.mxu0 %v8806
        %8827 = vmatprep.subr.bf16.mxu0 0
        %8828 = vmatpush1.bf16.msra.mxu0 %v8807
        %8829 = vmatprep.subr.bf16.mxu0 0
        %8830 = vmatpush1.bf16.msra.mxu0 %v8808
        %8831 = vmatprep.subr.bf16.mxu0 0
        %8832 = vmatpush1.bf16.msra.mxu0 %v8809
        %8833 = vmatprep.subr.bf16.mxu0 0
        %8834 = vmatpush1.bf16.msra.mxu0 %v8810
        %8835 = vmatprep.subr.bf16.mxu0 0
        %8836 = vmatpush1.bf16.msra.mxu0 0
        %8837 = vmatprep.subr.bf16.mxu0 0
        %8838 = vmatpush1.bf16.msra.mxu0 0
        %8839 = vmatprep.subr.bf16.mxu0 0
        %8840 = vmatpush1.bf16.msra.mxu0 0
        %8841 = vmatprep.subr.bf16.mxu0 0
        %8842 = vmatpush1.bf16.msra.mxu0 0
        %8843 = vmatprep.subr.bf16.mxu0 0
        %8844 = vmatpush1.bf16.msra.mxu0 0
        %8845 = vmatprep.subr.bf16.mxu0 0
        %8846 = vmatpush1.bf16.msra.mxu0 0
        %8847 = vmatprep.subr.bf16.mxu0 0
        %8848 = vmatpush1.bf16.msra.mxu0 0
        %8849 = vmatprep.subr.bf16.mxu0 0
        %8850 = vmatpush1.bf16.msra.mxu0 0
        %8851 = vmatprep.mubr.bf16.mxu0 0
        %8852 = vmatmul.mubr.bf16.gmra.mrb[0].mxu0 %v8732
        %v8853 = vpop.f32.mrb[0].mxu0
        %v8854 = vadd.f32 %v8769, %v8853
        %v8855 = vpop.f32.mrb[0].mxu0
        %v8856 = vpop.f32.mrb[0].mxu0
        %v8857 = vadd.f32 %v8769, %v8856
        %v8858 = vpop.f32.mrb[0].mxu0
        %8859 = vmatprep.mubr.bf16.mxu0 0
        %8860 = vmatmul.mubr.bf16.gmra.mrb[0].mxu0 %v8733
        %v8861 = vpop.f32.mrb[0].mxu0
        %v8862 = vadd.f32 %v8769, %v8861
        %v8863 = vpop.f32.mrb[0].mxu0
        %v8864 = vpop.f32.mrb[0].mxu0
        %v8865 = vadd.f32 %v8769, %v8864
        %v8866 = vpop.f32.mrb[0].mxu0
        %8867 = vmatprep.mubr.bf16.mxu0 0
        %8868 = vmatmul.mubr.bf16.gmra.mrb[0].mxu0 %v8734
        %v8869 = vpop.f32.mrb[0].mxu0
        %v8870 = vadd.f32 %v8769, %v8869
        %v8871 = vpop.f32.mrb[0].mxu0
        %v8872 = vpop.f32.mrb[0].mxu0
        %v8873 = vadd.f32 %v8769, %v8872
        %v8874 = vpop.f32.mrb[0].mxu0
        %8875 = vmatprep.mubr.bf16.mxu0 0
        %8876 = vmatmul.mubr.bf16.gmra.mrb[0].mxu0 %v8735
        %v8877 = vpop.f32.mrb[0].mxu0
        %v8878 = vadd.f32 %v8769, %v8877
        %v8879 = vpop.f32.mrb[0].mxu0
        %v8880 = vpop.f32.mrb[0].mxu0
        %v8881 = vadd.f32 %v8769, %v8880
        %v8882 = vpop.f32.mrb[0].mxu0
        %8883 = vmatprep.mubr.bf16.mxu0 0
        %8884 = vmatmul.mubr.bf16.gmra.mrb[0].mxu0 %v8736
        %v8885 = vpop.f32.mrb[0].mxu0
        %v8886 = vadd.f32 %v8769, %v8885
        %v8887 = vpop.f32.mrb[0].mxu0
        %v8888 = vpop.f32.mrb[0].mxu0
        %v8889 = vadd.f32 %v8769, %v8888
        %v8890 = vpop.f32.mrb[0].mxu0
        %8891 = vmatprep.mubr.bf16.mxu0 0
        %8892 = vmatmul.mubr.bf16.gmra.mrb[0].mxu0 %v8737
        %v8893 = vpop.f32.mrb[0].mxu0
        %v8894 = vadd.f32 %v8769, %v8893
        %v8895 = vpop.f32.mrb[0].mxu0
        %v8896 = vpop.f32.mrb[0].mxu0
        %v8897 = vadd.f32 %v8769, %v8896
        %v8898 = vpop.f32.mrb[0].mxu0
        %8899 = vmatprep.mubr.bf16.mxu0 0
        %8900 = vmatmul.mubr.bf16.gmra.mrb[0].mxu0 %v8738
        %v8901 = vpop.f32.mrb[0].mxu0
        %v8902 = vadd.f32 %v8769, %v8901
        %v8903 = vpop.f32.mrb[0].mxu0
        %v8904 = vpop.f32.mrb[0].mxu0
        %v8905 = vadd.f32 %v8769, %v8904
        %v8906 = vpop.f32.mrb[0].mxu0
        %8907 = vmatprep.mubr.bf16.mxu0 0
        %8908 = vmatmul.mubr.bf16.gmra.mrb[0].mxu0 %v8739
        %v8909 = vpop.f32.mrb[0].mxu0
        %v8910 = vadd.f32 %v8769, %v8909
        %v8911 = vpop.f32.mrb[0].mxu0
        %v8912 = vpop.f32.mrb[0].mxu0
        %v8913 = vadd.f32 %v8769, %v8912
        %v8914 = vpop.f32.mrb[0].mxu0
        %8915 = vmatprep.mubr.bf16.mxu0 0
        %8916 = vmatmul.mubr.bf16.gmra.mrb[0].mxu0 %v8740
        %v8917 = vpop.f32.mrb[0].mxu0
        %v8918 = vadd.f32 %v8769, %v8917
        %v8919 = vpop.f32.mrb[0].mxu0
        %v8920 = vpop.f32.mrb[0].mxu0
        %v8921 = vadd.f32 %v8769, %v8920
        %v8922 = vpop.f32.mrb[0].mxu0
        %8923 = vmatprep.mubr.bf16.mxu0 0
        %8924 = vmatmul.mubr.bf16.gmra.mrb[0].mxu0 %v8741
        %v8925 = vpop.f32.mrb[0].mxu0
        %v8926 = vadd.f32 %v8769, %v8925
        %v8927 = vpop.f32.mrb[0].mxu0
        %v8928 = vpop.f32.mrb[0].mxu0
        %v8929 = vadd.f32 %v8769, %v8928
        %v8930 = vpop.f32.mrb[0].mxu0
        %8931 = vmatprep.mubr.bf16.mxu0 0
        %8932 = vmatmul.mubr.bf16.gmra.mrb[0].mxu0 %v8742
        %v8933 = vpop.f32.mrb[0].mxu0
        %v8934 = vadd.f32 %v8769, %v8933
        %v8935 = vpop.f32.mrb[0].mxu0
        %v8936 = vpop.f32.mrb[0].mxu0
        %v8937 = vadd.f32 %v8769, %v8936
        %v8938 = vpop.f32.mrb[0].mxu0
        %8939 = vmatprep.mubr.bf16.mxu0 0
        %8940 = vmatmul.mubr.bf16.gmra.mrb[0].mxu0 %v8743
        %v8941 = vpop.f32.mrb[0].mxu0
        %v8942 = vadd.f32 %v8769, %v8941
        %v8943 = vpop.f32.mrb[0].mxu0
        %v8944 = vpop.f32.mrb[0].mxu0
        %v8945 = vadd.f32 %v8769, %v8944
        %v8946 = vpop.f32.mrb[0].mxu0
        %8947 = vmatprep.mubr.bf16.mxu0 0
        %8948 = vmatmul.mubr.bf16.gmra.mrb[0].mxu0 %v8744
        %v8949 = vpop.f32.mrb[0].mxu0
        %v8950 = vadd.f32 %v8769, %v8949
        %v8951 = vpop.f32.mrb[0].mxu0
        %v8952 = vpop.f32.mrb[0].mxu0
        %v8953 = vadd.f32 %v8769, %v8952
        %v8954 = vpop.f32.mrb[0].mxu0
        %8955 = vmatprep.mubr.bf16.mxu0 0
        %8956 = vmatmul.mubr.bf16.gmra.mrb[0].mxu0 %v8745
        %v8957 = vpop.f32.mrb[0].mxu0
        %v8958 = vadd.f32 %v8769, %v8957
        %v8959 = vpop.f32.mrb[0].mxu0
        %v8960 = vpop.f32.mrb[0].mxu0
        %v8961 = vadd.f32 %v8769, %v8960
        %v8962 = vpop.f32.mrb[0].mxu0
        %8963 = vmatprep.mubr.bf16.mxu0 0
        %8964 = vmatmul.mubr.bf16.gmra.mrb[0].mxu0 %v8746
        %v8965 = vpop.f32.mrb[0].mxu0
        %v8966 = vadd.f32 %v8769, %v8965
        %v8967 = vpop.f32.mrb[0].mxu0
        %v8968 = vpop.f32.mrb[0].mxu0
        %v8969 = vadd.f32 %v8769, %v8968
        %v8970 = vpop.f32.mrb[0].mxu0
        %8971 = vmatprep.mubr.bf16.mxu0 0
        %8972 = vmatmul.mubr.bf16.gmra.mrb[0].mxu0 %v8747
        %v8973 = vpop.f32.mrb[0].mxu0
        %v8974 = vadd.f32 %v8769, %v8973
        %v8975 = vpop.f32.mrb[0].mxu0
        %v8976 = vpop.f32.mrb[0].mxu0
        %v8977 = vadd.f32 %v8769, %v8976
        %v8978 = vpop.f32.mrb[0].mxu0
        %8979 = vdwg.mxu0
        %8980 = vst [vmem:[%s940] sm:$0xff] %v8854
        %8981 = vst [vmem:[%s940 + $0x8] sm:$0xff] %v8857
        %8982 = vst [vmem:[%s940 + $0x10] sm:$0xff] %v8862
        %8983 = vst [vmem:[%s940 + $0x18] sm:$0xff] %v8865
        %8984 = vst [vmem:[%s940 + $0x20] sm:$0xff] %v8870
        %8985 = vst [vmem:[%s940 + $0x28] sm:$0xff] %v8873
        %8986 = vst [vmem:[%s940 + $0x30] sm:$0xff] %v8878
        %8987 = vst [vmem:[%s940 + $0x38] sm:$0xff] %v8881
        %8988 = vst [vmem:[%s940 + $0x40] sm:$0xff] %v8886
        %8989 = vst [vmem:[%s940 + $0x48] sm:$0xff] %v8889
        %8990 = vst [vmem:[%s940 + $0x50] sm:$0xff] %v8894
        %8991 = vst [vmem:[%s940 + $0x58] sm:$0xff] %v8897
        %8992 = vst [vmem:[%s940 + $0x60] sm:$0xff] %v8902
        %8993 = vst [vmem:[%s940 + $0x68] sm:$0xff] %v8905
        %8994 = vst [vmem:[%s940 + $0x70] sm:$0xff] %v8910
        %8995 = vst [vmem:[%s940 + $0x78] sm:$0xff] %v8913
        %8996 = vst [vmem:[%s940 + $0x80] sm:$0xff] %v8918
        %8997 = vst [vmem:[%s940 + $0x88] sm:$0xff] %v8921
        %8998 = vst [vmem:[%s940 + $0x90] sm:$0xff] %v8926
        %8999 = vst [vmem:[%s940 + $0x98] sm:$0xff] %v8929
        %9000 = vst [vmem:[%s940 + $0xa0] sm:$0xff] %v8934
        %9001 = vst [vmem:[%s940 + $0xa8] sm:$0xff] %v8937
        %9002 = vst [vmem:[%s940 + $0xb0] sm:$0xff] %v8942
        %9003 = vst [vmem:[%s940 + $0xb8] sm:$0xff] %v8945
        %9004 = vst [vmem:[%s940 + $0xc0] sm:$0xff] %v8950
        %9005 = vst [vmem:[%s940 + $0xc8] sm:$0xff] %v8953
        %9006 = vst [vmem:[%s940 + $0xd0] sm:$0xff] %v8958
        %9007 = vst [vmem:[%s940 + $0xd8] sm:$0xff] %v8961
        %9008 = vst [vmem:[%s940 + $0xe0] sm:$0xff] %v8966
        %9009 = vst [vmem:[%s940 + $0xe8] sm:$0xff] %v8969
        %9010 = vst [vmem:[%s940 + $0xf0] sm:$0xff] %v8974
        %9011 = vst [vmem:[%s940 + $0xf8] sm:$0xff] %v8977
        %s9012 = sand.u32 %s528, 1
        %s9013 = scalar_lea.sflag [#allocation4], %s9012
        %s9014 = sand.u32 %s528, 1
        %s9015 = smul.addr %s9014, 256
        %s9016 = scalar_lea.vmem [#allocation26], %s9015
        // Predicated region
        $region169: #{tpu_custom_call.1} parent=107 // pred_check
          %p9017 = pneg %p538
        $region170: #{tpu_custom_call.1} parent=107 // pred_check_branch
          %9019 = sbr.rel (%p9017) target = $region172
        $region171: #{tpu_custom_call.1} parent=107 // pred_region
          %s9020 = smul.u32 32, %s48
          %s9022 = ssub.s32 4096, 4096
          %9023 = vsyncadd %s9013, %s9022
          %s9024 = smul.addr %s9020, 128
          %s9025 = scalar_lea.hbm %s22, %s9024
          %s9026 = sshll.u32 %s9016, 4
          %s9027 = int_to_ptr.vmem [resolvable:$true] %s9026
          %9032 = dma.vmem_to_hbm [thread:$0]  %s9027, 4096, %s9025, %s9013, 128, 128, 8
        $region172: #{tpu_custom_call.1} parent=107 // pred_fallthru
          _
      $region108: #{tpu_custom_call.1} parent=5 // pred_fallthru
        _
      %p9033 = scmp.le.s32.totalorder 2, %s43
      // Predicated region
      $region173: #{tpu_custom_call.1} parent=5 // pred_check
        %p9034 = pneg %p9033
      $region174: #{tpu_custom_call.1} parent=5 // pred_check_branch
        %9036 = sbr.rel (%p9034) target = $region176
      $region175: #{tpu_custom_call.1} parent=5 // pred_region
        %s9037 = ssub.s32 %s43, 2
        // Predicated region
        $region177: #{tpu_custom_call.1} parent=175 // pred_check
          %p9038 = pneg %p544
        $region178: #{tpu_custom_call.1} parent=175 // pred_check_branch
          %9040 = sbr.rel (%p9038) target = $region180
        $region179: #{tpu_custom_call.1} parent=175 // pred_region
          %s9041 = sand.u32 %s529, 1
          %s9042 = scalar_lea.sflag [#allocation4], %s9041
          %s9043 = sand.u32 %s529, 1
          %s9044 = smul.addr %s9043, 256
          %s9045 = scalar_lea.vmem [#allocation26], %s9044
          %9046 = dma.done %s9042, 4096
        $region180: #{tpu_custom_call.1} parent=175 // pred_fallthru
          _
      $region176: #{tpu_custom_call.1} parent=5 // pred_fallthru
        _
    $region6: #{tpu_custom_call.1} parent=1 // loop_footer
      %s47 = sadd.s32 1, %s43
    $region7: #{tpu_custom_call.1} parent=1 // loop_footer_branch
      %42 = sbr.rel target = $region3
    $region8: #{tpu_custom_call.1} parent=1 // loop_exit
      _
    %9047 = vsyncpa [#allocation3], 1
    %s9048 = scalar_lea.sflag [#allocation3], 1
    %9049 = vsyncpa %s9048, 1
    %9050 = vsyncpa [#allocation6], 1
    %s9051 = scalar_lea.sflag [#allocation6], 1
    %9052 = vsyncpa %s9051, 1
    %9053 = vsyncpa [#allocation9], 1
    %9054 = vsyncpa [#allocation12], 1
    %9055 = vsyncpa [#allocation15], 1
    %9056 = vsyncpa [#allocation18], 1
    %9057 = vsyncpa [#allocation21], 1
    %9058 = vsyncpa [#allocation24], 1
    %9059 = vsyncpa [#allocation4], 1
    %s9060 = scalar_lea.sflag [#allocation4], 1
    %9061 = vsyncpa %s9060, 1

</llo_original>
